<compile_context>
chip_gen: v7x
topology: tpu7x:2x2x1
jax: 0.10.0
libtpu: 0.0.40
codegen_flags: <defaults>
</compile_context>

<pallas_src>
import functools

import jax
import jax.numpy as jnp
from jax import lax
from jax.experimental import pallas as pl
from jax.experimental.pallas import tpu as pltpu


# ----------------------------------------------------------------------------
# In-kernel helpers (operate on values in the flattened-lane layout (C, L))
# ----------------------------------------------------------------------------
def _conv3x3_relu_flat(x, wmat, bias, dilation, row_stride):
    """x: (Cin, Lin), spatial flattened as h*row_stride + w (lane dim).
    wmat: (Cout, 9*Cin) with column order (kh, kw, cin).  bias: (Cout, 1).
    Returns (Cout, Lout), Lout = Lin - dilation*(2*row_stride + 2)."""
    cin, lin = x.shape
    lout = lin - dilation * (2 * row_stride + 2)
    pieces = []
    for kh in range(3):
        for kw in range(3):
            off = dilation * (kh * row_stride + kw)
            pieces.append(x[:, off:off + lout])
    patches = jnp.concatenate(pieces, axis=0)                 # (9*Cin, Lout)
    y = lax.dot_general(wmat, patches,
                        dimension_numbers=(((1,), (0,)), ((), ())),
                        preferred_element_type=jnp.float32)   # (Cout, Lout)
    return jnp.maximum(y + bias, 0.0)


def _maxpool2x2_flat(x, dilation, row_stride):
    """2x2 / stride-2 maxpool in flattened layout WITHOUT downsampling: takes
    the window max at every position; consumers read at doubled dilation."""
    c, lin = x.shape
    lout = lin - dilation * (row_stride + 1)

    def win(off):
        return x[:, off:off + lout]

    return jnp.maximum(
        jnp.maximum(win(0), win(dilation)),
        jnp.maximum(win(dilation * row_stride), win(dilation * (row_stride + 1))))


def _tinyvgg_kernel(x_ref, w1_ref, b1_ref, w2_ref, b2_ref, w3_ref, b3_ref,
                    w4_ref, b4_ref, wfc_ref, bfc_ref, o_ref, *,
                    row_stride, out_ch):
    x = x_ref[0]                                              # (Cin_pad, H*W)
    # conv_block_1
    y = _conv3x3_relu_flat(x, w1_ref[...], b1_ref[...], 1, row_stride)
    y = _conv3x3_relu_flat(y, w2_ref[...], b2_ref[...], 1, row_stride)
    y = _maxpool2x2_flat(y, 1, row_stride)
    # conv_block_2 (pooled data lives on a stride-2 sub-grid -> dilation 2)
    y = _conv3x3_relu_flat(y, w3_ref[...], b3_ref[...], 2, row_stride)
    y = _conv3x3_relu_flat(y, w4_ref[...], b4_ref[...], 2, row_stride)
    y = _maxpool2x2_flat(y, 2, row_stride)                    # (C, Lf)

    # classifier: Flatten + Linear.  The gather of the 13x13 surviving lanes
    # is folded into zero-expanded per-class weights wfc_ref: (O, C, Lf).
    # out[o] = sum_{c,l} y[c,l] * wfc[o,c,l]  -> elementwise mult (VPU) plus
    # lane/sublane reductions (XLU); garbage lanes are multiplied by zero.
    logits = []
    for o in range(out_ch):                                   # O is tiny/static
        prod = y * wfc_ref[o]                                 # (C, Lf) VPU
        lane_sum = jnp.sum(prod, axis=1, keepdims=True)       # (C, 1)
        logits.append(jnp.sum(lane_sum, axis=0, keepdims=True))   # (1, 1)
    o_ref[0] = jnp.concatenate(logits, axis=1) + bfc_ref[...]     # (1, O)


# ----------------------------------------------------------------------------
# Wrapper: host-side repacking + a single pallas_call
# ----------------------------------------------------------------------------
def tinyvgg_forward(x_nchw, params):
    N, cin, H, W = x_nchw.shape
    hidden = params["w1"].shape[0]
    out_ch = params["wfc"].shape[0]
    HW = H * W

    # Pad input channels to a sublane multiple so the im2col concat is aligned.
    cin_pad = -(-cin // 8) * 8
    x_flat = jnp.pad(x_nchw.reshape(N, cin, HW),
                     ((0, 0), (0, cin_pad - cin), (0, 0)))

    def conv_wmat(w, cpad):
        cout, c = w.shape[0], w.shape[1]
        w = jnp.pad(w, ((0, 0), (0, cpad - c), (0, 0), (0, 0)))
        # (Cout, Cin, 3, 3) -> (Cout, kh, kw, Cin) -> (Cout, 9*Cin)
        return jnp.transpose(w, (0, 2, 3, 1)).reshape(cout, -1)

    w1m = conv_wmat(params["w1"], cin_pad)
    w2m = conv_wmat(params["w2"], hidden)
    w3m = conv_wmat(params["w3"], hidden)
    w4m = conv_wmat(params["w4"], hidden)
    b1 = params["b1"].reshape(hidden, 1)
    b2 = params["b2"].reshape(hidden, 1)
    b3 = params["b3"].reshape(hidden, 1)
    b4 = params["b4"].reshape(hidden, 1)

    # Flattened-lane length after each stage (mirrors the kernel).
    L = HW
    L -= 1 * (2 * W + 2)        # conv1
    L -= 1 * (2 * W + 2)        # conv2
    L -= 1 * (W + 1)            # pool1
    L -= 2 * (2 * W + 2)        # conv3
    L -= 2 * (2 * W + 2)        # conv4
    L -= 2 * (W + 1)            # pool2
    Lf = L

    Hf = ((H - 4) // 2 - 4) // 2     # 13 for 64x64 input
    Wf = ((W - 4) // 2 - 4) // 2
    # Torch Flatten order is (c, i, j); surviving feature (c, i, j) lives at
    # lane r = 4*i*W + 4*j.  Zero-expand the classifier weight accordingly,
    # laid out as (O, C, Lf) so the kernel contracts it with y elementwise.
    w_r = params["wfc"].reshape(out_ch, hidden, Hf * Wf)          # (O, C, 169)
    r_idx = (4 * jnp.arange(Hf)[:, None] * W
             + 4 * jnp.arange(Wf)[None, :]).reshape(-1)
    wfc_exp = jnp.zeros((out_ch, hidden, Lf), jnp.float32).at[:, :, r_idx].set(w_r)
    bfc = params["bfc"].reshape(1, out_ch)

    kernel = functools.partial(_tinyvgg_kernel, row_stride=W, out_ch=out_ch)
    const2 = lambda n: (0, 0)

    out = pl.pallas_call(
        kernel,
        out_shape=jax.ShapeDtypeStruct((N, 1, out_ch), jnp.float32),
        grid=(N,),
        in_specs=[
            pl.BlockSpec((1, cin_pad, HW), lambda n: (n, 0, 0)),
            pl.BlockSpec(w1m.shape, const2),
            pl.BlockSpec(b1.shape, const2),
            pl.BlockSpec(w2m.shape, const2),
            pl.BlockSpec(b2.shape, const2),
            pl.BlockSpec(w3m.shape, const2),
            pl.BlockSpec(b3.shape, const2),
            pl.BlockSpec(w4m.shape, const2),
            pl.BlockSpec(b4.shape, const2),
            pl.BlockSpec(wfc_exp.shape, lambda n: (0, 0, 0)),
            pl.BlockSpec(bfc.shape, const2),
        ],
        out_specs=pl.BlockSpec((1, 1, out_ch), lambda n: (n, 0, 0)),
        compiler_params=pltpu.CompilerParams(dimension_semantics=("parallel",)),
    )(x_flat, w1m, b1, w2m, b2, w3m, b3, w4m, b4, wfc_exp, bfc)
    return out[:, 0, :]


# ----------------------------------------------------------------------------
# Parameters (PyTorch layouts) and pure-JAX reference
# ----------------------------------------------------------------------------
def init_params(key, in_ch, hidden, out_ch):
    ks = jax.random.split(key, 10)

    def cw(k, cout, cin):
        return 0.1 * jax.random.normal(k, (cout, cin, 3, 3), jnp.float32)

    return {
        "w1": cw(ks[0], hidden, in_ch),
        "b1": 0.01 * jax.random.normal(ks[1], (hidden,), jnp.float32),
        "w2": cw(ks[2], hidden, hidden),
        "b2": 0.01 * jax.random.normal(ks[3], (hidden,), jnp.float32),
        "w3": cw(ks[4], hidden, hidden),
        "b3": 0.01 * jax.random.normal(ks[5], (hidden,), jnp.float32),
        "w4": cw(ks[6], hidden, hidden),
        "b4": 0.01 * jax.random.normal(ks[7], (hidden,), jnp.float32),
        "wfc": 0.05 * jax.random.normal(ks[8], (out_ch, hidden * 13 * 13), jnp.float32),
        "bfc": 0.01 * jax.random.normal(ks[9], (out_ch,), jnp.float32),
    }


def tinyvgg_reference(x, params):
    dn = ("NCHW", "OIHW", "NCHW")

    def conv_relu(x, w, b):
        y = lax.conv_general_dilated(x, w, (1, 1), "VALID", dimension_numbers=dn,
                                     precision=lax.Precision.HIGHEST)
        return jnp.maximum(y + b[None, :, None, None], 0.0)

    def pool(x):
        n, c, h, w = x.shape
        return x.reshape(n, c, h // 2, 2, w // 2, 2).max(axis=(3, 5))

    x = conv_relu(x, params["w1"], params["b1"])
    x = conv_relu(x, params["w2"], params["b2"])
    x = pool(x)
    x = conv_relu(x, params["w3"], params["b3"])
    x = conv_relu(x, params["w4"], params["b4"])
    x = pool(x)
    x = x.reshape(x.shape[0], -1)
    return jnp.dot(x, params["wfc"].T,
                   precision=lax.Precision.HIGHEST) + params["bfc"]


if __name__ == "__main__":
    key = jax.random.PRNGKey(0)
    k_x, k_p = jax.random.split(key)

    # Spatial 64x64 is forced by the classifier's hidden_units*13*13 in_features.
    N, IN_CH, HIDDEN, OUT = 2, 3, 8, 3
    x = jax.random.normal(k_x, (N, IN_CH, 64, 64), jnp.float32)
    params = init_params(k_p, IN_CH, HIDDEN, OUT)

    fwd = jax.jit(tinyvgg_forward)
    out = jax.block_until_ready(fwd(x, params))
    ref = jax.block_until_ready(tinyvgg_reference(x, params))

    assert out.shape == (N, OUT), out.shape
    max_err = float(jnp.max(jnp.abs(out - ref)))
    # Tolerance leaves headroom for MXU f32-emulation rounding vs XLA's conv.
    assert jnp.allclose(out, ref, atol=2e-2, rtol=2e-2), max_err
    print("KERNEL_OK")
</pallas_src>

<mosaic_0001>
module attributes {stable_mosaic.version = 11 : i64} {
  func.func @_tinyvgg_kernel(%arg0: i32, %arg1: memref<1x8x4096xf32, #tpu.memory_space<vmem>>, %arg2: memref<8x72xf32, #tpu.memory_space<vmem>>, %arg3: memref<8x1xf32, #tpu.memory_space<vmem>>, %arg4: memref<8x72xf32, #tpu.memory_space<vmem>>, %arg5: memref<8x1xf32, #tpu.memory_space<vmem>>, %arg6: memref<8x72xf32, #tpu.memory_space<vmem>>, %arg7: memref<8x1xf32, #tpu.memory_space<vmem>>, %arg8: memref<8x72xf32, #tpu.memory_space<vmem>>, %arg9: memref<8x1xf32, #tpu.memory_space<vmem>>, %arg10: memref<3x8x3121xf32, #tpu.memory_space<vmem>>, %arg11: memref<1x3xf32, #tpu.memory_space<vmem>>, %arg12: memref<1x1x3xf32, #tpu.memory_space<vmem>>) attributes {dimension_semantics = [#tpu.dimension_semantics<parallel>], iteration_bounds = array<i64: 2>, scalar_prefetch = 0 : i64, scratch_operands = 0 : i64, tpu.core_type = #tpu.core_type<tc>, window_params = [{transform_indices = @transform_0, window_bounds = array<i64: 1, 8, 4096>}, {pipeline_mode = #tpu.pipeline_mode<synchronous>, transform_indices = @transform_1, window_bounds = array<i64: 8, 72>}, {pipeline_mode = #tpu.pipeline_mode<synchronous>, transform_indices = @transform_2, window_bounds = array<i64: 8, 1>}, {pipeline_mode = #tpu.pipeline_mode<synchronous>, transform_indices = @transform_3, window_bounds = array<i64: 8, 72>}, {pipeline_mode = #tpu.pipeline_mode<synchronous>, transform_indices = @transform_4, window_bounds = array<i64: 8, 1>}, {pipeline_mode = #tpu.pipeline_mode<synchronous>, transform_indices = @transform_5, window_bounds = array<i64: 8, 72>}, {pipeline_mode = #tpu.pipeline_mode<synchronous>, transform_indices = @transform_6, window_bounds = array<i64: 8, 1>}, {pipeline_mode = #tpu.pipeline_mode<synchronous>, transform_indices = @transform_7, window_bounds = array<i64: 8, 72>}, {pipeline_mode = #tpu.pipeline_mode<synchronous>, transform_indices = @transform_8, window_bounds = array<i64: 8, 1>}, {pipeline_mode = #tpu.pipeline_mode<synchronous>, transform_indices = @transform_9, window_bounds = array<i64: 3, 8, 3121>}, {pipeline_mode = #tpu.pipeline_mode<synchronous>, transform_indices = @transform_10, window_bounds = array<i64: 1, 3>}, {transform_indices = @transform_11, window_bounds = array<i64: 1, 1, 3>}]} {
    %c0 = arith.constant 0 : index
    %c0_0 = arith.constant 0 : index
    %c0_1 = arith.constant 0 : index
    %0 = vector.load %arg1[%c0, %c0_0, %c0_1] : memref<1x8x4096xf32, #tpu.memory_space<vmem>>, vector<1x8x4096xf32>
    %1 = vector.shape_cast %0 : vector<1x8x4096xf32> to vector<8x4096xf32>
    %c0_2 = arith.constant 0 : index
    %c0_3 = arith.constant 0 : index
    %2 = vector.load %arg2[%c0_2, %c0_3] : memref<8x72xf32, #tpu.memory_space<vmem>>, vector<8x72xf32>
    %c0_4 = arith.constant 0 : index
    %c0_5 = arith.constant 0 : index
    %3 = vector.load %arg3[%c0_4, %c0_5] : memref<8x1xf32, #tpu.memory_space<vmem>>, vector<8x1xf32>
    %4 = vector.extract_strided_slice %1 {offsets = [0, 0], sizes = [8, 3966], strides = [1, 1]} : vector<8x4096xf32> to vector<8x3966xf32>
    %5 = vector.extract_strided_slice %1 {offsets = [0, 1], sizes = [8, 3966], strides = [1, 1]} : vector<8x4096xf32> to vector<8x3966xf32>
    %6 = vector.extract_strided_slice %1 {offsets = [0, 2], sizes = [8, 3966], strides = [1, 1]} : vector<8x4096xf32> to vector<8x3966xf32>
    %7 = vector.extract_strided_slice %1 {offsets = [0, 64], sizes = [8, 3966], strides = [1, 1]} : vector<8x4096xf32> to vector<8x3966xf32>
    %8 = vector.extract_strided_slice %1 {offsets = [0, 65], sizes = [8, 3966], strides = [1, 1]} : vector<8x4096xf32> to vector<8x3966xf32>
    %9 = vector.extract_strided_slice %1 {offsets = [0, 66], sizes = [8, 3966], strides = [1, 1]} : vector<8x4096xf32> to vector<8x3966xf32>
    %10 = vector.extract_strided_slice %1 {offsets = [0, 128], sizes = [8, 3966], strides = [1, 1]} : vector<8x4096xf32> to vector<8x3966xf32>
    %11 = vector.extract_strided_slice %1 {offsets = [0, 129], sizes = [8, 3966], strides = [1, 1]} : vector<8x4096xf32> to vector<8x3966xf32>
    %12 = vector.extract_strided_slice %1 {offsets = [0, 130], sizes = [8, 3966], strides = [1, 1]} : vector<8x4096xf32> to vector<8x3966xf32>
    %13 = tpu.concatenate %4, %5, %6, %7, %8, %9, %10, %11, %12 in 0 : vector<8x3966xf32>, vector<8x3966xf32>, vector<8x3966xf32>, vector<8x3966xf32>, vector<8x3966xf32>, vector<8x3966xf32>, vector<8x3966xf32>, vector<8x3966xf32>, vector<8x3966xf32> -> vector<72x3966xf32>
    %cst = arith.constant dense<0.000000e+00> : vector<8x3966xf32>
    %14 = tpu.matmul %2, %13, %cst {dimension_numbers = #tpu.dot_dimension_numbers<[1], [0], [0], [1], [0, 0, 1, 1], [], []>} : vector<8x72xf32>, vector<72x3966xf32>, vector<8x3966xf32> -> vector<8x3966xf32>
    %15 = vector.broadcast %3 : vector<8x1xf32> to vector<8x3966xf32>
    %16 = arith.addf %14, %15 : vector<8x3966xf32>
    %cst_6 = arith.constant 0.000000e+00 : f32
    %17 = vector.broadcast %cst_6 : f32 to vector<8x3966xf32>
    %18 = arith.maximumf %16, %17 : vector<8x3966xf32>
    %c0_7 = arith.constant 0 : index
    %c0_8 = arith.constant 0 : index
    %19 = vector.load %arg4[%c0_7, %c0_8] : memref<8x72xf32, #tpu.memory_space<vmem>>, vector<8x72xf32>
    %c0_9 = arith.constant 0 : index
    %c0_10 = arith.constant 0 : index
    %20 = vector.load %arg5[%c0_9, %c0_10] : memref<8x1xf32, #tpu.memory_space<vmem>>, vector<8x1xf32>
    %21 = vector.extract_strided_slice %18 {offsets = [0, 0], sizes = [8, 3836], strides = [1, 1]} : vector<8x3966xf32> to vector<8x3836xf32>
    %22 = vector.extract_strided_slice %18 {offsets = [0, 1], sizes = [8, 3836], strides = [1, 1]} : vector<8x3966xf32> to vector<8x3836xf32>
    %23 = vector.extract_strided_slice %18 {offsets = [0, 2], sizes = [8, 3836], strides = [1, 1]} : vector<8x3966xf32> to vector<8x3836xf32>
    %24 = vector.extract_strided_slice %18 {offsets = [0, 64], sizes = [8, 3836], strides = [1, 1]} : vector<8x3966xf32> to vector<8x3836xf32>
    %25 = vector.extract_strided_slice %18 {offsets = [0, 65], sizes = [8, 3836], strides = [1, 1]} : vector<8x3966xf32> to vector<8x3836xf32>
    %26 = vector.extract_strided_slice %18 {offsets = [0, 66], sizes = [8, 3836], strides = [1, 1]} : vector<8x3966xf32> to vector<8x3836xf32>
    %27 = vector.extract_strided_slice %18 {offsets = [0, 128], sizes = [8, 3836], strides = [1, 1]} : vector<8x3966xf32> to vector<8x3836xf32>
    %28 = vector.extract_strided_slice %18 {offsets = [0, 129], sizes = [8, 3836], strides = [1, 1]} : vector<8x3966xf32> to vector<8x3836xf32>
    %29 = vector.extract_strided_slice %18 {offsets = [0, 130], sizes = [8, 3836], strides = [1, 1]} : vector<8x3966xf32> to vector<8x3836xf32>
    %30 = tpu.concatenate %21, %22, %23, %24, %25, %26, %27, %28, %29 in 0 : vector<8x3836xf32>, vector<8x3836xf32>, vector<8x3836xf32>, vector<8x3836xf32>, vector<8x3836xf32>, vector<8x3836xf32>, vector<8x3836xf32>, vector<8x3836xf32>, vector<8x3836xf32> -> vector<72x3836xf32>
    %cst_11 = arith.constant dense<0.000000e+00> : vector<8x3836xf32>
    %31 = tpu.matmul %19, %30, %cst_11 {dimension_numbers = #tpu.dot_dimension_numbers<[1], [0], [0], [1], [0, 0, 1, 1], [], []>} : vector<8x72xf32>, vector<72x3836xf32>, vector<8x3836xf32> -> vector<8x3836xf32>
    %32 = vector.broadcast %20 : vector<8x1xf32> to vector<8x3836xf32>
    %33 = arith.addf %31, %32 : vector<8x3836xf32>
    %cst_12 = arith.constant 0.000000e+00 : f32
    %34 = vector.broadcast %cst_12 : f32 to vector<8x3836xf32>
    %35 = arith.maximumf %33, %34 : vector<8x3836xf32>
    %36 = vector.extract_strided_slice %35 {offsets = [0, 0], sizes = [8, 3771], strides = [1, 1]} : vector<8x3836xf32> to vector<8x3771xf32>
    %37 = vector.extract_strided_slice %35 {offsets = [0, 1], sizes = [8, 3771], strides = [1, 1]} : vector<8x3836xf32> to vector<8x3771xf32>
    %38 = arith.maximumf %36, %37 : vector<8x3771xf32>
    %39 = vector.extract_strided_slice %35 {offsets = [0, 64], sizes = [8, 3771], strides = [1, 1]} : vector<8x3836xf32> to vector<8x3771xf32>
    %40 = vector.extract_strided_slice %35 {offsets = [0, 65], sizes = [8, 3771], strides = [1, 1]} : vector<8x3836xf32> to vector<8x3771xf32>
    %41 = arith.maximumf %39, %40 : vector<8x3771xf32>
    %42 = arith.maximumf %38, %41 : vector<8x3771xf32>
    %c0_13 = arith.constant 0 : index
    %c0_14 = arith.constant 0 : index
    %43 = vector.load %arg6[%c0_13, %c0_14] : memref<8x72xf32, #tpu.memory_space<vmem>>, vector<8x72xf32>
    %c0_15 = arith.constant 0 : index
    %c0_16 = arith.constant 0 : index
    %44 = vector.load %arg7[%c0_15, %c0_16] : memref<8x1xf32, #tpu.memory_space<vmem>>, vector<8x1xf32>
    %45 = vector.extract_strided_slice %42 {offsets = [0, 0], sizes = [8, 3511], strides = [1, 1]} : vector<8x3771xf32> to vector<8x3511xf32>
    %46 = vector.extract_strided_slice %42 {offsets = [0, 2], sizes = [8, 3511], strides = [1, 1]} : vector<8x3771xf32> to vector<8x3511xf32>
    %47 = vector.extract_strided_slice %42 {offsets = [0, 4], sizes = [8, 3511], strides = [1, 1]} : vector<8x3771xf32> to vector<8x3511xf32>
    %48 = vector.extract_strided_slice %42 {offsets = [0, 128], sizes = [8, 3511], strides = [1, 1]} : vector<8x3771xf32> to vector<8x3511xf32>
    %49 = vector.extract_strided_slice %42 {offsets = [0, 130], sizes = [8, 3511], strides = [1, 1]} : vector<8x3771xf32> to vector<8x3511xf32>
    %50 = vector.extract_strided_slice %42 {offsets = [0, 132], sizes = [8, 3511], strides = [1, 1]} : vector<8x3771xf32> to vector<8x3511xf32>
    %51 = vector.extract_strided_slice %42 {offsets = [0, 256], sizes = [8, 3511], strides = [1, 1]} : vector<8x3771xf32> to vector<8x3511xf32>
    %52 = vector.extract_strided_slice %42 {offsets = [0, 258], sizes = [8, 3511], strides = [1, 1]} : vector<8x3771xf32> to vector<8x3511xf32>
    %53 = vector.extract_strided_slice %42 {offsets = [0, 260], sizes = [8, 3511], strides = [1, 1]} : vector<8x3771xf32> to vector<8x3511xf32>
    %54 = tpu.concatenate %45, %46, %47, %48, %49, %50, %51, %52, %53 in 0 : vector<8x3511xf32>, vector<8x3511xf32>, vector<8x3511xf32>, vector<8x3511xf32>, vector<8x3511xf32>, vector<8x3511xf32>, vector<8x3511xf32>, vector<8x3511xf32>, vector<8x3511xf32> -> vector<72x3511xf32>
    %cst_17 = arith.constant dense<0.000000e+00> : vector<8x3511xf32>
    %55 = tpu.matmul %43, %54, %cst_17 {dimension_numbers = #tpu.dot_dimension_numbers<[1], [0], [0], [1], [0, 0, 1, 1], [], []>} : vector<8x72xf32>, vector<72x3511xf32>, vector<8x3511xf32> -> vector<8x3511xf32>
    %56 = vector.broadcast %44 : vector<8x1xf32> to vector<8x3511xf32>
    %57 = arith.addf %55, %56 : vector<8x3511xf32>
    %cst_18 = arith.constant 0.000000e+00 : f32
    %58 = vector.broadcast %cst_18 : f32 to vector<8x3511xf32>
    %59 = arith.maximumf %57, %58 : vector<8x3511xf32>
    %c0_19 = arith.constant 0 : index
    %c0_20 = arith.constant 0 : index
    %60 = vector.load %arg8[%c0_19, %c0_20] : memref<8x72xf32, #tpu.memory_space<vmem>>, vector<8x72xf32>
    %c0_21 = arith.constant 0 : index
    %c0_22 = arith.constant 0 : index
    %61 = vector.load %arg9[%c0_21, %c0_22] : memref<8x1xf32, #tpu.memory_space<vmem>>, vector<8x1xf32>
    %62 = vector.extract_strided_slice %59 {offsets = [0, 0], sizes = [8, 3251], strides = [1, 1]} : vector<8x3511xf32> to vector<8x3251xf32>
    %63 = vector.extract_strided_slice %59 {offsets = [0, 2], sizes = [8, 3251], strides = [1, 1]} : vector<8x3511xf32> to vector<8x3251xf32>
    %64 = vector.extract_strided_slice %59 {offsets = [0, 4], sizes = [8, 3251], strides = [1, 1]} : vector<8x3511xf32> to vector<8x3251xf32>
    %65 = vector.extract_strided_slice %59 {offsets = [0, 128], sizes = [8, 3251], strides = [1, 1]} : vector<8x3511xf32> to vector<8x3251xf32>
    %66 = vector.extract_strided_slice %59 {offsets = [0, 130], sizes = [8, 3251], strides = [1, 1]} : vector<8x3511xf32> to vector<8x3251xf32>
    %67 = vector.extract_strided_slice %59 {offsets = [0, 132], sizes = [8, 3251], strides = [1, 1]} : vector<8x3511xf32> to vector<8x3251xf32>
    %68 = vector.extract_strided_slice %59 {offsets = [0, 256], sizes = [8, 3251], strides = [1, 1]} : vector<8x3511xf32> to vector<8x3251xf32>
    %69 = vector.extract_strided_slice %59 {offsets = [0, 258], sizes = [8, 3251], strides = [1, 1]} : vector<8x3511xf32> to vector<8x3251xf32>
    %70 = vector.extract_strided_slice %59 {offsets = [0, 260], sizes = [8, 3251], strides = [1, 1]} : vector<8x3511xf32> to vector<8x3251xf32>
    %71 = tpu.concatenate %62, %63, %64, %65, %66, %67, %68, %69, %70 in 0 : vector<8x3251xf32>, vector<8x3251xf32>, vector<8x3251xf32>, vector<8x3251xf32>, vector<8x3251xf32>, vector<8x3251xf32>, vector<8x3251xf32>, vector<8x3251xf32>, vector<8x3251xf32> -> vector<72x3251xf32>
    %cst_23 = arith.constant dense<0.000000e+00> : vector<8x3251xf32>
    %72 = tpu.matmul %60, %71, %cst_23 {dimension_numbers = #tpu.dot_dimension_numbers<[1], [0], [0], [1], [0, 0, 1, 1], [], []>} : vector<8x72xf32>, vector<72x3251xf32>, vector<8x3251xf32> -> vector<8x3251xf32>
    %73 = vector.broadcast %61 : vector<8x1xf32> to vector<8x3251xf32>
    %74 = arith.addf %72, %73 : vector<8x3251xf32>
    %cst_24 = arith.constant 0.000000e+00 : f32
    %75 = vector.broadcast %cst_24 : f32 to vector<8x3251xf32>
    %76 = arith.maximumf %74, %75 : vector<8x3251xf32>
    %77 = vector.extract_strided_slice %76 {offsets = [0, 0], sizes = [8, 3121], strides = [1, 1]} : vector<8x3251xf32> to vector<8x3121xf32>
    %78 = vector.extract_strided_slice %76 {offsets = [0, 2], sizes = [8, 3121], strides = [1, 1]} : vector<8x3251xf32> to vector<8x3121xf32>
    %79 = arith.maximumf %77, %78 : vector<8x3121xf32>
    %80 = vector.extract_strided_slice %76 {offsets = [0, 128], sizes = [8, 3121], strides = [1, 1]} : vector<8x3251xf32> to vector<8x3121xf32>
    %81 = vector.extract_strided_slice %76 {offsets = [0, 130], sizes = [8, 3121], strides = [1, 1]} : vector<8x3251xf32> to vector<8x3121xf32>
    %82 = arith.maximumf %80, %81 : vector<8x3121xf32>
    %83 = arith.maximumf %79, %82 : vector<8x3121xf32>
    %c0_25 = arith.constant 0 : index
    %c0_26 = arith.constant 0 : index
    %c0_27 = arith.constant 0 : index
    %84 = vector.load %arg10[%c0_25, %c0_26, %c0_27] : memref<3x8x3121xf32, #tpu.memory_space<vmem>>, vector<1x8x3121xf32>
    %85 = vector.shape_cast %84 : vector<1x8x3121xf32> to vector<8x3121xf32>
    %86 = arith.mulf %83, %85 : vector<8x3121xf32>
    %cst_28 = arith.constant dense<0.000000e+00> : vector<8xf32>
    %87 = vector.multi_reduction <add>, %86, %cst_28 [1] : vector<8x3121xf32> to vector<8xf32>
    %88 = vector.shape_cast %87 : vector<8xf32> to vector<8x1xf32>
    %cst_29 = arith.constant dense<0.000000e+00> : vector<1xf32>
    %89 = vector.multi_reduction <add>, %88, %cst_29 [0] : vector<8x1xf32> to vector<1xf32>
    %90 = vector.shape_cast %89 : vector<1xf32> to vector<1x1xf32>
    %c1 = arith.constant 1 : index
    %c0_30 = arith.constant 0 : index
    %c0_31 = arith.constant 0 : index
    %91 = vector.load %arg10[%c1, %c0_30, %c0_31] : memref<3x8x3121xf32, #tpu.memory_space<vmem>>, vector<1x8x3121xf32>
    %92 = vector.shape_cast %91 : vector<1x8x3121xf32> to vector<8x3121xf32>
    %93 = arith.mulf %83, %92 : vector<8x3121xf32>
    %cst_32 = arith.constant dense<0.000000e+00> : vector<8xf32>
    %94 = vector.multi_reduction <add>, %93, %cst_32 [1] : vector<8x3121xf32> to vector<8xf32>
    %95 = vector.shape_cast %94 : vector<8xf32> to vector<8x1xf32>
    %cst_33 = arith.constant dense<0.000000e+00> : vector<1xf32>
    %96 = vector.multi_reduction <add>, %95, %cst_33 [0] : vector<8x1xf32> to vector<1xf32>
    %97 = vector.shape_cast %96 : vector<1xf32> to vector<1x1xf32>
    %c2 = arith.constant 2 : index
    %c0_34 = arith.constant 0 : index
    %c0_35 = arith.constant 0 : index
    %98 = vector.load %arg10[%c2, %c0_34, %c0_35] : memref<3x8x3121xf32, #tpu.memory_space<vmem>>, vector<1x8x3121xf32>
    %99 = vector.shape_cast %98 : vector<1x8x3121xf32> to vector<8x3121xf32>
    %100 = arith.mulf %83, %99 : vector<8x3121xf32>
    %cst_36 = arith.constant dense<0.000000e+00> : vector<8xf32>
    %101 = vector.multi_reduction <add>, %100, %cst_36 [1] : vector<8x3121xf32> to vector<8xf32>
    %102 = vector.shape_cast %101 : vector<8xf32> to vector<8x1xf32>
    %cst_37 = arith.constant dense<0.000000e+00> : vector<1xf32>
    %103 = vector.multi_reduction <add>, %102, %cst_37 [0] : vector<8x1xf32> to vector<1xf32>
    %104 = vector.shape_cast %103 : vector<1xf32> to vector<1x1xf32>
    %105 = tpu.concatenate %90, %97, %104 in 1 : vector<1x1xf32>, vector<1x1xf32>, vector<1x1xf32> -> vector<1x3xf32>
    %c0_38 = arith.constant 0 : index
    %c0_39 = arith.constant 0 : index
    %106 = vector.load %arg11[%c0_38, %c0_39] : memref<1x3xf32, #tpu.memory_space<vmem>>, vector<1x3xf32>
    %107 = arith.addf %105, %106 : vector<1x3xf32>
    %c0_40 = arith.constant 0 : index
    %c0_41 = arith.constant 0 : index
    %c0_42 = arith.constant 0 : index
    %108 = vector.load %arg12[%c0_40, %c0_41, %c0_42] : memref<1x1x3xf32, #tpu.memory_space<vmem>>, vector<1x1x3xf32>
    %109 = vector.shape_cast %108 : vector<1x1x3xf32> to vector<1x3xf32>
    %110 = vector.shape_cast %107 : vector<1x3xf32> to vector<1x1x3xf32>
    tpu.vector_store %arg12[%c0_40, %c0_41, %c0_42], %110 {strides = array<i32>} : memref<1x1x3xf32, #tpu.memory_space<vmem>>, vector<1x1x3xf32>,
    return
  }
  func.func @transform_0(%arg0: i32) -> (i32, i32, i32) {
    %c0_i32 = arith.constant 0 : i32
    %c0_i32_0 = arith.constant 0 : i32
    %c0_i32_1 = arith.constant 0 : i32
    return %arg0, %c0_i32, %c0_i32_0 : i32, i32, i32
  }
  func.func @transform_1(%arg0: i32) -> (i32, i32) {
    %c0_i32 = arith.constant 0 : i32
    %c0_i32_0 = arith.constant 0 : i32
    %c0_i32_1 = arith.constant 0 : i32
    return %c0_i32, %c0_i32_0 : i32, i32
  }
  func.func @transform_2(%arg0: i32) -> (i32, i32) {
    %c0_i32 = arith.constant 0 : i32
    %c0_i32_0 = arith.constant 0 : i32
    %c0_i32_1 = arith.constant 0 : i32
    return %c0_i32, %c0_i32_0 : i32, i32
  }
  func.func @transform_3(%arg0: i32) -> (i32, i32) {
    %c0_i32 = arith.constant 0 : i32
    %c0_i32_0 = arith.constant 0 : i32
    %c0_i32_1 = arith.constant 0 : i32
    return %c0_i32, %c0_i32_0 : i32, i32
  }
  func.func @transform_4(%arg0: i32) -> (i32, i32) {
    %c0_i32 = arith.constant 0 : i32
    %c0_i32_0 = arith.constant 0 : i32
    %c0_i32_1 = arith.constant 0 : i32
    return %c0_i32, %c0_i32_0 : i32, i32
  }
  func.func @transform_5(%arg0: i32) -> (i32, i32) {
    %c0_i32 = arith.constant 0 : i32
    %c0_i32_0 = arith.constant 0 : i32
    %c0_i32_1 = arith.constant 0 : i32
    return %c0_i32, %c0_i32_0 : i32, i32
  }
  func.func @transform_6(%arg0: i32) -> (i32, i32) {
    %c0_i32 = arith.constant 0 : i32
    %c0_i32_0 = arith.constant 0 : i32
    %c0_i32_1 = arith.constant 0 : i32
    return %c0_i32, %c0_i32_0 : i32, i32
  }
  func.func @transform_7(%arg0: i32) -> (i32, i32) {
    %c0_i32 = arith.constant 0 : i32
    %c0_i32_0 = arith.constant 0 : i32
    %c0_i32_1 = arith.constant 0 : i32
    return %c0_i32, %c0_i32_0 : i32, i32
  }
  func.func @transform_8(%arg0: i32) -> (i32, i32) {
    %c0_i32 = arith.constant 0 : i32
    %c0_i32_0 = arith.constant 0 : i32
    %c0_i32_1 = arith.constant 0 : i32
    return %c0_i32, %c0_i32_0 : i32, i32
  }
  func.func @transform_9(%arg0: i32) -> (i32, i32, i32) {
    %c0_i32 = arith.constant 0 : i32
    %c0_i32_0 = arith.constant 0 : i32
    %c0_i32_1 = arith.constant 0 : i32
    %c0_i32_2 = arith.constant 0 : i32
    return %c0_i32, %c0_i32_0, %c0_i32_1 : i32, i32, i32
  }
  func.func @transform_10(%arg0: i32) -> (i32, i32) {
    %c0_i32 = arith.constant 0 : i32
    %c0_i32_0 = arith.constant 0 : i32
    %c0_i32_1 = arith.constant 0 : i32
    return %c0_i32, %c0_i32_0 : i32, i32
  }
  func.func @transform_11(%arg0: i32) -> (i32, i32, i32) {
    %c0_i32 = arith.constant 0 : i32
    %c0_i32_0 = arith.constant 0 : i32
    %c0_i32_1 = arith.constant 0 : i32
    return %arg0, %c0_i32, %c0_i32_0 : i32, i32, i32
  }
}

</mosaic_0001>

<llo_original>
// kernel: tinyvgg_forward.1
$region0: #{tinyvgg_forward.1}
  #allocation0 [shape = 'u32[]', space=smem, size = 0x4, offset = 0x4, fixed_abs, tag = 'smem constant byte address 0x4 - core index']
  #allocation1 [shape = 'u32[144,128]{1,0:T(1,128)}', space=vmem, size = 0x12000, scoped, tag = 'internal scratch']
  %s0 = inlined_call_operand.vmem [shape: f32[2,8,4096], index: 0, kind: input, shape index: {}]
  %s1 = inlined_call_operand.vmem [shape: f32[8,72], index: 1, kind: input, shape index: {}]
  %s2 = inlined_call_operand.vmem [shape: f32[8,1], index: 2, kind: input, shape index: {}]
  %s3 = inlined_call_operand.vmem [shape: f32[8,72], index: 3, kind: input, shape index: {}]
  %s4 = inlined_call_operand.vmem [shape: f32[8,1], index: 4, kind: input, shape index: {}]
  %s5 = inlined_call_operand.vmem [shape: f32[8,72], index: 5, kind: input, shape index: {}]
  %s6 = inlined_call_operand.vmem [shape: f32[8,1], index: 6, kind: input, shape index: {}]
  %s7 = inlined_call_operand.vmem [shape: f32[8,72], index: 7, kind: input, shape index: {}]
  %s8 = inlined_call_operand.vmem [shape: f32[8,1], index: 8, kind: input, shape index: {}]
  %s9 = inlined_call_operand.vmem [shape: f32[3,8,3121], index: 9, kind: input, shape index: {}]
  %s10 = inlined_call_operand.vmem [shape: f32[1,3], index: 10, kind: input, shape index: {}]
  %s11 = inlined_call_operand.hbm [shape: f32[2,1,3], index: 11, kind: output, shape index: {}]
  %s12 = sld [smem:[#allocation0]]
  $region77: #{tinyvgg_forward.1} parent=0
    _
  %s14 = ssub.s32 1, %s12
  %s15 = scalar_select 0, %s14, %s12
  $region1: #{tinyvgg_forward.1} parent=0
    #allocation2 [shape = 'u8[1024]{0}', space=vmem, size = 0x400, scoped, tag = 'output window, operand 0']
    #allocation3 [shape = 's32[2]{0}', space=sflag, size = 0x8, scoped, tag = 'scoped memory for tinyvgg_forward.1']
    %16 = vsyncpa [#allocation3], 0
    %s17 = scalar_lea.sflag [#allocation3], 1
    %18 = vsyncpa %s17, 0
    loop: start=0, step=1, limit=4
    $region2: #{tinyvgg_forward.1} parent=1 // loop_pre_header
      _
    $region3: #{tinyvgg_forward.1} parent=1 // loop_header
      %s20 = sphi 0, %s24
      %p21 = scmp.ge.s32.totalorder %s20, 4
      %s30 = sphi 0, %s32
      %s33 = sphi 0, %s30
      %s34 = sphi 0, %s33
      %s50 = sphi 0, %s34
      %s54 = sphi 0, %s54
      %s56 = sphi 0, %s54
      %s57 = sphi 0, %s56
      %s71 = sphi 0, %s57
      %s75 = sphi 0, %s75
      %s77 = sphi 0, %s75
      %s78 = sphi 0, %s77
      %s92 = sphi 0, %s78
      %s96 = sphi 0, %s96
      %s98 = sphi 0, %s96
      %s99 = sphi 0, %s98
      %s113 = sphi 0, %s99
      %s117 = sphi 0, %s117
      %s119 = sphi 0, %s117
      %s120 = sphi 0, %s119
      %s134 = sphi 0, %s120
      %s138 = sphi 0, %s138
      %s140 = sphi 0, %s138
      %s141 = sphi 0, %s140
      %s155 = sphi 0, %s141
      %s159 = sphi 0, %s159
      %s161 = sphi 0, %s159
      %s162 = sphi 0, %s161
      %s176 = sphi 0, %s162
      %s180 = sphi 0, %s180
      %s182 = sphi 0, %s180
      %s183 = sphi 0, %s182
      %s197 = sphi 0, %s183
      %s201 = sphi 0, %s201
      %s203 = sphi 0, %s201
      %s204 = sphi 0, %s203
      %s218 = sphi 0, %s204
      %s222 = sphi 0, %s222
      %s224 = sphi 0, %s222
      %s225 = sphi 0, %s224
      %s239 = sphi 0, %s225
      %s243 = sphi 0, %s243
      %s245 = sphi 0, %s243
      %s246 = sphi 0, %s245
      %s260 = sphi 0, %s246
      %s266 = sphi 0, %s268
      %s269 = sphi 0, %s266
      %s270 = sphi 0, %s269
      %s286 = sphi 0, %s270
    $region4: #{tinyvgg_forward.1} parent=1 // loop_header_branch
      %23 = sbr.rel (%p21) target = $region8
    $region5: #{tinyvgg_forward.1} parent=1 // loop_body
      %s25 = ssub.s32 %s20, 1
      %s26 = ssub.s32 %s20, 2
      %s27 = sadd.s32 %s20, 1
      %s28 = ssub.s32 %s20, %s27
      %p29 = scmp.eq.s32.totalorder %s28, 0
      %s31 = sadd.s32 %s30, 1
      %s32 = scalar_select %p29, %s30, %s31
      %p35 = pneg %p29
      %p36 = scmp.eq.s32.totalorder %s20, 1
      %p37 = por %p35, %p36
      %p38 = scmp.ne.s32.totalorder %s30, %s33
      %p39 = scmp.eq.s32.totalorder %s20, 0
      %p40 = por %p38, %p39
      %p41 = scmp.ne.s32.totalorder %s30, %s33
      %p42 = scmp.eq.s32.totalorder %s25, 1
      %p43 = por %p41, %p42
      %p44 = scmp.ne.s32.totalorder %s33, %s34
      %p45 = scmp.eq.s32.totalorder %s25, 0
      %p46 = por %p44, %p45
      %p47 = scmp.ne.s32.totalorder %s33, %s34
      %p48 = scmp.eq.s32.totalorder %s26, 1
      %p49 = por %p47, %p48
      %p51 = scmp.ne.s32.totalorder %s34, %s50
      %p52 = scmp.eq.s32.totalorder %s26, 0
      %p53 = por %p51, %p52
      %s55 = sadd.s32 %s54, 1
      %p58 = scmp.eq.s32.totalorder %s20, 1
      %p59 = scmp.ne.s32.totalorder %s54, %s56
      %p60 = scmp.eq.s32.totalorder %s20, 0
      %p61 = por %p59, %p60
      %p62 = scmp.ne.s32.totalorder %s54, %s56
      %p63 = scmp.eq.s32.totalorder %s25, 1
      %p64 = por %p62, %p63
      %p65 = scmp.ne.s32.totalorder %s56, %s57
      %p66 = scmp.eq.s32.totalorder %s25, 0
      %p67 = por %p65, %p66
      %p68 = scmp.ne.s32.totalorder %s56, %s57
      %p69 = scmp.eq.s32.totalorder %s26, 1
      %p70 = por %p68, %p69
      %p72 = scmp.ne.s32.totalorder %s57, %s71
      %p73 = scmp.eq.s32.totalorder %s26, 0
      %p74 = por %p72, %p73
      %s76 = sadd.s32 %s75, 1
      %p79 = scmp.eq.s32.totalorder %s20, 1
      %p80 = scmp.ne.s32.totalorder %s75, %s77
      %p81 = scmp.eq.s32.totalorder %s20, 0
      %p82 = por %p80, %p81
      %p83 = scmp.ne.s32.totalorder %s75, %s77
      %p84 = scmp.eq.s32.totalorder %s25, 1
      %p85 = por %p83, %p84
      %p86 = scmp.ne.s32.totalorder %s77, %s78
      %p87 = scmp.eq.s32.totalorder %s25, 0
      %p88 = por %p86, %p87
      %p89 = scmp.ne.s32.totalorder %s77, %s78
      %p90 = scmp.eq.s32.totalorder %s26, 1
      %p91 = por %p89, %p90
      %p93 = scmp.ne.s32.totalorder %s78, %s92
      %p94 = scmp.eq.s32.totalorder %s26, 0
      %p95 = por %p93, %p94
      %s97 = sadd.s32 %s96, 1
      %p100 = scmp.eq.s32.totalorder %s20, 1
      %p101 = scmp.ne.s32.totalorder %s96, %s98
      %p102 = scmp.eq.s32.totalorder %s20, 0
      %p103 = por %p101, %p102
      %p104 = scmp.ne.s32.totalorder %s96, %s98
      %p105 = scmp.eq.s32.totalorder %s25, 1
      %p106 = por %p104, %p105
      %p107 = scmp.ne.s32.totalorder %s98, %s99
      %p108 = scmp.eq.s32.totalorder %s25, 0
      %p109 = por %p107, %p108
      %p110 = scmp.ne.s32.totalorder %s98, %s99
      %p111 = scmp.eq.s32.totalorder %s26, 1
      %p112 = por %p110, %p111
      %p114 = scmp.ne.s32.totalorder %s99, %s113
      %p115 = scmp.eq.s32.totalorder %s26, 0
      %p116 = por %p114, %p115
      %s118 = sadd.s32 %s117, 1
      %p121 = scmp.eq.s32.totalorder %s20, 1
      %p122 = scmp.ne.s32.totalorder %s117, %s119
      %p123 = scmp.eq.s32.totalorder %s20, 0
      %p124 = por %p122, %p123
      %p125 = scmp.ne.s32.totalorder %s117, %s119
      %p126 = scmp.eq.s32.totalorder %s25, 1
      %p127 = por %p125, %p126
      %p128 = scmp.ne.s32.totalorder %s119, %s120
      %p129 = scmp.eq.s32.totalorder %s25, 0
      %p130 = por %p128, %p129
      %p131 = scmp.ne.s32.totalorder %s119, %s120
      %p132 = scmp.eq.s32.totalorder %s26, 1
      %p133 = por %p131, %p132
      %p135 = scmp.ne.s32.totalorder %s120, %s134
      %p136 = scmp.eq.s32.totalorder %s26, 0
      %p137 = por %p135, %p136
      %s139 = sadd.s32 %s138, 1
      %p142 = scmp.eq.s32.totalorder %s20, 1
      %p143 = scmp.ne.s32.totalorder %s138, %s140
      %p144 = scmp.eq.s32.totalorder %s20, 0
      %p145 = por %p143, %p144
      %p146 = scmp.ne.s32.totalorder %s138, %s140
      %p147 = scmp.eq.s32.totalorder %s25, 1
      %p148 = por %p146, %p147
      %p149 = scmp.ne.s32.totalorder %s140, %s141
      %p150 = scmp.eq.s32.totalorder %s25, 0
      %p151 = por %p149, %p150
      %p152 = scmp.ne.s32.totalorder %s140, %s141
      %p153 = scmp.eq.s32.totalorder %s26, 1
      %p154 = por %p152, %p153
      %p156 = scmp.ne.s32.totalorder %s141, %s155
      %p157 = scmp.eq.s32.totalorder %s26, 0
      %p158 = por %p156, %p157
      %s160 = sadd.s32 %s159, 1
      %p163 = scmp.eq.s32.totalorder %s20, 1
      %p164 = scmp.ne.s32.totalorder %s159, %s161
      %p165 = scmp.eq.s32.totalorder %s20, 0
      %p166 = por %p164, %p165
      %p167 = scmp.ne.s32.totalorder %s159, %s161
      %p168 = scmp.eq.s32.totalorder %s25, 1
      %p169 = por %p167, %p168
      %p170 = scmp.ne.s32.totalorder %s161, %s162
      %p171 = scmp.eq.s32.totalorder %s25, 0
      %p172 = por %p170, %p171
      %p173 = scmp.ne.s32.totalorder %s161, %s162
      %p174 = scmp.eq.s32.totalorder %s26, 1
      %p175 = por %p173, %p174
      %p177 = scmp.ne.s32.totalorder %s162, %s176
      %p178 = scmp.eq.s32.totalorder %s26, 0
      %p179 = por %p177, %p178
      %s181 = sadd.s32 %s180, 1
      %p184 = scmp.eq.s32.totalorder %s20, 1
      %p185 = scmp.ne.s32.totalorder %s180, %s182
      %p186 = scmp.eq.s32.totalorder %s20, 0
      %p187 = por %p185, %p186
      %p188 = scmp.ne.s32.totalorder %s180, %s182
      %p189 = scmp.eq.s32.totalorder %s25, 1
      %p190 = por %p188, %p189
      %p191 = scmp.ne.s32.totalorder %s182, %s183
      %p192 = scmp.eq.s32.totalorder %s25, 0
      %p193 = por %p191, %p192
      %p194 = scmp.ne.s32.totalorder %s182, %s183
      %p195 = scmp.eq.s32.totalorder %s26, 1
      %p196 = por %p194, %p195
      %p198 = scmp.ne.s32.totalorder %s183, %s197
      %p199 = scmp.eq.s32.totalorder %s26, 0
      %p200 = por %p198, %p199
      %s202 = sadd.s32 %s201, 1
      %p205 = scmp.eq.s32.totalorder %s20, 1
      %p206 = scmp.ne.s32.totalorder %s201, %s203
      %p207 = scmp.eq.s32.totalorder %s20, 0
      %p208 = por %p206, %p207
      %p209 = scmp.ne.s32.totalorder %s201, %s203
      %p210 = scmp.eq.s32.totalorder %s25, 1
      %p211 = por %p209, %p210
      %p212 = scmp.ne.s32.totalorder %s203, %s204
      %p213 = scmp.eq.s32.totalorder %s25, 0
      %p214 = por %p212, %p213
      %p215 = scmp.ne.s32.totalorder %s203, %s204
      %p216 = scmp.eq.s32.totalorder %s26, 1
      %p217 = por %p215, %p216
      %p219 = scmp.ne.s32.totalorder %s204, %s218
      %p220 = scmp.eq.s32.totalorder %s26, 0
      %p221 = por %p219, %p220
      %s223 = sadd.s32 %s222, 1
      %p226 = scmp.eq.s32.totalorder %s20, 1
      %p227 = scmp.ne.s32.totalorder %s222, %s224
      %p228 = scmp.eq.s32.totalorder %s20, 0
      %p229 = por %p227, %p228
      %p230 = scmp.ne.s32.totalorder %s222, %s224
      %p231 = scmp.eq.s32.totalorder %s25, 1
      %p232 = por %p230, %p231
      %p233 = scmp.ne.s32.totalorder %s224, %s225
      %p234 = scmp.eq.s32.totalorder %s25, 0
      %p235 = por %p233, %p234
      %p236 = scmp.ne.s32.totalorder %s224, %s225
      %p237 = scmp.eq.s32.totalorder %s26, 1
      %p238 = por %p236, %p237
      %p240 = scmp.ne.s32.totalorder %s225, %s239
      %p241 = scmp.eq.s32.totalorder %s26, 0
      %p242 = por %p240, %p241
      %s244 = sadd.s32 %s243, 1
      %p247 = scmp.eq.s32.totalorder %s20, 1
      %p248 = scmp.ne.s32.totalorder %s243, %s245
      %p249 = scmp.eq.s32.totalorder %s20, 0
      %p250 = por %p248, %p249
      %p251 = scmp.ne.s32.totalorder %s243, %s245
      %p252 = scmp.eq.s32.totalorder %s25, 1
      %p253 = por %p251, %p252
      %p254 = scmp.ne.s32.totalorder %s245, %s246
      %p255 = scmp.eq.s32.totalorder %s25, 0
      %p256 = por %p254, %p255
      %p257 = scmp.ne.s32.totalorder %s245, %s246
      %p258 = scmp.eq.s32.totalorder %s26, 1
      %p259 = por %p257, %p258
      %p261 = scmp.ne.s32.totalorder %s246, %s260
      %p262 = scmp.eq.s32.totalorder %s26, 0
      %p263 = por %p261, %p262
      %s264 = ssub.s32 %s20, %s27
      %p265 = scmp.eq.s32.totalorder %s264, 0
      %s267 = sadd.s32 %s266, 1
      %s268 = scalar_select %p265, %s266, %s267
      %p271 = pneg %p265
      %p272 = scmp.eq.s32.totalorder %s20, 1
      %p273 = por %p271, %p272
      %p274 = scmp.ne.s32.totalorder %s266, %s269
      %p275 = scmp.eq.s32.totalorder %s20, 0
      %p276 = por %p274, %p275
      %p277 = scmp.ne.s32.totalorder %s266, %s269
      %p278 = scmp.eq.s32.totalorder %s25, 1
      %p279 = por %p277, %p278
      %p280 = scmp.ne.s32.totalorder %s269, %s270
      %p281 = scmp.eq.s32.totalorder %s25, 0
      %p282 = por %p280, %p281
      %p283 = scmp.ne.s32.totalorder %s269, %s270
      %p284 = scmp.eq.s32.totalorder %s26, 1
      %p285 = por %p283, %p284
      %p287 = scmp.ne.s32.totalorder %s270, %s286
      %p288 = scmp.eq.s32.totalorder %s26, 0
      %p289 = por %p287, %p288
      %p290 = scmp.le.s32.totalorder 1, %s20
      %p291 = scmp.lt.s32.totalorder %s20, 3
      %p292 = pnand %p290, %p291
      %p293 = pneg %p292
      // Predicated region
      $region9: #{tinyvgg_forward.1} parent=5 // pred_check
        _
      $region10: #{tinyvgg_forward.1} parent=5 // pred_check_branch
        %295 = sbr.rel (%p292) target = $region12
      $region11: #{tinyvgg_forward.1} parent=5 // pred_region
        %s296 = ssub.s32 %s20, 1
        // Predicated region
        $region13: #{tinyvgg_forward.1} parent=11 // pred_check
          %p297 = pneg %p67
        $region14: #{tinyvgg_forward.1} parent=11 // pred_check_branch
          %299 = sbr.rel (%p297) target = $region16
        $region15: #{tinyvgg_forward.1} parent=11 // pred_region
          _
        $region16: #{tinyvgg_forward.1} parent=11 // pred_fallthru
          _
        // Predicated region
        $region17: #{tinyvgg_forward.1} parent=11 // pred_check
          %p300 = pneg %p88
        $region18: #{tinyvgg_forward.1} parent=11 // pred_check_branch
          %302 = sbr.rel (%p300) target = $region20
        $region19: #{tinyvgg_forward.1} parent=11 // pred_region
          _
        $region20: #{tinyvgg_forward.1} parent=11 // pred_fallthru
          _
        // Predicated region
        $region21: #{tinyvgg_forward.1} parent=11 // pred_check
          %p303 = pneg %p109
        $region22: #{tinyvgg_forward.1} parent=11 // pred_check_branch
          %305 = sbr.rel (%p303) target = $region24
        $region23: #{tinyvgg_forward.1} parent=11 // pred_region
          _
        $region24: #{tinyvgg_forward.1} parent=11 // pred_fallthru
          _
        // Predicated region
        $region25: #{tinyvgg_forward.1} parent=11 // pred_check
          %p306 = pneg %p130
        $region26: #{tinyvgg_forward.1} parent=11 // pred_check_branch
          %308 = sbr.rel (%p306) target = $region28
        $region27: #{tinyvgg_forward.1} parent=11 // pred_region
          _
        $region28: #{tinyvgg_forward.1} parent=11 // pred_fallthru
          _
        // Predicated region
        $region29: #{tinyvgg_forward.1} parent=11 // pred_check
          %p309 = pneg %p151
        $region30: #{tinyvgg_forward.1} parent=11 // pred_check_branch
          %311 = sbr.rel (%p309) target = $region32
        $region31: #{tinyvgg_forward.1} parent=11 // pred_region
          _
        $region32: #{tinyvgg_forward.1} parent=11 // pred_fallthru
          _
        // Predicated region
        $region33: #{tinyvgg_forward.1} parent=11 // pred_check
          %p312 = pneg %p172
        $region34: #{tinyvgg_forward.1} parent=11 // pred_check_branch
          %314 = sbr.rel (%p312) target = $region36
        $region35: #{tinyvgg_forward.1} parent=11 // pred_region
          _
        $region36: #{tinyvgg_forward.1} parent=11 // pred_fallthru
          _
        // Predicated region
        $region37: #{tinyvgg_forward.1} parent=11 // pred_check
          %p315 = pneg %p193
        $region38: #{tinyvgg_forward.1} parent=11 // pred_check_branch
          %317 = sbr.rel (%p315) target = $region40
        $region39: #{tinyvgg_forward.1} parent=11 // pred_region
          _
        $region40: #{tinyvgg_forward.1} parent=11 // pred_fallthru
          _
        // Predicated region
        $region41: #{tinyvgg_forward.1} parent=11 // pred_check
          %p318 = pneg %p214
        $region42: #{tinyvgg_forward.1} parent=11 // pred_check_branch
          %320 = sbr.rel (%p318) target = $region44
        $region43: #{tinyvgg_forward.1} parent=11 // pred_region
          _
        $region44: #{tinyvgg_forward.1} parent=11 // pred_fallthru
          _
        // Predicated region
        $region45: #{tinyvgg_forward.1} parent=11 // pred_check
          %p321 = pneg %p235
        $region46: #{tinyvgg_forward.1} parent=11 // pred_check_branch
          %323 = sbr.rel (%p321) target = $region48
        $region47: #{tinyvgg_forward.1} parent=11 // pred_region
          _
        $region48: #{tinyvgg_forward.1} parent=11 // pred_fallthru
          _
        // Predicated region
        $region49: #{tinyvgg_forward.1} parent=11 // pred_check
          %p324 = pneg %p256
        $region50: #{tinyvgg_forward.1} parent=11 // pred_check_branch
          %326 = sbr.rel (%p324) target = $region52
        $region51: #{tinyvgg_forward.1} parent=11 // pred_region
          _
        $region52: #{tinyvgg_forward.1} parent=11 // pred_fallthru
          _
      $region12: #{tinyvgg_forward.1} parent=5 // pred_fallthru
        _
      %p327 = scmp.lt.s32.totalorder %s20, 2
      // Predicated region
      $region53: #{tinyvgg_forward.1} parent=5 // pred_check
        %p328 = pneg %p327
      $region54: #{tinyvgg_forward.1} parent=5 // pred_check_branch
        %330 = sbr.rel (%p328) target = $region56
      $region55: #{tinyvgg_forward.1} parent=5 // pred_region
        // Predicated region
        $region57: #{tinyvgg_forward.1} parent=55 // pred_check
          %p331 = pneg %p40
        $region58: #{tinyvgg_forward.1} parent=55 // pred_check_branch
          %333 = sbr.rel (%p331) target = $region60
        $region59: #{tinyvgg_forward.1} parent=55 // pred_region
          %p334 = scmp.lt.s32.totalorder %s20, 1
          %s335 = scalar_select %p334, %s20, 1
          %s336 = smul.addr %s335, 32
          %s337 = smul.addr %s336, 8
          %s338 = scalar_lea.vmem %s0, %s337
        $region60: #{tinyvgg_forward.1} parent=55 // pred_fallthru
          _
      $region56: #{tinyvgg_forward.1} parent=5 // pred_fallthru
        _
      %p339 = scmp.le.s32.totalorder 1, %s20
      %p340 = scmp.lt.s32.totalorder %s20, 3
      %p341 = pnand %p339, %p340
      %p342 = pneg %p341
      // Predicated region
      $region61: #{tinyvgg_forward.1} parent=5 // pred_check
        _
      $region62: #{tinyvgg_forward.1} parent=5 // pred_check_branch
        %344 = sbr.rel (%p341) target = $region64
      $region63: #{tinyvgg_forward.1} parent=5 // pred_region
        %s345 = ssub.s32 %s20, 1
        %p346 = scmp.lt.s32.totalorder %s25, 1
        %s347 = scalar_select %p346, %s25, 1
        %s348 = smul.addr %s347, 32
        %s349 = smul.addr %s348, 8
        %s350 = scalar_lea.vmem %s0, %s349
        %p351 = pneg %p46
        %p352 = pneg %p43
        %p353 = pneg %p67
        %p354 = pneg %p64
        %p355 = pneg %p88
        %p356 = pneg %p85
        %p357 = pneg %p109
        %p358 = pneg %p106
        %p359 = pneg %p130
        %p360 = pneg %p127
        %p361 = pneg %p151
        %p362 = pneg %p148
        %p363 = pneg %p172
        %p364 = pneg %p169
        %p365 = pneg %p193
        %p366 = pneg %p190
        %p367 = pneg %p214
        %p368 = pneg %p211
        %p369 = pneg %p235
        %p370 = pneg %p232
        %p371 = pneg %p256
        %p372 = pneg %p253
        %p373 = pneg %p282
        %p374 = pneg %p279
        %s375 = sand.u32 %s269, 1
        %s376 = scalar_lea.sflag [#allocation3], %s375
        %s377 = sand.u32 %s269, 1
        %s378 = scalar_lea.vmem [#allocation2], %s377
        %p379 = scmp.lt.s32.totalorder %s25, 1
        %s380 = scalar_select %p379, %s25, 1
        %s381 = smul.addr %s380, 32
        %s382 = smul.addr %s381, 8
        %s383 = scalar_lea.vmem %s0, %s382
        %v384 = vld [vmem:[%s383] sm:$0xff]
        %v385 = vld [vmem:[%s383 + $0x8] sm:$0xff]
        %v386 = vld [vmem:[%s383 + $0x10] sm:$0xff]
        %v387 = vld [vmem:[%s383 + $0x18] sm:$0xff]
        %v388 = vld [vmem:[%s383 + $0x20] sm:$0xff]
        %v389 = vld [vmem:[%s383 + $0x28] sm:$0xff]
        %v390 = vld [vmem:[%s383 + $0x30] sm:$0xff]
        %v391 = vld [vmem:[%s383 + $0x38] sm:$0xff]
        %v392 = vld [vmem:[%s383 + $0x40] sm:$0xff]
        %v393 = vld [vmem:[%s383 + $0x48] sm:$0xff]
        %v394 = vld [vmem:[%s383 + $0x50] sm:$0xff]
        %v395 = vld [vmem:[%s383 + $0x58] sm:$0xff]
        %v396 = vld [vmem:[%s383 + $0x60] sm:$0xff]
        %v397 = vld [vmem:[%s383 + $0x68] sm:$0xff]
        %v398 = vld [vmem:[%s383 + $0x70] sm:$0xff]
        %v399 = vld [vmem:[%s383 + $0x78] sm:$0xff]
        %v400 = vld [vmem:[%s383 + $0x80] sm:$0xff]
        %v401 = vld [vmem:[%s383 + $0x88] sm:$0xff]
        %v402 = vld [vmem:[%s383 + $0x90] sm:$0xff]
        %v403 = vld [vmem:[%s383 + $0x98] sm:$0xff]
        %v404 = vld [vmem:[%s383 + $0xa0] sm:$0xff]
        %v405 = vld [vmem:[%s383 + $0xa8] sm:$0xff]
        %v406 = vld [vmem:[%s383 + $0xb0] sm:$0xff]
        %v407 = vld [vmem:[%s383 + $0xb8] sm:$0xff]
        %v408 = vld [vmem:[%s383 + $0xc0] sm:$0xff]
        %v409 = vld [vmem:[%s383 + $0xc8] sm:$0xff]
        %v410 = vld [vmem:[%s383 + $0xd0] sm:$0xff]
        %v411 = vld [vmem:[%s383 + $0xd8] sm:$0xff]
        %v412 = vld [vmem:[%s383 + $0xe0] sm:$0xff]
        %v413 = vld [vmem:[%s383 + $0xe8] sm:$0xff]
        %v414 = vld [vmem:[%s383 + $0xf0] sm:$0xff]
        %v415 = vld [vmem:[%s383 + $0xf8] sm:$0xff]
        %v416 = vld [vmem:[%s1] sm:$0xff]
        %v417 = vld [vmem:[%s2] sm:$0xff]
        %449 = vrot.lane.b32.xlu0 %v384, 127
        %v450 = vpop.permute.xlu0 %449
        %451 = vrot.lane.b32.xlu0 %v385, 127
        %v452 = vpop.permute.xlu0 %451
        %453 = vrot.lane.b32.xlu0 %v386, 127
        %v454 = vpop.permute.xlu0 %453
        %455 = vrot.lane.b32.xlu0 %v387, 127
        %v456 = vpop.permute.xlu0 %455
        %457 = vrot.lane.b32.xlu0 %v388, 127
        %v458 = vpop.permute.xlu0 %457
        %459 = vrot.lane.b32.xlu0 %v389, 127
        %v460 = vpop.permute.xlu0 %459
        %461 = vrot.lane.b32.xlu0 %v390, 127
        %v462 = vpop.permute.xlu0 %461
        %463 = vrot.lane.b32.xlu0 %v391, 127
        %v464 = vpop.permute.xlu0 %463
        %465 = vrot.lane.b32.xlu0 %v392, 127
        %v466 = vpop.permute.xlu0 %465
        %467 = vrot.lane.b32.xlu0 %v393, 127
        %v468 = vpop.permute.xlu0 %467
        %469 = vrot.lane.b32.xlu0 %v394, 127
        %v470 = vpop.permute.xlu0 %469
        %471 = vrot.lane.b32.xlu0 %v395, 127
        %v472 = vpop.permute.xlu0 %471
        %473 = vrot.lane.b32.xlu0 %v396, 127
        %v474 = vpop.permute.xlu0 %473
        %475 = vrot.lane.b32.xlu0 %v397, 127
        %v476 = vpop.permute.xlu0 %475
        %477 = vrot.lane.b32.xlu0 %v398, 127
        %v478 = vpop.permute.xlu0 %477
        %479 = vrot.lane.b32.xlu0 %v399, 127
        %v480 = vpop.permute.xlu0 %479
        %481 = vrot.lane.b32.xlu0 %v400, 127
        %v482 = vpop.permute.xlu0 %481
        %483 = vrot.lane.b32.xlu0 %v401, 127
        %v484 = vpop.permute.xlu0 %483
        %485 = vrot.lane.b32.xlu0 %v402, 127
        %v486 = vpop.permute.xlu0 %485
        %487 = vrot.lane.b32.xlu0 %v403, 127
        %v488 = vpop.permute.xlu0 %487
        %489 = vrot.lane.b32.xlu0 %v404, 127
        %v490 = vpop.permute.xlu0 %489
        %491 = vrot.lane.b32.xlu0 %v405, 127
        %v492 = vpop.permute.xlu0 %491
        %493 = vrot.lane.b32.xlu0 %v406, 127
        %v494 = vpop.permute.xlu0 %493
        %495 = vrot.lane.b32.xlu0 %v407, 127
        %v496 = vpop.permute.xlu0 %495
        %497 = vrot.lane.b32.xlu0 %v408, 127
        %v498 = vpop.permute.xlu0 %497
        %499 = vrot.lane.b32.xlu0 %v409, 127
        %v500 = vpop.permute.xlu0 %499
        %501 = vrot.lane.b32.xlu0 %v410, 127
        %v502 = vpop.permute.xlu0 %501
        %503 = vrot.lane.b32.xlu0 %v411, 127
        %v504 = vpop.permute.xlu0 %503
        %505 = vrot.lane.b32.xlu0 %v412, 127
        %v506 = vpop.permute.xlu0 %505
        %507 = vrot.lane.b32.xlu0 %v413, 127
        %v508 = vpop.permute.xlu0 %507
        %509 = vrot.lane.b32.xlu0 %v414, 127
        %v510 = vpop.permute.xlu0 %509
        %vm511 = vcmask 1039360
        %v512 = vsel %vm511, %v450, %v452
        %v513 = vsel %vm511, %v452, %v454
        %v514 = vsel %vm511, %v454, %v456
        %v515 = vsel %vm511, %v456, %v458
        %v516 = vsel %vm511, %v458, %v460
        %v517 = vsel %vm511, %v460, %v462
        %v518 = vsel %vm511, %v462, %v464
        %v519 = vsel %vm511, %v464, %v466
        %v520 = vsel %vm511, %v466, %v468
        %v521 = vsel %vm511, %v468, %v470
        %v522 = vsel %vm511, %v470, %v472
        %v523 = vsel %vm511, %v472, %v474
        %v524 = vsel %vm511, %v474, %v476
        %v525 = vsel %vm511, %v476, %v478
        %v526 = vsel %vm511, %v478, %v480
        %v527 = vsel %vm511, %v480, %v482
        %v528 = vsel %vm511, %v482, %v484
        %v529 = vsel %vm511, %v484, %v486
        %v530 = vsel %vm511, %v486, %v488
        %v531 = vsel %vm511, %v488, %v490
        %v532 = vsel %vm511, %v490, %v492
        %v533 = vsel %vm511, %v492, %v494
        %v534 = vsel %vm511, %v494, %v496
        %v535 = vsel %vm511, %v496, %v498
        %v536 = vsel %vm511, %v498, %v500
        %v537 = vsel %vm511, %v500, %v502
        %v538 = vsel %vm511, %v502, %v504
        %v539 = vsel %vm511, %v504, %v506
        %v540 = vsel %vm511, %v506, %v508
        %v541 = vsel %vm511, %v508, %v510
        %573 = vrot.lane.b32.xlu0 %v384, 126
        %v574 = vpop.permute.xlu0 %573
        %575 = vrot.lane.b32.xlu0 %v385, 126
        %v576 = vpop.permute.xlu0 %575
        %577 = vrot.lane.b32.xlu0 %v386, 126
        %v578 = vpop.permute.xlu0 %577
        %579 = vrot.lane.b32.xlu0 %v387, 126
        %v580 = vpop.permute.xlu0 %579
        %581 = vrot.lane.b32.xlu0 %v388, 126
        %v582 = vpop.permute.xlu0 %581
        %583 = vrot.lane.b32.xlu0 %v389, 126
        %v584 = vpop.permute.xlu0 %583
        %585 = vrot.lane.b32.xlu0 %v390, 126
        %v586 = vpop.permute.xlu0 %585
        %587 = vrot.lane.b32.xlu0 %v391, 126
        %v588 = vpop.permute.xlu0 %587
        %589 = vrot.lane.b32.xlu0 %v392, 126
        %v590 = vpop.permute.xlu0 %589
        %591 = vrot.lane.b32.xlu0 %v393, 126
        %v592 = vpop.permute.xlu0 %591
        %593 = vrot.lane.b32.xlu0 %v394, 126
        %v594 = vpop.permute.xlu0 %593
        %595 = vrot.lane.b32.xlu0 %v395, 126
        %v596 = vpop.permute.xlu0 %595
        %597 = vrot.lane.b32.xlu0 %v396, 126
        %v598 = vpop.permute.xlu0 %597
        %599 = vrot.lane.b32.xlu0 %v397, 126
        %v600 = vpop.permute.xlu0 %599
        %601 = vrot.lane.b32.xlu0 %v398, 126
        %v602 = vpop.permute.xlu0 %601
        %603 = vrot.lane.b32.xlu0 %v399, 126
        %v604 = vpop.permute.xlu0 %603
        %605 = vrot.lane.b32.xlu0 %v400, 126
        %v606 = vpop.permute.xlu0 %605
        %607 = vrot.lane.b32.xlu0 %v401, 126
        %v608 = vpop.permute.xlu0 %607
        %609 = vrot.lane.b32.xlu0 %v402, 126
        %v610 = vpop.permute.xlu0 %609
        %611 = vrot.lane.b32.xlu0 %v403, 126
        %v612 = vpop.permute.xlu0 %611
        %613 = vrot.lane.b32.xlu0 %v404, 126
        %v614 = vpop.permute.xlu0 %613
        %615 = vrot.lane.b32.xlu0 %v405, 126
        %v616 = vpop.permute.xlu0 %615
        %617 = vrot.lane.b32.xlu0 %v406, 126
        %v618 = vpop.permute.xlu0 %617
        %619 = vrot.lane.b32.xlu0 %v407, 126
        %v620 = vpop.permute.xlu0 %619
        %621 = vrot.lane.b32.xlu0 %v408, 126
        %v622 = vpop.permute.xlu0 %621
        %623 = vrot.lane.b32.xlu0 %v409, 126
        %v624 = vpop.permute.xlu0 %623
        %625 = vrot.lane.b32.xlu0 %v410, 126
        %v626 = vpop.permute.xlu0 %625
        %627 = vrot.lane.b32.xlu0 %v411, 126
        %v628 = vpop.permute.xlu0 %627
        %629 = vrot.lane.b32.xlu0 %v412, 126
        %v630 = vpop.permute.xlu0 %629
        %631 = vrot.lane.b32.xlu0 %v413, 126
        %v632 = vpop.permute.xlu0 %631
        %633 = vrot.lane.b32.xlu0 %v414, 126
        %v634 = vpop.permute.xlu0 %633
        %vm635 = vcmask 1031168
        %v636 = vsel %vm635, %v574, %v576
        %v637 = vsel %vm635, %v576, %v578
        %v638 = vsel %vm635, %v578, %v580
        %v639 = vsel %vm635, %v580, %v582
        %v640 = vsel %vm635, %v582, %v584
        %v641 = vsel %vm635, %v584, %v586
        %v642 = vsel %vm635, %v586, %v588
        %v643 = vsel %vm635, %v588, %v590
        %v644 = vsel %vm635, %v590, %v592
        %v645 = vsel %vm635, %v592, %v594
        %v646 = vsel %vm635, %v594, %v596
        %v647 = vsel %vm635, %v596, %v598
        %v648 = vsel %vm635, %v598, %v600
        %v649 = vsel %vm635, %v600, %v602
        %v650 = vsel %vm635, %v602, %v604
        %v651 = vsel %vm635, %v604, %v606
        %v652 = vsel %vm635, %v606, %v608
        %v653 = vsel %vm635, %v608, %v610
        %v654 = vsel %vm635, %v610, %v612
        %v655 = vsel %vm635, %v612, %v614
        %v656 = vsel %vm635, %v614, %v616
        %v657 = vsel %vm635, %v616, %v618
        %v658 = vsel %vm635, %v618, %v620
        %v659 = vsel %vm635, %v620, %v622
        %v660 = vsel %vm635, %v622, %v624
        %v661 = vsel %vm635, %v624, %v626
        %v662 = vsel %vm635, %v626, %v628
        %v663 = vsel %vm635, %v628, %v630
        %v664 = vsel %vm635, %v630, %v632
        %v665 = vsel %vm635, %v632, %v634
        %698 = vrot.lane.b32.xlu0 %v384, 64
        %v699 = vpop.permute.xlu0 %698
        %700 = vrot.lane.b32.xlu0 %v385, 64
        %v701 = vpop.permute.xlu0 %700
        %702 = vrot.lane.b32.xlu0 %v386, 64
        %v703 = vpop.permute.xlu0 %702
        %704 = vrot.lane.b32.xlu0 %v387, 64
        %v705 = vpop.permute.xlu0 %704
        %706 = vrot.lane.b32.xlu0 %v388, 64
        %v707 = vpop.permute.xlu0 %706
        %708 = vrot.lane.b32.xlu0 %v389, 64
        %v709 = vpop.permute.xlu0 %708
        %710 = vrot.lane.b32.xlu0 %v390, 64
        %v711 = vpop.permute.xlu0 %710
        %712 = vrot.lane.b32.xlu0 %v391, 64
        %v713 = vpop.permute.xlu0 %712
        %714 = vrot.lane.b32.xlu0 %v392, 64
        %v715 = vpop.permute.xlu0 %714
        %716 = vrot.lane.b32.xlu0 %v393, 64
        %v717 = vpop.permute.xlu0 %716
        %718 = vrot.lane.b32.xlu0 %v394, 64
        %v719 = vpop.permute.xlu0 %718
        %720 = vrot.lane.b32.xlu0 %v395, 64
        %v721 = vpop.permute.xlu0 %720
        %722 = vrot.lane.b32.xlu0 %v396, 64
        %v723 = vpop.permute.xlu0 %722
        %724 = vrot.lane.b32.xlu0 %v397, 64
        %v725 = vpop.permute.xlu0 %724
        %726 = vrot.lane.b32.xlu0 %v398, 64
        %v727 = vpop.permute.xlu0 %726
        %728 = vrot.lane.b32.xlu0 %v399, 64
        %v729 = vpop.permute.xlu0 %728
        %730 = vrot.lane.b32.xlu0 %v400, 64
        %v731 = vpop.permute.xlu0 %730
        %732 = vrot.lane.b32.xlu0 %v401, 64
        %v733 = vpop.permute.xlu0 %732
        %734 = vrot.lane.b32.xlu0 %v402, 64
        %v735 = vpop.permute.xlu0 %734
        %736 = vrot.lane.b32.xlu0 %v403, 64
        %v737 = vpop.permute.xlu0 %736
        %738 = vrot.lane.b32.xlu0 %v404, 64
        %v739 = vpop.permute.xlu0 %738
        %740 = vrot.lane.b32.xlu0 %v405, 64
        %v741 = vpop.permute.xlu0 %740
        %742 = vrot.lane.b32.xlu0 %v406, 64
        %v743 = vpop.permute.xlu0 %742
        %744 = vrot.lane.b32.xlu0 %v407, 64
        %v745 = vpop.permute.xlu0 %744
        %746 = vrot.lane.b32.xlu0 %v408, 64
        %v747 = vpop.permute.xlu0 %746
        %748 = vrot.lane.b32.xlu0 %v409, 64
        %v749 = vpop.permute.xlu0 %748
        %750 = vrot.lane.b32.xlu0 %v410, 64
        %v751 = vpop.permute.xlu0 %750
        %752 = vrot.lane.b32.xlu0 %v411, 64
        %v753 = vpop.permute.xlu0 %752
        %754 = vrot.lane.b32.xlu0 %v412, 64
        %v755 = vpop.permute.xlu0 %754
        %756 = vrot.lane.b32.xlu0 %v413, 64
        %v757 = vpop.permute.xlu0 %756
        %758 = vrot.lane.b32.xlu0 %v414, 64
        %v759 = vpop.permute.xlu0 %758
        %760 = vrot.lane.b32.xlu0 %v415, 64
        %v761 = vpop.permute.xlu0 %760
        %vm762 = vcmask 523264
        %v763 = vsel %vm762, %v699, %v701
        %v764 = vsel %vm762, %v701, %v703
        %v765 = vsel %vm762, %v703, %v705
        %v766 = vsel %vm762, %v705, %v707
        %v767 = vsel %vm762, %v707, %v709
        %v768 = vsel %vm762, %v709, %v711
        %v769 = vsel %vm762, %v711, %v713
        %v770 = vsel %vm762, %v713, %v715
        %v771 = vsel %vm762, %v715, %v717
        %v772 = vsel %vm762, %v717, %v719
        %v773 = vsel %vm762, %v719, %v721
        %v774 = vsel %vm762, %v721, %v723
        %v775 = vsel %vm762, %v723, %v725
        %v776 = vsel %vm762, %v725, %v727
        %v777 = vsel %vm762, %v727, %v729
        %v778 = vsel %vm762, %v729, %v731
        %v779 = vsel %vm762, %v731, %v733
        %v780 = vsel %vm762, %v733, %v735
        %v781 = vsel %vm762, %v735, %v737
        %v782 = vsel %vm762, %v737, %v739
        %v783 = vsel %vm762, %v739, %v741
        %v784 = vsel %vm762, %v741, %v743
        %v785 = vsel %vm762, %v743, %v745
        %v786 = vsel %vm762, %v745, %v747
        %v787 = vsel %vm762, %v747, %v749
        %v788 = vsel %vm762, %v749, %v751
        %v789 = vsel %vm762, %v751, %v753
        %v790 = vsel %vm762, %v753, %v755
        %v791 = vsel %vm762, %v755, %v757
        %v792 = vsel %vm762, %v757, %v759
        %v793 = vsel %vm762, %v759, %v761
        %825 = vrot.lane.b32.xlu0 %v384, 63
        %v826 = vpop.permute.xlu0 %825
        %827 = vrot.lane.b32.xlu0 %v385, 63
        %v828 = vpop.permute.xlu0 %827
        %829 = vrot.lane.b32.xlu0 %v386, 63
        %v830 = vpop.permute.xlu0 %829
        %831 = vrot.lane.b32.xlu0 %v387, 63
        %v832 = vpop.permute.xlu0 %831
        %833 = vrot.lane.b32.xlu0 %v388, 63
        %v834 = vpop.permute.xlu0 %833
        %835 = vrot.lane.b32.xlu0 %v389, 63
        %v836 = vpop.permute.xlu0 %835
        %837 = vrot.lane.b32.xlu0 %v390, 63
        %v838 = vpop.permute.xlu0 %837
        %839 = vrot.lane.b32.xlu0 %v391, 63
        %v840 = vpop.permute.xlu0 %839
        %841 = vrot.lane.b32.xlu0 %v392, 63
        %v842 = vpop.permute.xlu0 %841
        %843 = vrot.lane.b32.xlu0 %v393, 63
        %v844 = vpop.permute.xlu0 %843
        %845 = vrot.lane.b32.xlu0 %v394, 63
        %v846 = vpop.permute.xlu0 %845
        %847 = vrot.lane.b32.xlu0 %v395, 63
        %v848 = vpop.permute.xlu0 %847
        %849 = vrot.lane.b32.xlu0 %v396, 63
        %v850 = vpop.permute.xlu0 %849
        %851 = vrot.lane.b32.xlu0 %v397, 63
        %v852 = vpop.permute.xlu0 %851
        %853 = vrot.lane.b32.xlu0 %v398, 63
        %v854 = vpop.permute.xlu0 %853
        %855 = vrot.lane.b32.xlu0 %v399, 63
        %v856 = vpop.permute.xlu0 %855
        %857 = vrot.lane.b32.xlu0 %v400, 63
        %v858 = vpop.permute.xlu0 %857
        %859 = vrot.lane.b32.xlu0 %v401, 63
        %v860 = vpop.permute.xlu0 %859
        %861 = vrot.lane.b32.xlu0 %v402, 63
        %v862 = vpop.permute.xlu0 %861
        %863 = vrot.lane.b32.xlu0 %v403, 63
        %v864 = vpop.permute.xlu0 %863
        %865 = vrot.lane.b32.xlu0 %v404, 63
        %v866 = vpop.permute.xlu0 %865
        %867 = vrot.lane.b32.xlu0 %v405, 63
        %v868 = vpop.permute.xlu0 %867
        %869 = vrot.lane.b32.xlu0 %v406, 63
        %v870 = vpop.permute.xlu0 %869
        %871 = vrot.lane.b32.xlu0 %v407, 63
        %v872 = vpop.permute.xlu0 %871
        %873 = vrot.lane.b32.xlu0 %v408, 63
        %v874 = vpop.permute.xlu0 %873
        %875 = vrot.lane.b32.xlu0 %v409, 63
        %v876 = vpop.permute.xlu0 %875
        %877 = vrot.lane.b32.xlu0 %v410, 63
        %v878 = vpop.permute.xlu0 %877
        %879 = vrot.lane.b32.xlu0 %v411, 63
        %v880 = vpop.permute.xlu0 %879
        %881 = vrot.lane.b32.xlu0 %v412, 63
        %v882 = vpop.permute.xlu0 %881
        %883 = vrot.lane.b32.xlu0 %v413, 63
        %v884 = vpop.permute.xlu0 %883
        %885 = vrot.lane.b32.xlu0 %v414, 63
        %v886 = vpop.permute.xlu0 %885
        %887 = vrot.lane.b32.xlu0 %v415, 63
        %v888 = vpop.permute.xlu0 %887
        %vm889 = vcmask 515072
        %v890 = vsel %vm889, %v826, %v828
        %v891 = vsel %vm889, %v828, %v830
        %v892 = vsel %vm889, %v830, %v832
        %v893 = vsel %vm889, %v832, %v834
        %v894 = vsel %vm889, %v834, %v836
        %v895 = vsel %vm889, %v836, %v838
        %v896 = vsel %vm889, %v838, %v840
        %v897 = vsel %vm889, %v840, %v842
        %v898 = vsel %vm889, %v842, %v844
        %v899 = vsel %vm889, %v844, %v846
        %v900 = vsel %vm889, %v846, %v848
        %v901 = vsel %vm889, %v848, %v850
        %v902 = vsel %vm889, %v850, %v852
        %v903 = vsel %vm889, %v852, %v854
        %v904 = vsel %vm889, %v854, %v856
        %v905 = vsel %vm889, %v856, %v858
        %v906 = vsel %vm889, %v858, %v860
        %v907 = vsel %vm889, %v860, %v862
        %v908 = vsel %vm889, %v862, %v864
        %v909 = vsel %vm889, %v864, %v866
        %v910 = vsel %vm889, %v866, %v868
        %v911 = vsel %vm889, %v868, %v870
        %v912 = vsel %vm889, %v870, %v872
        %v913 = vsel %vm889, %v872, %v874
        %v914 = vsel %vm889, %v874, %v876
        %v915 = vsel %vm889, %v876, %v878
        %v916 = vsel %vm889, %v878, %v880
        %v917 = vsel %vm889, %v880, %v882
        %v918 = vsel %vm889, %v882, %v884
        %v919 = vsel %vm889, %v884, %v886
        %v920 = vsel %vm889, %v886, %v888
        %952 = vrot.lane.b32.xlu0 %v384, 62
        %v953 = vpop.permute.xlu0 %952
        %954 = vrot.lane.b32.xlu0 %v385, 62
        %v955 = vpop.permute.xlu0 %954
        %956 = vrot.lane.b32.xlu0 %v386, 62
        %v957 = vpop.permute.xlu0 %956
        %958 = vrot.lane.b32.xlu0 %v387, 62
        %v959 = vpop.permute.xlu0 %958
        %960 = vrot.lane.b32.xlu0 %v388, 62
        %v961 = vpop.permute.xlu0 %960
        %962 = vrot.lane.b32.xlu0 %v389, 62
        %v963 = vpop.permute.xlu0 %962
        %964 = vrot.lane.b32.xlu0 %v390, 62
        %v965 = vpop.permute.xlu0 %964
        %966 = vrot.lane.b32.xlu0 %v391, 62
        %v967 = vpop.permute.xlu0 %966
        %968 = vrot.lane.b32.xlu0 %v392, 62
        %v969 = vpop.permute.xlu0 %968
        %970 = vrot.lane.b32.xlu0 %v393, 62
        %v971 = vpop.permute.xlu0 %970
        %972 = vrot.lane.b32.xlu0 %v394, 62
        %v973 = vpop.permute.xlu0 %972
        %974 = vrot.lane.b32.xlu0 %v395, 62
        %v975 = vpop.permute.xlu0 %974
        %976 = vrot.lane.b32.xlu0 %v396, 62
        %v977 = vpop.permute.xlu0 %976
        %978 = vrot.lane.b32.xlu0 %v397, 62
        %v979 = vpop.permute.xlu0 %978
        %980 = vrot.lane.b32.xlu0 %v398, 62
        %v981 = vpop.permute.xlu0 %980
        %982 = vrot.lane.b32.xlu0 %v399, 62
        %v983 = vpop.permute.xlu0 %982
        %984 = vrot.lane.b32.xlu0 %v400, 62
        %v985 = vpop.permute.xlu0 %984
        %986 = vrot.lane.b32.xlu0 %v401, 62
        %v987 = vpop.permute.xlu0 %986
        %988 = vrot.lane.b32.xlu0 %v402, 62
        %v989 = vpop.permute.xlu0 %988
        %990 = vrot.lane.b32.xlu0 %v403, 62
        %v991 = vpop.permute.xlu0 %990
        %992 = vrot.lane.b32.xlu0 %v404, 62
        %v993 = vpop.permute.xlu0 %992
        %994 = vrot.lane.b32.xlu0 %v405, 62
        %v995 = vpop.permute.xlu0 %994
        %996 = vrot.lane.b32.xlu0 %v406, 62
        %v997 = vpop.permute.xlu0 %996
        %998 = vrot.lane.b32.xlu0 %v407, 62
        %v999 = vpop.permute.xlu0 %998
        %1000 = vrot.lane.b32.xlu0 %v408, 62
        %v1001 = vpop.permute.xlu0 %1000
        %1002 = vrot.lane.b32.xlu0 %v409, 62
        %v1003 = vpop.permute.xlu0 %1002
        %1004 = vrot.lane.b32.xlu0 %v410, 62
        %v1005 = vpop.permute.xlu0 %1004
        %1006 = vrot.lane.b32.xlu0 %v411, 62
        %v1007 = vpop.permute.xlu0 %1006
        %1008 = vrot.lane.b32.xlu0 %v412, 62
        %v1009 = vpop.permute.xlu0 %1008
        %1010 = vrot.lane.b32.xlu0 %v413, 62
        %v1011 = vpop.permute.xlu0 %1010
        %1012 = vrot.lane.b32.xlu0 %v414, 62
        %v1013 = vpop.permute.xlu0 %1012
        %1014 = vrot.lane.b32.xlu0 %v415, 62
        %v1015 = vpop.permute.xlu0 %1014
        %vm1016 = vcmask 506880
        %v1017 = vsel %vm1016, %v953, %v955
        %v1018 = vsel %vm1016, %v955, %v957
        %v1019 = vsel %vm1016, %v957, %v959
        %v1020 = vsel %vm1016, %v959, %v961
        %v1021 = vsel %vm1016, %v961, %v963
        %v1022 = vsel %vm1016, %v963, %v965
        %v1023 = vsel %vm1016, %v965, %v967
        %v1024 = vsel %vm1016, %v967, %v969
        %v1025 = vsel %vm1016, %v969, %v971
        %v1026 = vsel %vm1016, %v971, %v973
        %v1027 = vsel %vm1016, %v973, %v975
        %v1028 = vsel %vm1016, %v975, %v977
        %v1029 = vsel %vm1016, %v977, %v979
        %v1030 = vsel %vm1016, %v979, %v981
        %v1031 = vsel %vm1016, %v981, %v983
        %v1032 = vsel %vm1016, %v983, %v985
        %v1033 = vsel %vm1016, %v985, %v987
        %v1034 = vsel %vm1016, %v987, %v989
        %v1035 = vsel %vm1016, %v989, %v991
        %v1036 = vsel %vm1016, %v991, %v993
        %v1037 = vsel %vm1016, %v993, %v995
        %v1038 = vsel %vm1016, %v995, %v997
        %v1039 = vsel %vm1016, %v997, %v999
        %v1040 = vsel %vm1016, %v999, %v1001
        %v1041 = vsel %vm1016, %v1001, %v1003
        %v1042 = vsel %vm1016, %v1003, %v1005
        %v1043 = vsel %vm1016, %v1005, %v1007
        %v1044 = vsel %vm1016, %v1007, %v1009
        %v1045 = vsel %vm1016, %v1009, %v1011
        %v1046 = vsel %vm1016, %v1011, %v1013
        %v1047 = vsel %vm1016, %v1013, %v1015
        %1079 = vrot.lane.b32.xlu0 %v415, 127
        %v1080 = vpop.permute.xlu0 %1079
        %v1081 = vsel %vm511, %v510, %v1080
        %1084 = vrot.lane.b32.xlu0 %v415, 126
        %v1085 = vpop.permute.xlu0 %1084
        %v1086 = vsel %vm635, %v634, %v1085
        %1090 = vset.pattern.permute.xlu0 0
        %1091 = vperm.xlu0 %1090, %v417
        %v1092 = vpop.permute.xlu0 %1091
        %vm1094 = vcmask 588800
        %v1096 = vsel %vm1094, %v416, 0
        %1098 = vmatprep.subr.mxu0 %v385
        %1099 = vmatpush1.msra.mxu0 %v384
        %1100 = vmatprep.subr.mxu0 %v513
        %1101 = vmatpush1.msra.mxu0 %v512
        %1102 = vmatprep.subr.mxu0 %v637
        %1103 = vmatpush1.msra.mxu0 %v636
        %1104 = vmatprep.subr.mxu0 %v764
        %1105 = vmatpush1.msra.mxu0 %v763
        %1106 = vmatprep.subr.mxu0 %v891
        %1107 = vmatpush1.msra.mxu0 %v890
        %1108 = vmatprep.subr.mxu0 %v1018
        %1109 = vmatpush1.msra.mxu0 %v1017
        %1110 = vmatprep.subr.mxu0 %v386
        %1111 = vmatpush1.msra.mxu0 %v385
        %1112 = vmatprep.subr.mxu0 %v514
        %1113 = vmatpush1.msra.mxu0 %v513
        %1114 = vmatprep.subr.mxu0 %v638
        %1115 = vmatpush1.msra.mxu0 %v637
        %1116 = vmatprep.subr.mxu0 0.0
        %1117 = vmatpush1.msra.mxu0 0.0
        %1118 = vmatprep.subr.mxu0 0.0
        %1119 = vmatpush1.msra.mxu0 0.0
        %1120 = vmatprep.subr.mxu0 0.0
        %1121 = vmatpush1.msra.mxu0 0.0
        %1122 = vmatprep.subr.mxu0 0.0
        %1123 = vmatpush1.msra.mxu0 0.0
        %1124 = vmatprep.subr.mxu0 0.0
        %1125 = vmatpush1.msra.mxu0 0.0
        %1126 = vmatprep.subr.mxu0 0.0
        %1127 = vmatpush1.msra.mxu0 0.0
        %1128 = vmatprep.subr.mxu0 0.0
        %1129 = vmatpush1.msra.mxu0 0.0
        %1130 = vmatprep.subr.mxu0 0.0
        %1131 = vmatpush1.msra.mxu0 0.0
        %1132 = vmatprep.subr.mxu0 0.0
        %1133 = vmatpush1.msra.mxu0 0.0
        %1134 = vmatprep.subr.mxu0 0.0
        %1135 = vmatpush1.msra.mxu0 0.0
        %1136 = vmatprep.subr.mxu0 0.0
        %1137 = vmatpush1.msra.mxu0 0.0
        %1138 = vmatprep.subr.mxu0 0.0
        %1139 = vmatpush1.msra.mxu0 0.0
        %1140 = vmatprep.subr.mxu0 0.0
        %1141 = vmatpush1.msra.mxu0 0.0
        %1142 = vmatprep.subr.mxu0 0.0
        %1143 = vmatpush1.msra.mxu0 0.0
        %1144 = vmatprep.subr.mxu0 0.0
        %1145 = vmatpush1.msra.mxu0 0.0
        %1146 = vmatprep.subr.mxu0 0.0
        %1147 = vmatpush1.msra.mxu0 0.0
        %1148 = vmatprep.subr.mxu0 0.0
        %1149 = vmatpush1.msra.mxu0 0.0
        %1150 = vmatprep.subr.mxu0 0.0
        %1151 = vmatpush1.msra.mxu0 0.0
        %1152 = vmatprep.subr.mxu0 0.0
        %1153 = vmatpush1.msra.mxu0 0.0
        %1154 = vmatprep.subr.mxu0 0.0
        %1155 = vmatpush1.msra.mxu0 0.0
        %1156 = vmatprep.subr.mxu0 0.0
        %1157 = vmatpush1.msra.mxu0 0.0
        %1158 = vmatprep.subr.mxu0 0.0
        %1159 = vmatpush1.msra.mxu0 0.0
        %1160 = vmatprep.subr.mxu0 0.0
        %1161 = vmatpush1.msra.mxu0 0.0
        %1162 = vmatprep.mubr.f32.mxu0 0.0
        %1163 = vmatmul.mubr.f32.gmra.mrb[0].mxu0 %v1096
        %v1164 = vpop.f32.mrb[0].mxu0
        %v1165 = vadd.f32 %v1092, %v1164
        %v1166 = vpop.f32.mrb[0].mxu0
        %v1167 = vadd.f32 %v1092, %v1166
        %1168 = vdwg.mxu0
        %1169 = vmatprep.subr.mxu0 %v387
        %1170 = vmatpush1.msra.mxu0 %v386
        %1171 = vmatprep.subr.mxu0 %v515
        %1172 = vmatpush1.msra.mxu0 %v514
        %1173 = vmatprep.subr.mxu0 %v639
        %1174 = vmatpush1.msra.mxu0 %v638
        %1175 = vmatprep.subr.mxu0 %v766
        %1176 = vmatpush1.msra.mxu0 %v765
        %1177 = vmatprep.subr.mxu0 %v893
        %1178 = vmatpush1.msra.mxu0 %v892
        %1179 = vmatprep.subr.mxu0 %v1020
        %1180 = vmatpush1.msra.mxu0 %v1019
        %1181 = vmatprep.subr.mxu0 %v388
        %1182 = vmatpush1.msra.mxu0 %v387
        %1183 = vmatprep.subr.mxu0 %v516
        %1184 = vmatpush1.msra.mxu0 %v515
        %1185 = vmatprep.subr.mxu0 %v640
        %1186 = vmatpush1.msra.mxu0 %v639
        %1187 = vmatprep.subr.mxu0 0.0
        %1188 = vmatpush1.msra.mxu0 0.0
        %1189 = vmatprep.subr.mxu0 0.0
        %1190 = vmatpush1.msra.mxu0 0.0
        %1191 = vmatprep.subr.mxu0 0.0
        %1192 = vmatpush1.msra.mxu0 0.0
        %1193 = vmatprep.subr.mxu0 0.0
        %1194 = vmatpush1.msra.mxu0 0.0
        %1195 = vmatprep.subr.mxu0 0.0
        %1196 = vmatpush1.msra.mxu0 0.0
        %1197 = vmatprep.subr.mxu0 0.0
        %1198 = vmatpush1.msra.mxu0 0.0
        %1199 = vmatprep.subr.mxu0 0.0
        %1200 = vmatpush1.msra.mxu0 0.0
        %1201 = vmatprep.subr.mxu0 0.0
        %1202 = vmatpush1.msra.mxu0 0.0
        %1203 = vmatprep.subr.mxu0 0.0
        %1204 = vmatpush1.msra.mxu0 0.0
        %1205 = vmatprep.subr.mxu0 0.0
        %1206 = vmatpush1.msra.mxu0 0.0
        %1207 = vmatprep.subr.mxu0 0.0
        %1208 = vmatpush1.msra.mxu0 0.0
        %1209 = vmatprep.subr.mxu0 0.0
        %1210 = vmatpush1.msra.mxu0 0.0
        %1211 = vmatprep.subr.mxu0 0.0
        %1212 = vmatpush1.msra.mxu0 0.0
        %1213 = vmatprep.subr.mxu0 0.0
        %1214 = vmatpush1.msra.mxu0 0.0
        %1215 = vmatprep.subr.mxu0 0.0
        %1216 = vmatpush1.msra.mxu0 0.0
        %1217 = vmatprep.subr.mxu0 0.0
        %1218 = vmatpush1.msra.mxu0 0.0
        %1219 = vmatprep.subr.mxu0 0.0
        %1220 = vmatpush1.msra.mxu0 0.0
        %1221 = vmatprep.subr.mxu0 0.0
        %1222 = vmatpush1.msra.mxu0 0.0
        %1223 = vmatprep.subr.mxu0 0.0
        %1224 = vmatpush1.msra.mxu0 0.0
        %1225 = vmatprep.subr.mxu0 0.0
        %1226 = vmatpush1.msra.mxu0 0.0
        %1227 = vmatprep.subr.mxu0 0.0
        %1228 = vmatpush1.msra.mxu0 0.0
        %1229 = vmatprep.subr.mxu0 0.0
        %1230 = vmatpush1.msra.mxu0 0.0
        %1231 = vmatprep.subr.mxu0 0.0
        %1232 = vmatpush1.msra.mxu0 0.0
        %1233 = vmatprep.mubr.f32.mxu0 0.0
        %1234 = vmatmul.mubr.f32.gmra.mrb[0].mxu0 %v1096
        %v1235 = vpop.f32.mrb[0].mxu0
        %v1236 = vadd.f32 %v1092, %v1235
        %v1237 = vpop.f32.mrb[0].mxu0
        %v1238 = vadd.f32 %v1092, %v1237
        %1239 = vdwg.mxu0
        %1240 = vmatprep.subr.mxu0 %v389
        %1241 = vmatpush1.msra.mxu0 %v388
        %1242 = vmatprep.subr.mxu0 %v517
        %1243 = vmatpush1.msra.mxu0 %v516
        %1244 = vmatprep.subr.mxu0 %v641
        %1245 = vmatpush1.msra.mxu0 %v640
        %1246 = vmatprep.subr.mxu0 %v768
        %1247 = vmatpush1.msra.mxu0 %v767
        %1248 = vmatprep.subr.mxu0 %v895
        %1249 = vmatpush1.msra.mxu0 %v894
        %1250 = vmatprep.subr.mxu0 %v1022
        %1251 = vmatpush1.msra.mxu0 %v1021
        %1252 = vmatprep.subr.mxu0 %v390
        %1253 = vmatpush1.msra.mxu0 %v389
        %1254 = vmatprep.subr.mxu0 %v518
        %1255 = vmatpush1.msra.mxu0 %v517
        %1256 = vmatprep.subr.mxu0 %v642
        %1257 = vmatpush1.msra.mxu0 %v641
        %1258 = vmatprep.subr.mxu0 0.0
        %1259 = vmatpush1.msra.mxu0 0.0
        %1260 = vmatprep.subr.mxu0 0.0
        %1261 = vmatpush1.msra.mxu0 0.0
        %1262 = vmatprep.subr.mxu0 0.0
        %1263 = vmatpush1.msra.mxu0 0.0
        %1264 = vmatprep.subr.mxu0 0.0
        %1265 = vmatpush1.msra.mxu0 0.0
        %1266 = vmatprep.subr.mxu0 0.0
        %1267 = vmatpush1.msra.mxu0 0.0
        %1268 = vmatprep.subr.mxu0 0.0
        %1269 = vmatpush1.msra.mxu0 0.0
        %1270 = vmatprep.subr.mxu0 0.0
        %1271 = vmatpush1.msra.mxu0 0.0
        %1272 = vmatprep.subr.mxu0 0.0
        %1273 = vmatpush1.msra.mxu0 0.0
        %1274 = vmatprep.subr.mxu0 0.0
        %1275 = vmatpush1.msra.mxu0 0.0
        %1276 = vmatprep.subr.mxu0 0.0
        %1277 = vmatpush1.msra.mxu0 0.0
        %1278 = vmatprep.subr.mxu0 0.0
        %1279 = vmatpush1.msra.mxu0 0.0
        %1280 = vmatprep.subr.mxu0 0.0
        %1281 = vmatpush1.msra.mxu0 0.0
        %1282 = vmatprep.subr.mxu0 0.0
        %1283 = vmatpush1.msra.mxu0 0.0
        %1284 = vmatprep.subr.mxu0 0.0
        %1285 = vmatpush1.msra.mxu0 0.0
        %1286 = vmatprep.subr.mxu0 0.0
        %1287 = vmatpush1.msra.mxu0 0.0
        %1288 = vmatprep.subr.mxu0 0.0
        %1289 = vmatpush1.msra.mxu0 0.0
        %1290 = vmatprep.subr.mxu0 0.0
        %1291 = vmatpush1.msra.mxu0 0.0
        %1292 = vmatprep.subr.mxu0 0.0
        %1293 = vmatpush1.msra.mxu0 0.0
        %1294 = vmatprep.subr.mxu0 0.0
        %1295 = vmatpush1.msra.mxu0 0.0
        %1296 = vmatprep.subr.mxu0 0.0
        %1297 = vmatpush1.msra.mxu0 0.0
        %1298 = vmatprep.subr.mxu0 0.0
        %1299 = vmatpush1.msra.mxu0 0.0
        %1300 = vmatprep.subr.mxu0 0.0
        %1301 = vmatpush1.msra.mxu0 0.0
        %1302 = vmatprep.subr.mxu0 0.0
        %1303 = vmatpush1.msra.mxu0 0.0
        %1304 = vmatprep.mubr.f32.mxu0 0.0
        %1305 = vmatmul.mubr.f32.gmra.mrb[0].mxu0 %v1096
        %v1306 = vpop.f32.mrb[0].mxu0
        %v1307 = vadd.f32 %v1092, %v1306
        %v1308 = vpop.f32.mrb[0].mxu0
        %v1309 = vadd.f32 %v1092, %v1308
        %1310 = vdwg.mxu0
        %1311 = vmatprep.subr.mxu0 %v391
        %1312 = vmatpush1.msra.mxu0 %v390
        %1313 = vmatprep.subr.mxu0 %v519
        %1314 = vmatpush1.msra.mxu0 %v518
        %1315 = vmatprep.subr.mxu0 %v643
        %1316 = vmatpush1.msra.mxu0 %v642
        %1317 = vmatprep.subr.mxu0 %v770
        %1318 = vmatpush1.msra.mxu0 %v769
        %1319 = vmatprep.subr.mxu0 %v897
        %1320 = vmatpush1.msra.mxu0 %v896
        %1321 = vmatprep.subr.mxu0 %v1024
        %1322 = vmatpush1.msra.mxu0 %v1023
        %1323 = vmatprep.subr.mxu0 %v392
        %1324 = vmatpush1.msra.mxu0 %v391
        %1325 = vmatprep.subr.mxu0 %v520
        %1326 = vmatpush1.msra.mxu0 %v519
        %1327 = vmatprep.subr.mxu0 %v644
        %1328 = vmatpush1.msra.mxu0 %v643
        %1329 = vmatprep.subr.mxu0 0.0
        %1330 = vmatpush1.msra.mxu0 0.0
        %1331 = vmatprep.subr.mxu0 0.0
        %1332 = vmatpush1.msra.mxu0 0.0
        %1333 = vmatprep.subr.mxu0 0.0
        %1334 = vmatpush1.msra.mxu0 0.0
        %1335 = vmatprep.subr.mxu0 0.0
        %1336 = vmatpush1.msra.mxu0 0.0
        %1337 = vmatprep.subr.mxu0 0.0
        %1338 = vmatpush1.msra.mxu0 0.0
        %1339 = vmatprep.subr.mxu0 0.0
        %1340 = vmatpush1.msra.mxu0 0.0
        %1341 = vmatprep.subr.mxu0 0.0
        %1342 = vmatpush1.msra.mxu0 0.0
        %1343 = vmatprep.subr.mxu0 0.0
        %1344 = vmatpush1.msra.mxu0 0.0
        %1345 = vmatprep.subr.mxu0 0.0
        %1346 = vmatpush1.msra.mxu0 0.0
        %1347 = vmatprep.subr.mxu0 0.0
        %1348 = vmatpush1.msra.mxu0 0.0
        %1349 = vmatprep.subr.mxu0 0.0
        %1350 = vmatpush1.msra.mxu0 0.0
        %1351 = vmatprep.subr.mxu0 0.0
        %1352 = vmatpush1.msra.mxu0 0.0
        %1353 = vmatprep.subr.mxu0 0.0
        %1354 = vmatpush1.msra.mxu0 0.0
        %1355 = vmatprep.subr.mxu0 0.0
        %1356 = vmatpush1.msra.mxu0 0.0
        %1357 = vmatprep.subr.mxu0 0.0
        %1358 = vmatpush1.msra.mxu0 0.0
        %1359 = vmatprep.subr.mxu0 0.0
        %1360 = vmatpush1.msra.mxu0 0.0
        %1361 = vmatprep.subr.mxu0 0.0
        %1362 = vmatpush1.msra.mxu0 0.0
        %1363 = vmatprep.subr.mxu0 0.0
        %1364 = vmatpush1.msra.mxu0 0.0
        %1365 = vmatprep.subr.mxu0 0.0
        %1366 = vmatpush1.msra.mxu0 0.0
        %1367 = vmatprep.subr.mxu0 0.0
        %1368 = vmatpush1.msra.mxu0 0.0
        %1369 = vmatprep.subr.mxu0 0.0
        %1370 = vmatpush1.msra.mxu0 0.0
        %1371 = vmatprep.subr.mxu0 0.0
        %1372 = vmatpush1.msra.mxu0 0.0
        %1373 = vmatprep.subr.mxu0 0.0
        %1374 = vmatpush1.msra.mxu0 0.0
        %1375 = vmatprep.mubr.f32.mxu0 0.0
        %1376 = vmatmul.mubr.f32.gmra.mrb[0].mxu0 %v1096
        %v1377 = vpop.f32.mrb[0].mxu0
        %v1378 = vadd.f32 %v1092, %v1377
        %v1379 = vpop.f32.mrb[0].mxu0
        %v1380 = vadd.f32 %v1092, %v1379
        %1381 = vdwg.mxu0
        %1382 = vmatprep.subr.mxu0 %v393
        %1383 = vmatpush1.msra.mxu0 %v392
        %1384 = vmatprep.subr.mxu0 %v521
        %1385 = vmatpush1.msra.mxu0 %v520
        %1386 = vmatprep.subr.mxu0 %v645
        %1387 = vmatpush1.msra.mxu0 %v644
        %1388 = vmatprep.subr.mxu0 %v772
        %1389 = vmatpush1.msra.mxu0 %v771
        %1390 = vmatprep.subr.mxu0 %v899
        %1391 = vmatpush1.msra.mxu0 %v898
        %1392 = vmatprep.subr.mxu0 %v1026
        %1393 = vmatpush1.msra.mxu0 %v1025
        %1394 = vmatprep.subr.mxu0 %v394
        %1395 = vmatpush1.msra.mxu0 %v393
        %1396 = vmatprep.subr.mxu0 %v522
        %1397 = vmatpush1.msra.mxu0 %v521
        %1398 = vmatprep.subr.mxu0 %v646
        %1399 = vmatpush1.msra.mxu0 %v645
        %1400 = vmatprep.subr.mxu0 0.0
        %1401 = vmatpush1.msra.mxu0 0.0
        %1402 = vmatprep.subr.mxu0 0.0
        %1403 = vmatpush1.msra.mxu0 0.0
        %1404 = vmatprep.subr.mxu0 0.0
        %1405 = vmatpush1.msra.mxu0 0.0
        %1406 = vmatprep.subr.mxu0 0.0
        %1407 = vmatpush1.msra.mxu0 0.0
        %1408 = vmatprep.subr.mxu0 0.0
        %1409 = vmatpush1.msra.mxu0 0.0
        %1410 = vmatprep.subr.mxu0 0.0
        %1411 = vmatpush1.msra.mxu0 0.0
        %1412 = vmatprep.subr.mxu0 0.0
        %1413 = vmatpush1.msra.mxu0 0.0
        %1414 = vmatprep.subr.mxu0 0.0
        %1415 = vmatpush1.msra.mxu0 0.0
        %1416 = vmatprep.subr.mxu0 0.0
        %1417 = vmatpush1.msra.mxu0 0.0
        %1418 = vmatprep.subr.mxu0 0.0
        %1419 = vmatpush1.msra.mxu0 0.0
        %1420 = vmatprep.subr.mxu0 0.0
        %1421 = vmatpush1.msra.mxu0 0.0
        %1422 = vmatprep.subr.mxu0 0.0
        %1423 = vmatpush1.msra.mxu0 0.0
        %1424 = vmatprep.subr.mxu0 0.0
        %1425 = vmatpush1.msra.mxu0 0.0
        %1426 = vmatprep.subr.mxu0 0.0
        %1427 = vmatpush1.msra.mxu0 0.0
        %1428 = vmatprep.subr.mxu0 0.0
        %1429 = vmatpush1.msra.mxu0 0.0
        %1430 = vmatprep.subr.mxu0 0.0
        %1431 = vmatpush1.msra.mxu0 0.0
        %1432 = vmatprep.subr.mxu0 0.0
        %1433 = vmatpush1.msra.mxu0 0.0
        %1434 = vmatprep.subr.mxu0 0.0
        %1435 = vmatpush1.msra.mxu0 0.0
        %1436 = vmatprep.subr.mxu0 0.0
        %1437 = vmatpush1.msra.mxu0 0.0
        %1438 = vmatprep.subr.mxu0 0.0
        %1439 = vmatpush1.msra.mxu0 0.0
        %1440 = vmatprep.subr.mxu0 0.0
        %1441 = vmatpush1.msra.mxu0 0.0
        %1442 = vmatprep.subr.mxu0 0.0
        %1443 = vmatpush1.msra.mxu0 0.0
        %1444 = vmatprep.subr.mxu0 0.0
        %1445 = vmatpush1.msra.mxu0 0.0
        %1446 = vmatprep.mubr.f32.mxu0 0.0
        %1447 = vmatmul.mubr.f32.gmra.mrb[0].mxu0 %v1096
        %v1448 = vpop.f32.mrb[0].mxu0
        %v1449 = vadd.f32 %v1092, %v1448
        %v1450 = vpop.f32.mrb[0].mxu0
        %v1451 = vadd.f32 %v1092, %v1450
        %1452 = vdwg.mxu0
        %1453 = vmatprep.subr.mxu0 %v395
        %1454 = vmatpush1.msra.mxu0 %v394
        %1455 = vmatprep.subr.mxu0 %v523
        %1456 = vmatpush1.msra.mxu0 %v522
        %1457 = vmatprep.subr.mxu0 %v647
        %1458 = vmatpush1.msra.mxu0 %v646
        %1459 = vmatprep.subr.mxu0 %v774
        %1460 = vmatpush1.msra.mxu0 %v773
        %1461 = vmatprep.subr.mxu0 %v901
        %1462 = vmatpush1.msra.mxu0 %v900
        %1463 = vmatprep.subr.mxu0 %v1028
        %1464 = vmatpush1.msra.mxu0 %v1027
        %1465 = vmatprep.subr.mxu0 %v396
        %1466 = vmatpush1.msra.mxu0 %v395
        %1467 = vmatprep.subr.mxu0 %v524
        %1468 = vmatpush1.msra.mxu0 %v523
        %1469 = vmatprep.subr.mxu0 %v648
        %1470 = vmatpush1.msra.mxu0 %v647
        %1471 = vmatprep.subr.mxu0 0.0
        %1472 = vmatpush1.msra.mxu0 0.0
        %1473 = vmatprep.subr.mxu0 0.0
        %1474 = vmatpush1.msra.mxu0 0.0
        %1475 = vmatprep.subr.mxu0 0.0
        %1476 = vmatpush1.msra.mxu0 0.0
        %1477 = vmatprep.subr.mxu0 0.0
        %1478 = vmatpush1.msra.mxu0 0.0
        %1479 = vmatprep.subr.mxu0 0.0
        %1480 = vmatpush1.msra.mxu0 0.0
        %1481 = vmatprep.subr.mxu0 0.0
        %1482 = vmatpush1.msra.mxu0 0.0
        %1483 = vmatprep.subr.mxu0 0.0
        %1484 = vmatpush1.msra.mxu0 0.0
        %1485 = vmatprep.subr.mxu0 0.0
        %1486 = vmatpush1.msra.mxu0 0.0
        %1487 = vmatprep.subr.mxu0 0.0
        %1488 = vmatpush1.msra.mxu0 0.0
        %1489 = vmatprep.subr.mxu0 0.0
        %1490 = vmatpush1.msra.mxu0 0.0
        %1491 = vmatprep.subr.mxu0 0.0
        %1492 = vmatpush1.msra.mxu0 0.0
        %1493 = vmatprep.subr.mxu0 0.0
        %1494 = vmatpush1.msra.mxu0 0.0
        %1495 = vmatprep.subr.mxu0 0.0
        %1496 = vmatpush1.msra.mxu0 0.0
        %1497 = vmatprep.subr.mxu0 0.0
        %1498 = vmatpush1.msra.mxu0 0.0
        %1499 = vmatprep.subr.mxu0 0.0
        %1500 = vmatpush1.msra.mxu0 0.0
        %1501 = vmatprep.subr.mxu0 0.0
        %1502 = vmatpush1.msra.mxu0 0.0
        %1503 = vmatprep.subr.mxu0 0.0
        %1504 = vmatpush1.msra.mxu0 0.0
        %1505 = vmatprep.subr.mxu0 0.0
        %1506 = vmatpush1.msra.mxu0 0.0
        %1507 = vmatprep.subr.mxu0 0.0
        %1508 = vmatpush1.msra.mxu0 0.0
        %1509 = vmatprep.subr.mxu0 0.0
        %1510 = vmatpush1.msra.mxu0 0.0
        %1511 = vmatprep.subr.mxu0 0.0
        %1512 = vmatpush1.msra.mxu0 0.0
        %1513 = vmatprep.subr.mxu0 0.0
        %1514 = vmatpush1.msra.mxu0 0.0
        %1515 = vmatprep.subr.mxu0 0.0
        %1516 = vmatpush1.msra.mxu0 0.0
        %1517 = vmatprep.mubr.f32.mxu0 0.0
        %1518 = vmatmul.mubr.f32.gmra.mrb[0].mxu0 %v1096
        %v1519 = vpop.f32.mrb[0].mxu0
        %v1520 = vadd.f32 %v1092, %v1519
        %v1521 = vpop.f32.mrb[0].mxu0
        %v1522 = vadd.f32 %v1092, %v1521
        %1523 = vdwg.mxu0
        %1524 = vmatprep.subr.mxu0 %v397
        %1525 = vmatpush1.msra.mxu0 %v396
        %1526 = vmatprep.subr.mxu0 %v525
        %1527 = vmatpush1.msra.mxu0 %v524
        %1528 = vmatprep.subr.mxu0 %v649
        %1529 = vmatpush1.msra.mxu0 %v648
        %1530 = vmatprep.subr.mxu0 %v776
        %1531 = vmatpush1.msra.mxu0 %v775
        %1532 = vmatprep.subr.mxu0 %v903
        %1533 = vmatpush1.msra.mxu0 %v902
        %1534 = vmatprep.subr.mxu0 %v1030
        %1535 = vmatpush1.msra.mxu0 %v1029
        %1536 = vmatprep.subr.mxu0 %v398
        %1537 = vmatpush1.msra.mxu0 %v397
        %1538 = vmatprep.subr.mxu0 %v526
        %1539 = vmatpush1.msra.mxu0 %v525
        %1540 = vmatprep.subr.mxu0 %v650
        %1541 = vmatpush1.msra.mxu0 %v649
        %1542 = vmatprep.subr.mxu0 0.0
        %1543 = vmatpush1.msra.mxu0 0.0
        %1544 = vmatprep.subr.mxu0 0.0
        %1545 = vmatpush1.msra.mxu0 0.0
        %1546 = vmatprep.subr.mxu0 0.0
        %1547 = vmatpush1.msra.mxu0 0.0
        %1548 = vmatprep.subr.mxu0 0.0
        %1549 = vmatpush1.msra.mxu0 0.0
        %1550 = vmatprep.subr.mxu0 0.0
        %1551 = vmatpush1.msra.mxu0 0.0
        %1552 = vmatprep.subr.mxu0 0.0
        %1553 = vmatpush1.msra.mxu0 0.0
        %1554 = vmatprep.subr.mxu0 0.0
        %1555 = vmatpush1.msra.mxu0 0.0
        %1556 = vmatprep.subr.mxu0 0.0
        %1557 = vmatpush1.msra.mxu0 0.0
        %1558 = vmatprep.subr.mxu0 0.0
        %1559 = vmatpush1.msra.mxu0 0.0
        %1560 = vmatprep.subr.mxu0 0.0
        %1561 = vmatpush1.msra.mxu0 0.0
        %1562 = vmatprep.subr.mxu0 0.0
        %1563 = vmatpush1.msra.mxu0 0.0
        %1564 = vmatprep.subr.mxu0 0.0
        %1565 = vmatpush1.msra.mxu0 0.0
        %1566 = vmatprep.subr.mxu0 0.0
        %1567 = vmatpush1.msra.mxu0 0.0
        %1568 = vmatprep.subr.mxu0 0.0
        %1569 = vmatpush1.msra.mxu0 0.0
        %1570 = vmatprep.subr.mxu0 0.0
        %1571 = vmatpush1.msra.mxu0 0.0
        %1572 = vmatprep.subr.mxu0 0.0
        %1573 = vmatpush1.msra.mxu0 0.0
        %1574 = vmatprep.subr.mxu0 0.0
        %1575 = vmatpush1.msra.mxu0 0.0
        %1576 = vmatprep.subr.mxu0 0.0
        %1577 = vmatpush1.msra.mxu0 0.0
        %1578 = vmatprep.subr.mxu0 0.0
        %1579 = vmatpush1.msra.mxu0 0.0
        %1580 = vmatprep.subr.mxu0 0.0
        %1581 = vmatpush1.msra.mxu0 0.0
        %1582 = vmatprep.subr.mxu0 0.0
        %1583 = vmatpush1.msra.mxu0 0.0
        %1584 = vmatprep.subr.mxu0 0.0
        %1585 = vmatpush1.msra.mxu0 0.0
        %1586 = vmatprep.subr.mxu0 0.0
        %1587 = vmatpush1.msra.mxu0 0.0
        %1588 = vmatprep.mubr.f32.mxu0 0.0
        %1589 = vmatmul.mubr.f32.gmra.mrb[0].mxu0 %v1096
        %v1590 = vpop.f32.mrb[0].mxu0
        %v1591 = vadd.f32 %v1092, %v1590
        %v1592 = vpop.f32.mrb[0].mxu0
        %v1593 = vadd.f32 %v1092, %v1592
        %1594 = vdwg.mxu0
        %1595 = vmatprep.subr.mxu0 %v399
        %1596 = vmatpush1.msra.mxu0 %v398
        %1597 = vmatprep.subr.mxu0 %v527
        %1598 = vmatpush1.msra.mxu0 %v526
        %1599 = vmatprep.subr.mxu0 %v651
        %1600 = vmatpush1.msra.mxu0 %v650
        %1601 = vmatprep.subr.mxu0 %v778
        %1602 = vmatpush1.msra.mxu0 %v777
        %1603 = vmatprep.subr.mxu0 %v905
        %1604 = vmatpush1.msra.mxu0 %v904
        %1605 = vmatprep.subr.mxu0 %v1032
        %1606 = vmatpush1.msra.mxu0 %v1031
        %1607 = vmatprep.subr.mxu0 %v400
        %1608 = vmatpush1.msra.mxu0 %v399
        %1609 = vmatprep.subr.mxu0 %v528
        %1610 = vmatpush1.msra.mxu0 %v527
        %1611 = vmatprep.subr.mxu0 %v652
        %1612 = vmatpush1.msra.mxu0 %v651
        %1613 = vmatprep.subr.mxu0 0.0
        %1614 = vmatpush1.msra.mxu0 0.0
        %1615 = vmatprep.subr.mxu0 0.0
        %1616 = vmatpush1.msra.mxu0 0.0
        %1617 = vmatprep.subr.mxu0 0.0
        %1618 = vmatpush1.msra.mxu0 0.0
        %1619 = vmatprep.subr.mxu0 0.0
        %1620 = vmatpush1.msra.mxu0 0.0
        %1621 = vmatprep.subr.mxu0 0.0
        %1622 = vmatpush1.msra.mxu0 0.0
        %1623 = vmatprep.subr.mxu0 0.0
        %1624 = vmatpush1.msra.mxu0 0.0
        %1625 = vmatprep.subr.mxu0 0.0
        %1626 = vmatpush1.msra.mxu0 0.0
        %1627 = vmatprep.subr.mxu0 0.0
        %1628 = vmatpush1.msra.mxu0 0.0
        %1629 = vmatprep.subr.mxu0 0.0
        %1630 = vmatpush1.msra.mxu0 0.0
        %1631 = vmatprep.subr.mxu0 0.0
        %1632 = vmatpush1.msra.mxu0 0.0
        %1633 = vmatprep.subr.mxu0 0.0
        %1634 = vmatpush1.msra.mxu0 0.0
        %1635 = vmatprep.subr.mxu0 0.0
        %1636 = vmatpush1.msra.mxu0 0.0
        %1637 = vmatprep.subr.mxu0 0.0
        %1638 = vmatpush1.msra.mxu0 0.0
        %1639 = vmatprep.subr.mxu0 0.0
        %1640 = vmatpush1.msra.mxu0 0.0
        %1641 = vmatprep.subr.mxu0 0.0
        %1642 = vmatpush1.msra.mxu0 0.0
        %1643 = vmatprep.subr.mxu0 0.0
        %1644 = vmatpush1.msra.mxu0 0.0
        %1645 = vmatprep.subr.mxu0 0.0
        %1646 = vmatpush1.msra.mxu0 0.0
        %1647 = vmatprep.subr.mxu0 0.0
        %1648 = vmatpush1.msra.mxu0 0.0
        %1649 = vmatprep.subr.mxu0 0.0
        %1650 = vmatpush1.msra.mxu0 0.0
        %1651 = vmatprep.subr.mxu0 0.0
        %1652 = vmatpush1.msra.mxu0 0.0
        %1653 = vmatprep.subr.mxu0 0.0
        %1654 = vmatpush1.msra.mxu0 0.0
        %1655 = vmatprep.subr.mxu0 0.0
        %1656 = vmatpush1.msra.mxu0 0.0
        %1657 = vmatprep.subr.mxu0 0.0
        %1658 = vmatpush1.msra.mxu0 0.0
        %1659 = vmatprep.mubr.f32.mxu0 0.0
        %1660 = vmatmul.mubr.f32.gmra.mrb[0].mxu0 %v1096
        %v1661 = vpop.f32.mrb[0].mxu0
        %v1662 = vadd.f32 %v1092, %v1661
        %v1663 = vpop.f32.mrb[0].mxu0
        %v1664 = vadd.f32 %v1092, %v1663
        %1665 = vdwg.mxu0
        %1666 = vmatprep.subr.mxu0 %v401
        %1667 = vmatpush1.msra.mxu0 %v400
        %1668 = vmatprep.subr.mxu0 %v529
        %1669 = vmatpush1.msra.mxu0 %v528
        %1670 = vmatprep.subr.mxu0 %v653
        %1671 = vmatpush1.msra.mxu0 %v652
        %1672 = vmatprep.subr.mxu0 %v780
        %1673 = vmatpush1.msra.mxu0 %v779
        %1674 = vmatprep.subr.mxu0 %v907
        %1675 = vmatpush1.msra.mxu0 %v906
        %1676 = vmatprep.subr.mxu0 %v1034
        %1677 = vmatpush1.msra.mxu0 %v1033
        %1678 = vmatprep.subr.mxu0 %v402
        %1679 = vmatpush1.msra.mxu0 %v401
        %1680 = vmatprep.subr.mxu0 %v530
        %1681 = vmatpush1.msra.mxu0 %v529
        %1682 = vmatprep.subr.mxu0 %v654
        %1683 = vmatpush1.msra.mxu0 %v653
        %1684 = vmatprep.subr.mxu0 0.0
        %1685 = vmatpush1.msra.mxu0 0.0
        %1686 = vmatprep.subr.mxu0 0.0
        %1687 = vmatpush1.msra.mxu0 0.0
        %1688 = vmatprep.subr.mxu0 0.0
        %1689 = vmatpush1.msra.mxu0 0.0
        %1690 = vmatprep.subr.mxu0 0.0
        %1691 = vmatpush1.msra.mxu0 0.0
        %1692 = vmatprep.subr.mxu0 0.0
        %1693 = vmatpush1.msra.mxu0 0.0
        %1694 = vmatprep.subr.mxu0 0.0
        %1695 = vmatpush1.msra.mxu0 0.0
        %1696 = vmatprep.subr.mxu0 0.0
        %1697 = vmatpush1.msra.mxu0 0.0
        %1698 = vmatprep.subr.mxu0 0.0
        %1699 = vmatpush1.msra.mxu0 0.0
        %1700 = vmatprep.subr.mxu0 0.0
        %1701 = vmatpush1.msra.mxu0 0.0
        %1702 = vmatprep.subr.mxu0 0.0
        %1703 = vmatpush1.msra.mxu0 0.0
        %1704 = vmatprep.subr.mxu0 0.0
        %1705 = vmatpush1.msra.mxu0 0.0
        %1706 = vmatprep.subr.mxu0 0.0
        %1707 = vmatpush1.msra.mxu0 0.0
        %1708 = vmatprep.subr.mxu0 0.0
        %1709 = vmatpush1.msra.mxu0 0.0
        %1710 = vmatprep.subr.mxu0 0.0
        %1711 = vmatpush1.msra.mxu0 0.0
        %1712 = vmatprep.subr.mxu0 0.0
        %1713 = vmatpush1.msra.mxu0 0.0
        %1714 = vmatprep.subr.mxu0 0.0
        %1715 = vmatpush1.msra.mxu0 0.0
        %1716 = vmatprep.subr.mxu0 0.0
        %1717 = vmatpush1.msra.mxu0 0.0
        %1718 = vmatprep.subr.mxu0 0.0
        %1719 = vmatpush1.msra.mxu0 0.0
        %1720 = vmatprep.subr.mxu0 0.0
        %1721 = vmatpush1.msra.mxu0 0.0
        %1722 = vmatprep.subr.mxu0 0.0
        %1723 = vmatpush1.msra.mxu0 0.0
        %1724 = vmatprep.subr.mxu0 0.0
        %1725 = vmatpush1.msra.mxu0 0.0
        %1726 = vmatprep.subr.mxu0 0.0
        %1727 = vmatpush1.msra.mxu0 0.0
        %1728 = vmatprep.subr.mxu0 0.0
        %1729 = vmatpush1.msra.mxu0 0.0
        %1730 = vmatprep.mubr.f32.mxu0 0.0
        %1731 = vmatmul.mubr.f32.gmra.mrb[0].mxu0 %v1096
        %v1732 = vpop.f32.mrb[0].mxu0
        %v1733 = vadd.f32 %v1092, %v1732
        %v1734 = vpop.f32.mrb[0].mxu0
        %v1735 = vadd.f32 %v1092, %v1734
        %1736 = vdwg.mxu0
        %1737 = vmatprep.subr.mxu0 %v403
        %1738 = vmatpush1.msra.mxu0 %v402
        %1739 = vmatprep.subr.mxu0 %v531
        %1740 = vmatpush1.msra.mxu0 %v530
        %1741 = vmatprep.subr.mxu0 %v655
        %1742 = vmatpush1.msra.mxu0 %v654
        %1743 = vmatprep.subr.mxu0 %v782
        %1744 = vmatpush1.msra.mxu0 %v781
        %1745 = vmatprep.subr.mxu0 %v909
        %1746 = vmatpush1.msra.mxu0 %v908
        %1747 = vmatprep.subr.mxu0 %v1036
        %1748 = vmatpush1.msra.mxu0 %v1035
        %1749 = vmatprep.subr.mxu0 %v404
        %1750 = vmatpush1.msra.mxu0 %v403
        %1751 = vmatprep.subr.mxu0 %v532
        %1752 = vmatpush1.msra.mxu0 %v531
        %1753 = vmatprep.subr.mxu0 %v656
        %1754 = vmatpush1.msra.mxu0 %v655
        %1755 = vmatprep.subr.mxu0 0.0
        %1756 = vmatpush1.msra.mxu0 0.0
        %1757 = vmatprep.subr.mxu0 0.0
        %1758 = vmatpush1.msra.mxu0 0.0
        %1759 = vmatprep.subr.mxu0 0.0
        %1760 = vmatpush1.msra.mxu0 0.0
        %1761 = vmatprep.subr.mxu0 0.0
        %1762 = vmatpush1.msra.mxu0 0.0
        %1763 = vmatprep.subr.mxu0 0.0
        %1764 = vmatpush1.msra.mxu0 0.0
        %1765 = vmatprep.subr.mxu0 0.0
        %1766 = vmatpush1.msra.mxu0 0.0
        %1767 = vmatprep.subr.mxu0 0.0
        %1768 = vmatpush1.msra.mxu0 0.0
        %1769 = vmatprep.subr.mxu0 0.0
        %1770 = vmatpush1.msra.mxu0 0.0
        %1771 = vmatprep.subr.mxu0 0.0
        %1772 = vmatpush1.msra.mxu0 0.0
        %1773 = vmatprep.subr.mxu0 0.0
        %1774 = vmatpush1.msra.mxu0 0.0
        %1775 = vmatprep.subr.mxu0 0.0
        %1776 = vmatpush1.msra.mxu0 0.0
        %1777 = vmatprep.subr.mxu0 0.0
        %1778 = vmatpush1.msra.mxu0 0.0
        %1779 = vmatprep.subr.mxu0 0.0
        %1780 = vmatpush1.msra.mxu0 0.0
        %1781 = vmatprep.subr.mxu0 0.0
        %1782 = vmatpush1.msra.mxu0 0.0
        %1783 = vmatprep.subr.mxu0 0.0
        %1784 = vmatpush1.msra.mxu0 0.0
        %1785 = vmatprep.subr.mxu0 0.0
        %1786 = vmatpush1.msra.mxu0 0.0
        %1787 = vmatprep.subr.mxu0 0.0
        %1788 = vmatpush1.msra.mxu0 0.0
        %1789 = vmatprep.subr.mxu0 0.0
        %1790 = vmatpush1.msra.mxu0 0.0
        %1791 = vmatprep.subr.mxu0 0.0
        %1792 = vmatpush1.msra.mxu0 0.0
        %1793 = vmatprep.subr.mxu0 0.0
        %1794 = vmatpush1.msra.mxu0 0.0
        %1795 = vmatprep.subr.mxu0 0.0
        %1796 = vmatpush1.msra.mxu0 0.0
        %1797 = vmatprep.subr.mxu0 0.0
        %1798 = vmatpush1.msra.mxu0 0.0
        %1799 = vmatprep.subr.mxu0 0.0
        %1800 = vmatpush1.msra.mxu0 0.0
        %1801 = vmatprep.mubr.f32.mxu0 0.0
        %1802 = vmatmul.mubr.f32.gmra.mrb[0].mxu0 %v1096
        %v1803 = vpop.f32.mrb[0].mxu0
        %v1804 = vadd.f32 %v1092, %v1803
        %v1805 = vpop.f32.mrb[0].mxu0
        %v1806 = vadd.f32 %v1092, %v1805
        %1807 = vdwg.mxu0
        %1808 = vmatprep.subr.mxu0 %v405
        %1809 = vmatpush1.msra.mxu0 %v404
        %1810 = vmatprep.subr.mxu0 %v533
        %1811 = vmatpush1.msra.mxu0 %v532
        %1812 = vmatprep.subr.mxu0 %v657
        %1813 = vmatpush1.msra.mxu0 %v656
        %1814 = vmatprep.subr.mxu0 %v784
        %1815 = vmatpush1.msra.mxu0 %v783
        %1816 = vmatprep.subr.mxu0 %v911
        %1817 = vmatpush1.msra.mxu0 %v910
        %1818 = vmatprep.subr.mxu0 %v1038
        %1819 = vmatpush1.msra.mxu0 %v1037
        %1820 = vmatprep.subr.mxu0 %v406
        %1821 = vmatpush1.msra.mxu0 %v405
        %1822 = vmatprep.subr.mxu0 %v534
        %1823 = vmatpush1.msra.mxu0 %v533
        %1824 = vmatprep.subr.mxu0 %v658
        %1825 = vmatpush1.msra.mxu0 %v657
        %1826 = vmatprep.subr.mxu0 0.0
        %1827 = vmatpush1.msra.mxu0 0.0
        %1828 = vmatprep.subr.mxu0 0.0
        %1829 = vmatpush1.msra.mxu0 0.0
        %1830 = vmatprep.subr.mxu0 0.0
        %1831 = vmatpush1.msra.mxu0 0.0
        %1832 = vmatprep.subr.mxu0 0.0
        %1833 = vmatpush1.msra.mxu0 0.0
        %1834 = vmatprep.subr.mxu0 0.0
        %1835 = vmatpush1.msra.mxu0 0.0
        %1836 = vmatprep.subr.mxu0 0.0
        %1837 = vmatpush1.msra.mxu0 0.0
        %1838 = vmatprep.subr.mxu0 0.0
        %1839 = vmatpush1.msra.mxu0 0.0
        %1840 = vmatprep.subr.mxu0 0.0
        %1841 = vmatpush1.msra.mxu0 0.0
        %1842 = vmatprep.subr.mxu0 0.0
        %1843 = vmatpush1.msra.mxu0 0.0
        %1844 = vmatprep.subr.mxu0 0.0
        %1845 = vmatpush1.msra.mxu0 0.0
        %1846 = vmatprep.subr.mxu0 0.0
        %1847 = vmatpush1.msra.mxu0 0.0
        %1848 = vmatprep.subr.mxu0 0.0
        %1849 = vmatpush1.msra.mxu0 0.0
        %1850 = vmatprep.subr.mxu0 0.0
        %1851 = vmatpush1.msra.mxu0 0.0
        %1852 = vmatprep.subr.mxu0 0.0
        %1853 = vmatpush1.msra.mxu0 0.0
        %1854 = vmatprep.subr.mxu0 0.0
        %1855 = vmatpush1.msra.mxu0 0.0
        %1856 = vmatprep.subr.mxu0 0.0
        %1857 = vmatpush1.msra.mxu0 0.0
        %1858 = vmatprep.subr.mxu0 0.0
        %1859 = vmatpush1.msra.mxu0 0.0
        %1860 = vmatprep.subr.mxu0 0.0
        %1861 = vmatpush1.msra.mxu0 0.0
        %1862 = vmatprep.subr.mxu0 0.0
        %1863 = vmatpush1.msra.mxu0 0.0
        %1864 = vmatprep.subr.mxu0 0.0
        %1865 = vmatpush1.msra.mxu0 0.0
        %1866 = vmatprep.subr.mxu0 0.0
        %1867 = vmatpush1.msra.mxu0 0.0
        %1868 = vmatprep.subr.mxu0 0.0
        %1869 = vmatpush1.msra.mxu0 0.0
        %1870 = vmatprep.subr.mxu0 0.0
        %1871 = vmatpush1.msra.mxu0 0.0
        %1872 = vmatprep.mubr.f32.mxu0 0.0
        %1873 = vmatmul.mubr.f32.gmra.mrb[0].mxu0 %v1096
        %v1874 = vpop.f32.mrb[0].mxu0
        %v1875 = vadd.f32 %v1092, %v1874
        %v1876 = vpop.f32.mrb[0].mxu0
        %v1877 = vadd.f32 %v1092, %v1876
        %1878 = vdwg.mxu0
        %1879 = vmatprep.subr.mxu0 %v407
        %1880 = vmatpush1.msra.mxu0 %v406
        %1881 = vmatprep.subr.mxu0 %v535
        %1882 = vmatpush1.msra.mxu0 %v534
        %1883 = vmatprep.subr.mxu0 %v659
        %1884 = vmatpush1.msra.mxu0 %v658
        %1885 = vmatprep.subr.mxu0 %v786
        %1886 = vmatpush1.msra.mxu0 %v785
        %1887 = vmatprep.subr.mxu0 %v913
        %1888 = vmatpush1.msra.mxu0 %v912
        %1889 = vmatprep.subr.mxu0 %v1040
        %1890 = vmatpush1.msra.mxu0 %v1039
        %1891 = vmatprep.subr.mxu0 %v408
        %1892 = vmatpush1.msra.mxu0 %v407
        %1893 = vmatprep.subr.mxu0 %v536
        %1894 = vmatpush1.msra.mxu0 %v535
        %1895 = vmatprep.subr.mxu0 %v660
        %1896 = vmatpush1.msra.mxu0 %v659
        %1897 = vmatprep.subr.mxu0 0.0
        %1898 = vmatpush1.msra.mxu0 0.0
        %1899 = vmatprep.subr.mxu0 0.0
        %1900 = vmatpush1.msra.mxu0 0.0
        %1901 = vmatprep.subr.mxu0 0.0
        %1902 = vmatpush1.msra.mxu0 0.0
        %1903 = vmatprep.subr.mxu0 0.0
        %1904 = vmatpush1.msra.mxu0 0.0
        %1905 = vmatprep.subr.mxu0 0.0
        %1906 = vmatpush1.msra.mxu0 0.0
        %1907 = vmatprep.subr.mxu0 0.0
        %1908 = vmatpush1.msra.mxu0 0.0
        %1909 = vmatprep.subr.mxu0 0.0
        %1910 = vmatpush1.msra.mxu0 0.0
        %1911 = vmatprep.subr.mxu0 0.0
        %1912 = vmatpush1.msra.mxu0 0.0
        %1913 = vmatprep.subr.mxu0 0.0
        %1914 = vmatpush1.msra.mxu0 0.0
        %1915 = vmatprep.subr.mxu0 0.0
        %1916 = vmatpush1.msra.mxu0 0.0
        %1917 = vmatprep.subr.mxu0 0.0
        %1918 = vmatpush1.msra.mxu0 0.0
        %1919 = vmatprep.subr.mxu0 0.0
        %1920 = vmatpush1.msra.mxu0 0.0
        %1921 = vmatprep.subr.mxu0 0.0
        %1922 = vmatpush1.msra.mxu0 0.0
        %1923 = vmatprep.subr.mxu0 0.0
        %1924 = vmatpush1.msra.mxu0 0.0
        %1925 = vmatprep.subr.mxu0 0.0
        %1926 = vmatpush1.msra.mxu0 0.0
        %1927 = vmatprep.subr.mxu0 0.0
        %1928 = vmatpush1.msra.mxu0 0.0
        %1929 = vmatprep.subr.mxu0 0.0
        %1930 = vmatpush1.msra.mxu0 0.0
        %1931 = vmatprep.subr.mxu0 0.0
        %1932 = vmatpush1.msra.mxu0 0.0
        %1933 = vmatprep.subr.mxu0 0.0
        %1934 = vmatpush1.msra.mxu0 0.0
        %1935 = vmatprep.subr.mxu0 0.0
        %1936 = vmatpush1.msra.mxu0 0.0
        %1937 = vmatprep.subr.mxu0 0.0
        %1938 = vmatpush1.msra.mxu0 0.0
        %1939 = vmatprep.subr.mxu0 0.0
        %1940 = vmatpush1.msra.mxu0 0.0
        %1941 = vmatprep.subr.mxu0 0.0
        %1942 = vmatpush1.msra.mxu0 0.0
        %1943 = vmatprep.mubr.f32.mxu0 0.0
        %1944 = vmatmul.mubr.f32.gmra.mrb[0].mxu0 %v1096
        %v1945 = vpop.f32.mrb[0].mxu0
        %v1946 = vadd.f32 %v1092, %v1945
        %v1947 = vpop.f32.mrb[0].mxu0
        %v1948 = vadd.f32 %v1092, %v1947
        %1949 = vdwg.mxu0
        %1950 = vmatprep.subr.mxu0 %v409
        %1951 = vmatpush1.msra.mxu0 %v408
        %1952 = vmatprep.subr.mxu0 %v537
        %1953 = vmatpush1.msra.mxu0 %v536
        %1954 = vmatprep.subr.mxu0 %v661
        %1955 = vmatpush1.msra.mxu0 %v660
        %1956 = vmatprep.subr.mxu0 %v788
        %1957 = vmatpush1.msra.mxu0 %v787
        %1958 = vmatprep.subr.mxu0 %v915
        %1959 = vmatpush1.msra.mxu0 %v914
        %1960 = vmatprep.subr.mxu0 %v1042
        %1961 = vmatpush1.msra.mxu0 %v1041
        %1962 = vmatprep.subr.mxu0 %v410
        %1963 = vmatpush1.msra.mxu0 %v409
        %1964 = vmatprep.subr.mxu0 %v538
        %1965 = vmatpush1.msra.mxu0 %v537
        %1966 = vmatprep.subr.mxu0 %v662
        %1967 = vmatpush1.msra.mxu0 %v661
        %1968 = vmatprep.subr.mxu0 0.0
        %1969 = vmatpush1.msra.mxu0 0.0
        %1970 = vmatprep.subr.mxu0 0.0
        %1971 = vmatpush1.msra.mxu0 0.0
        %1972 = vmatprep.subr.mxu0 0.0
        %1973 = vmatpush1.msra.mxu0 0.0
        %1974 = vmatprep.subr.mxu0 0.0
        %1975 = vmatpush1.msra.mxu0 0.0
        %1976 = vmatprep.subr.mxu0 0.0
        %1977 = vmatpush1.msra.mxu0 0.0
        %1978 = vmatprep.subr.mxu0 0.0
        %1979 = vmatpush1.msra.mxu0 0.0
        %1980 = vmatprep.subr.mxu0 0.0
        %1981 = vmatpush1.msra.mxu0 0.0
        %1982 = vmatprep.subr.mxu0 0.0
        %1983 = vmatpush1.msra.mxu0 0.0
        %1984 = vmatprep.subr.mxu0 0.0
        %1985 = vmatpush1.msra.mxu0 0.0
        %1986 = vmatprep.subr.mxu0 0.0
        %1987 = vmatpush1.msra.mxu0 0.0
        %1988 = vmatprep.subr.mxu0 0.0
        %1989 = vmatpush1.msra.mxu0 0.0
        %1990 = vmatprep.subr.mxu0 0.0
        %1991 = vmatpush1.msra.mxu0 0.0
        %1992 = vmatprep.subr.mxu0 0.0
        %1993 = vmatpush1.msra.mxu0 0.0
        %1994 = vmatprep.subr.mxu0 0.0
        %1995 = vmatpush1.msra.mxu0 0.0
        %1996 = vmatprep.subr.mxu0 0.0
        %1997 = vmatpush1.msra.mxu0 0.0
        %1998 = vmatprep.subr.mxu0 0.0
        %1999 = vmatpush1.msra.mxu0 0.0
        %2000 = vmatprep.subr.mxu0 0.0
        %2001 = vmatpush1.msra.mxu0 0.0
        %2002 = vmatprep.subr.mxu0 0.0
        %2003 = vmatpush1.msra.mxu0 0.0
        %2004 = vmatprep.subr.mxu0 0.0
        %2005 = vmatpush1.msra.mxu0 0.0
        %2006 = vmatprep.subr.mxu0 0.0
        %2007 = vmatpush1.msra.mxu0 0.0
        %2008 = vmatprep.subr.mxu0 0.0
        %2009 = vmatpush1.msra.mxu0 0.0
        %2010 = vmatprep.subr.mxu0 0.0
        %2011 = vmatpush1.msra.mxu0 0.0
        %2012 = vmatprep.subr.mxu0 0.0
        %2013 = vmatpush1.msra.mxu0 0.0
        %2014 = vmatprep.mubr.f32.mxu0 0.0
        %2015 = vmatmul.mubr.f32.gmra.mrb[0].mxu0 %v1096
        %v2016 = vpop.f32.mrb[0].mxu0
        %v2017 = vadd.f32 %v1092, %v2016
        %v2018 = vpop.f32.mrb[0].mxu0
        %v2019 = vadd.f32 %v1092, %v2018
        %2020 = vdwg.mxu0
        %2021 = vmatprep.subr.mxu0 %v411
        %2022 = vmatpush1.msra.mxu0 %v410
        %2023 = vmatprep.subr.mxu0 %v539
        %2024 = vmatpush1.msra.mxu0 %v538
        %2025 = vmatprep.subr.mxu0 %v663
        %2026 = vmatpush1.msra.mxu0 %v662
        %2027 = vmatprep.subr.mxu0 %v790
        %2028 = vmatpush1.msra.mxu0 %v789
        %2029 = vmatprep.subr.mxu0 %v917
        %2030 = vmatpush1.msra.mxu0 %v916
        %2031 = vmatprep.subr.mxu0 %v1044
        %2032 = vmatpush1.msra.mxu0 %v1043
        %2033 = vmatprep.subr.mxu0 %v412
        %2034 = vmatpush1.msra.mxu0 %v411
        %2035 = vmatprep.subr.mxu0 %v540
        %2036 = vmatpush1.msra.mxu0 %v539
        %2037 = vmatprep.subr.mxu0 %v664
        %2038 = vmatpush1.msra.mxu0 %v663
        %2039 = vmatprep.subr.mxu0 0.0
        %2040 = vmatpush1.msra.mxu0 0.0
        %2041 = vmatprep.subr.mxu0 0.0
        %2042 = vmatpush1.msra.mxu0 0.0
        %2043 = vmatprep.subr.mxu0 0.0
        %2044 = vmatpush1.msra.mxu0 0.0
        %2045 = vmatprep.subr.mxu0 0.0
        %2046 = vmatpush1.msra.mxu0 0.0
        %2047 = vmatprep.subr.mxu0 0.0
        %2048 = vmatpush1.msra.mxu0 0.0
        %2049 = vmatprep.subr.mxu0 0.0
        %2050 = vmatpush1.msra.mxu0 0.0
        %2051 = vmatprep.subr.mxu0 0.0
        %2052 = vmatpush1.msra.mxu0 0.0
        %2053 = vmatprep.subr.mxu0 0.0
        %2054 = vmatpush1.msra.mxu0 0.0
        %2055 = vmatprep.subr.mxu0 0.0
        %2056 = vmatpush1.msra.mxu0 0.0
        %2057 = vmatprep.subr.mxu0 0.0
        %2058 = vmatpush1.msra.mxu0 0.0
        %2059 = vmatprep.subr.mxu0 0.0
        %2060 = vmatpush1.msra.mxu0 0.0
        %2061 = vmatprep.subr.mxu0 0.0
        %2062 = vmatpush1.msra.mxu0 0.0
        %2063 = vmatprep.subr.mxu0 0.0
        %2064 = vmatpush1.msra.mxu0 0.0
        %2065 = vmatprep.subr.mxu0 0.0
        %2066 = vmatpush1.msra.mxu0 0.0
        %2067 = vmatprep.subr.mxu0 0.0
        %2068 = vmatpush1.msra.mxu0 0.0
        %2069 = vmatprep.subr.mxu0 0.0
        %2070 = vmatpush1.msra.mxu0 0.0
        %2071 = vmatprep.subr.mxu0 0.0
        %2072 = vmatpush1.msra.mxu0 0.0
        %2073 = vmatprep.subr.mxu0 0.0
        %2074 = vmatpush1.msra.mxu0 0.0
        %2075 = vmatprep.subr.mxu0 0.0
        %2076 = vmatpush1.msra.mxu0 0.0
        %2077 = vmatprep.subr.mxu0 0.0
        %2078 = vmatpush1.msra.mxu0 0.0
        %2079 = vmatprep.subr.mxu0 0.0
        %2080 = vmatpush1.msra.mxu0 0.0
        %2081 = vmatprep.subr.mxu0 0.0
        %2082 = vmatpush1.msra.mxu0 0.0
        %2083 = vmatprep.subr.mxu0 0.0
        %2084 = vmatpush1.msra.mxu0 0.0
        %2085 = vmatprep.mubr.f32.mxu0 0.0
        %2086 = vmatmul.mubr.f32.gmra.mrb[0].mxu0 %v1096
        %v2087 = vpop.f32.mrb[0].mxu0
        %v2088 = vadd.f32 %v1092, %v2087
        %v2089 = vpop.f32.mrb[0].mxu0
        %v2090 = vadd.f32 %v1092, %v2089
        %2091 = vdwg.mxu0
        %2092 = vmatprep.subr.mxu0 %v413
        %2093 = vmatpush1.msra.mxu0 %v412
        %2094 = vmatprep.subr.mxu0 %v541
        %2095 = vmatpush1.msra.mxu0 %v540
        %2096 = vmatprep.subr.mxu0 %v665
        %2097 = vmatpush1.msra.mxu0 %v664
        %2098 = vmatprep.subr.mxu0 %v792
        %2099 = vmatpush1.msra.mxu0 %v791
        %2100 = vmatprep.subr.mxu0 %v919
        %2101 = vmatpush1.msra.mxu0 %v918
        %2102 = vmatprep.subr.mxu0 %v1046
        %2103 = vmatpush1.msra.mxu0 %v1045
        %2104 = vmatprep.subr.mxu0 %v414
        %2105 = vmatpush1.msra.mxu0 %v413
        %2106 = vmatprep.subr.mxu0 %v1081
        %2107 = vmatpush1.msra.mxu0 %v541
        %2108 = vmatprep.subr.mxu0 %v1086
        %2109 = vmatpush1.msra.mxu0 %v665
        %2110 = vmatprep.subr.mxu0 0.0
        %2111 = vmatpush1.msra.mxu0 0.0
        %2112 = vmatprep.subr.mxu0 0.0
        %2113 = vmatpush1.msra.mxu0 0.0
        %2114 = vmatprep.subr.mxu0 0.0
        %2115 = vmatpush1.msra.mxu0 0.0
        %2116 = vmatprep.subr.mxu0 0.0
        %2117 = vmatpush1.msra.mxu0 0.0
        %2118 = vmatprep.subr.mxu0 0.0
        %2119 = vmatpush1.msra.mxu0 0.0
        %2120 = vmatprep.subr.mxu0 0.0
        %2121 = vmatpush1.msra.mxu0 0.0
        %2122 = vmatprep.subr.mxu0 0.0
        %2123 = vmatpush1.msra.mxu0 0.0
        %2124 = vmatprep.subr.mxu0 0.0
        %2125 = vmatpush1.msra.mxu0 0.0
        %2126 = vmatprep.subr.mxu0 0.0
        %2127 = vmatpush1.msra.mxu0 0.0
        %2128 = vmatprep.subr.mxu0 0.0
        %2129 = vmatpush1.msra.mxu0 0.0
        %2130 = vmatprep.subr.mxu0 0.0
        %2131 = vmatpush1.msra.mxu0 0.0
        %2132 = vmatprep.subr.mxu0 0.0
        %2133 = vmatpush1.msra.mxu0 0.0
        %2134 = vmatprep.subr.mxu0 0.0
        %2135 = vmatpush1.msra.mxu0 0.0
        %2136 = vmatprep.subr.mxu0 0.0
        %2137 = vmatpush1.msra.mxu0 0.0
        %2138 = vmatprep.subr.mxu0 0.0
        %2139 = vmatpush1.msra.mxu0 0.0
        %2140 = vmatprep.subr.mxu0 0.0
        %2141 = vmatpush1.msra.mxu0 0.0
        %2142 = vmatprep.subr.mxu0 0.0
        %2143 = vmatpush1.msra.mxu0 0.0
        %2144 = vmatprep.subr.mxu0 0.0
        %2145 = vmatpush1.msra.mxu0 0.0
        %2146 = vmatprep.subr.mxu0 0.0
        %2147 = vmatpush1.msra.mxu0 0.0
        %2148 = vmatprep.subr.mxu0 0.0
        %2149 = vmatpush1.msra.mxu0 0.0
        %2150 = vmatprep.subr.mxu0 0.0
        %2151 = vmatpush1.msra.mxu0 0.0
        %2152 = vmatprep.subr.mxu0 0.0
        %2153 = vmatpush1.msra.mxu0 0.0
        %2154 = vmatprep.subr.mxu0 0.0
        %2155 = vmatpush1.msra.mxu0 0.0
        %2156 = vmatprep.mubr.f32.mxu0 0.0
        %2157 = vmatmul.mubr.f32.gmra.mrb[0].mxu0 %v1096
        %v2158 = vpop.f32.mrb[0].mxu0
        %v2159 = vadd.f32 %v1092, %v2158
        %v2160 = vpop.f32.mrb[0].mxu0
        %v2161 = vadd.f32 %v1092, %v2160
        %2162 = vdwg.mxu0
        %2163 = vmatprep.subr.mxu0 0.0
        %2164 = vmatpush1.msra.mxu0 %v414
        %2165 = vmatprep.subr.mxu0 0.0
        %2166 = vmatpush1.msra.mxu0 %v510
        %2167 = vmatprep.subr.mxu0 0.0
        %2168 = vmatpush1.msra.mxu0 %v634
        %2169 = vmatprep.subr.mxu0 0.0
        %2170 = vmatpush1.msra.mxu0 %v793
        %2171 = vmatprep.subr.mxu0 0.0
        %2172 = vmatpush1.msra.mxu0 %v920
        %2173 = vmatprep.subr.mxu0 0.0
        %2174 = vmatpush1.msra.mxu0 %v1047
        %2175 = vmatprep.subr.mxu0 0.0
        %2176 = vmatpush1.msra.mxu0 %v415
        %2177 = vmatprep.subr.mxu0 0.0
        %2178 = vmatpush1.msra.mxu0 %v1080
        %2179 = vmatprep.subr.mxu0 0.0
        %2180 = vmatpush1.msra.mxu0 %v1085
        %2181 = vmatprep.subr.mxu0 0.0
        %2182 = vmatpush1.msra.mxu0 0.0
        %2183 = vmatprep.subr.mxu0 0.0
        %2184 = vmatpush1.msra.mxu0 0.0
        %2185 = vmatprep.subr.mxu0 0.0
        %2186 = vmatpush1.msra.mxu0 0.0
        %2187 = vmatprep.subr.mxu0 0.0
        %2188 = vmatpush1.msra.mxu0 0.0
        %2189 = vmatprep.subr.mxu0 0.0
        %2190 = vmatpush1.msra.mxu0 0.0
        %2191 = vmatprep.subr.mxu0 0.0
        %2192 = vmatpush1.msra.mxu0 0.0
        %2193 = vmatprep.subr.mxu0 0.0
        %2194 = vmatpush1.msra.mxu0 0.0
        %2195 = vmatprep.subr.mxu0 0.0
        %2196 = vmatpush1.msra.mxu0 0.0
        %2197 = vmatprep.subr.mxu0 0.0
        %2198 = vmatpush1.msra.mxu0 0.0
        %2199 = vmatprep.subr.mxu0 0.0
        %2200 = vmatpush1.msra.mxu0 0.0
        %2201 = vmatprep.subr.mxu0 0.0
        %2202 = vmatpush1.msra.mxu0 0.0
        %2203 = vmatprep.subr.mxu0 0.0
        %2204 = vmatpush1.msra.mxu0 0.0
        %2205 = vmatprep.subr.mxu0 0.0
        %2206 = vmatpush1.msra.mxu0 0.0
        %2207 = vmatprep.subr.mxu0 0.0
        %2208 = vmatpush1.msra.mxu0 0.0
        %2209 = vmatprep.subr.mxu0 0.0
        %2210 = vmatpush1.msra.mxu0 0.0
        %2211 = vmatprep.subr.mxu0 0.0
        %2212 = vmatpush1.msra.mxu0 0.0
        %2213 = vmatprep.subr.mxu0 0.0
        %2214 = vmatpush1.msra.mxu0 0.0
        %2215 = vmatprep.subr.mxu0 0.0
        %2216 = vmatpush1.msra.mxu0 0.0
        %2217 = vmatprep.subr.mxu0 0.0
        %2218 = vmatpush1.msra.mxu0 0.0
        %2219 = vmatprep.subr.mxu0 0.0
        %2220 = vmatpush1.msra.mxu0 0.0
        %2221 = vmatprep.subr.mxu0 0.0
        %2222 = vmatpush1.msra.mxu0 0.0
        %2223 = vmatprep.subr.mxu0 0.0
        %2224 = vmatpush1.msra.mxu0 0.0
        %2225 = vmatprep.subr.mxu0 0.0
        %2226 = vmatpush1.msra.mxu0 0.0
        %2227 = vmatprep.mubr.f32.mxu0 0.0
        %2228 = vmatmul.mubr.f32.gmra.mrb[0].mxu0 %v1096
        %v2229 = vpop.f32.mrb[0].mxu0
        %v2230 = vadd.f32 %v1092, %v2229
        %v2231 = vpop.f32.mrb[0].mxu0
        %2232 = vdwg.mxu0
        %v2233 = vmax.f32 %v1165, 0.0
        %v2234 = vmax.f32 %v1167, 0.0
        %v2235 = vmax.f32 %v1236, 0.0
        %v2236 = vmax.f32 %v1238, 0.0
        %v2237 = vmax.f32 %v1307, 0.0
        %v2238 = vmax.f32 %v1309, 0.0
        %v2239 = vmax.f32 %v1378, 0.0
        %v2240 = vmax.f32 %v1380, 0.0
        %v2241 = vmax.f32 %v1449, 0.0
        %v2242 = vmax.f32 %v1451, 0.0
        %v2243 = vmax.f32 %v1520, 0.0
        %v2244 = vmax.f32 %v1522, 0.0
        %v2245 = vmax.f32 %v1591, 0.0
        %v2246 = vmax.f32 %v1593, 0.0
        %v2247 = vmax.f32 %v1662, 0.0
        %v2248 = vmax.f32 %v1664, 0.0
        %v2249 = vmax.f32 %v1733, 0.0
        %v2250 = vmax.f32 %v1735, 0.0
        %v2251 = vmax.f32 %v1804, 0.0
        %v2252 = vmax.f32 %v1806, 0.0
        %v2253 = vmax.f32 %v1875, 0.0
        %v2254 = vmax.f32 %v1877, 0.0
        %v2255 = vmax.f32 %v1946, 0.0
        %v2256 = vmax.f32 %v1948, 0.0
        %v2257 = vmax.f32 %v2017, 0.0
        %v2258 = vmax.f32 %v2019, 0.0
        %v2259 = vmax.f32 %v2088, 0.0
        %v2260 = vmax.f32 %v2090, 0.0
        %v2261 = vmax.f32 %v2159, 0.0
        %v2262 = vmax.f32 %v2161, 0.0
        %v2263 = vmax.f32 %v2230, 0.0
        %v2264 = vld [vmem:[%s3] sm:$0xff]
        %v2265 = vld [vmem:[%s4] sm:$0xff]
        %2296 = vrot.lane.b32.xlu0 %v2233, 127
        %v2297 = vpop.permute.xlu0 %2296
        %2298 = vrot.lane.b32.xlu0 %v2234, 127
        %v2299 = vpop.permute.xlu0 %2298
        %2300 = vrot.lane.b32.xlu0 %v2235, 127
        %v2301 = vpop.permute.xlu0 %2300
        %2302 = vrot.lane.b32.xlu0 %v2236, 127
        %v2303 = vpop.permute.xlu0 %2302
        %2304 = vrot.lane.b32.xlu0 %v2237, 127
        %v2305 = vpop.permute.xlu0 %2304
        %2306 = vrot.lane.b32.xlu0 %v2238, 127
        %v2307 = vpop.permute.xlu0 %2306
        %2308 = vrot.lane.b32.xlu0 %v2239, 127
        %v2309 = vpop.permute.xlu0 %2308
        %2310 = vrot.lane.b32.xlu0 %v2240, 127
        %v2311 = vpop.permute.xlu0 %2310
        %2312 = vrot.lane.b32.xlu0 %v2241, 127
        %v2313 = vpop.permute.xlu0 %2312
        %2314 = vrot.lane.b32.xlu0 %v2242, 127
        %v2315 = vpop.permute.xlu0 %2314
        %2316 = vrot.lane.b32.xlu0 %v2243, 127
        %v2317 = vpop.permute.xlu0 %2316
        %2318 = vrot.lane.b32.xlu0 %v2244, 127
        %v2319 = vpop.permute.xlu0 %2318
        %2320 = vrot.lane.b32.xlu0 %v2245, 127
        %v2321 = vpop.permute.xlu0 %2320
        %2322 = vrot.lane.b32.xlu0 %v2246, 127
        %v2323 = vpop.permute.xlu0 %2322
        %2324 = vrot.lane.b32.xlu0 %v2247, 127
        %v2325 = vpop.permute.xlu0 %2324
        %2326 = vrot.lane.b32.xlu0 %v2248, 127
        %v2327 = vpop.permute.xlu0 %2326
        %2328 = vrot.lane.b32.xlu0 %v2249, 127
        %v2329 = vpop.permute.xlu0 %2328
        %2330 = vrot.lane.b32.xlu0 %v2250, 127
        %v2331 = vpop.permute.xlu0 %2330
        %2332 = vrot.lane.b32.xlu0 %v2251, 127
        %v2333 = vpop.permute.xlu0 %2332
        %2334 = vrot.lane.b32.xlu0 %v2252, 127
        %v2335 = vpop.permute.xlu0 %2334
        %2336 = vrot.lane.b32.xlu0 %v2253, 127
        %v2337 = vpop.permute.xlu0 %2336
        %2338 = vrot.lane.b32.xlu0 %v2254, 127
        %v2339 = vpop.permute.xlu0 %2338
        %2340 = vrot.lane.b32.xlu0 %v2255, 127
        %v2341 = vpop.permute.xlu0 %2340
        %2342 = vrot.lane.b32.xlu0 %v2256, 127
        %v2343 = vpop.permute.xlu0 %2342
        %2344 = vrot.lane.b32.xlu0 %v2257, 127
        %v2345 = vpop.permute.xlu0 %2344
        %2346 = vrot.lane.b32.xlu0 %v2258, 127
        %v2347 = vpop.permute.xlu0 %2346
        %2348 = vrot.lane.b32.xlu0 %v2259, 127
        %v2349 = vpop.permute.xlu0 %2348
        %2350 = vrot.lane.b32.xlu0 %v2260, 127
        %v2351 = vpop.permute.xlu0 %2350
        %2352 = vrot.lane.b32.xlu0 %v2261, 127
        %v2353 = vpop.permute.xlu0 %2352
        %2354 = vrot.lane.b32.xlu0 %v2262, 127
        %v2355 = vpop.permute.xlu0 %2354
        %v2356 = vsel %vm511, %v2297, %v2299
        %v2357 = vsel %vm511, %v2299, %v2301
        %v2358 = vsel %vm511, %v2301, %v2303
        %v2359 = vsel %vm511, %v2303, %v2305
        %v2360 = vsel %vm511, %v2305, %v2307
        %v2361 = vsel %vm511, %v2307, %v2309
        %v2362 = vsel %vm511, %v2309, %v2311
        %v2363 = vsel %vm511, %v2311, %v2313
        %v2364 = vsel %vm511, %v2313, %v2315
        %v2365 = vsel %vm511, %v2315, %v2317
        %v2366 = vsel %vm511, %v2317, %v2319
        %v2367 = vsel %vm511, %v2319, %v2321
        %v2368 = vsel %vm511, %v2321, %v2323
        %v2369 = vsel %vm511, %v2323, %v2325
        %v2370 = vsel %vm511, %v2325, %v2327
        %v2371 = vsel %vm511, %v2327, %v2329
        %v2372 = vsel %vm511, %v2329, %v2331
        %v2373 = vsel %vm511, %v2331, %v2333
        %v2374 = vsel %vm511, %v2333, %v2335
        %v2375 = vsel %vm511, %v2335, %v2337
        %v2376 = vsel %vm511, %v2337, %v2339
        %v2377 = vsel %vm511, %v2339, %v2341
        %v2378 = vsel %vm511, %v2341, %v2343
        %v2379 = vsel %vm511, %v2343, %v2345
        %v2380 = vsel %vm511, %v2345, %v2347
        %v2381 = vsel %vm511, %v2347, %v2349
        %v2382 = vsel %vm511, %v2349, %v2351
        %v2383 = vsel %vm511, %v2351, %v2353
        %v2384 = vsel %vm511, %v2353, %v2355
        %2415 = vrot.lane.b32.xlu0 %v2233, 126
        %v2416 = vpop.permute.xlu0 %2415
        %2417 = vrot.lane.b32.xlu0 %v2234, 126
        %v2418 = vpop.permute.xlu0 %2417
        %2419 = vrot.lane.b32.xlu0 %v2235, 126
        %v2420 = vpop.permute.xlu0 %2419
        %2421 = vrot.lane.b32.xlu0 %v2236, 126
        %v2422 = vpop.permute.xlu0 %2421
        %2423 = vrot.lane.b32.xlu0 %v2237, 126
        %v2424 = vpop.permute.xlu0 %2423
        %2425 = vrot.lane.b32.xlu0 %v2238, 126
        %v2426 = vpop.permute.xlu0 %2425
        %2427 = vrot.lane.b32.xlu0 %v2239, 126
        %v2428 = vpop.permute.xlu0 %2427
        %2429 = vrot.lane.b32.xlu0 %v2240, 126
        %v2430 = vpop.permute.xlu0 %2429
        %2431 = vrot.lane.b32.xlu0 %v2241, 126
        %v2432 = vpop.permute.xlu0 %2431
        %2433 = vrot.lane.b32.xlu0 %v2242, 126
        %v2434 = vpop.permute.xlu0 %2433
        %2435 = vrot.lane.b32.xlu0 %v2243, 126
        %v2436 = vpop.permute.xlu0 %2435
        %2437 = vrot.lane.b32.xlu0 %v2244, 126
        %v2438 = vpop.permute.xlu0 %2437
        %2439 = vrot.lane.b32.xlu0 %v2245, 126
        %v2440 = vpop.permute.xlu0 %2439
        %2441 = vrot.lane.b32.xlu0 %v2246, 126
        %v2442 = vpop.permute.xlu0 %2441
        %2443 = vrot.lane.b32.xlu0 %v2247, 126
        %v2444 = vpop.permute.xlu0 %2443
        %2445 = vrot.lane.b32.xlu0 %v2248, 126
        %v2446 = vpop.permute.xlu0 %2445
        %2447 = vrot.lane.b32.xlu0 %v2249, 126
        %v2448 = vpop.permute.xlu0 %2447
        %2449 = vrot.lane.b32.xlu0 %v2250, 126
        %v2450 = vpop.permute.xlu0 %2449
        %2451 = vrot.lane.b32.xlu0 %v2251, 126
        %v2452 = vpop.permute.xlu0 %2451
        %2453 = vrot.lane.b32.xlu0 %v2252, 126
        %v2454 = vpop.permute.xlu0 %2453
        %2455 = vrot.lane.b32.xlu0 %v2253, 126
        %v2456 = vpop.permute.xlu0 %2455
        %2457 = vrot.lane.b32.xlu0 %v2254, 126
        %v2458 = vpop.permute.xlu0 %2457
        %2459 = vrot.lane.b32.xlu0 %v2255, 126
        %v2460 = vpop.permute.xlu0 %2459
        %2461 = vrot.lane.b32.xlu0 %v2256, 126
        %v2462 = vpop.permute.xlu0 %2461
        %2463 = vrot.lane.b32.xlu0 %v2257, 126
        %v2464 = vpop.permute.xlu0 %2463
        %2465 = vrot.lane.b32.xlu0 %v2258, 126
        %v2466 = vpop.permute.xlu0 %2465
        %2467 = vrot.lane.b32.xlu0 %v2259, 126
        %v2468 = vpop.permute.xlu0 %2467
        %2469 = vrot.lane.b32.xlu0 %v2260, 126
        %v2470 = vpop.permute.xlu0 %2469
        %2471 = vrot.lane.b32.xlu0 %v2261, 126
        %v2472 = vpop.permute.xlu0 %2471
        %2473 = vrot.lane.b32.xlu0 %v2262, 126
        %v2474 = vpop.permute.xlu0 %2473
        %v2475 = vsel %vm635, %v2416, %v2418
        %v2476 = vsel %vm635, %v2418, %v2420
        %v2477 = vsel %vm635, %v2420, %v2422
        %v2478 = vsel %vm635, %v2422, %v2424
        %v2479 = vsel %vm635, %v2424, %v2426
        %v2480 = vsel %vm635, %v2426, %v2428
        %v2481 = vsel %vm635, %v2428, %v2430
        %v2482 = vsel %vm635, %v2430, %v2432
        %v2483 = vsel %vm635, %v2432, %v2434
        %v2484 = vsel %vm635, %v2434, %v2436
        %v2485 = vsel %vm635, %v2436, %v2438
        %v2486 = vsel %vm635, %v2438, %v2440
        %v2487 = vsel %vm635, %v2440, %v2442
        %v2488 = vsel %vm635, %v2442, %v2444
        %v2489 = vsel %vm635, %v2444, %v2446
        %v2490 = vsel %vm635, %v2446, %v2448
        %v2491 = vsel %vm635, %v2448, %v2450
        %v2492 = vsel %vm635, %v2450, %v2452
        %v2493 = vsel %vm635, %v2452, %v2454
        %v2494 = vsel %vm635, %v2454, %v2456
        %v2495 = vsel %vm635, %v2456, %v2458
        %v2496 = vsel %vm635, %v2458, %v2460
        %v2497 = vsel %vm635, %v2460, %v2462
        %v2498 = vsel %vm635, %v2462, %v2464
        %v2499 = vsel %vm635, %v2464, %v2466
        %v2500 = vsel %vm635, %v2466, %v2468
        %v2501 = vsel %vm635, %v2468, %v2470
        %v2502 = vsel %vm635, %v2470, %v2472
        %v2503 = vsel %vm635, %v2472, %v2474
        %2535 = vrot.lane.b32.xlu0 %v2233, 64
        %v2536 = vpop.permute.xlu0 %2535
        %2537 = vrot.lane.b32.xlu0 %v2234, 64
        %v2538 = vpop.permute.xlu0 %2537
        %2539 = vrot.lane.b32.xlu0 %v2235, 64
        %v2540 = vpop.permute.xlu0 %2539
        %2541 = vrot.lane.b32.xlu0 %v2236, 64
        %v2542 = vpop.permute.xlu0 %2541
        %2543 = vrot.lane.b32.xlu0 %v2237, 64
        %v2544 = vpop.permute.xlu0 %2543
        %2545 = vrot.lane.b32.xlu0 %v2238, 64
        %v2546 = vpop.permute.xlu0 %2545
        %2547 = vrot.lane.b32.xlu0 %v2239, 64
        %v2548 = vpop.permute.xlu0 %2547
        %2549 = vrot.lane.b32.xlu0 %v2240, 64
        %v2550 = vpop.permute.xlu0 %2549
        %2551 = vrot.lane.b32.xlu0 %v2241, 64
        %v2552 = vpop.permute.xlu0 %2551
        %2553 = vrot.lane.b32.xlu0 %v2242, 64
        %v2554 = vpop.permute.xlu0 %2553
        %2555 = vrot.lane.b32.xlu0 %v2243, 64
        %v2556 = vpop.permute.xlu0 %2555
        %2557 = vrot.lane.b32.xlu0 %v2244, 64
        %v2558 = vpop.permute.xlu0 %2557
        %2559 = vrot.lane.b32.xlu0 %v2245, 64
        %v2560 = vpop.permute.xlu0 %2559
        %2561 = vrot.lane.b32.xlu0 %v2246, 64
        %v2562 = vpop.permute.xlu0 %2561
        %2563 = vrot.lane.b32.xlu0 %v2247, 64
        %v2564 = vpop.permute.xlu0 %2563
        %2565 = vrot.lane.b32.xlu0 %v2248, 64
        %v2566 = vpop.permute.xlu0 %2565
        %2567 = vrot.lane.b32.xlu0 %v2249, 64
        %v2568 = vpop.permute.xlu0 %2567
        %2569 = vrot.lane.b32.xlu0 %v2250, 64
        %v2570 = vpop.permute.xlu0 %2569
        %2571 = vrot.lane.b32.xlu0 %v2251, 64
        %v2572 = vpop.permute.xlu0 %2571
        %2573 = vrot.lane.b32.xlu0 %v2252, 64
        %v2574 = vpop.permute.xlu0 %2573
        %2575 = vrot.lane.b32.xlu0 %v2253, 64
        %v2576 = vpop.permute.xlu0 %2575
        %2577 = vrot.lane.b32.xlu0 %v2254, 64
        %v2578 = vpop.permute.xlu0 %2577
        %2579 = vrot.lane.b32.xlu0 %v2255, 64
        %v2580 = vpop.permute.xlu0 %2579
        %2581 = vrot.lane.b32.xlu0 %v2256, 64
        %v2582 = vpop.permute.xlu0 %2581
        %2583 = vrot.lane.b32.xlu0 %v2257, 64
        %v2584 = vpop.permute.xlu0 %2583
        %2585 = vrot.lane.b32.xlu0 %v2258, 64
        %v2586 = vpop.permute.xlu0 %2585
        %2587 = vrot.lane.b32.xlu0 %v2259, 64
        %v2588 = vpop.permute.xlu0 %2587
        %2589 = vrot.lane.b32.xlu0 %v2260, 64
        %v2590 = vpop.permute.xlu0 %2589
        %2591 = vrot.lane.b32.xlu0 %v2261, 64
        %v2592 = vpop.permute.xlu0 %2591
        %2593 = vrot.lane.b32.xlu0 %v2262, 64
        %v2594 = vpop.permute.xlu0 %2593
        %2595 = vrot.lane.b32.xlu0 %v2263, 64
        %v2596 = vpop.permute.xlu0 %2595
        %v2597 = vsel %vm762, %v2536, %v2538
        %v2598 = vsel %vm762, %v2538, %v2540
        %v2599 = vsel %vm762, %v2540, %v2542
        %v2600 = vsel %vm762, %v2542, %v2544
        %v2601 = vsel %vm762, %v2544, %v2546
        %v2602 = vsel %vm762, %v2546, %v2548
        %v2603 = vsel %vm762, %v2548, %v2550
        %v2604 = vsel %vm762, %v2550, %v2552
        %v2605 = vsel %vm762, %v2552, %v2554
        %v2606 = vsel %vm762, %v2554, %v2556
        %v2607 = vsel %vm762, %v2556, %v2558
        %v2608 = vsel %vm762, %v2558, %v2560
        %v2609 = vsel %vm762, %v2560, %v2562
        %v2610 = vsel %vm762, %v2562, %v2564
        %v2611 = vsel %vm762, %v2564, %v2566
        %v2612 = vsel %vm762, %v2566, %v2568
        %v2613 = vsel %vm762, %v2568, %v2570
        %v2614 = vsel %vm762, %v2570, %v2572
        %v2615 = vsel %vm762, %v2572, %v2574
        %v2616 = vsel %vm762, %v2574, %v2576
        %v2617 = vsel %vm762, %v2576, %v2578
        %v2618 = vsel %vm762, %v2578, %v2580
        %v2619 = vsel %vm762, %v2580, %v2582
        %v2620 = vsel %vm762, %v2582, %v2584
        %v2621 = vsel %vm762, %v2584, %v2586
        %v2622 = vsel %vm762, %v2586, %v2588
        %v2623 = vsel %vm762, %v2588, %v2590
        %v2624 = vsel %vm762, %v2590, %v2592
        %v2625 = vsel %vm762, %v2592, %v2594
        %v2626 = vsel %vm762, %v2594, %v2596
        %2657 = vrot.lane.b32.xlu0 %v2233, 63
        %v2658 = vpop.permute.xlu0 %2657
        %2659 = vrot.lane.b32.xlu0 %v2234, 63
        %v2660 = vpop.permute.xlu0 %2659
        %2661 = vrot.lane.b32.xlu0 %v2235, 63
        %v2662 = vpop.permute.xlu0 %2661
        %2663 = vrot.lane.b32.xlu0 %v2236, 63
        %v2664 = vpop.permute.xlu0 %2663
        %2665 = vrot.lane.b32.xlu0 %v2237, 63
        %v2666 = vpop.permute.xlu0 %2665
        %2667 = vrot.lane.b32.xlu0 %v2238, 63
        %v2668 = vpop.permute.xlu0 %2667
        %2669 = vrot.lane.b32.xlu0 %v2239, 63
        %v2670 = vpop.permute.xlu0 %2669
        %2671 = vrot.lane.b32.xlu0 %v2240, 63
        %v2672 = vpop.permute.xlu0 %2671
        %2673 = vrot.lane.b32.xlu0 %v2241, 63
        %v2674 = vpop.permute.xlu0 %2673
        %2675 = vrot.lane.b32.xlu0 %v2242, 63
        %v2676 = vpop.permute.xlu0 %2675
        %2677 = vrot.lane.b32.xlu0 %v2243, 63
        %v2678 = vpop.permute.xlu0 %2677
        %2679 = vrot.lane.b32.xlu0 %v2244, 63
        %v2680 = vpop.permute.xlu0 %2679
        %2681 = vrot.lane.b32.xlu0 %v2245, 63
        %v2682 = vpop.permute.xlu0 %2681
        %2683 = vrot.lane.b32.xlu0 %v2246, 63
        %v2684 = vpop.permute.xlu0 %2683
        %2685 = vrot.lane.b32.xlu0 %v2247, 63
        %v2686 = vpop.permute.xlu0 %2685
        %2687 = vrot.lane.b32.xlu0 %v2248, 63
        %v2688 = vpop.permute.xlu0 %2687
        %2689 = vrot.lane.b32.xlu0 %v2249, 63
        %v2690 = vpop.permute.xlu0 %2689
        %2691 = vrot.lane.b32.xlu0 %v2250, 63
        %v2692 = vpop.permute.xlu0 %2691
        %2693 = vrot.lane.b32.xlu0 %v2251, 63
        %v2694 = vpop.permute.xlu0 %2693
        %2695 = vrot.lane.b32.xlu0 %v2252, 63
        %v2696 = vpop.permute.xlu0 %2695
        %2697 = vrot.lane.b32.xlu0 %v2253, 63
        %v2698 = vpop.permute.xlu0 %2697
        %2699 = vrot.lane.b32.xlu0 %v2254, 63
        %v2700 = vpop.permute.xlu0 %2699
        %2701 = vrot.lane.b32.xlu0 %v2255, 63
        %v2702 = vpop.permute.xlu0 %2701
        %2703 = vrot.lane.b32.xlu0 %v2256, 63
        %v2704 = vpop.permute.xlu0 %2703
        %2705 = vrot.lane.b32.xlu0 %v2257, 63
        %v2706 = vpop.permute.xlu0 %2705
        %2707 = vrot.lane.b32.xlu0 %v2258, 63
        %v2708 = vpop.permute.xlu0 %2707
        %2709 = vrot.lane.b32.xlu0 %v2259, 63
        %v2710 = vpop.permute.xlu0 %2709
        %2711 = vrot.lane.b32.xlu0 %v2260, 63
        %v2712 = vpop.permute.xlu0 %2711
        %2713 = vrot.lane.b32.xlu0 %v2261, 63
        %v2714 = vpop.permute.xlu0 %2713
        %2715 = vrot.lane.b32.xlu0 %v2262, 63
        %v2716 = vpop.permute.xlu0 %2715
        %2717 = vrot.lane.b32.xlu0 %v2263, 63
        %v2718 = vpop.permute.xlu0 %2717
        %v2719 = vsel %vm889, %v2658, %v2660
        %v2720 = vsel %vm889, %v2660, %v2662
        %v2721 = vsel %vm889, %v2662, %v2664
        %v2722 = vsel %vm889, %v2664, %v2666
        %v2723 = vsel %vm889, %v2666, %v2668
        %v2724 = vsel %vm889, %v2668, %v2670
        %v2725 = vsel %vm889, %v2670, %v2672
        %v2726 = vsel %vm889, %v2672, %v2674
        %v2727 = vsel %vm889, %v2674, %v2676
        %v2728 = vsel %vm889, %v2676, %v2678
        %v2729 = vsel %vm889, %v2678, %v2680
        %v2730 = vsel %vm889, %v2680, %v2682
        %v2731 = vsel %vm889, %v2682, %v2684
        %v2732 = vsel %vm889, %v2684, %v2686
        %v2733 = vsel %vm889, %v2686, %v2688
        %v2734 = vsel %vm889, %v2688, %v2690
        %v2735 = vsel %vm889, %v2690, %v2692
        %v2736 = vsel %vm889, %v2692, %v2694
        %v2737 = vsel %vm889, %v2694, %v2696
        %v2738 = vsel %vm889, %v2696, %v2698
        %v2739 = vsel %vm889, %v2698, %v2700
        %v2740 = vsel %vm889, %v2700, %v2702
        %v2741 = vsel %vm889, %v2702, %v2704
        %v2742 = vsel %vm889, %v2704, %v2706
        %v2743 = vsel %vm889, %v2706, %v2708
        %v2744 = vsel %vm889, %v2708, %v2710
        %v2745 = vsel %vm889, %v2710, %v2712
        %v2746 = vsel %vm889, %v2712, %v2714
        %v2747 = vsel %vm889, %v2714, %v2716
        %v2748 = vsel %vm889, %v2716, %v2718
        %2779 = vrot.lane.b32.xlu0 %v2233, 62
        %v2780 = vpop.permute.xlu0 %2779
        %2781 = vrot.lane.b32.xlu0 %v2234, 62
        %v2782 = vpop.permute.xlu0 %2781
        %2783 = vrot.lane.b32.xlu0 %v2235, 62
        %v2784 = vpop.permute.xlu0 %2783
        %2785 = vrot.lane.b32.xlu0 %v2236, 62
        %v2786 = vpop.permute.xlu0 %2785
        %2787 = vrot.lane.b32.xlu0 %v2237, 62
        %v2788 = vpop.permute.xlu0 %2787
        %2789 = vrot.lane.b32.xlu0 %v2238, 62
        %v2790 = vpop.permute.xlu0 %2789
        %2791 = vrot.lane.b32.xlu0 %v2239, 62
        %v2792 = vpop.permute.xlu0 %2791
        %2793 = vrot.lane.b32.xlu0 %v2240, 62
        %v2794 = vpop.permute.xlu0 %2793
        %2795 = vrot.lane.b32.xlu0 %v2241, 62
        %v2796 = vpop.permute.xlu0 %2795
        %2797 = vrot.lane.b32.xlu0 %v2242, 62
        %v2798 = vpop.permute.xlu0 %2797
        %2799 = vrot.lane.b32.xlu0 %v2243, 62
        %v2800 = vpop.permute.xlu0 %2799
        %2801 = vrot.lane.b32.xlu0 %v2244, 62
        %v2802 = vpop.permute.xlu0 %2801
        %2803 = vrot.lane.b32.xlu0 %v2245, 62
        %v2804 = vpop.permute.xlu0 %2803
        %2805 = vrot.lane.b32.xlu0 %v2246, 62
        %v2806 = vpop.permute.xlu0 %2805
        %2807 = vrot.lane.b32.xlu0 %v2247, 62
        %v2808 = vpop.permute.xlu0 %2807
        %2809 = vrot.lane.b32.xlu0 %v2248, 62
        %v2810 = vpop.permute.xlu0 %2809
        %2811 = vrot.lane.b32.xlu0 %v2249, 62
        %v2812 = vpop.permute.xlu0 %2811
        %2813 = vrot.lane.b32.xlu0 %v2250, 62
        %v2814 = vpop.permute.xlu0 %2813
        %2815 = vrot.lane.b32.xlu0 %v2251, 62
        %v2816 = vpop.permute.xlu0 %2815
        %2817 = vrot.lane.b32.xlu0 %v2252, 62
        %v2818 = vpop.permute.xlu0 %2817
        %2819 = vrot.lane.b32.xlu0 %v2253, 62
        %v2820 = vpop.permute.xlu0 %2819
        %2821 = vrot.lane.b32.xlu0 %v2254, 62
        %v2822 = vpop.permute.xlu0 %2821
        %2823 = vrot.lane.b32.xlu0 %v2255, 62
        %v2824 = vpop.permute.xlu0 %2823
        %2825 = vrot.lane.b32.xlu0 %v2256, 62
        %v2826 = vpop.permute.xlu0 %2825
        %2827 = vrot.lane.b32.xlu0 %v2257, 62
        %v2828 = vpop.permute.xlu0 %2827
        %2829 = vrot.lane.b32.xlu0 %v2258, 62
        %v2830 = vpop.permute.xlu0 %2829
        %2831 = vrot.lane.b32.xlu0 %v2259, 62
        %v2832 = vpop.permute.xlu0 %2831
        %2833 = vrot.lane.b32.xlu0 %v2260, 62
        %v2834 = vpop.permute.xlu0 %2833
        %2835 = vrot.lane.b32.xlu0 %v2261, 62
        %v2836 = vpop.permute.xlu0 %2835
        %2837 = vrot.lane.b32.xlu0 %v2262, 62
        %v2838 = vpop.permute.xlu0 %2837
        %2839 = vrot.lane.b32.xlu0 %v2263, 62
        %v2840 = vpop.permute.xlu0 %2839
        %v2841 = vsel %vm1016, %v2780, %v2782
        %v2842 = vsel %vm1016, %v2782, %v2784
        %v2843 = vsel %vm1016, %v2784, %v2786
        %v2844 = vsel %vm1016, %v2786, %v2788
        %v2845 = vsel %vm1016, %v2788, %v2790
        %v2846 = vsel %vm1016, %v2790, %v2792
        %v2847 = vsel %vm1016, %v2792, %v2794
        %v2848 = vsel %vm1016, %v2794, %v2796
        %v2849 = vsel %vm1016, %v2796, %v2798
        %v2850 = vsel %vm1016, %v2798, %v2800
        %v2851 = vsel %vm1016, %v2800, %v2802
        %v2852 = vsel %vm1016, %v2802, %v2804
        %v2853 = vsel %vm1016, %v2804, %v2806
        %v2854 = vsel %vm1016, %v2806, %v2808
        %v2855 = vsel %vm1016, %v2808, %v2810
        %v2856 = vsel %vm1016, %v2810, %v2812
        %v2857 = vsel %vm1016, %v2812, %v2814
        %v2858 = vsel %vm1016, %v2814, %v2816
        %v2859 = vsel %vm1016, %v2816, %v2818
        %v2860 = vsel %vm1016, %v2818, %v2820
        %v2861 = vsel %vm1016, %v2820, %v2822
        %v2862 = vsel %vm1016, %v2822, %v2824
        %v2863 = vsel %vm1016, %v2824, %v2826
        %v2864 = vsel %vm1016, %v2826, %v2828
        %v2865 = vsel %vm1016, %v2828, %v2830
        %v2866 = vsel %vm1016, %v2830, %v2832
        %v2867 = vsel %vm1016, %v2832, %v2834
        %v2868 = vsel %vm1016, %v2834, %v2836
        %v2869 = vsel %vm1016, %v2836, %v2838
        %v2870 = vsel %vm1016, %v2838, %v2840
        %2901 = vrot.lane.b32.xlu0 %v2263, 127
        %v2902 = vpop.permute.xlu0 %2901
        %v2903 = vsel %vm511, %v2355, %v2902
        %2906 = vrot.lane.b32.xlu0 %v2263, 126
        %v2907 = vpop.permute.xlu0 %2906
        %v2908 = vsel %vm635, %v2474, %v2907
        %2912 = vset.pattern.permute.xlu0 0
        %2913 = vperm.xlu0 %2912, %v2265
        %v2914 = vpop.permute.xlu0 %2913
        %v2917 = vsel %vm1094, %v2264, 0
        %2919 = vmatprep.subr.mxu0 %v2234
        %2920 = vmatpush1.msra.mxu0 %v2233
        %2921 = vmatprep.subr.mxu0 %v2357
        %2922 = vmatpush1.msra.mxu0 %v2356
        %2923 = vmatprep.subr.mxu0 %v2476
        %2924 = vmatpush1.msra.mxu0 %v2475
        %2925 = vmatprep.subr.mxu0 %v2598
        %2926 = vmatpush1.msra.mxu0 %v2597
        %2927 = vmatprep.subr.mxu0 %v2720
        %2928 = vmatpush1.msra.mxu0 %v2719
        %2929 = vmatprep.subr.mxu0 %v2842
        %2930 = vmatpush1.msra.mxu0 %v2841
        %2931 = vmatprep.subr.mxu0 %v2235
        %2932 = vmatpush1.msra.mxu0 %v2234
        %2933 = vmatprep.subr.mxu0 %v2358
        %2934 = vmatpush1.msra.mxu0 %v2357
        %2935 = vmatprep.subr.mxu0 %v2477
        %2936 = vmatpush1.msra.mxu0 %v2476
        %2937 = vmatprep.subr.mxu0 0.0
        %2938 = vmatpush1.msra.mxu0 0.0
        %2939 = vmatprep.subr.mxu0 0.0
        %2940 = vmatpush1.msra.mxu0 0.0
        %2941 = vmatprep.subr.mxu0 0.0
        %2942 = vmatpush1.msra.mxu0 0.0
        %2943 = vmatprep.subr.mxu0 0.0
        %2944 = vmatpush1.msra.mxu0 0.0
        %2945 = vmatprep.subr.mxu0 0.0
        %2946 = vmatpush1.msra.mxu0 0.0
        %2947 = vmatprep.subr.mxu0 0.0
        %2948 = vmatpush1.msra.mxu0 0.0
        %2949 = vmatprep.subr.mxu0 0.0
        %2950 = vmatpush1.msra.mxu0 0.0
        %2951 = vmatprep.subr.mxu0 0.0
        %2952 = vmatpush1.msra.mxu0 0.0
        %2953 = vmatprep.subr.mxu0 0.0
        %2954 = vmatpush1.msra.mxu0 0.0
        %2955 = vmatprep.subr.mxu0 0.0
        %2956 = vmatpush1.msra.mxu0 0.0
        %2957 = vmatprep.subr.mxu0 0.0
        %2958 = vmatpush1.msra.mxu0 0.0
        %2959 = vmatprep.subr.mxu0 0.0
        %2960 = vmatpush1.msra.mxu0 0.0
        %2961 = vmatprep.subr.mxu0 0.0
        %2962 = vmatpush1.msra.mxu0 0.0
        %2963 = vmatprep.subr.mxu0 0.0
        %2964 = vmatpush1.msra.mxu0 0.0
        %2965 = vmatprep.subr.mxu0 0.0
        %2966 = vmatpush1.msra.mxu0 0.0
        %2967 = vmatprep.subr.mxu0 0.0
        %2968 = vmatpush1.msra.mxu0 0.0
        %2969 = vmatprep.subr.mxu0 0.0
        %2970 = vmatpush1.msra.mxu0 0.0
        %2971 = vmatprep.subr.mxu0 0.0
        %2972 = vmatpush1.msra.mxu0 0.0
        %2973 = vmatprep.subr.mxu0 0.0
        %2974 = vmatpush1.msra.mxu0 0.0
        %2975 = vmatprep.subr.mxu0 0.0
        %2976 = vmatpush1.msra.mxu0 0.0
        %2977 = vmatprep.subr.mxu0 0.0
        %2978 = vmatpush1.msra.mxu0 0.0
        %2979 = vmatprep.subr.mxu0 0.0
        %2980 = vmatpush1.msra.mxu0 0.0
        %2981 = vmatprep.subr.mxu0 0.0
        %2982 = vmatpush1.msra.mxu0 0.0
        %2983 = vmatprep.mubr.f32.mxu0 0.0
        %2984 = vmatmul.mubr.f32.gmra.mrb[0].mxu0 %v2917
        %v2985 = vpop.f32.mrb[0].mxu0
        %v2986 = vadd.f32 %v2914, %v2985
        %v2987 = vpop.f32.mrb[0].mxu0
        %v2988 = vadd.f32 %v2914, %v2987
        %2989 = vdwg.mxu0
        %2990 = vmatprep.subr.mxu0 %v2236
        %2991 = vmatpush1.msra.mxu0 %v2235
        %2992 = vmatprep.subr.mxu0 %v2359
        %2993 = vmatpush1.msra.mxu0 %v2358
        %2994 = vmatprep.subr.mxu0 %v2478
        %2995 = vmatpush1.msra.mxu0 %v2477
        %2996 = vmatprep.subr.mxu0 %v2600
        %2997 = vmatpush1.msra.mxu0 %v2599
        %2998 = vmatprep.subr.mxu0 %v2722
        %2999 = vmatpush1.msra.mxu0 %v2721
        %3000 = vmatprep.subr.mxu0 %v2844
        %3001 = vmatpush1.msra.mxu0 %v2843
        %3002 = vmatprep.subr.mxu0 %v2237
        %3003 = vmatpush1.msra.mxu0 %v2236
        %3004 = vmatprep.subr.mxu0 %v2360
        %3005 = vmatpush1.msra.mxu0 %v2359
        %3006 = vmatprep.subr.mxu0 %v2479
        %3007 = vmatpush1.msra.mxu0 %v2478
        %3008 = vmatprep.subr.mxu0 0.0
        %3009 = vmatpush1.msra.mxu0 0.0
        %3010 = vmatprep.subr.mxu0 0.0
        %3011 = vmatpush1.msra.mxu0 0.0
        %3012 = vmatprep.subr.mxu0 0.0
        %3013 = vmatpush1.msra.mxu0 0.0
        %3014 = vmatprep.subr.mxu0 0.0
        %3015 = vmatpush1.msra.mxu0 0.0
        %3016 = vmatprep.subr.mxu0 0.0
        %3017 = vmatpush1.msra.mxu0 0.0
        %3018 = vmatprep.subr.mxu0 0.0
        %3019 = vmatpush1.msra.mxu0 0.0
        %3020 = vmatprep.subr.mxu0 0.0
        %3021 = vmatpush1.msra.mxu0 0.0
        %3022 = vmatprep.subr.mxu0 0.0
        %3023 = vmatpush1.msra.mxu0 0.0
        %3024 = vmatprep.subr.mxu0 0.0
        %3025 = vmatpush1.msra.mxu0 0.0
        %3026 = vmatprep.subr.mxu0 0.0
        %3027 = vmatpush1.msra.mxu0 0.0
        %3028 = vmatprep.subr.mxu0 0.0
        %3029 = vmatpush1.msra.mxu0 0.0
        %3030 = vmatprep.subr.mxu0 0.0
        %3031 = vmatpush1.msra.mxu0 0.0
        %3032 = vmatprep.subr.mxu0 0.0
        %3033 = vmatpush1.msra.mxu0 0.0
        %3034 = vmatprep.subr.mxu0 0.0
        %3035 = vmatpush1.msra.mxu0 0.0
        %3036 = vmatprep.subr.mxu0 0.0
        %3037 = vmatpush1.msra.mxu0 0.0
        %3038 = vmatprep.subr.mxu0 0.0
        %3039 = vmatpush1.msra.mxu0 0.0
        %3040 = vmatprep.subr.mxu0 0.0
        %3041 = vmatpush1.msra.mxu0 0.0
        %3042 = vmatprep.subr.mxu0 0.0
        %3043 = vmatpush1.msra.mxu0 0.0
        %3044 = vmatprep.subr.mxu0 0.0
        %3045 = vmatpush1.msra.mxu0 0.0
        %3046 = vmatprep.subr.mxu0 0.0
        %3047 = vmatpush1.msra.mxu0 0.0
        %3048 = vmatprep.subr.mxu0 0.0
        %3049 = vmatpush1.msra.mxu0 0.0
        %3050 = vmatprep.subr.mxu0 0.0
        %3051 = vmatpush1.msra.mxu0 0.0
        %3052 = vmatprep.subr.mxu0 0.0
        %3053 = vmatpush1.msra.mxu0 0.0
        %3054 = vmatprep.mubr.f32.mxu0 0.0
        %3055 = vmatmul.mubr.f32.gmra.mrb[0].mxu0 %v2917
        %v3056 = vpop.f32.mrb[0].mxu0
        %v3057 = vadd.f32 %v2914, %v3056
        %v3058 = vpop.f32.mrb[0].mxu0
        %v3059 = vadd.f32 %v2914, %v3058
        %3060 = vdwg.mxu0
        %3061 = vmatprep.subr.mxu0 %v2238
        %3062 = vmatpush1.msra.mxu0 %v2237
        %3063 = vmatprep.subr.mxu0 %v2361
        %3064 = vmatpush1.msra.mxu0 %v2360
        %3065 = vmatprep.subr.mxu0 %v2480
        %3066 = vmatpush1.msra.mxu0 %v2479
        %3067 = vmatprep.subr.mxu0 %v2602
        %3068 = vmatpush1.msra.mxu0 %v2601
        %3069 = vmatprep.subr.mxu0 %v2724
        %3070 = vmatpush1.msra.mxu0 %v2723
        %3071 = vmatprep.subr.mxu0 %v2846
        %3072 = vmatpush1.msra.mxu0 %v2845
        %3073 = vmatprep.subr.mxu0 %v2239
        %3074 = vmatpush1.msra.mxu0 %v2238
        %3075 = vmatprep.subr.mxu0 %v2362
        %3076 = vmatpush1.msra.mxu0 %v2361
        %3077 = vmatprep.subr.mxu0 %v2481
        %3078 = vmatpush1.msra.mxu0 %v2480
        %3079 = vmatprep.subr.mxu0 0.0
        %3080 = vmatpush1.msra.mxu0 0.0
        %3081 = vmatprep.subr.mxu0 0.0
        %3082 = vmatpush1.msra.mxu0 0.0
        %3083 = vmatprep.subr.mxu0 0.0
        %3084 = vmatpush1.msra.mxu0 0.0
        %3085 = vmatprep.subr.mxu0 0.0
        %3086 = vmatpush1.msra.mxu0 0.0
        %3087 = vmatprep.subr.mxu0 0.0
        %3088 = vmatpush1.msra.mxu0 0.0
        %3089 = vmatprep.subr.mxu0 0.0
        %3090 = vmatpush1.msra.mxu0 0.0
        %3091 = vmatprep.subr.mxu0 0.0
        %3092 = vmatpush1.msra.mxu0 0.0
        %3093 = vmatprep.subr.mxu0 0.0
        %3094 = vmatpush1.msra.mxu0 0.0
        %3095 = vmatprep.subr.mxu0 0.0
        %3096 = vmatpush1.msra.mxu0 0.0
        %3097 = vmatprep.subr.mxu0 0.0
        %3098 = vmatpush1.msra.mxu0 0.0
        %3099 = vmatprep.subr.mxu0 0.0
        %3100 = vmatpush1.msra.mxu0 0.0
        %3101 = vmatprep.subr.mxu0 0.0
        %3102 = vmatpush1.msra.mxu0 0.0
        %3103 = vmatprep.subr.mxu0 0.0
        %3104 = vmatpush1.msra.mxu0 0.0
        %3105 = vmatprep.subr.mxu0 0.0
        %3106 = vmatpush1.msra.mxu0 0.0
        %3107 = vmatprep.subr.mxu0 0.0
        %3108 = vmatpush1.msra.mxu0 0.0
        %3109 = vmatprep.subr.mxu0 0.0
        %3110 = vmatpush1.msra.mxu0 0.0
        %3111 = vmatprep.subr.mxu0 0.0
        %3112 = vmatpush1.msra.mxu0 0.0
        %3113 = vmatprep.subr.mxu0 0.0
        %3114 = vmatpush1.msra.mxu0 0.0
        %3115 = vmatprep.subr.mxu0 0.0
        %3116 = vmatpush1.msra.mxu0 0.0
        %3117 = vmatprep.subr.mxu0 0.0
        %3118 = vmatpush1.msra.mxu0 0.0
        %3119 = vmatprep.subr.mxu0 0.0
        %3120 = vmatpush1.msra.mxu0 0.0
        %3121 = vmatprep.subr.mxu0 0.0
        %3122 = vmatpush1.msra.mxu0 0.0
        %3123 = vmatprep.subr.mxu0 0.0
        %3124 = vmatpush1.msra.mxu0 0.0
        %3125 = vmatprep.mubr.f32.mxu0 0.0
        %3126 = vmatmul.mubr.f32.gmra.mrb[0].mxu0 %v2917
        %v3127 = vpop.f32.mrb[0].mxu0
        %v3128 = vadd.f32 %v2914, %v3127
        %v3129 = vpop.f32.mrb[0].mxu0
        %v3130 = vadd.f32 %v2914, %v3129
        %3131 = vdwg.mxu0
        %3132 = vmatprep.subr.mxu0 %v2240
        %3133 = vmatpush1.msra.mxu0 %v2239
        %3134 = vmatprep.subr.mxu0 %v2363
        %3135 = vmatpush1.msra.mxu0 %v2362
        %3136 = vmatprep.subr.mxu0 %v2482
        %3137 = vmatpush1.msra.mxu0 %v2481
        %3138 = vmatprep.subr.mxu0 %v2604
        %3139 = vmatpush1.msra.mxu0 %v2603
        %3140 = vmatprep.subr.mxu0 %v2726
        %3141 = vmatpush1.msra.mxu0 %v2725
        %3142 = vmatprep.subr.mxu0 %v2848
        %3143 = vmatpush1.msra.mxu0 %v2847
        %3144 = vmatprep.subr.mxu0 %v2241
        %3145 = vmatpush1.msra.mxu0 %v2240
        %3146 = vmatprep.subr.mxu0 %v2364
        %3147 = vmatpush1.msra.mxu0 %v2363
        %3148 = vmatprep.subr.mxu0 %v2483
        %3149 = vmatpush1.msra.mxu0 %v2482
        %3150 = vmatprep.subr.mxu0 0.0
        %3151 = vmatpush1.msra.mxu0 0.0
        %3152 = vmatprep.subr.mxu0 0.0
        %3153 = vmatpush1.msra.mxu0 0.0
        %3154 = vmatprep.subr.mxu0 0.0
        %3155 = vmatpush1.msra.mxu0 0.0
        %3156 = vmatprep.subr.mxu0 0.0
        %3157 = vmatpush1.msra.mxu0 0.0
        %3158 = vmatprep.subr.mxu0 0.0
        %3159 = vmatpush1.msra.mxu0 0.0
        %3160 = vmatprep.subr.mxu0 0.0
        %3161 = vmatpush1.msra.mxu0 0.0
        %3162 = vmatprep.subr.mxu0 0.0
        %3163 = vmatpush1.msra.mxu0 0.0
        %3164 = vmatprep.subr.mxu0 0.0
        %3165 = vmatpush1.msra.mxu0 0.0
        %3166 = vmatprep.subr.mxu0 0.0
        %3167 = vmatpush1.msra.mxu0 0.0
        %3168 = vmatprep.subr.mxu0 0.0
        %3169 = vmatpush1.msra.mxu0 0.0
        %3170 = vmatprep.subr.mxu0 0.0
        %3171 = vmatpush1.msra.mxu0 0.0
        %3172 = vmatprep.subr.mxu0 0.0
        %3173 = vmatpush1.msra.mxu0 0.0
        %3174 = vmatprep.subr.mxu0 0.0
        %3175 = vmatpush1.msra.mxu0 0.0
        %3176 = vmatprep.subr.mxu0 0.0
        %3177 = vmatpush1.msra.mxu0 0.0
        %3178 = vmatprep.subr.mxu0 0.0
        %3179 = vmatpush1.msra.mxu0 0.0
        %3180 = vmatprep.subr.mxu0 0.0
        %3181 = vmatpush1.msra.mxu0 0.0
        %3182 = vmatprep.subr.mxu0 0.0
        %3183 = vmatpush1.msra.mxu0 0.0
        %3184 = vmatprep.subr.mxu0 0.0
        %3185 = vmatpush1.msra.mxu0 0.0
        %3186 = vmatprep.subr.mxu0 0.0
        %3187 = vmatpush1.msra.mxu0 0.0
        %3188 = vmatprep.subr.mxu0 0.0
        %3189 = vmatpush1.msra.mxu0 0.0
        %3190 = vmatprep.subr.mxu0 0.0
        %3191 = vmatpush1.msra.mxu0 0.0
        %3192 = vmatprep.subr.mxu0 0.0
        %3193 = vmatpush1.msra.mxu0 0.0
        %3194 = vmatprep.subr.mxu0 0.0
        %3195 = vmatpush1.msra.mxu0 0.0
        %3196 = vmatprep.mubr.f32.mxu0 0.0
        %3197 = vmatmul.mubr.f32.gmra.mrb[0].mxu0 %v2917
        %v3198 = vpop.f32.mrb[0].mxu0
        %v3199 = vadd.f32 %v2914, %v3198
        %v3200 = vpop.f32.mrb[0].mxu0
        %v3201 = vadd.f32 %v2914, %v3200
        %3202 = vdwg.mxu0
        %3203 = vmatprep.subr.mxu0 %v2242
        %3204 = vmatpush1.msra.mxu0 %v2241
        %3205 = vmatprep.subr.mxu0 %v2365
        %3206 = vmatpush1.msra.mxu0 %v2364
        %3207 = vmatprep.subr.mxu0 %v2484
        %3208 = vmatpush1.msra.mxu0 %v2483
        %3209 = vmatprep.subr.mxu0 %v2606
        %3210 = vmatpush1.msra.mxu0 %v2605
        %3211 = vmatprep.subr.mxu0 %v2728
        %3212 = vmatpush1.msra.mxu0 %v2727
        %3213 = vmatprep.subr.mxu0 %v2850
        %3214 = vmatpush1.msra.mxu0 %v2849
        %3215 = vmatprep.subr.mxu0 %v2243
        %3216 = vmatpush1.msra.mxu0 %v2242
        %3217 = vmatprep.subr.mxu0 %v2366
        %3218 = vmatpush1.msra.mxu0 %v2365
        %3219 = vmatprep.subr.mxu0 %v2485
        %3220 = vmatpush1.msra.mxu0 %v2484
        %3221 = vmatprep.subr.mxu0 0.0
        %3222 = vmatpush1.msra.mxu0 0.0
        %3223 = vmatprep.subr.mxu0 0.0
        %3224 = vmatpush1.msra.mxu0 0.0
        %3225 = vmatprep.subr.mxu0 0.0
        %3226 = vmatpush1.msra.mxu0 0.0
        %3227 = vmatprep.subr.mxu0 0.0
        %3228 = vmatpush1.msra.mxu0 0.0
        %3229 = vmatprep.subr.mxu0 0.0
        %3230 = vmatpush1.msra.mxu0 0.0
        %3231 = vmatprep.subr.mxu0 0.0
        %3232 = vmatpush1.msra.mxu0 0.0
        %3233 = vmatprep.subr.mxu0 0.0
        %3234 = vmatpush1.msra.mxu0 0.0
        %3235 = vmatprep.subr.mxu0 0.0
        %3236 = vmatpush1.msra.mxu0 0.0
        %3237 = vmatprep.subr.mxu0 0.0
        %3238 = vmatpush1.msra.mxu0 0.0
        %3239 = vmatprep.subr.mxu0 0.0
        %3240 = vmatpush1.msra.mxu0 0.0
        %3241 = vmatprep.subr.mxu0 0.0
        %3242 = vmatpush1.msra.mxu0 0.0
        %3243 = vmatprep.subr.mxu0 0.0
        %3244 = vmatpush1.msra.mxu0 0.0
        %3245 = vmatprep.subr.mxu0 0.0
        %3246 = vmatpush1.msra.mxu0 0.0
        %3247 = vmatprep.subr.mxu0 0.0
        %3248 = vmatpush1.msra.mxu0 0.0
        %3249 = vmatprep.subr.mxu0 0.0
        %3250 = vmatpush1.msra.mxu0 0.0
        %3251 = vmatprep.subr.mxu0 0.0
        %3252 = vmatpush1.msra.mxu0 0.0
        %3253 = vmatprep.subr.mxu0 0.0
        %3254 = vmatpush1.msra.mxu0 0.0
        %3255 = vmatprep.subr.mxu0 0.0
        %3256 = vmatpush1.msra.mxu0 0.0
        %3257 = vmatprep.subr.mxu0 0.0
        %3258 = vmatpush1.msra.mxu0 0.0
        %3259 = vmatprep.subr.mxu0 0.0
        %3260 = vmatpush1.msra.mxu0 0.0
        %3261 = vmatprep.subr.mxu0 0.0
        %3262 = vmatpush1.msra.mxu0 0.0
        %3263 = vmatprep.subr.mxu0 0.0
        %3264 = vmatpush1.msra.mxu0 0.0
        %3265 = vmatprep.subr.mxu0 0.0
        %3266 = vmatpush1.msra.mxu0 0.0
        %3267 = vmatprep.mubr.f32.mxu0 0.0
        %3268 = vmatmul.mubr.f32.gmra.mrb[0].mxu0 %v2917
        %v3269 = vpop.f32.mrb[0].mxu0
        %v3270 = vadd.f32 %v2914, %v3269
        %v3271 = vpop.f32.mrb[0].mxu0
        %v3272 = vadd.f32 %v2914, %v3271
        %3273 = vdwg.mxu0
        %3274 = vmatprep.subr.mxu0 %v2244
        %3275 = vmatpush1.msra.mxu0 %v2243
        %3276 = vmatprep.subr.mxu0 %v2367
        %3277 = vmatpush1.msra.mxu0 %v2366
        %3278 = vmatprep.subr.mxu0 %v2486
        %3279 = vmatpush1.msra.mxu0 %v2485
        %3280 = vmatprep.subr.mxu0 %v2608
        %3281 = vmatpush1.msra.mxu0 %v2607
        %3282 = vmatprep.subr.mxu0 %v2730
        %3283 = vmatpush1.msra.mxu0 %v2729
        %3284 = vmatprep.subr.mxu0 %v2852
        %3285 = vmatpush1.msra.mxu0 %v2851
        %3286 = vmatprep.subr.mxu0 %v2245
        %3287 = vmatpush1.msra.mxu0 %v2244
        %3288 = vmatprep.subr.mxu0 %v2368
        %3289 = vmatpush1.msra.mxu0 %v2367
        %3290 = vmatprep.subr.mxu0 %v2487
        %3291 = vmatpush1.msra.mxu0 %v2486
        %3292 = vmatprep.subr.mxu0 0.0
        %3293 = vmatpush1.msra.mxu0 0.0
        %3294 = vmatprep.subr.mxu0 0.0
        %3295 = vmatpush1.msra.mxu0 0.0
        %3296 = vmatprep.subr.mxu0 0.0
        %3297 = vmatpush1.msra.mxu0 0.0
        %3298 = vmatprep.subr.mxu0 0.0
        %3299 = vmatpush1.msra.mxu0 0.0
        %3300 = vmatprep.subr.mxu0 0.0
        %3301 = vmatpush1.msra.mxu0 0.0
        %3302 = vmatprep.subr.mxu0 0.0
        %3303 = vmatpush1.msra.mxu0 0.0
        %3304 = vmatprep.subr.mxu0 0.0
        %3305 = vmatpush1.msra.mxu0 0.0
        %3306 = vmatprep.subr.mxu0 0.0
        %3307 = vmatpush1.msra.mxu0 0.0
        %3308 = vmatprep.subr.mxu0 0.0
        %3309 = vmatpush1.msra.mxu0 0.0
        %3310 = vmatprep.subr.mxu0 0.0
        %3311 = vmatpush1.msra.mxu0 0.0
        %3312 = vmatprep.subr.mxu0 0.0
        %3313 = vmatpush1.msra.mxu0 0.0
        %3314 = vmatprep.subr.mxu0 0.0
        %3315 = vmatpush1.msra.mxu0 0.0
        %3316 = vmatprep.subr.mxu0 0.0
        %3317 = vmatpush1.msra.mxu0 0.0
        %3318 = vmatprep.subr.mxu0 0.0
        %3319 = vmatpush1.msra.mxu0 0.0
        %3320 = vmatprep.subr.mxu0 0.0
        %3321 = vmatpush1.msra.mxu0 0.0
        %3322 = vmatprep.subr.mxu0 0.0
        %3323 = vmatpush1.msra.mxu0 0.0
        %3324 = vmatprep.subr.mxu0 0.0
        %3325 = vmatpush1.msra.mxu0 0.0
        %3326 = vmatprep.subr.mxu0 0.0
        %3327 = vmatpush1.msra.mxu0 0.0
        %3328 = vmatprep.subr.mxu0 0.0
        %3329 = vmatpush1.msra.mxu0 0.0
        %3330 = vmatprep.subr.mxu0 0.0
        %3331 = vmatpush1.msra.mxu0 0.0
        %3332 = vmatprep.subr.mxu0 0.0
        %3333 = vmatpush1.msra.mxu0 0.0
        %3334 = vmatprep.subr.mxu0 0.0
        %3335 = vmatpush1.msra.mxu0 0.0
        %3336 = vmatprep.subr.mxu0 0.0
        %3337 = vmatpush1.msra.mxu0 0.0
        %3338 = vmatprep.mubr.f32.mxu0 0.0
        %3339 = vmatmul.mubr.f32.gmra.mrb[0].mxu0 %v2917
        %v3340 = vpop.f32.mrb[0].mxu0
        %v3341 = vadd.f32 %v2914, %v3340
        %v3342 = vpop.f32.mrb[0].mxu0
        %v3343 = vadd.f32 %v2914, %v3342
        %3344 = vdwg.mxu0
        %3345 = vmatprep.subr.mxu0 %v2246
        %3346 = vmatpush1.msra.mxu0 %v2245
        %3347 = vmatprep.subr.mxu0 %v2369
        %3348 = vmatpush1.msra.mxu0 %v2368
        %3349 = vmatprep.subr.mxu0 %v2488
        %3350 = vmatpush1.msra.mxu0 %v2487
        %3351 = vmatprep.subr.mxu0 %v2610
        %3352 = vmatpush1.msra.mxu0 %v2609
        %3353 = vmatprep.subr.mxu0 %v2732
        %3354 = vmatpush1.msra.mxu0 %v2731
        %3355 = vmatprep.subr.mxu0 %v2854
        %3356 = vmatpush1.msra.mxu0 %v2853
        %3357 = vmatprep.subr.mxu0 %v2247
        %3358 = vmatpush1.msra.mxu0 %v2246
        %3359 = vmatprep.subr.mxu0 %v2370
        %3360 = vmatpush1.msra.mxu0 %v2369
        %3361 = vmatprep.subr.mxu0 %v2489
        %3362 = vmatpush1.msra.mxu0 %v2488
        %3363 = vmatprep.subr.mxu0 0.0
        %3364 = vmatpush1.msra.mxu0 0.0
        %3365 = vmatprep.subr.mxu0 0.0
        %3366 = vmatpush1.msra.mxu0 0.0
        %3367 = vmatprep.subr.mxu0 0.0
        %3368 = vmatpush1.msra.mxu0 0.0
        %3369 = vmatprep.subr.mxu0 0.0
        %3370 = vmatpush1.msra.mxu0 0.0
        %3371 = vmatprep.subr.mxu0 0.0
        %3372 = vmatpush1.msra.mxu0 0.0
        %3373 = vmatprep.subr.mxu0 0.0
        %3374 = vmatpush1.msra.mxu0 0.0
        %3375 = vmatprep.subr.mxu0 0.0
        %3376 = vmatpush1.msra.mxu0 0.0
        %3377 = vmatprep.subr.mxu0 0.0
        %3378 = vmatpush1.msra.mxu0 0.0
        %3379 = vmatprep.subr.mxu0 0.0
        %3380 = vmatpush1.msra.mxu0 0.0
        %3381 = vmatprep.subr.mxu0 0.0
        %3382 = vmatpush1.msra.mxu0 0.0
        %3383 = vmatprep.subr.mxu0 0.0
        %3384 = vmatpush1.msra.mxu0 0.0
        %3385 = vmatprep.subr.mxu0 0.0
        %3386 = vmatpush1.msra.mxu0 0.0
        %3387 = vmatprep.subr.mxu0 0.0
        %3388 = vmatpush1.msra.mxu0 0.0
        %3389 = vmatprep.subr.mxu0 0.0
        %3390 = vmatpush1.msra.mxu0 0.0
        %3391 = vmatprep.subr.mxu0 0.0
        %3392 = vmatpush1.msra.mxu0 0.0
        %3393 = vmatprep.subr.mxu0 0.0
        %3394 = vmatpush1.msra.mxu0 0.0
        %3395 = vmatprep.subr.mxu0 0.0
        %3396 = vmatpush1.msra.mxu0 0.0
        %3397 = vmatprep.subr.mxu0 0.0
        %3398 = vmatpush1.msra.mxu0 0.0
        %3399 = vmatprep.subr.mxu0 0.0
        %3400 = vmatpush1.msra.mxu0 0.0
        %3401 = vmatprep.subr.mxu0 0.0
        %3402 = vmatpush1.msra.mxu0 0.0
        %3403 = vmatprep.subr.mxu0 0.0
        %3404 = vmatpush1.msra.mxu0 0.0
        %3405 = vmatprep.subr.mxu0 0.0
        %3406 = vmatpush1.msra.mxu0 0.0
        %3407 = vmatprep.subr.mxu0 0.0
        %3408 = vmatpush1.msra.mxu0 0.0
        %3409 = vmatprep.mubr.f32.mxu0 0.0
        %3410 = vmatmul.mubr.f32.gmra.mrb[0].mxu0 %v2917
        %v3411 = vpop.f32.mrb[0].mxu0
        %v3412 = vadd.f32 %v2914, %v3411
        %v3413 = vpop.f32.mrb[0].mxu0
        %v3414 = vadd.f32 %v2914, %v3413
        %3415 = vdwg.mxu0
        %3416 = vmatprep.subr.mxu0 %v2248
        %3417 = vmatpush1.msra.mxu0 %v2247
        %3418 = vmatprep.subr.mxu0 %v2371
        %3419 = vmatpush1.msra.mxu0 %v2370
        %3420 = vmatprep.subr.mxu0 %v2490
        %3421 = vmatpush1.msra.mxu0 %v2489
        %3422 = vmatprep.subr.mxu0 %v2612
        %3423 = vmatpush1.msra.mxu0 %v2611
        %3424 = vmatprep.subr.mxu0 %v2734
        %3425 = vmatpush1.msra.mxu0 %v2733
        %3426 = vmatprep.subr.mxu0 %v2856
        %3427 = vmatpush1.msra.mxu0 %v2855
        %3428 = vmatprep.subr.mxu0 %v2249
        %3429 = vmatpush1.msra.mxu0 %v2248
        %3430 = vmatprep.subr.mxu0 %v2372
        %3431 = vmatpush1.msra.mxu0 %v2371
        %3432 = vmatprep.subr.mxu0 %v2491
        %3433 = vmatpush1.msra.mxu0 %v2490
        %3434 = vmatprep.subr.mxu0 0.0
        %3435 = vmatpush1.msra.mxu0 0.0
        %3436 = vmatprep.subr.mxu0 0.0
        %3437 = vmatpush1.msra.mxu0 0.0
        %3438 = vmatprep.subr.mxu0 0.0
        %3439 = vmatpush1.msra.mxu0 0.0
        %3440 = vmatprep.subr.mxu0 0.0
        %3441 = vmatpush1.msra.mxu0 0.0
        %3442 = vmatprep.subr.mxu0 0.0
        %3443 = vmatpush1.msra.mxu0 0.0
        %3444 = vmatprep.subr.mxu0 0.0
        %3445 = vmatpush1.msra.mxu0 0.0
        %3446 = vmatprep.subr.mxu0 0.0
        %3447 = vmatpush1.msra.mxu0 0.0
        %3448 = vmatprep.subr.mxu0 0.0
        %3449 = vmatpush1.msra.mxu0 0.0
        %3450 = vmatprep.subr.mxu0 0.0
        %3451 = vmatpush1.msra.mxu0 0.0
        %3452 = vmatprep.subr.mxu0 0.0
        %3453 = vmatpush1.msra.mxu0 0.0
        %3454 = vmatprep.subr.mxu0 0.0
        %3455 = vmatpush1.msra.mxu0 0.0
        %3456 = vmatprep.subr.mxu0 0.0
        %3457 = vmatpush1.msra.mxu0 0.0
        %3458 = vmatprep.subr.mxu0 0.0
        %3459 = vmatpush1.msra.mxu0 0.0
        %3460 = vmatprep.subr.mxu0 0.0
        %3461 = vmatpush1.msra.mxu0 0.0
        %3462 = vmatprep.subr.mxu0 0.0
        %3463 = vmatpush1.msra.mxu0 0.0
        %3464 = vmatprep.subr.mxu0 0.0
        %3465 = vmatpush1.msra.mxu0 0.0
        %3466 = vmatprep.subr.mxu0 0.0
        %3467 = vmatpush1.msra.mxu0 0.0
        %3468 = vmatprep.subr.mxu0 0.0
        %3469 = vmatpush1.msra.mxu0 0.0
        %3470 = vmatprep.subr.mxu0 0.0
        %3471 = vmatpush1.msra.mxu0 0.0
        %3472 = vmatprep.subr.mxu0 0.0
        %3473 = vmatpush1.msra.mxu0 0.0
        %3474 = vmatprep.subr.mxu0 0.0
        %3475 = vmatpush1.msra.mxu0 0.0
        %3476 = vmatprep.subr.mxu0 0.0
        %3477 = vmatpush1.msra.mxu0 0.0
        %3478 = vmatprep.subr.mxu0 0.0
        %3479 = vmatpush1.msra.mxu0 0.0
        %3480 = vmatprep.mubr.f32.mxu0 0.0
        %3481 = vmatmul.mubr.f32.gmra.mrb[0].mxu0 %v2917
        %v3482 = vpop.f32.mrb[0].mxu0
        %v3483 = vadd.f32 %v2914, %v3482
        %v3484 = vpop.f32.mrb[0].mxu0
        %v3485 = vadd.f32 %v2914, %v3484
        %3486 = vdwg.mxu0
        %3487 = vmatprep.subr.mxu0 %v2250
        %3488 = vmatpush1.msra.mxu0 %v2249
        %3489 = vmatprep.subr.mxu0 %v2373
        %3490 = vmatpush1.msra.mxu0 %v2372
        %3491 = vmatprep.subr.mxu0 %v2492
        %3492 = vmatpush1.msra.mxu0 %v2491
        %3493 = vmatprep.subr.mxu0 %v2614
        %3494 = vmatpush1.msra.mxu0 %v2613
        %3495 = vmatprep.subr.mxu0 %v2736
        %3496 = vmatpush1.msra.mxu0 %v2735
        %3497 = vmatprep.subr.mxu0 %v2858
        %3498 = vmatpush1.msra.mxu0 %v2857
        %3499 = vmatprep.subr.mxu0 %v2251
        %3500 = vmatpush1.msra.mxu0 %v2250
        %3501 = vmatprep.subr.mxu0 %v2374
        %3502 = vmatpush1.msra.mxu0 %v2373
        %3503 = vmatprep.subr.mxu0 %v2493
        %3504 = vmatpush1.msra.mxu0 %v2492
        %3505 = vmatprep.subr.mxu0 0.0
        %3506 = vmatpush1.msra.mxu0 0.0
        %3507 = vmatprep.subr.mxu0 0.0
        %3508 = vmatpush1.msra.mxu0 0.0
        %3509 = vmatprep.subr.mxu0 0.0
        %3510 = vmatpush1.msra.mxu0 0.0
        %3511 = vmatprep.subr.mxu0 0.0
        %3512 = vmatpush1.msra.mxu0 0.0
        %3513 = vmatprep.subr.mxu0 0.0
        %3514 = vmatpush1.msra.mxu0 0.0
        %3515 = vmatprep.subr.mxu0 0.0
        %3516 = vmatpush1.msra.mxu0 0.0
        %3517 = vmatprep.subr.mxu0 0.0
        %3518 = vmatpush1.msra.mxu0 0.0
        %3519 = vmatprep.subr.mxu0 0.0
        %3520 = vmatpush1.msra.mxu0 0.0
        %3521 = vmatprep.subr.mxu0 0.0
        %3522 = vmatpush1.msra.mxu0 0.0
        %3523 = vmatprep.subr.mxu0 0.0
        %3524 = vmatpush1.msra.mxu0 0.0
        %3525 = vmatprep.subr.mxu0 0.0
        %3526 = vmatpush1.msra.mxu0 0.0
        %3527 = vmatprep.subr.mxu0 0.0
        %3528 = vmatpush1.msra.mxu0 0.0
        %3529 = vmatprep.subr.mxu0 0.0
        %3530 = vmatpush1.msra.mxu0 0.0
        %3531 = vmatprep.subr.mxu0 0.0
        %3532 = vmatpush1.msra.mxu0 0.0
        %3533 = vmatprep.subr.mxu0 0.0
        %3534 = vmatpush1.msra.mxu0 0.0
        %3535 = vmatprep.subr.mxu0 0.0
        %3536 = vmatpush1.msra.mxu0 0.0
        %3537 = vmatprep.subr.mxu0 0.0
        %3538 = vmatpush1.msra.mxu0 0.0
        %3539 = vmatprep.subr.mxu0 0.0
        %3540 = vmatpush1.msra.mxu0 0.0
        %3541 = vmatprep.subr.mxu0 0.0
        %3542 = vmatpush1.msra.mxu0 0.0
        %3543 = vmatprep.subr.mxu0 0.0
        %3544 = vmatpush1.msra.mxu0 0.0
        %3545 = vmatprep.subr.mxu0 0.0
        %3546 = vmatpush1.msra.mxu0 0.0
        %3547 = vmatprep.subr.mxu0 0.0
        %3548 = vmatpush1.msra.mxu0 0.0
        %3549 = vmatprep.subr.mxu0 0.0
        %3550 = vmatpush1.msra.mxu0 0.0
        %3551 = vmatprep.mubr.f32.mxu0 0.0
        %3552 = vmatmul.mubr.f32.gmra.mrb[0].mxu0 %v2917
        %v3553 = vpop.f32.mrb[0].mxu0
        %v3554 = vadd.f32 %v2914, %v3553
        %v3555 = vpop.f32.mrb[0].mxu0
        %v3556 = vadd.f32 %v2914, %v3555
        %3557 = vdwg.mxu0
        %3558 = vmatprep.subr.mxu0 %v2252
        %3559 = vmatpush1.msra.mxu0 %v2251
        %3560 = vmatprep.subr.mxu0 %v2375
        %3561 = vmatpush1.msra.mxu0 %v2374
        %3562 = vmatprep.subr.mxu0 %v2494
        %3563 = vmatpush1.msra.mxu0 %v2493
        %3564 = vmatprep.subr.mxu0 %v2616
        %3565 = vmatpush1.msra.mxu0 %v2615
        %3566 = vmatprep.subr.mxu0 %v2738
        %3567 = vmatpush1.msra.mxu0 %v2737
        %3568 = vmatprep.subr.mxu0 %v2860
        %3569 = vmatpush1.msra.mxu0 %v2859
        %3570 = vmatprep.subr.mxu0 %v2253
        %3571 = vmatpush1.msra.mxu0 %v2252
        %3572 = vmatprep.subr.mxu0 %v2376
        %3573 = vmatpush1.msra.mxu0 %v2375
        %3574 = vmatprep.subr.mxu0 %v2495
        %3575 = vmatpush1.msra.mxu0 %v2494
        %3576 = vmatprep.subr.mxu0 0.0
        %3577 = vmatpush1.msra.mxu0 0.0
        %3578 = vmatprep.subr.mxu0 0.0
        %3579 = vmatpush1.msra.mxu0 0.0
        %3580 = vmatprep.subr.mxu0 0.0
        %3581 = vmatpush1.msra.mxu0 0.0
        %3582 = vmatprep.subr.mxu0 0.0
        %3583 = vmatpush1.msra.mxu0 0.0
        %3584 = vmatprep.subr.mxu0 0.0
        %3585 = vmatpush1.msra.mxu0 0.0
        %3586 = vmatprep.subr.mxu0 0.0
        %3587 = vmatpush1.msra.mxu0 0.0
        %3588 = vmatprep.subr.mxu0 0.0
        %3589 = vmatpush1.msra.mxu0 0.0
        %3590 = vmatprep.subr.mxu0 0.0
        %3591 = vmatpush1.msra.mxu0 0.0
        %3592 = vmatprep.subr.mxu0 0.0
        %3593 = vmatpush1.msra.mxu0 0.0
        %3594 = vmatprep.subr.mxu0 0.0
        %3595 = vmatpush1.msra.mxu0 0.0
        %3596 = vmatprep.subr.mxu0 0.0
        %3597 = vmatpush1.msra.mxu0 0.0
        %3598 = vmatprep.subr.mxu0 0.0
        %3599 = vmatpush1.msra.mxu0 0.0
        %3600 = vmatprep.subr.mxu0 0.0
        %3601 = vmatpush1.msra.mxu0 0.0
        %3602 = vmatprep.subr.mxu0 0.0
        %3603 = vmatpush1.msra.mxu0 0.0
        %3604 = vmatprep.subr.mxu0 0.0
        %3605 = vmatpush1.msra.mxu0 0.0
        %3606 = vmatprep.subr.mxu0 0.0
        %3607 = vmatpush1.msra.mxu0 0.0
        %3608 = vmatprep.subr.mxu0 0.0
        %3609 = vmatpush1.msra.mxu0 0.0
        %3610 = vmatprep.subr.mxu0 0.0
        %3611 = vmatpush1.msra.mxu0 0.0
        %3612 = vmatprep.subr.mxu0 0.0
        %3613 = vmatpush1.msra.mxu0 0.0
        %3614 = vmatprep.subr.mxu0 0.0
        %3615 = vmatpush1.msra.mxu0 0.0
        %3616 = vmatprep.subr.mxu0 0.0
        %3617 = vmatpush1.msra.mxu0 0.0
        %3618 = vmatprep.subr.mxu0 0.0
        %3619 = vmatpush1.msra.mxu0 0.0
        %3620 = vmatprep.subr.mxu0 0.0
        %3621 = vmatpush1.msra.mxu0 0.0
        %3622 = vmatprep.mubr.f32.mxu0 0.0
        %3623 = vmatmul.mubr.f32.gmra.mrb[0].mxu0 %v2917
        %v3624 = vpop.f32.mrb[0].mxu0
        %v3625 = vadd.f32 %v2914, %v3624
        %v3626 = vpop.f32.mrb[0].mxu0
        %v3627 = vadd.f32 %v2914, %v3626
        %3628 = vdwg.mxu0
        %3629 = vmatprep.subr.mxu0 %v2254
        %3630 = vmatpush1.msra.mxu0 %v2253
        %3631 = vmatprep.subr.mxu0 %v2377
        %3632 = vmatpush1.msra.mxu0 %v2376
        %3633 = vmatprep.subr.mxu0 %v2496
        %3634 = vmatpush1.msra.mxu0 %v2495
        %3635 = vmatprep.subr.mxu0 %v2618
        %3636 = vmatpush1.msra.mxu0 %v2617
        %3637 = vmatprep.subr.mxu0 %v2740
        %3638 = vmatpush1.msra.mxu0 %v2739
        %3639 = vmatprep.subr.mxu0 %v2862
        %3640 = vmatpush1.msra.mxu0 %v2861
        %3641 = vmatprep.subr.mxu0 %v2255
        %3642 = vmatpush1.msra.mxu0 %v2254
        %3643 = vmatprep.subr.mxu0 %v2378
        %3644 = vmatpush1.msra.mxu0 %v2377
        %3645 = vmatprep.subr.mxu0 %v2497
        %3646 = vmatpush1.msra.mxu0 %v2496
        %3647 = vmatprep.subr.mxu0 0.0
        %3648 = vmatpush1.msra.mxu0 0.0
        %3649 = vmatprep.subr.mxu0 0.0
        %3650 = vmatpush1.msra.mxu0 0.0
        %3651 = vmatprep.subr.mxu0 0.0
        %3652 = vmatpush1.msra.mxu0 0.0
        %3653 = vmatprep.subr.mxu0 0.0
        %3654 = vmatpush1.msra.mxu0 0.0
        %3655 = vmatprep.subr.mxu0 0.0
        %3656 = vmatpush1.msra.mxu0 0.0
        %3657 = vmatprep.subr.mxu0 0.0
        %3658 = vmatpush1.msra.mxu0 0.0
        %3659 = vmatprep.subr.mxu0 0.0
        %3660 = vmatpush1.msra.mxu0 0.0
        %3661 = vmatprep.subr.mxu0 0.0
        %3662 = vmatpush1.msra.mxu0 0.0
        %3663 = vmatprep.subr.mxu0 0.0
        %3664 = vmatpush1.msra.mxu0 0.0
        %3665 = vmatprep.subr.mxu0 0.0
        %3666 = vmatpush1.msra.mxu0 0.0
        %3667 = vmatprep.subr.mxu0 0.0
        %3668 = vmatpush1.msra.mxu0 0.0
        %3669 = vmatprep.subr.mxu0 0.0
        %3670 = vmatpush1.msra.mxu0 0.0
        %3671 = vmatprep.subr.mxu0 0.0
        %3672 = vmatpush1.msra.mxu0 0.0
        %3673 = vmatprep.subr.mxu0 0.0
        %3674 = vmatpush1.msra.mxu0 0.0
        %3675 = vmatprep.subr.mxu0 0.0
        %3676 = vmatpush1.msra.mxu0 0.0
        %3677 = vmatprep.subr.mxu0 0.0
        %3678 = vmatpush1.msra.mxu0 0.0
        %3679 = vmatprep.subr.mxu0 0.0
        %3680 = vmatpush1.msra.mxu0 0.0
        %3681 = vmatprep.subr.mxu0 0.0
        %3682 = vmatpush1.msra.mxu0 0.0
        %3683 = vmatprep.subr.mxu0 0.0
        %3684 = vmatpush1.msra.mxu0 0.0
        %3685 = vmatprep.subr.mxu0 0.0
        %3686 = vmatpush1.msra.mxu0 0.0
        %3687 = vmatprep.subr.mxu0 0.0
        %3688 = vmatpush1.msra.mxu0 0.0
        %3689 = vmatprep.subr.mxu0 0.0
        %3690 = vmatpush1.msra.mxu0 0.0
        %3691 = vmatprep.subr.mxu0 0.0
        %3692 = vmatpush1.msra.mxu0 0.0
        %3693 = vmatprep.mubr.f32.mxu0 0.0
        %3694 = vmatmul.mubr.f32.gmra.mrb[0].mxu0 %v2917
        %v3695 = vpop.f32.mrb[0].mxu0
        %v3696 = vadd.f32 %v2914, %v3695
        %v3697 = vpop.f32.mrb[0].mxu0
        %v3698 = vadd.f32 %v2914, %v3697
        %3699 = vdwg.mxu0
        %3700 = vmatprep.subr.mxu0 %v2256
        %3701 = vmatpush1.msra.mxu0 %v2255
        %3702 = vmatprep.subr.mxu0 %v2379
        %3703 = vmatpush1.msra.mxu0 %v2378
        %3704 = vmatprep.subr.mxu0 %v2498
        %3705 = vmatpush1.msra.mxu0 %v2497
        %3706 = vmatprep.subr.mxu0 %v2620
        %3707 = vmatpush1.msra.mxu0 %v2619
        %3708 = vmatprep.subr.mxu0 %v2742
        %3709 = vmatpush1.msra.mxu0 %v2741
        %3710 = vmatprep.subr.mxu0 %v2864
        %3711 = vmatpush1.msra.mxu0 %v2863
        %3712 = vmatprep.subr.mxu0 %v2257
        %3713 = vmatpush1.msra.mxu0 %v2256
        %3714 = vmatprep.subr.mxu0 %v2380
        %3715 = vmatpush1.msra.mxu0 %v2379
        %3716 = vmatprep.subr.mxu0 %v2499
        %3717 = vmatpush1.msra.mxu0 %v2498
        %3718 = vmatprep.subr.mxu0 0.0
        %3719 = vmatpush1.msra.mxu0 0.0
        %3720 = vmatprep.subr.mxu0 0.0
        %3721 = vmatpush1.msra.mxu0 0.0
        %3722 = vmatprep.subr.mxu0 0.0
        %3723 = vmatpush1.msra.mxu0 0.0
        %3724 = vmatprep.subr.mxu0 0.0
        %3725 = vmatpush1.msra.mxu0 0.0
        %3726 = vmatprep.subr.mxu0 0.0
        %3727 = vmatpush1.msra.mxu0 0.0
        %3728 = vmatprep.subr.mxu0 0.0
        %3729 = vmatpush1.msra.mxu0 0.0
        %3730 = vmatprep.subr.mxu0 0.0
        %3731 = vmatpush1.msra.mxu0 0.0
        %3732 = vmatprep.subr.mxu0 0.0
        %3733 = vmatpush1.msra.mxu0 0.0
        %3734 = vmatprep.subr.mxu0 0.0
        %3735 = vmatpush1.msra.mxu0 0.0
        %3736 = vmatprep.subr.mxu0 0.0
        %3737 = vmatpush1.msra.mxu0 0.0
        %3738 = vmatprep.subr.mxu0 0.0
        %3739 = vmatpush1.msra.mxu0 0.0
        %3740 = vmatprep.subr.mxu0 0.0
        %3741 = vmatpush1.msra.mxu0 0.0
        %3742 = vmatprep.subr.mxu0 0.0
        %3743 = vmatpush1.msra.mxu0 0.0
        %3744 = vmatprep.subr.mxu0 0.0
        %3745 = vmatpush1.msra.mxu0 0.0
        %3746 = vmatprep.subr.mxu0 0.0
        %3747 = vmatpush1.msra.mxu0 0.0
        %3748 = vmatprep.subr.mxu0 0.0
        %3749 = vmatpush1.msra.mxu0 0.0
        %3750 = vmatprep.subr.mxu0 0.0
        %3751 = vmatpush1.msra.mxu0 0.0
        %3752 = vmatprep.subr.mxu0 0.0
        %3753 = vmatpush1.msra.mxu0 0.0
        %3754 = vmatprep.subr.mxu0 0.0
        %3755 = vmatpush1.msra.mxu0 0.0
        %3756 = vmatprep.subr.mxu0 0.0
        %3757 = vmatpush1.msra.mxu0 0.0
        %3758 = vmatprep.subr.mxu0 0.0
        %3759 = vmatpush1.msra.mxu0 0.0
        %3760 = vmatprep.subr.mxu0 0.0
        %3761 = vmatpush1.msra.mxu0 0.0
        %3762 = vmatprep.subr.mxu0 0.0
        %3763 = vmatpush1.msra.mxu0 0.0
        %3764 = vmatprep.mubr.f32.mxu0 0.0
        %3765 = vmatmul.mubr.f32.gmra.mrb[0].mxu0 %v2917
        %v3766 = vpop.f32.mrb[0].mxu0
        %v3767 = vadd.f32 %v2914, %v3766
        %v3768 = vpop.f32.mrb[0].mxu0
        %v3769 = vadd.f32 %v2914, %v3768
        %3770 = vdwg.mxu0
        %3771 = vmatprep.subr.mxu0 %v2258
        %3772 = vmatpush1.msra.mxu0 %v2257
        %3773 = vmatprep.subr.mxu0 %v2381
        %3774 = vmatpush1.msra.mxu0 %v2380
        %3775 = vmatprep.subr.mxu0 %v2500
        %3776 = vmatpush1.msra.mxu0 %v2499
        %3777 = vmatprep.subr.mxu0 %v2622
        %3778 = vmatpush1.msra.mxu0 %v2621
        %3779 = vmatprep.subr.mxu0 %v2744
        %3780 = vmatpush1.msra.mxu0 %v2743
        %3781 = vmatprep.subr.mxu0 %v2866
        %3782 = vmatpush1.msra.mxu0 %v2865
        %3783 = vmatprep.subr.mxu0 %v2259
        %3784 = vmatpush1.msra.mxu0 %v2258
        %3785 = vmatprep.subr.mxu0 %v2382
        %3786 = vmatpush1.msra.mxu0 %v2381
        %3787 = vmatprep.subr.mxu0 %v2501
        %3788 = vmatpush1.msra.mxu0 %v2500
        %3789 = vmatprep.subr.mxu0 0.0
        %3790 = vmatpush1.msra.mxu0 0.0
        %3791 = vmatprep.subr.mxu0 0.0
        %3792 = vmatpush1.msra.mxu0 0.0
        %3793 = vmatprep.subr.mxu0 0.0
        %3794 = vmatpush1.msra.mxu0 0.0
        %3795 = vmatprep.subr.mxu0 0.0
        %3796 = vmatpush1.msra.mxu0 0.0
        %3797 = vmatprep.subr.mxu0 0.0
        %3798 = vmatpush1.msra.mxu0 0.0
        %3799 = vmatprep.subr.mxu0 0.0
        %3800 = vmatpush1.msra.mxu0 0.0
        %3801 = vmatprep.subr.mxu0 0.0
        %3802 = vmatpush1.msra.mxu0 0.0
        %3803 = vmatprep.subr.mxu0 0.0
        %3804 = vmatpush1.msra.mxu0 0.0
        %3805 = vmatprep.subr.mxu0 0.0
        %3806 = vmatpush1.msra.mxu0 0.0
        %3807 = vmatprep.subr.mxu0 0.0
        %3808 = vmatpush1.msra.mxu0 0.0
        %3809 = vmatprep.subr.mxu0 0.0
        %3810 = vmatpush1.msra.mxu0 0.0
        %3811 = vmatprep.subr.mxu0 0.0
        %3812 = vmatpush1.msra.mxu0 0.0
        %3813 = vmatprep.subr.mxu0 0.0
        %3814 = vmatpush1.msra.mxu0 0.0
        %3815 = vmatprep.subr.mxu0 0.0
        %3816 = vmatpush1.msra.mxu0 0.0
        %3817 = vmatprep.subr.mxu0 0.0
        %3818 = vmatpush1.msra.mxu0 0.0
        %3819 = vmatprep.subr.mxu0 0.0
        %3820 = vmatpush1.msra.mxu0 0.0
        %3821 = vmatprep.subr.mxu0 0.0
        %3822 = vmatpush1.msra.mxu0 0.0
        %3823 = vmatprep.subr.mxu0 0.0
        %3824 = vmatpush1.msra.mxu0 0.0
        %3825 = vmatprep.subr.mxu0 0.0
        %3826 = vmatpush1.msra.mxu0 0.0
        %3827 = vmatprep.subr.mxu0 0.0
        %3828 = vmatpush1.msra.mxu0 0.0
        %3829 = vmatprep.subr.mxu0 0.0
        %3830 = vmatpush1.msra.mxu0 0.0
        %3831 = vmatprep.subr.mxu0 0.0
        %3832 = vmatpush1.msra.mxu0 0.0
        %3833 = vmatprep.subr.mxu0 0.0
        %3834 = vmatpush1.msra.mxu0 0.0
        %3835 = vmatprep.mubr.f32.mxu0 0.0
        %3836 = vmatmul.mubr.f32.gmra.mrb[0].mxu0 %v2917
        %v3837 = vpop.f32.mrb[0].mxu0
        %v3838 = vadd.f32 %v2914, %v3837
        %v3839 = vpop.f32.mrb[0].mxu0
        %v3840 = vadd.f32 %v2914, %v3839
        %3841 = vdwg.mxu0
        %3842 = vmatprep.subr.mxu0 %v2260
        %3843 = vmatpush1.msra.mxu0 %v2259
        %3844 = vmatprep.subr.mxu0 %v2383
        %3845 = vmatpush1.msra.mxu0 %v2382
        %3846 = vmatprep.subr.mxu0 %v2502
        %3847 = vmatpush1.msra.mxu0 %v2501
        %3848 = vmatprep.subr.mxu0 %v2624
        %3849 = vmatpush1.msra.mxu0 %v2623
        %3850 = vmatprep.subr.mxu0 %v2746
        %3851 = vmatpush1.msra.mxu0 %v2745
        %3852 = vmatprep.subr.mxu0 %v2868
        %3853 = vmatpush1.msra.mxu0 %v2867
        %3854 = vmatprep.subr.mxu0 %v2261
        %3855 = vmatpush1.msra.mxu0 %v2260
        %3856 = vmatprep.subr.mxu0 %v2384
        %3857 = vmatpush1.msra.mxu0 %v2383
        %3858 = vmatprep.subr.mxu0 %v2503
        %3859 = vmatpush1.msra.mxu0 %v2502
        %3860 = vmatprep.subr.mxu0 0.0
        %3861 = vmatpush1.msra.mxu0 0.0
        %3862 = vmatprep.subr.mxu0 0.0
        %3863 = vmatpush1.msra.mxu0 0.0
        %3864 = vmatprep.subr.mxu0 0.0
        %3865 = vmatpush1.msra.mxu0 0.0
        %3866 = vmatprep.subr.mxu0 0.0
        %3867 = vmatpush1.msra.mxu0 0.0
        %3868 = vmatprep.subr.mxu0 0.0
        %3869 = vmatpush1.msra.mxu0 0.0
        %3870 = vmatprep.subr.mxu0 0.0
        %3871 = vmatpush1.msra.mxu0 0.0
        %3872 = vmatprep.subr.mxu0 0.0
        %3873 = vmatpush1.msra.mxu0 0.0
        %3874 = vmatprep.subr.mxu0 0.0
        %3875 = vmatpush1.msra.mxu0 0.0
        %3876 = vmatprep.subr.mxu0 0.0
        %3877 = vmatpush1.msra.mxu0 0.0
        %3878 = vmatprep.subr.mxu0 0.0
        %3879 = vmatpush1.msra.mxu0 0.0
        %3880 = vmatprep.subr.mxu0 0.0
        %3881 = vmatpush1.msra.mxu0 0.0
        %3882 = vmatprep.subr.mxu0 0.0
        %3883 = vmatpush1.msra.mxu0 0.0
        %3884 = vmatprep.subr.mxu0 0.0
        %3885 = vmatpush1.msra.mxu0 0.0
        %3886 = vmatprep.subr.mxu0 0.0
        %3887 = vmatpush1.msra.mxu0 0.0
        %3888 = vmatprep.subr.mxu0 0.0
        %3889 = vmatpush1.msra.mxu0 0.0
        %3890 = vmatprep.subr.mxu0 0.0
        %3891 = vmatpush1.msra.mxu0 0.0
        %3892 = vmatprep.subr.mxu0 0.0
        %3893 = vmatpush1.msra.mxu0 0.0
        %3894 = vmatprep.subr.mxu0 0.0
        %3895 = vmatpush1.msra.mxu0 0.0
        %3896 = vmatprep.subr.mxu0 0.0
        %3897 = vmatpush1.msra.mxu0 0.0
        %3898 = vmatprep.subr.mxu0 0.0
        %3899 = vmatpush1.msra.mxu0 0.0
        %3900 = vmatprep.subr.mxu0 0.0
        %3901 = vmatpush1.msra.mxu0 0.0
        %3902 = vmatprep.subr.mxu0 0.0
        %3903 = vmatpush1.msra.mxu0 0.0
        %3904 = vmatprep.subr.mxu0 0.0
        %3905 = vmatpush1.msra.mxu0 0.0
        %3906 = vmatprep.mubr.f32.mxu0 0.0
        %3907 = vmatmul.mubr.f32.gmra.mrb[0].mxu0 %v2917
        %v3908 = vpop.f32.mrb[0].mxu0
        %v3909 = vadd.f32 %v2914, %v3908
        %v3910 = vpop.f32.mrb[0].mxu0
        %v3911 = vadd.f32 %v2914, %v3910
        %3912 = vdwg.mxu0
        %3913 = vmatprep.subr.mxu0 %v2262
        %3914 = vmatpush1.msra.mxu0 %v2261
        %3915 = vmatprep.subr.mxu0 %v2355
        %3916 = vmatpush1.msra.mxu0 %v2384
        %3917 = vmatprep.subr.mxu0 %v2474
        %3918 = vmatpush1.msra.mxu0 %v2503
        %3919 = vmatprep.subr.mxu0 %v2626
        %3920 = vmatpush1.msra.mxu0 %v2625
        %3921 = vmatprep.subr.mxu0 %v2748
        %3922 = vmatpush1.msra.mxu0 %v2747
        %3923 = vmatprep.subr.mxu0 %v2870
        %3924 = vmatpush1.msra.mxu0 %v2869
        %3925 = vmatprep.subr.mxu0 %v2263
        %3926 = vmatpush1.msra.mxu0 %v2262
        %3927 = vmatprep.subr.mxu0 %v2902
        %3928 = vmatpush1.msra.mxu0 %v2903
        %3929 = vmatprep.subr.mxu0 %v2907
        %3930 = vmatpush1.msra.mxu0 %v2908
        %3931 = vmatprep.subr.mxu0 0.0
        %3932 = vmatpush1.msra.mxu0 0.0
        %3933 = vmatprep.subr.mxu0 0.0
        %3934 = vmatpush1.msra.mxu0 0.0
        %3935 = vmatprep.subr.mxu0 0.0
        %3936 = vmatpush1.msra.mxu0 0.0
        %3937 = vmatprep.subr.mxu0 0.0
        %3938 = vmatpush1.msra.mxu0 0.0
        %3939 = vmatprep.subr.mxu0 0.0
        %3940 = vmatpush1.msra.mxu0 0.0
        %3941 = vmatprep.subr.mxu0 0.0
        %3942 = vmatpush1.msra.mxu0 0.0
        %3943 = vmatprep.subr.mxu0 0.0
        %3944 = vmatpush1.msra.mxu0 0.0
        %3945 = vmatprep.subr.mxu0 0.0
        %3946 = vmatpush1.msra.mxu0 0.0
        %3947 = vmatprep.subr.mxu0 0.0
        %3948 = vmatpush1.msra.mxu0 0.0
        %3949 = vmatprep.subr.mxu0 0.0
        %3950 = vmatpush1.msra.mxu0 0.0
        %3951 = vmatprep.subr.mxu0 0.0
        %3952 = vmatpush1.msra.mxu0 0.0
        %3953 = vmatprep.subr.mxu0 0.0
        %3954 = vmatpush1.msra.mxu0 0.0
        %3955 = vmatprep.subr.mxu0 0.0
        %3956 = vmatpush1.msra.mxu0 0.0
        %3957 = vmatprep.subr.mxu0 0.0
        %3958 = vmatpush1.msra.mxu0 0.0
        %3959 = vmatprep.subr.mxu0 0.0
        %3960 = vmatpush1.msra.mxu0 0.0
        %3961 = vmatprep.subr.mxu0 0.0
        %3962 = vmatpush1.msra.mxu0 0.0
        %3963 = vmatprep.subr.mxu0 0.0
        %3964 = vmatpush1.msra.mxu0 0.0
        %3965 = vmatprep.subr.mxu0 0.0
        %3966 = vmatpush1.msra.mxu0 0.0
        %3967 = vmatprep.subr.mxu0 0.0
        %3968 = vmatpush1.msra.mxu0 0.0
        %3969 = vmatprep.subr.mxu0 0.0
        %3970 = vmatpush1.msra.mxu0 0.0
        %3971 = vmatprep.subr.mxu0 0.0
        %3972 = vmatpush1.msra.mxu0 0.0
        %3973 = vmatprep.subr.mxu0 0.0
        %3974 = vmatpush1.msra.mxu0 0.0
        %3975 = vmatprep.subr.mxu0 0.0
        %3976 = vmatpush1.msra.mxu0 0.0
        %3977 = vmatprep.mubr.f32.mxu0 0.0
        %3978 = vmatmul.mubr.f32.gmra.mrb[0].mxu0 %v2917
        %v3979 = vpop.f32.mrb[0].mxu0
        %v3980 = vadd.f32 %v2914, %v3979
        %v3981 = vpop.f32.mrb[0].mxu0
        %v3982 = vadd.f32 %v2914, %v3981
        %3983 = vdwg.mxu0
        %v3984 = vmax.f32 %v2986, 0.0
        %v3985 = vmax.f32 %v2988, 0.0
        %v3986 = vmax.f32 %v3057, 0.0
        %v3987 = vmax.f32 %v3059, 0.0
        %v3988 = vmax.f32 %v3128, 0.0
        %v3989 = vmax.f32 %v3130, 0.0
        %v3990 = vmax.f32 %v3199, 0.0
        %v3991 = vmax.f32 %v3201, 0.0
        %v3992 = vmax.f32 %v3270, 0.0
        %v3993 = vmax.f32 %v3272, 0.0
        %v3994 = vmax.f32 %v3341, 0.0
        %v3995 = vmax.f32 %v3343, 0.0
        %v3996 = vmax.f32 %v3412, 0.0
        %v3997 = vmax.f32 %v3414, 0.0
        %v3998 = vmax.f32 %v3483, 0.0
        %v3999 = vmax.f32 %v3485, 0.0
        %v4000 = vmax.f32 %v3554, 0.0
        %v4001 = vmax.f32 %v3556, 0.0
        %v4002 = vmax.f32 %v3625, 0.0
        %v4003 = vmax.f32 %v3627, 0.0
        %v4004 = vmax.f32 %v3696, 0.0
        %v4005 = vmax.f32 %v3698, 0.0
        %v4006 = vmax.f32 %v3767, 0.0
        %v4007 = vmax.f32 %v3769, 0.0
        %v4008 = vmax.f32 %v3838, 0.0
        %v4009 = vmax.f32 %v3840, 0.0
        %v4010 = vmax.f32 %v3909, 0.0
        %v4011 = vmax.f32 %v3911, 0.0
        %v4012 = vmax.f32 %v3980, 0.0
        %v4013 = vmax.f32 %v3982, 0.0
        %4044 = vrot.lane.b32.xlu0 %v3984, 127
        %v4045 = vpop.permute.xlu0 %4044
        %4046 = vrot.lane.b32.xlu0 %v3985, 127
        %v4047 = vpop.permute.xlu0 %4046
        %4048 = vrot.lane.b32.xlu0 %v3986, 127
        %v4049 = vpop.permute.xlu0 %4048
        %4050 = vrot.lane.b32.xlu0 %v3987, 127
        %v4051 = vpop.permute.xlu0 %4050
        %4052 = vrot.lane.b32.xlu0 %v3988, 127
        %v4053 = vpop.permute.xlu0 %4052
        %4054 = vrot.lane.b32.xlu0 %v3989, 127
        %v4055 = vpop.permute.xlu0 %4054
        %4056 = vrot.lane.b32.xlu0 %v3990, 127
        %v4057 = vpop.permute.xlu0 %4056
        %4058 = vrot.lane.b32.xlu0 %v3991, 127
        %v4059 = vpop.permute.xlu0 %4058
        %4060 = vrot.lane.b32.xlu0 %v3992, 127
        %v4061 = vpop.permute.xlu0 %4060
        %4062 = vrot.lane.b32.xlu0 %v3993, 127
        %v4063 = vpop.permute.xlu0 %4062
        %4064 = vrot.lane.b32.xlu0 %v3994, 127
        %v4065 = vpop.permute.xlu0 %4064
        %4066 = vrot.lane.b32.xlu0 %v3995, 127
        %v4067 = vpop.permute.xlu0 %4066
        %4068 = vrot.lane.b32.xlu0 %v3996, 127
        %v4069 = vpop.permute.xlu0 %4068
        %4070 = vrot.lane.b32.xlu0 %v3997, 127
        %v4071 = vpop.permute.xlu0 %4070
        %4072 = vrot.lane.b32.xlu0 %v3998, 127
        %v4073 = vpop.permute.xlu0 %4072
        %4074 = vrot.lane.b32.xlu0 %v3999, 127
        %v4075 = vpop.permute.xlu0 %4074
        %4076 = vrot.lane.b32.xlu0 %v4000, 127
        %v4077 = vpop.permute.xlu0 %4076
        %4078 = vrot.lane.b32.xlu0 %v4001, 127
        %v4079 = vpop.permute.xlu0 %4078
        %4080 = vrot.lane.b32.xlu0 %v4002, 127
        %v4081 = vpop.permute.xlu0 %4080
        %4082 = vrot.lane.b32.xlu0 %v4003, 127
        %v4083 = vpop.permute.xlu0 %4082
        %4084 = vrot.lane.b32.xlu0 %v4004, 127
        %v4085 = vpop.permute.xlu0 %4084
        %4086 = vrot.lane.b32.xlu0 %v4005, 127
        %v4087 = vpop.permute.xlu0 %4086
        %4088 = vrot.lane.b32.xlu0 %v4006, 127
        %v4089 = vpop.permute.xlu0 %4088
        %4090 = vrot.lane.b32.xlu0 %v4007, 127
        %v4091 = vpop.permute.xlu0 %4090
        %4092 = vrot.lane.b32.xlu0 %v4008, 127
        %v4093 = vpop.permute.xlu0 %4092
        %4094 = vrot.lane.b32.xlu0 %v4009, 127
        %v4095 = vpop.permute.xlu0 %4094
        %4096 = vrot.lane.b32.xlu0 %v4010, 127
        %v4097 = vpop.permute.xlu0 %4096
        %4098 = vrot.lane.b32.xlu0 %v4011, 127
        %v4099 = vpop.permute.xlu0 %4098
        %4100 = vrot.lane.b32.xlu0 %v4012, 127
        %v4101 = vpop.permute.xlu0 %4100
        %4102 = vrot.lane.b32.xlu0 %v4013, 127
        %v4103 = vpop.permute.xlu0 %4102
        %v4104 = vsel %vm511, %v4045, %v4047
        %v4105 = vsel %vm511, %v4047, %v4049
        %v4106 = vsel %vm511, %v4049, %v4051
        %v4107 = vsel %vm511, %v4051, %v4053
        %v4108 = vsel %vm511, %v4053, %v4055
        %v4109 = vsel %vm511, %v4055, %v4057
        %v4110 = vsel %vm511, %v4057, %v4059
        %v4111 = vsel %vm511, %v4059, %v4061
        %v4112 = vsel %vm511, %v4061, %v4063
        %v4113 = vsel %vm511, %v4063, %v4065
        %v4114 = vsel %vm511, %v4065, %v4067
        %v4115 = vsel %vm511, %v4067, %v4069
        %v4116 = vsel %vm511, %v4069, %v4071
        %v4117 = vsel %vm511, %v4071, %v4073
        %v4118 = vsel %vm511, %v4073, %v4075
        %v4119 = vsel %vm511, %v4075, %v4077
        %v4120 = vsel %vm511, %v4077, %v4079
        %v4121 = vsel %vm511, %v4079, %v4081
        %v4122 = vsel %vm511, %v4081, %v4083
        %v4123 = vsel %vm511, %v4083, %v4085
        %v4124 = vsel %vm511, %v4085, %v4087
        %v4125 = vsel %vm511, %v4087, %v4089
        %v4126 = vsel %vm511, %v4089, %v4091
        %v4127 = vsel %vm511, %v4091, %v4093
        %v4128 = vsel %vm511, %v4093, %v4095
        %v4129 = vsel %vm511, %v4095, %v4097
        %v4130 = vsel %vm511, %v4097, %v4099
        %v4131 = vsel %vm511, %v4099, %v4101
        %v4132 = vsel %vm511, %v4101, %v4103
        %v4163 = vmax.f32 %v3984, %v4104
        %v4164 = vmax.f32 %v3985, %v4105
        %v4165 = vmax.f32 %v3986, %v4106
        %v4166 = vmax.f32 %v3987, %v4107
        %v4167 = vmax.f32 %v3988, %v4108
        %v4168 = vmax.f32 %v3989, %v4109
        %v4169 = vmax.f32 %v3990, %v4110
        %v4170 = vmax.f32 %v3991, %v4111
        %v4171 = vmax.f32 %v3992, %v4112
        %v4172 = vmax.f32 %v3993, %v4113
        %v4173 = vmax.f32 %v3994, %v4114
        %v4174 = vmax.f32 %v3995, %v4115
        %v4175 = vmax.f32 %v3996, %v4116
        %v4176 = vmax.f32 %v3997, %v4117
        %v4177 = vmax.f32 %v3998, %v4118
        %v4178 = vmax.f32 %v3999, %v4119
        %v4179 = vmax.f32 %v4000, %v4120
        %v4180 = vmax.f32 %v4001, %v4121
        %v4181 = vmax.f32 %v4002, %v4122
        %v4182 = vmax.f32 %v4003, %v4123
        %v4183 = vmax.f32 %v4004, %v4124
        %v4184 = vmax.f32 %v4005, %v4125
        %v4185 = vmax.f32 %v4006, %v4126
        %v4186 = vmax.f32 %v4007, %v4127
        %v4187 = vmax.f32 %v4008, %v4128
        %v4188 = vmax.f32 %v4009, %v4129
        %v4189 = vmax.f32 %v4010, %v4130
        %v4190 = vmax.f32 %v4011, %v4131
        %v4191 = vmax.f32 %v4012, %v4132
        %v4192 = vmax.f32 %v4013, %v4103
        %4223 = vrot.lane.b32.xlu0 %v4163, 64
        %v4224 = vpop.permute.xlu0 %4223
        %4225 = vrot.lane.b32.xlu0 %v4164, 64
        %v4226 = vpop.permute.xlu0 %4225
        %4227 = vrot.lane.b32.xlu0 %v4165, 64
        %v4228 = vpop.permute.xlu0 %4227
        %4229 = vrot.lane.b32.xlu0 %v4166, 64
        %v4230 = vpop.permute.xlu0 %4229
        %4231 = vrot.lane.b32.xlu0 %v4167, 64
        %v4232 = vpop.permute.xlu0 %4231
        %4233 = vrot.lane.b32.xlu0 %v4168, 64
        %v4234 = vpop.permute.xlu0 %4233
        %4235 = vrot.lane.b32.xlu0 %v4169, 64
        %v4236 = vpop.permute.xlu0 %4235
        %4237 = vrot.lane.b32.xlu0 %v4170, 64
        %v4238 = vpop.permute.xlu0 %4237
        %4239 = vrot.lane.b32.xlu0 %v4171, 64
        %v4240 = vpop.permute.xlu0 %4239
        %4241 = vrot.lane.b32.xlu0 %v4172, 64
        %v4242 = vpop.permute.xlu0 %4241
        %4243 = vrot.lane.b32.xlu0 %v4173, 64
        %v4244 = vpop.permute.xlu0 %4243
        %4245 = vrot.lane.b32.xlu0 %v4174, 64
        %v4246 = vpop.permute.xlu0 %4245
        %4247 = vrot.lane.b32.xlu0 %v4175, 64
        %v4248 = vpop.permute.xlu0 %4247
        %4249 = vrot.lane.b32.xlu0 %v4176, 64
        %v4250 = vpop.permute.xlu0 %4249
        %4251 = vrot.lane.b32.xlu0 %v4177, 64
        %v4252 = vpop.permute.xlu0 %4251
        %4253 = vrot.lane.b32.xlu0 %v4178, 64
        %v4254 = vpop.permute.xlu0 %4253
        %4255 = vrot.lane.b32.xlu0 %v4179, 64
        %v4256 = vpop.permute.xlu0 %4255
        %4257 = vrot.lane.b32.xlu0 %v4180, 64
        %v4258 = vpop.permute.xlu0 %4257
        %4259 = vrot.lane.b32.xlu0 %v4181, 64
        %v4260 = vpop.permute.xlu0 %4259
        %4261 = vrot.lane.b32.xlu0 %v4182, 64
        %v4262 = vpop.permute.xlu0 %4261
        %4263 = vrot.lane.b32.xlu0 %v4183, 64
        %v4264 = vpop.permute.xlu0 %4263
        %4265 = vrot.lane.b32.xlu0 %v4184, 64
        %v4266 = vpop.permute.xlu0 %4265
        %4267 = vrot.lane.b32.xlu0 %v4185, 64
        %v4268 = vpop.permute.xlu0 %4267
        %4269 = vrot.lane.b32.xlu0 %v4186, 64
        %v4270 = vpop.permute.xlu0 %4269
        %4271 = vrot.lane.b32.xlu0 %v4187, 64
        %v4272 = vpop.permute.xlu0 %4271
        %4273 = vrot.lane.b32.xlu0 %v4188, 64
        %v4274 = vpop.permute.xlu0 %4273
        %4275 = vrot.lane.b32.xlu0 %v4189, 64
        %v4276 = vpop.permute.xlu0 %4275
        %4277 = vrot.lane.b32.xlu0 %v4190, 64
        %v4278 = vpop.permute.xlu0 %4277
        %4279 = vrot.lane.b32.xlu0 %v4191, 64
        %v4280 = vpop.permute.xlu0 %4279
        %4281 = vrot.lane.b32.xlu0 %v4192, 64
        %v4282 = vpop.permute.xlu0 %4281
        %v4283 = vsel %vm762, %v4224, %v4226
        %v4284 = vsel %vm762, %v4226, %v4228
        %v4285 = vsel %vm762, %v4228, %v4230
        %v4286 = vsel %vm762, %v4230, %v4232
        %v4287 = vsel %vm762, %v4232, %v4234
        %v4288 = vsel %vm762, %v4234, %v4236
        %v4289 = vsel %vm762, %v4236, %v4238
        %v4290 = vsel %vm762, %v4238, %v4240
        %v4291 = vsel %vm762, %v4240, %v4242
        %v4292 = vsel %vm762, %v4242, %v4244
        %v4293 = vsel %vm762, %v4244, %v4246
        %v4294 = vsel %vm762, %v4246, %v4248
        %v4295 = vsel %vm762, %v4248, %v4250
        %v4296 = vsel %vm762, %v4250, %v4252
        %v4297 = vsel %vm762, %v4252, %v4254
        %v4298 = vsel %vm762, %v4254, %v4256
        %v4299 = vsel %vm762, %v4256, %v4258
        %v4300 = vsel %vm762, %v4258, %v4260
        %v4301 = vsel %vm762, %v4260, %v4262
        %v4302 = vsel %vm762, %v4262, %v4264
        %v4303 = vsel %vm762, %v4264, %v4266
        %v4304 = vsel %vm762, %v4266, %v4268
        %v4305 = vsel %vm762, %v4268, %v4270
        %v4306 = vsel %vm762, %v4270, %v4272
        %v4307 = vsel %vm762, %v4272, %v4274
        %v4308 = vsel %vm762, %v4274, %v4276
        %v4309 = vsel %vm762, %v4276, %v4278
        %v4310 = vsel %vm762, %v4278, %v4280
        %v4311 = vsel %vm762, %v4280, %v4282
        %v4342 = vmax.f32 %v4163, %v4283
        %v4343 = vmax.f32 %v4164, %v4284
        %v4344 = vmax.f32 %v4165, %v4285
        %v4345 = vmax.f32 %v4166, %v4286
        %v4346 = vmax.f32 %v4167, %v4287
        %v4347 = vmax.f32 %v4168, %v4288
        %v4348 = vmax.f32 %v4169, %v4289
        %v4349 = vmax.f32 %v4170, %v4290
        %v4350 = vmax.f32 %v4171, %v4291
        %v4351 = vmax.f32 %v4172, %v4292
        %v4352 = vmax.f32 %v4173, %v4293
        %v4353 = vmax.f32 %v4174, %v4294
        %v4354 = vmax.f32 %v4175, %v4295
        %v4355 = vmax.f32 %v4176, %v4296
        %v4356 = vmax.f32 %v4177, %v4297
        %v4357 = vmax.f32 %v4178, %v4298
        %v4358 = vmax.f32 %v4179, %v4299
        %v4359 = vmax.f32 %v4180, %v4300
        %v4360 = vmax.f32 %v4181, %v4301
        %v4361 = vmax.f32 %v4182, %v4302
        %v4362 = vmax.f32 %v4183, %v4303
        %v4363 = vmax.f32 %v4184, %v4304
        %v4364 = vmax.f32 %v4185, %v4305
        %v4365 = vmax.f32 %v4186, %v4306
        %v4366 = vmax.f32 %v4187, %v4307
        %v4367 = vmax.f32 %v4188, %v4308
        %v4368 = vmax.f32 %v4189, %v4309
        %v4369 = vmax.f32 %v4190, %v4310
        %v4370 = vmax.f32 %v4191, %v4311
        %v4371 = vmax.f32 %v4192, %v4282
        %v4372 = vld [vmem:[%s5] sm:$0xff]
        %v4373 = vld [vmem:[%s6] sm:$0xff]
        %4402 = vrot.lane.b32.xlu0 %v4342, 126
        %v4403 = vpop.permute.xlu0 %4402
        %4404 = vrot.lane.b32.xlu0 %v4343, 126
        %v4405 = vpop.permute.xlu0 %4404
        %4406 = vrot.lane.b32.xlu0 %v4344, 126
        %v4407 = vpop.permute.xlu0 %4406
        %4408 = vrot.lane.b32.xlu0 %v4345, 126
        %v4409 = vpop.permute.xlu0 %4408
        %4410 = vrot.lane.b32.xlu0 %v4346, 126
        %v4411 = vpop.permute.xlu0 %4410
        %4412 = vrot.lane.b32.xlu0 %v4347, 126
        %v4413 = vpop.permute.xlu0 %4412
        %4414 = vrot.lane.b32.xlu0 %v4348, 126
        %v4415 = vpop.permute.xlu0 %4414
        %4416 = vrot.lane.b32.xlu0 %v4349, 126
        %v4417 = vpop.permute.xlu0 %4416
        %4418 = vrot.lane.b32.xlu0 %v4350, 126
        %v4419 = vpop.permute.xlu0 %4418
        %4420 = vrot.lane.b32.xlu0 %v4351, 126
        %v4421 = vpop.permute.xlu0 %4420
        %4422 = vrot.lane.b32.xlu0 %v4352, 126
        %v4423 = vpop.permute.xlu0 %4422
        %4424 = vrot.lane.b32.xlu0 %v4353, 126
        %v4425 = vpop.permute.xlu0 %4424
        %4426 = vrot.lane.b32.xlu0 %v4354, 126
        %v4427 = vpop.permute.xlu0 %4426
        %4428 = vrot.lane.b32.xlu0 %v4355, 126
        %v4429 = vpop.permute.xlu0 %4428
        %4430 = vrot.lane.b32.xlu0 %v4356, 126
        %v4431 = vpop.permute.xlu0 %4430
        %4432 = vrot.lane.b32.xlu0 %v4357, 126
        %v4433 = vpop.permute.xlu0 %4432
        %4434 = vrot.lane.b32.xlu0 %v4358, 126
        %v4435 = vpop.permute.xlu0 %4434
        %4436 = vrot.lane.b32.xlu0 %v4359, 126
        %v4437 = vpop.permute.xlu0 %4436
        %4438 = vrot.lane.b32.xlu0 %v4360, 126
        %v4439 = vpop.permute.xlu0 %4438
        %4440 = vrot.lane.b32.xlu0 %v4361, 126
        %v4441 = vpop.permute.xlu0 %4440
        %4442 = vrot.lane.b32.xlu0 %v4362, 126
        %v4443 = vpop.permute.xlu0 %4442
        %4444 = vrot.lane.b32.xlu0 %v4363, 126
        %v4445 = vpop.permute.xlu0 %4444
        %4446 = vrot.lane.b32.xlu0 %v4364, 126
        %v4447 = vpop.permute.xlu0 %4446
        %4448 = vrot.lane.b32.xlu0 %v4365, 126
        %v4449 = vpop.permute.xlu0 %4448
        %4450 = vrot.lane.b32.xlu0 %v4366, 126
        %v4451 = vpop.permute.xlu0 %4450
        %4452 = vrot.lane.b32.xlu0 %v4367, 126
        %v4453 = vpop.permute.xlu0 %4452
        %4454 = vrot.lane.b32.xlu0 %v4368, 126
        %v4455 = vpop.permute.xlu0 %4454
        %4456 = vrot.lane.b32.xlu0 %v4369, 126
        %v4457 = vpop.permute.xlu0 %4456
        %v4458 = vsel %vm635, %v4403, %v4405
        %v4459 = vsel %vm635, %v4405, %v4407
        %v4460 = vsel %vm635, %v4407, %v4409
        %v4461 = vsel %vm635, %v4409, %v4411
        %v4462 = vsel %vm635, %v4411, %v4413
        %v4463 = vsel %vm635, %v4413, %v4415
        %v4464 = vsel %vm635, %v4415, %v4417
        %v4465 = vsel %vm635, %v4417, %v4419
        %v4466 = vsel %vm635, %v4419, %v4421
        %v4467 = vsel %vm635, %v4421, %v4423
        %v4468 = vsel %vm635, %v4423, %v4425
        %v4469 = vsel %vm635, %v4425, %v4427
        %v4470 = vsel %vm635, %v4427, %v4429
        %v4471 = vsel %vm635, %v4429, %v4431
        %v4472 = vsel %vm635, %v4431, %v4433
        %v4473 = vsel %vm635, %v4433, %v4435
        %v4474 = vsel %vm635, %v4435, %v4437
        %v4475 = vsel %vm635, %v4437, %v4439
        %v4476 = vsel %vm635, %v4439, %v4441
        %v4477 = vsel %vm635, %v4441, %v4443
        %v4478 = vsel %vm635, %v4443, %v4445
        %v4479 = vsel %vm635, %v4445, %v4447
        %v4480 = vsel %vm635, %v4447, %v4449
        %v4481 = vsel %vm635, %v4449, %v4451
        %v4482 = vsel %vm635, %v4451, %v4453
        %v4483 = vsel %vm635, %v4453, %v4455
        %v4484 = vsel %vm635, %v4455, %v4457
        %4513 = vrot.lane.b32.xlu0 %v4342, 124
        %v4514 = vpop.permute.xlu0 %4513
        %4515 = vrot.lane.b32.xlu0 %v4343, 124
        %v4516 = vpop.permute.xlu0 %4515
        %4517 = vrot.lane.b32.xlu0 %v4344, 124
        %v4518 = vpop.permute.xlu0 %4517
        %4519 = vrot.lane.b32.xlu0 %v4345, 124
        %v4520 = vpop.permute.xlu0 %4519
        %4521 = vrot.lane.b32.xlu0 %v4346, 124
        %v4522 = vpop.permute.xlu0 %4521
        %4523 = vrot.lane.b32.xlu0 %v4347, 124
        %v4524 = vpop.permute.xlu0 %4523
        %4525 = vrot.lane.b32.xlu0 %v4348, 124
        %v4526 = vpop.permute.xlu0 %4525
        %4527 = vrot.lane.b32.xlu0 %v4349, 124
        %v4528 = vpop.permute.xlu0 %4527
        %4529 = vrot.lane.b32.xlu0 %v4350, 124
        %v4530 = vpop.permute.xlu0 %4529
        %4531 = vrot.lane.b32.xlu0 %v4351, 124
        %v4532 = vpop.permute.xlu0 %4531
        %4533 = vrot.lane.b32.xlu0 %v4352, 124
        %v4534 = vpop.permute.xlu0 %4533
        %4535 = vrot.lane.b32.xlu0 %v4353, 124
        %v4536 = vpop.permute.xlu0 %4535
        %4537 = vrot.lane.b32.xlu0 %v4354, 124
        %v4538 = vpop.permute.xlu0 %4537
        %4539 = vrot.lane.b32.xlu0 %v4355, 124
        %v4540 = vpop.permute.xlu0 %4539
        %4541 = vrot.lane.b32.xlu0 %v4356, 124
        %v4542 = vpop.permute.xlu0 %4541
        %4543 = vrot.lane.b32.xlu0 %v4357, 124
        %v4544 = vpop.permute.xlu0 %4543
        %4545 = vrot.lane.b32.xlu0 %v4358, 124
        %v4546 = vpop.permute.xlu0 %4545
        %4547 = vrot.lane.b32.xlu0 %v4359, 124
        %v4548 = vpop.permute.xlu0 %4547
        %4549 = vrot.lane.b32.xlu0 %v4360, 124
        %v4550 = vpop.permute.xlu0 %4549
        %4551 = vrot.lane.b32.xlu0 %v4361, 124
        %v4552 = vpop.permute.xlu0 %4551
        %4553 = vrot.lane.b32.xlu0 %v4362, 124
        %v4554 = vpop.permute.xlu0 %4553
        %4555 = vrot.lane.b32.xlu0 %v4363, 124
        %v4556 = vpop.permute.xlu0 %4555
        %4557 = vrot.lane.b32.xlu0 %v4364, 124
        %v4558 = vpop.permute.xlu0 %4557
        %4559 = vrot.lane.b32.xlu0 %v4365, 124
        %v4560 = vpop.permute.xlu0 %4559
        %4561 = vrot.lane.b32.xlu0 %v4366, 124
        %v4562 = vpop.permute.xlu0 %4561
        %4563 = vrot.lane.b32.xlu0 %v4367, 124
        %v4564 = vpop.permute.xlu0 %4563
        %4565 = vrot.lane.b32.xlu0 %v4368, 124
        %v4566 = vpop.permute.xlu0 %4565
        %4567 = vrot.lane.b32.xlu0 %v4369, 124
        %v4568 = vpop.permute.xlu0 %4567
        %vm4569 = vcmask 1014784
        %v4570 = vsel %vm4569, %v4514, %v4516
        %v4571 = vsel %vm4569, %v4516, %v4518
        %v4572 = vsel %vm4569, %v4518, %v4520
        %v4573 = vsel %vm4569, %v4520, %v4522
        %v4574 = vsel %vm4569, %v4522, %v4524
        %v4575 = vsel %vm4569, %v4524, %v4526
        %v4576 = vsel %vm4569, %v4526, %v4528
        %v4577 = vsel %vm4569, %v4528, %v4530
        %v4578 = vsel %vm4569, %v4530, %v4532
        %v4579 = vsel %vm4569, %v4532, %v4534
        %v4580 = vsel %vm4569, %v4534, %v4536
        %v4581 = vsel %vm4569, %v4536, %v4538
        %v4582 = vsel %vm4569, %v4538, %v4540
        %v4583 = vsel %vm4569, %v4540, %v4542
        %v4584 = vsel %vm4569, %v4542, %v4544
        %v4585 = vsel %vm4569, %v4544, %v4546
        %v4586 = vsel %vm4569, %v4546, %v4548
        %v4587 = vsel %vm4569, %v4548, %v4550
        %v4588 = vsel %vm4569, %v4550, %v4552
        %v4589 = vsel %vm4569, %v4552, %v4554
        %v4590 = vsel %vm4569, %v4554, %v4556
        %v4591 = vsel %vm4569, %v4556, %v4558
        %v4592 = vsel %vm4569, %v4558, %v4560
        %v4593 = vsel %vm4569, %v4560, %v4562
        %v4594 = vsel %vm4569, %v4562, %v4564
        %v4595 = vsel %vm4569, %v4564, %v4566
        %v4596 = vsel %vm4569, %v4566, %v4568
        %4626 = vrot.lane.b32.xlu0 %v4370, 126
        %v4627 = vpop.permute.xlu0 %4626
        %v4628 = vsel %vm635, %v4457, %v4627
        %4631 = vrot.lane.b32.xlu0 %v4370, 124
        %v4632 = vpop.permute.xlu0 %4631
        %v4633 = vsel %vm4569, %v4568, %v4632
        %4637 = vrot.lane.b32.xlu0 %v4371, 126
        %v4638 = vpop.permute.xlu0 %4637
        %v4639 = vsel %vm635, %v4627, %v4638
        %4642 = vrot.lane.b32.xlu0 %v4371, 124
        %v4643 = vpop.permute.xlu0 %4642
        %v4644 = vsel %vm4569, %v4632, %v4643
        %4648 = vset.pattern.permute.xlu0 0
        %4649 = vperm.xlu0 %4648, %v4373
        %v4650 = vpop.permute.xlu0 %4649
        %v4653 = vsel %vm1094, %v4372, 0
        %4655 = vmatprep.subr.mxu0 %v4343
        %4656 = vmatpush1.msra.mxu0 %v4342
        %4657 = vmatprep.subr.mxu0 %v4459
        %4658 = vmatpush1.msra.mxu0 %v4458
        %4659 = vmatprep.subr.mxu0 %v4571
        %4660 = vmatpush1.msra.mxu0 %v4570
        %4661 = vmatprep.subr.mxu0 %v4344
        %4662 = vmatpush1.msra.mxu0 %v4343
        %4663 = vmatprep.subr.mxu0 %v4460
        %4664 = vmatpush1.msra.mxu0 %v4459
        %4665 = vmatprep.subr.mxu0 %v4572
        %4666 = vmatpush1.msra.mxu0 %v4571
        %4667 = vmatprep.subr.mxu0 %v4345
        %4668 = vmatpush1.msra.mxu0 %v4344
        %4669 = vmatprep.subr.mxu0 %v4461
        %4670 = vmatpush1.msra.mxu0 %v4460
        %4671 = vmatprep.subr.mxu0 %v4573
        %4672 = vmatpush1.msra.mxu0 %v4572
        %4673 = vmatprep.subr.mxu0 0.0
        %4674 = vmatpush1.msra.mxu0 0.0
        %4675 = vmatprep.subr.mxu0 0.0
        %4676 = vmatpush1.msra.mxu0 0.0
        %4677 = vmatprep.subr.mxu0 0.0
        %4678 = vmatpush1.msra.mxu0 0.0
        %4679 = vmatprep.subr.mxu0 0.0
        %4680 = vmatpush1.msra.mxu0 0.0
        %4681 = vmatprep.subr.mxu0 0.0
        %4682 = vmatpush1.msra.mxu0 0.0
        %4683 = vmatprep.subr.mxu0 0.0
        %4684 = vmatpush1.msra.mxu0 0.0
        %4685 = vmatprep.subr.mxu0 0.0
        %4686 = vmatpush1.msra.mxu0 0.0
        %4687 = vmatprep.subr.mxu0 0.0
        %4688 = vmatpush1.msra.mxu0 0.0
        %4689 = vmatprep.subr.mxu0 0.0
        %4690 = vmatpush1.msra.mxu0 0.0
        %4691 = vmatprep.subr.mxu0 0.0
        %4692 = vmatpush1.msra.mxu0 0.0
        %4693 = vmatprep.subr.mxu0 0.0
        %4694 = vmatpush1.msra.mxu0 0.0
        %4695 = vmatprep.subr.mxu0 0.0
        %4696 = vmatpush1.msra.mxu0 0.0
        %4697 = vmatprep.subr.mxu0 0.0
        %4698 = vmatpush1.msra.mxu0 0.0
        %4699 = vmatprep.subr.mxu0 0.0
        %4700 = vmatpush1.msra.mxu0 0.0
        %4701 = vmatprep.subr.mxu0 0.0
        %4702 = vmatpush1.msra.mxu0 0.0
        %4703 = vmatprep.subr.mxu0 0.0
        %4704 = vmatpush1.msra.mxu0 0.0
        %4705 = vmatprep.subr.mxu0 0.0
        %4706 = vmatpush1.msra.mxu0 0.0
        %4707 = vmatprep.subr.mxu0 0.0
        %4708 = vmatpush1.msra.mxu0 0.0
        %4709 = vmatprep.subr.mxu0 0.0
        %4710 = vmatpush1.msra.mxu0 0.0
        %4711 = vmatprep.subr.mxu0 0.0
        %4712 = vmatpush1.msra.mxu0 0.0
        %4713 = vmatprep.subr.mxu0 0.0
        %4714 = vmatpush1.msra.mxu0 0.0
        %4715 = vmatprep.subr.mxu0 0.0
        %4716 = vmatpush1.msra.mxu0 0.0
        %4717 = vmatprep.subr.mxu0 0.0
        %4718 = vmatpush1.msra.mxu0 0.0
        %4719 = vmatprep.mubr.f32.mxu0 0.0
        %4720 = vmatmul.mubr.f32.gmra.mrb[0].mxu0 %v4653
        %v4721 = vpop.f32.mrb[0].mxu0
        %v4722 = vadd.f32 %v4650, %v4721
        %v4723 = vpop.f32.mrb[0].mxu0
        %v4724 = vadd.f32 %v4650, %v4723
        %4725 = vdwg.mxu0
        %4726 = vmatprep.subr.mxu0 %v4345
        %4727 = vmatpush1.msra.mxu0 %v4344
        %4728 = vmatprep.subr.mxu0 %v4461
        %4729 = vmatpush1.msra.mxu0 %v4460
        %4730 = vmatprep.subr.mxu0 %v4573
        %4731 = vmatpush1.msra.mxu0 %v4572
        %4732 = vmatprep.subr.mxu0 %v4346
        %4733 = vmatpush1.msra.mxu0 %v4345
        %4734 = vmatprep.subr.mxu0 %v4462
        %4735 = vmatpush1.msra.mxu0 %v4461
        %4736 = vmatprep.subr.mxu0 %v4574
        %4737 = vmatpush1.msra.mxu0 %v4573
        %4738 = vmatprep.subr.mxu0 %v4347
        %4739 = vmatpush1.msra.mxu0 %v4346
        %4740 = vmatprep.subr.mxu0 %v4463
        %4741 = vmatpush1.msra.mxu0 %v4462
        %4742 = vmatprep.subr.mxu0 %v4575
        %4743 = vmatpush1.msra.mxu0 %v4574
        %4744 = vmatprep.subr.mxu0 0.0
        %4745 = vmatpush1.msra.mxu0 0.0
        %4746 = vmatprep.subr.mxu0 0.0
        %4747 = vmatpush1.msra.mxu0 0.0
        %4748 = vmatprep.subr.mxu0 0.0
        %4749 = vmatpush1.msra.mxu0 0.0
        %4750 = vmatprep.subr.mxu0 0.0
        %4751 = vmatpush1.msra.mxu0 0.0
        %4752 = vmatprep.subr.mxu0 0.0
        %4753 = vmatpush1.msra.mxu0 0.0
        %4754 = vmatprep.subr.mxu0 0.0
        %4755 = vmatpush1.msra.mxu0 0.0
        %4756 = vmatprep.subr.mxu0 0.0
        %4757 = vmatpush1.msra.mxu0 0.0
        %4758 = vmatprep.subr.mxu0 0.0
        %4759 = vmatpush1.msra.mxu0 0.0
        %4760 = vmatprep.subr.mxu0 0.0
        %4761 = vmatpush1.msra.mxu0 0.0
        %4762 = vmatprep.subr.mxu0 0.0
        %4763 = vmatpush1.msra.mxu0 0.0
        %4764 = vmatprep.subr.mxu0 0.0
        %4765 = vmatpush1.msra.mxu0 0.0
        %4766 = vmatprep.subr.mxu0 0.0
        %4767 = vmatpush1.msra.mxu0 0.0
        %4768 = vmatprep.subr.mxu0 0.0
        %4769 = vmatpush1.msra.mxu0 0.0
        %4770 = vmatprep.subr.mxu0 0.0
        %4771 = vmatpush1.msra.mxu0 0.0
        %4772 = vmatprep.subr.mxu0 0.0
        %4773 = vmatpush1.msra.mxu0 0.0
        %4774 = vmatprep.subr.mxu0 0.0
        %4775 = vmatpush1.msra.mxu0 0.0
        %4776 = vmatprep.subr.mxu0 0.0
        %4777 = vmatpush1.msra.mxu0 0.0
        %4778 = vmatprep.subr.mxu0 0.0
        %4779 = vmatpush1.msra.mxu0 0.0
        %4780 = vmatprep.subr.mxu0 0.0
        %4781 = vmatpush1.msra.mxu0 0.0
        %4782 = vmatprep.subr.mxu0 0.0
        %4783 = vmatpush1.msra.mxu0 0.0
        %4784 = vmatprep.subr.mxu0 0.0
        %4785 = vmatpush1.msra.mxu0 0.0
        %4786 = vmatprep.subr.mxu0 0.0
        %4787 = vmatpush1.msra.mxu0 0.0
        %4788 = vmatprep.subr.mxu0 0.0
        %4789 = vmatpush1.msra.mxu0 0.0
        %4790 = vmatprep.mubr.f32.mxu0 0.0
        %4791 = vmatmul.mubr.f32.gmra.mrb[0].mxu0 %v4653
        %v4792 = vpop.f32.mrb[0].mxu0
        %v4793 = vadd.f32 %v4650, %v4792
        %v4794 = vpop.f32.mrb[0].mxu0
        %v4795 = vadd.f32 %v4650, %v4794
        %4796 = vdwg.mxu0
        %4797 = vmatprep.subr.mxu0 %v4347
        %4798 = vmatpush1.msra.mxu0 %v4346
        %4799 = vmatprep.subr.mxu0 %v4463
        %4800 = vmatpush1.msra.mxu0 %v4462
        %4801 = vmatprep.subr.mxu0 %v4575
        %4802 = vmatpush1.msra.mxu0 %v4574
        %4803 = vmatprep.subr.mxu0 %v4348
        %4804 = vmatpush1.msra.mxu0 %v4347
        %4805 = vmatprep.subr.mxu0 %v4464
        %4806 = vmatpush1.msra.mxu0 %v4463
        %4807 = vmatprep.subr.mxu0 %v4576
        %4808 = vmatpush1.msra.mxu0 %v4575
        %4809 = vmatprep.subr.mxu0 %v4349
        %4810 = vmatpush1.msra.mxu0 %v4348
        %4811 = vmatprep.subr.mxu0 %v4465
        %4812 = vmatpush1.msra.mxu0 %v4464
        %4813 = vmatprep.subr.mxu0 %v4577
        %4814 = vmatpush1.msra.mxu0 %v4576
        %4815 = vmatprep.subr.mxu0 0.0
        %4816 = vmatpush1.msra.mxu0 0.0
        %4817 = vmatprep.subr.mxu0 0.0
        %4818 = vmatpush1.msra.mxu0 0.0
        %4819 = vmatprep.subr.mxu0 0.0
        %4820 = vmatpush1.msra.mxu0 0.0
        %4821 = vmatprep.subr.mxu0 0.0
        %4822 = vmatpush1.msra.mxu0 0.0
        %4823 = vmatprep.subr.mxu0 0.0
        %4824 = vmatpush1.msra.mxu0 0.0
        %4825 = vmatprep.subr.mxu0 0.0
        %4826 = vmatpush1.msra.mxu0 0.0
        %4827 = vmatprep.subr.mxu0 0.0
        %4828 = vmatpush1.msra.mxu0 0.0
        %4829 = vmatprep.subr.mxu0 0.0
        %4830 = vmatpush1.msra.mxu0 0.0
        %4831 = vmatprep.subr.mxu0 0.0
        %4832 = vmatpush1.msra.mxu0 0.0
        %4833 = vmatprep.subr.mxu0 0.0
        %4834 = vmatpush1.msra.mxu0 0.0
        %4835 = vmatprep.subr.mxu0 0.0
        %4836 = vmatpush1.msra.mxu0 0.0
        %4837 = vmatprep.subr.mxu0 0.0
        %4838 = vmatpush1.msra.mxu0 0.0
        %4839 = vmatprep.subr.mxu0 0.0
        %4840 = vmatpush1.msra.mxu0 0.0
        %4841 = vmatprep.subr.mxu0 0.0
        %4842 = vmatpush1.msra.mxu0 0.0
        %4843 = vmatprep.subr.mxu0 0.0
        %4844 = vmatpush1.msra.mxu0 0.0
        %4845 = vmatprep.subr.mxu0 0.0
        %4846 = vmatpush1.msra.mxu0 0.0
        %4847 = vmatprep.subr.mxu0 0.0
        %4848 = vmatpush1.msra.mxu0 0.0
        %4849 = vmatprep.subr.mxu0 0.0
        %4850 = vmatpush1.msra.mxu0 0.0
        %4851 = vmatprep.subr.mxu0 0.0
        %4852 = vmatpush1.msra.mxu0 0.0
        %4853 = vmatprep.subr.mxu0 0.0
        %4854 = vmatpush1.msra.mxu0 0.0
        %4855 = vmatprep.subr.mxu0 0.0
        %4856 = vmatpush1.msra.mxu0 0.0
        %4857 = vmatprep.subr.mxu0 0.0
        %4858 = vmatpush1.msra.mxu0 0.0
        %4859 = vmatprep.subr.mxu0 0.0
        %4860 = vmatpush1.msra.mxu0 0.0
        %4861 = vmatprep.mubr.f32.mxu0 0.0
        %4862 = vmatmul.mubr.f32.gmra.mrb[0].mxu0 %v4653
        %v4863 = vpop.f32.mrb[0].mxu0
        %v4864 = vadd.f32 %v4650, %v4863
        %v4865 = vpop.f32.mrb[0].mxu0
        %v4866 = vadd.f32 %v4650, %v4865
        %4867 = vdwg.mxu0
        %4868 = vmatprep.subr.mxu0 %v4349
        %4869 = vmatpush1.msra.mxu0 %v4348
        %4870 = vmatprep.subr.mxu0 %v4465
        %4871 = vmatpush1.msra.mxu0 %v4464
        %4872 = vmatprep.subr.mxu0 %v4577
        %4873 = vmatpush1.msra.mxu0 %v4576
        %4874 = vmatprep.subr.mxu0 %v4350
        %4875 = vmatpush1.msra.mxu0 %v4349
        %4876 = vmatprep.subr.mxu0 %v4466
        %4877 = vmatpush1.msra.mxu0 %v4465
        %4878 = vmatprep.subr.mxu0 %v4578
        %4879 = vmatpush1.msra.mxu0 %v4577
        %4880 = vmatprep.subr.mxu0 %v4351
        %4881 = vmatpush1.msra.mxu0 %v4350
        %4882 = vmatprep.subr.mxu0 %v4467
        %4883 = vmatpush1.msra.mxu0 %v4466
        %4884 = vmatprep.subr.mxu0 %v4579
        %4885 = vmatpush1.msra.mxu0 %v4578
        %4886 = vmatprep.subr.mxu0 0.0
        %4887 = vmatpush1.msra.mxu0 0.0
        %4888 = vmatprep.subr.mxu0 0.0
        %4889 = vmatpush1.msra.mxu0 0.0
        %4890 = vmatprep.subr.mxu0 0.0
        %4891 = vmatpush1.msra.mxu0 0.0
        %4892 = vmatprep.subr.mxu0 0.0
        %4893 = vmatpush1.msra.mxu0 0.0
        %4894 = vmatprep.subr.mxu0 0.0
        %4895 = vmatpush1.msra.mxu0 0.0
        %4896 = vmatprep.subr.mxu0 0.0
        %4897 = vmatpush1.msra.mxu0 0.0
        %4898 = vmatprep.subr.mxu0 0.0
        %4899 = vmatpush1.msra.mxu0 0.0
        %4900 = vmatprep.subr.mxu0 0.0
        %4901 = vmatpush1.msra.mxu0 0.0
        %4902 = vmatprep.subr.mxu0 0.0
        %4903 = vmatpush1.msra.mxu0 0.0
        %4904 = vmatprep.subr.mxu0 0.0
        %4905 = vmatpush1.msra.mxu0 0.0
        %4906 = vmatprep.subr.mxu0 0.0
        %4907 = vmatpush1.msra.mxu0 0.0
        %4908 = vmatprep.subr.mxu0 0.0
        %4909 = vmatpush1.msra.mxu0 0.0
        %4910 = vmatprep.subr.mxu0 0.0
        %4911 = vmatpush1.msra.mxu0 0.0
        %4912 = vmatprep.subr.mxu0 0.0
        %4913 = vmatpush1.msra.mxu0 0.0
        %4914 = vmatprep.subr.mxu0 0.0
        %4915 = vmatpush1.msra.mxu0 0.0
        %4916 = vmatprep.subr.mxu0 0.0
        %4917 = vmatpush1.msra.mxu0 0.0
        %4918 = vmatprep.subr.mxu0 0.0
        %4919 = vmatpush1.msra.mxu0 0.0
        %4920 = vmatprep.subr.mxu0 0.0
        %4921 = vmatpush1.msra.mxu0 0.0
        %4922 = vmatprep.subr.mxu0 0.0
        %4923 = vmatpush1.msra.mxu0 0.0
        %4924 = vmatprep.subr.mxu0 0.0
        %4925 = vmatpush1.msra.mxu0 0.0
        %4926 = vmatprep.subr.mxu0 0.0
        %4927 = vmatpush1.msra.mxu0 0.0
        %4928 = vmatprep.subr.mxu0 0.0
        %4929 = vmatpush1.msra.mxu0 0.0
        %4930 = vmatprep.subr.mxu0 0.0
        %4931 = vmatpush1.msra.mxu0 0.0
        %4932 = vmatprep.mubr.f32.mxu0 0.0
        %4933 = vmatmul.mubr.f32.gmra.mrb[0].mxu0 %v4653
        %v4934 = vpop.f32.mrb[0].mxu0
        %v4935 = vadd.f32 %v4650, %v4934
        %v4936 = vpop.f32.mrb[0].mxu0
        %v4937 = vadd.f32 %v4650, %v4936
        %4938 = vdwg.mxu0
        %4939 = vmatprep.subr.mxu0 %v4351
        %4940 = vmatpush1.msra.mxu0 %v4350
        %4941 = vmatprep.subr.mxu0 %v4467
        %4942 = vmatpush1.msra.mxu0 %v4466
        %4943 = vmatprep.subr.mxu0 %v4579
        %4944 = vmatpush1.msra.mxu0 %v4578
        %4945 = vmatprep.subr.mxu0 %v4352
        %4946 = vmatpush1.msra.mxu0 %v4351
        %4947 = vmatprep.subr.mxu0 %v4468
        %4948 = vmatpush1.msra.mxu0 %v4467
        %4949 = vmatprep.subr.mxu0 %v4580
        %4950 = vmatpush1.msra.mxu0 %v4579
        %4951 = vmatprep.subr.mxu0 %v4353
        %4952 = vmatpush1.msra.mxu0 %v4352
        %4953 = vmatprep.subr.mxu0 %v4469
        %4954 = vmatpush1.msra.mxu0 %v4468
        %4955 = vmatprep.subr.mxu0 %v4581
        %4956 = vmatpush1.msra.mxu0 %v4580
        %4957 = vmatprep.subr.mxu0 0.0
        %4958 = vmatpush1.msra.mxu0 0.0
        %4959 = vmatprep.subr.mxu0 0.0
        %4960 = vmatpush1.msra.mxu0 0.0
        %4961 = vmatprep.subr.mxu0 0.0
        %4962 = vmatpush1.msra.mxu0 0.0
        %4963 = vmatprep.subr.mxu0 0.0
        %4964 = vmatpush1.msra.mxu0 0.0
        %4965 = vmatprep.subr.mxu0 0.0
        %4966 = vmatpush1.msra.mxu0 0.0
        %4967 = vmatprep.subr.mxu0 0.0
        %4968 = vmatpush1.msra.mxu0 0.0
        %4969 = vmatprep.subr.mxu0 0.0
        %4970 = vmatpush1.msra.mxu0 0.0
        %4971 = vmatprep.subr.mxu0 0.0
        %4972 = vmatpush1.msra.mxu0 0.0
        %4973 = vmatprep.subr.mxu0 0.0
        %4974 = vmatpush1.msra.mxu0 0.0
        %4975 = vmatprep.subr.mxu0 0.0
        %4976 = vmatpush1.msra.mxu0 0.0
        %4977 = vmatprep.subr.mxu0 0.0
        %4978 = vmatpush1.msra.mxu0 0.0
        %4979 = vmatprep.subr.mxu0 0.0
        %4980 = vmatpush1.msra.mxu0 0.0
        %4981 = vmatprep.subr.mxu0 0.0
        %4982 = vmatpush1.msra.mxu0 0.0
        %4983 = vmatprep.subr.mxu0 0.0
        %4984 = vmatpush1.msra.mxu0 0.0
        %4985 = vmatprep.subr.mxu0 0.0
        %4986 = vmatpush1.msra.mxu0 0.0
        %4987 = vmatprep.subr.mxu0 0.0
        %4988 = vmatpush1.msra.mxu0 0.0
        %4989 = vmatprep.subr.mxu0 0.0
        %4990 = vmatpush1.msra.mxu0 0.0
        %4991 = vmatprep.subr.mxu0 0.0
        %4992 = vmatpush1.msra.mxu0 0.0
        %4993 = vmatprep.subr.mxu0 0.0
        %4994 = vmatpush1.msra.mxu0 0.0
        %4995 = vmatprep.subr.mxu0 0.0
        %4996 = vmatpush1.msra.mxu0 0.0
        %4997 = vmatprep.subr.mxu0 0.0
        %4998 = vmatpush1.msra.mxu0 0.0
        %4999 = vmatprep.subr.mxu0 0.0
        %5000 = vmatpush1.msra.mxu0 0.0
        %5001 = vmatprep.subr.mxu0 0.0
        %5002 = vmatpush1.msra.mxu0 0.0
        %5003 = vmatprep.mubr.f32.mxu0 0.0
        %5004 = vmatmul.mubr.f32.gmra.mrb[0].mxu0 %v4653
        %v5005 = vpop.f32.mrb[0].mxu0
        %v5006 = vadd.f32 %v4650, %v5005
        %v5007 = vpop.f32.mrb[0].mxu0
        %v5008 = vadd.f32 %v4650, %v5007
        %5009 = vdwg.mxu0
        %5010 = vmatprep.subr.mxu0 %v4353
        %5011 = vmatpush1.msra.mxu0 %v4352
        %5012 = vmatprep.subr.mxu0 %v4469
        %5013 = vmatpush1.msra.mxu0 %v4468
        %5014 = vmatprep.subr.mxu0 %v4581
        %5015 = vmatpush1.msra.mxu0 %v4580
        %5016 = vmatprep.subr.mxu0 %v4354
        %5017 = vmatpush1.msra.mxu0 %v4353
        %5018 = vmatprep.subr.mxu0 %v4470
        %5019 = vmatpush1.msra.mxu0 %v4469
        %5020 = vmatprep.subr.mxu0 %v4582
        %5021 = vmatpush1.msra.mxu0 %v4581
        %5022 = vmatprep.subr.mxu0 %v4355
        %5023 = vmatpush1.msra.mxu0 %v4354
        %5024 = vmatprep.subr.mxu0 %v4471
        %5025 = vmatpush1.msra.mxu0 %v4470
        %5026 = vmatprep.subr.mxu0 %v4583
        %5027 = vmatpush1.msra.mxu0 %v4582
        %5028 = vmatprep.subr.mxu0 0.0
        %5029 = vmatpush1.msra.mxu0 0.0
        %5030 = vmatprep.subr.mxu0 0.0
        %5031 = vmatpush1.msra.mxu0 0.0
        %5032 = vmatprep.subr.mxu0 0.0
        %5033 = vmatpush1.msra.mxu0 0.0
        %5034 = vmatprep.subr.mxu0 0.0
        %5035 = vmatpush1.msra.mxu0 0.0
        %5036 = vmatprep.subr.mxu0 0.0
        %5037 = vmatpush1.msra.mxu0 0.0
        %5038 = vmatprep.subr.mxu0 0.0
        %5039 = vmatpush1.msra.mxu0 0.0
        %5040 = vmatprep.subr.mxu0 0.0
        %5041 = vmatpush1.msra.mxu0 0.0
        %5042 = vmatprep.subr.mxu0 0.0
        %5043 = vmatpush1.msra.mxu0 0.0
        %5044 = vmatprep.subr.mxu0 0.0
        %5045 = vmatpush1.msra.mxu0 0.0
        %5046 = vmatprep.subr.mxu0 0.0
        %5047 = vmatpush1.msra.mxu0 0.0
        %5048 = vmatprep.subr.mxu0 0.0
        %5049 = vmatpush1.msra.mxu0 0.0
        %5050 = vmatprep.subr.mxu0 0.0
        %5051 = vmatpush1.msra.mxu0 0.0
        %5052 = vmatprep.subr.mxu0 0.0
        %5053 = vmatpush1.msra.mxu0 0.0
        %5054 = vmatprep.subr.mxu0 0.0
        %5055 = vmatpush1.msra.mxu0 0.0
        %5056 = vmatprep.subr.mxu0 0.0
        %5057 = vmatpush1.msra.mxu0 0.0
        %5058 = vmatprep.subr.mxu0 0.0
        %5059 = vmatpush1.msra.mxu0 0.0
        %5060 = vmatprep.subr.mxu0 0.0
        %5061 = vmatpush1.msra.mxu0 0.0
        %5062 = vmatprep.subr.mxu0 0.0
        %5063 = vmatpush1.msra.mxu0 0.0
        %5064 = vmatprep.subr.mxu0 0.0
        %5065 = vmatpush1.msra.mxu0 0.0
        %5066 = vmatprep.subr.mxu0 0.0
        %5067 = vmatpush1.msra.mxu0 0.0
        %5068 = vmatprep.subr.mxu0 0.0
        %5069 = vmatpush1.msra.mxu0 0.0
        %5070 = vmatprep.subr.mxu0 0.0
        %5071 = vmatpush1.msra.mxu0 0.0
        %5072 = vmatprep.subr.mxu0 0.0
        %5073 = vmatpush1.msra.mxu0 0.0
        %5074 = vmatprep.mubr.f32.mxu0 0.0
        %5075 = vmatmul.mubr.f32.gmra.mrb[0].mxu0 %v4653
        %v5076 = vpop.f32.mrb[0].mxu0
        %v5077 = vadd.f32 %v4650, %v5076
        %v5078 = vpop.f32.mrb[0].mxu0
        %v5079 = vadd.f32 %v4650, %v5078
        %5080 = vdwg.mxu0
        %5081 = vmatprep.subr.mxu0 %v4355
        %5082 = vmatpush1.msra.mxu0 %v4354
        %5083 = vmatprep.subr.mxu0 %v4471
        %5084 = vmatpush1.msra.mxu0 %v4470
        %5085 = vmatprep.subr.mxu0 %v4583
        %5086 = vmatpush1.msra.mxu0 %v4582
        %5087 = vmatprep.subr.mxu0 %v4356
        %5088 = vmatpush1.msra.mxu0 %v4355
        %5089 = vmatprep.subr.mxu0 %v4472
        %5090 = vmatpush1.msra.mxu0 %v4471
        %5091 = vmatprep.subr.mxu0 %v4584
        %5092 = vmatpush1.msra.mxu0 %v4583
        %5093 = vmatprep.subr.mxu0 %v4357
        %5094 = vmatpush1.msra.mxu0 %v4356
        %5095 = vmatprep.subr.mxu0 %v4473
        %5096 = vmatpush1.msra.mxu0 %v4472
        %5097 = vmatprep.subr.mxu0 %v4585
        %5098 = vmatpush1.msra.mxu0 %v4584
        %5099 = vmatprep.subr.mxu0 0.0
        %5100 = vmatpush1.msra.mxu0 0.0
        %5101 = vmatprep.subr.mxu0 0.0
        %5102 = vmatpush1.msra.mxu0 0.0
        %5103 = vmatprep.subr.mxu0 0.0
        %5104 = vmatpush1.msra.mxu0 0.0
        %5105 = vmatprep.subr.mxu0 0.0
        %5106 = vmatpush1.msra.mxu0 0.0
        %5107 = vmatprep.subr.mxu0 0.0
        %5108 = vmatpush1.msra.mxu0 0.0
        %5109 = vmatprep.subr.mxu0 0.0
        %5110 = vmatpush1.msra.mxu0 0.0
        %5111 = vmatprep.subr.mxu0 0.0
        %5112 = vmatpush1.msra.mxu0 0.0
        %5113 = vmatprep.subr.mxu0 0.0
        %5114 = vmatpush1.msra.mxu0 0.0
        %5115 = vmatprep.subr.mxu0 0.0
        %5116 = vmatpush1.msra.mxu0 0.0
        %5117 = vmatprep.subr.mxu0 0.0
        %5118 = vmatpush1.msra.mxu0 0.0
        %5119 = vmatprep.subr.mxu0 0.0
        %5120 = vmatpush1.msra.mxu0 0.0
        %5121 = vmatprep.subr.mxu0 0.0
        %5122 = vmatpush1.msra.mxu0 0.0
        %5123 = vmatprep.subr.mxu0 0.0
        %5124 = vmatpush1.msra.mxu0 0.0
        %5125 = vmatprep.subr.mxu0 0.0
        %5126 = vmatpush1.msra.mxu0 0.0
        %5127 = vmatprep.subr.mxu0 0.0
        %5128 = vmatpush1.msra.mxu0 0.0
        %5129 = vmatprep.subr.mxu0 0.0
        %5130 = vmatpush1.msra.mxu0 0.0
        %5131 = vmatprep.subr.mxu0 0.0
        %5132 = vmatpush1.msra.mxu0 0.0
        %5133 = vmatprep.subr.mxu0 0.0
        %5134 = vmatpush1.msra.mxu0 0.0
        %5135 = vmatprep.subr.mxu0 0.0
        %5136 = vmatpush1.msra.mxu0 0.0
        %5137 = vmatprep.subr.mxu0 0.0
        %5138 = vmatpush1.msra.mxu0 0.0
        %5139 = vmatprep.subr.mxu0 0.0
        %5140 = vmatpush1.msra.mxu0 0.0
        %5141 = vmatprep.subr.mxu0 0.0
        %5142 = vmatpush1.msra.mxu0 0.0
        %5143 = vmatprep.subr.mxu0 0.0
        %5144 = vmatpush1.msra.mxu0 0.0
        %5145 = vmatprep.mubr.f32.mxu0 0.0
        %5146 = vmatmul.mubr.f32.gmra.mrb[0].mxu0 %v4653
        %v5147 = vpop.f32.mrb[0].mxu0
        %v5148 = vadd.f32 %v4650, %v5147
        %v5149 = vpop.f32.mrb[0].mxu0
        %v5150 = vadd.f32 %v4650, %v5149
        %5151 = vdwg.mxu0
        %5152 = vmatprep.subr.mxu0 %v4357
        %5153 = vmatpush1.msra.mxu0 %v4356
        %5154 = vmatprep.subr.mxu0 %v4473
        %5155 = vmatpush1.msra.mxu0 %v4472
        %5156 = vmatprep.subr.mxu0 %v4585
        %5157 = vmatpush1.msra.mxu0 %v4584
        %5158 = vmatprep.subr.mxu0 %v4358
        %5159 = vmatpush1.msra.mxu0 %v4357
        %5160 = vmatprep.subr.mxu0 %v4474
        %5161 = vmatpush1.msra.mxu0 %v4473
        %5162 = vmatprep.subr.mxu0 %v4586
        %5163 = vmatpush1.msra.mxu0 %v4585
        %5164 = vmatprep.subr.mxu0 %v4359
        %5165 = vmatpush1.msra.mxu0 %v4358
        %5166 = vmatprep.subr.mxu0 %v4475
        %5167 = vmatpush1.msra.mxu0 %v4474
        %5168 = vmatprep.subr.mxu0 %v4587
        %5169 = vmatpush1.msra.mxu0 %v4586
        %5170 = vmatprep.subr.mxu0 0.0
        %5171 = vmatpush1.msra.mxu0 0.0
        %5172 = vmatprep.subr.mxu0 0.0
        %5173 = vmatpush1.msra.mxu0 0.0
        %5174 = vmatprep.subr.mxu0 0.0
        %5175 = vmatpush1.msra.mxu0 0.0
        %5176 = vmatprep.subr.mxu0 0.0
        %5177 = vmatpush1.msra.mxu0 0.0
        %5178 = vmatprep.subr.mxu0 0.0
        %5179 = vmatpush1.msra.mxu0 0.0
        %5180 = vmatprep.subr.mxu0 0.0
        %5181 = vmatpush1.msra.mxu0 0.0
        %5182 = vmatprep.subr.mxu0 0.0
        %5183 = vmatpush1.msra.mxu0 0.0
        %5184 = vmatprep.subr.mxu0 0.0
        %5185 = vmatpush1.msra.mxu0 0.0
        %5186 = vmatprep.subr.mxu0 0.0
        %5187 = vmatpush1.msra.mxu0 0.0
        %5188 = vmatprep.subr.mxu0 0.0
        %5189 = vmatpush1.msra.mxu0 0.0
        %5190 = vmatprep.subr.mxu0 0.0
        %5191 = vmatpush1.msra.mxu0 0.0
        %5192 = vmatprep.subr.mxu0 0.0
        %5193 = vmatpush1.msra.mxu0 0.0
        %5194 = vmatprep.subr.mxu0 0.0
        %5195 = vmatpush1.msra.mxu0 0.0
        %5196 = vmatprep.subr.mxu0 0.0
        %5197 = vmatpush1.msra.mxu0 0.0
        %5198 = vmatprep.subr.mxu0 0.0
        %5199 = vmatpush1.msra.mxu0 0.0
        %5200 = vmatprep.subr.mxu0 0.0
        %5201 = vmatpush1.msra.mxu0 0.0
        %5202 = vmatprep.subr.mxu0 0.0
        %5203 = vmatpush1.msra.mxu0 0.0
        %5204 = vmatprep.subr.mxu0 0.0
        %5205 = vmatpush1.msra.mxu0 0.0
        %5206 = vmatprep.subr.mxu0 0.0
        %5207 = vmatpush1.msra.mxu0 0.0
        %5208 = vmatprep.subr.mxu0 0.0
        %5209 = vmatpush1.msra.mxu0 0.0
        %5210 = vmatprep.subr.mxu0 0.0
        %5211 = vmatpush1.msra.mxu0 0.0
        %5212 = vmatprep.subr.mxu0 0.0
        %5213 = vmatpush1.msra.mxu0 0.0
        %5214 = vmatprep.subr.mxu0 0.0
        %5215 = vmatpush1.msra.mxu0 0.0
        %5216 = vmatprep.mubr.f32.mxu0 0.0
        %5217 = vmatmul.mubr.f32.gmra.mrb[0].mxu0 %v4653
        %v5218 = vpop.f32.mrb[0].mxu0
        %v5219 = vadd.f32 %v4650, %v5218
        %v5220 = vpop.f32.mrb[0].mxu0
        %v5221 = vadd.f32 %v4650, %v5220
        %5222 = vdwg.mxu0
        %5223 = vmatprep.subr.mxu0 %v4359
        %5224 = vmatpush1.msra.mxu0 %v4358
        %5225 = vmatprep.subr.mxu0 %v4475
        %5226 = vmatpush1.msra.mxu0 %v4474
        %5227 = vmatprep.subr.mxu0 %v4587
        %5228 = vmatpush1.msra.mxu0 %v4586
        %5229 = vmatprep.subr.mxu0 %v4360
        %5230 = vmatpush1.msra.mxu0 %v4359
        %5231 = vmatprep.subr.mxu0 %v4476
        %5232 = vmatpush1.msra.mxu0 %v4475
        %5233 = vmatprep.subr.mxu0 %v4588
        %5234 = vmatpush1.msra.mxu0 %v4587
        %5235 = vmatprep.subr.mxu0 %v4361
        %5236 = vmatpush1.msra.mxu0 %v4360
        %5237 = vmatprep.subr.mxu0 %v4477
        %5238 = vmatpush1.msra.mxu0 %v4476
        %5239 = vmatprep.subr.mxu0 %v4589
        %5240 = vmatpush1.msra.mxu0 %v4588
        %5241 = vmatprep.subr.mxu0 0.0
        %5242 = vmatpush1.msra.mxu0 0.0
        %5243 = vmatprep.subr.mxu0 0.0
        %5244 = vmatpush1.msra.mxu0 0.0
        %5245 = vmatprep.subr.mxu0 0.0
        %5246 = vmatpush1.msra.mxu0 0.0
        %5247 = vmatprep.subr.mxu0 0.0
        %5248 = vmatpush1.msra.mxu0 0.0
        %5249 = vmatprep.subr.mxu0 0.0
        %5250 = vmatpush1.msra.mxu0 0.0
        %5251 = vmatprep.subr.mxu0 0.0
        %5252 = vmatpush1.msra.mxu0 0.0
        %5253 = vmatprep.subr.mxu0 0.0
        %5254 = vmatpush1.msra.mxu0 0.0
        %5255 = vmatprep.subr.mxu0 0.0
        %5256 = vmatpush1.msra.mxu0 0.0
        %5257 = vmatprep.subr.mxu0 0.0
        %5258 = vmatpush1.msra.mxu0 0.0
        %5259 = vmatprep.subr.mxu0 0.0
        %5260 = vmatpush1.msra.mxu0 0.0
        %5261 = vmatprep.subr.mxu0 0.0
        %5262 = vmatpush1.msra.mxu0 0.0
        %5263 = vmatprep.subr.mxu0 0.0
        %5264 = vmatpush1.msra.mxu0 0.0
        %5265 = vmatprep.subr.mxu0 0.0
        %5266 = vmatpush1.msra.mxu0 0.0
        %5267 = vmatprep.subr.mxu0 0.0
        %5268 = vmatpush1.msra.mxu0 0.0
        %5269 = vmatprep.subr.mxu0 0.0
        %5270 = vmatpush1.msra.mxu0 0.0
        %5271 = vmatprep.subr.mxu0 0.0
        %5272 = vmatpush1.msra.mxu0 0.0
        %5273 = vmatprep.subr.mxu0 0.0
        %5274 = vmatpush1.msra.mxu0 0.0
        %5275 = vmatprep.subr.mxu0 0.0
        %5276 = vmatpush1.msra.mxu0 0.0
        %5277 = vmatprep.subr.mxu0 0.0
        %5278 = vmatpush1.msra.mxu0 0.0
        %5279 = vmatprep.subr.mxu0 0.0
        %5280 = vmatpush1.msra.mxu0 0.0
        %5281 = vmatprep.subr.mxu0 0.0
        %5282 = vmatpush1.msra.mxu0 0.0
        %5283 = vmatprep.subr.mxu0 0.0
        %5284 = vmatpush1.msra.mxu0 0.0
        %5285 = vmatprep.subr.mxu0 0.0
        %5286 = vmatpush1.msra.mxu0 0.0
        %5287 = vmatprep.mubr.f32.mxu0 0.0
        %5288 = vmatmul.mubr.f32.gmra.mrb[0].mxu0 %v4653
        %v5289 = vpop.f32.mrb[0].mxu0
        %v5290 = vadd.f32 %v4650, %v5289
        %v5291 = vpop.f32.mrb[0].mxu0
        %v5292 = vadd.f32 %v4650, %v5291
        %5293 = vdwg.mxu0
        %5294 = vmatprep.subr.mxu0 %v4361
        %5295 = vmatpush1.msra.mxu0 %v4360
        %5296 = vmatprep.subr.mxu0 %v4477
        %5297 = vmatpush1.msra.mxu0 %v4476
        %5298 = vmatprep.subr.mxu0 %v4589
        %5299 = vmatpush1.msra.mxu0 %v4588
        %5300 = vmatprep.subr.mxu0 %v4362
        %5301 = vmatpush1.msra.mxu0 %v4361
        %5302 = vmatprep.subr.mxu0 %v4478
        %5303 = vmatpush1.msra.mxu0 %v4477
        %5304 = vmatprep.subr.mxu0 %v4590
        %5305 = vmatpush1.msra.mxu0 %v4589
        %5306 = vmatprep.subr.mxu0 %v4363
        %5307 = vmatpush1.msra.mxu0 %v4362
        %5308 = vmatprep.subr.mxu0 %v4479
        %5309 = vmatpush1.msra.mxu0 %v4478
        %5310 = vmatprep.subr.mxu0 %v4591
        %5311 = vmatpush1.msra.mxu0 %v4590
        %5312 = vmatprep.subr.mxu0 0.0
        %5313 = vmatpush1.msra.mxu0 0.0
        %5314 = vmatprep.subr.mxu0 0.0
        %5315 = vmatpush1.msra.mxu0 0.0
        %5316 = vmatprep.subr.mxu0 0.0
        %5317 = vmatpush1.msra.mxu0 0.0
        %5318 = vmatprep.subr.mxu0 0.0
        %5319 = vmatpush1.msra.mxu0 0.0
        %5320 = vmatprep.subr.mxu0 0.0
        %5321 = vmatpush1.msra.mxu0 0.0
        %5322 = vmatprep.subr.mxu0 0.0
        %5323 = vmatpush1.msra.mxu0 0.0
        %5324 = vmatprep.subr.mxu0 0.0
        %5325 = vmatpush1.msra.mxu0 0.0
        %5326 = vmatprep.subr.mxu0 0.0
        %5327 = vmatpush1.msra.mxu0 0.0
        %5328 = vmatprep.subr.mxu0 0.0
        %5329 = vmatpush1.msra.mxu0 0.0
        %5330 = vmatprep.subr.mxu0 0.0
        %5331 = vmatpush1.msra.mxu0 0.0
        %5332 = vmatprep.subr.mxu0 0.0
        %5333 = vmatpush1.msra.mxu0 0.0
        %5334 = vmatprep.subr.mxu0 0.0
        %5335 = vmatpush1.msra.mxu0 0.0
        %5336 = vmatprep.subr.mxu0 0.0
        %5337 = vmatpush1.msra.mxu0 0.0
        %5338 = vmatprep.subr.mxu0 0.0
        %5339 = vmatpush1.msra.mxu0 0.0
        %5340 = vmatprep.subr.mxu0 0.0
        %5341 = vmatpush1.msra.mxu0 0.0
        %5342 = vmatprep.subr.mxu0 0.0
        %5343 = vmatpush1.msra.mxu0 0.0
        %5344 = vmatprep.subr.mxu0 0.0
        %5345 = vmatpush1.msra.mxu0 0.0
        %5346 = vmatprep.subr.mxu0 0.0
        %5347 = vmatpush1.msra.mxu0 0.0
        %5348 = vmatprep.subr.mxu0 0.0
        %5349 = vmatpush1.msra.mxu0 0.0
        %5350 = vmatprep.subr.mxu0 0.0
        %5351 = vmatpush1.msra.mxu0 0.0
        %5352 = vmatprep.subr.mxu0 0.0
        %5353 = vmatpush1.msra.mxu0 0.0
        %5354 = vmatprep.subr.mxu0 0.0
        %5355 = vmatpush1.msra.mxu0 0.0
        %5356 = vmatprep.subr.mxu0 0.0
        %5357 = vmatpush1.msra.mxu0 0.0
        %5358 = vmatprep.mubr.f32.mxu0 0.0
        %5359 = vmatmul.mubr.f32.gmra.mrb[0].mxu0 %v4653
        %v5360 = vpop.f32.mrb[0].mxu0
        %v5361 = vadd.f32 %v4650, %v5360
        %v5362 = vpop.f32.mrb[0].mxu0
        %v5363 = vadd.f32 %v4650, %v5362
        %5364 = vdwg.mxu0
        %5365 = vmatprep.subr.mxu0 %v4363
        %5366 = vmatpush1.msra.mxu0 %v4362
        %5367 = vmatprep.subr.mxu0 %v4479
        %5368 = vmatpush1.msra.mxu0 %v4478
        %5369 = vmatprep.subr.mxu0 %v4591
        %5370 = vmatpush1.msra.mxu0 %v4590
        %5371 = vmatprep.subr.mxu0 %v4364
        %5372 = vmatpush1.msra.mxu0 %v4363
        %5373 = vmatprep.subr.mxu0 %v4480
        %5374 = vmatpush1.msra.mxu0 %v4479
        %5375 = vmatprep.subr.mxu0 %v4592
        %5376 = vmatpush1.msra.mxu0 %v4591
        %5377 = vmatprep.subr.mxu0 %v4365
        %5378 = vmatpush1.msra.mxu0 %v4364
        %5379 = vmatprep.subr.mxu0 %v4481
        %5380 = vmatpush1.msra.mxu0 %v4480
        %5381 = vmatprep.subr.mxu0 %v4593
        %5382 = vmatpush1.msra.mxu0 %v4592
        %5383 = vmatprep.subr.mxu0 0.0
        %5384 = vmatpush1.msra.mxu0 0.0
        %5385 = vmatprep.subr.mxu0 0.0
        %5386 = vmatpush1.msra.mxu0 0.0
        %5387 = vmatprep.subr.mxu0 0.0
        %5388 = vmatpush1.msra.mxu0 0.0
        %5389 = vmatprep.subr.mxu0 0.0
        %5390 = vmatpush1.msra.mxu0 0.0
        %5391 = vmatprep.subr.mxu0 0.0
        %5392 = vmatpush1.msra.mxu0 0.0
        %5393 = vmatprep.subr.mxu0 0.0
        %5394 = vmatpush1.msra.mxu0 0.0
        %5395 = vmatprep.subr.mxu0 0.0
        %5396 = vmatpush1.msra.mxu0 0.0
        %5397 = vmatprep.subr.mxu0 0.0
        %5398 = vmatpush1.msra.mxu0 0.0
        %5399 = vmatprep.subr.mxu0 0.0
        %5400 = vmatpush1.msra.mxu0 0.0
        %5401 = vmatprep.subr.mxu0 0.0
        %5402 = vmatpush1.msra.mxu0 0.0
        %5403 = vmatprep.subr.mxu0 0.0
        %5404 = vmatpush1.msra.mxu0 0.0
        %5405 = vmatprep.subr.mxu0 0.0
        %5406 = vmatpush1.msra.mxu0 0.0
        %5407 = vmatprep.subr.mxu0 0.0
        %5408 = vmatpush1.msra.mxu0 0.0
        %5409 = vmatprep.subr.mxu0 0.0
        %5410 = vmatpush1.msra.mxu0 0.0
        %5411 = vmatprep.subr.mxu0 0.0
        %5412 = vmatpush1.msra.mxu0 0.0
        %5413 = vmatprep.subr.mxu0 0.0
        %5414 = vmatpush1.msra.mxu0 0.0
        %5415 = vmatprep.subr.mxu0 0.0
        %5416 = vmatpush1.msra.mxu0 0.0
        %5417 = vmatprep.subr.mxu0 0.0
        %5418 = vmatpush1.msra.mxu0 0.0
        %5419 = vmatprep.subr.mxu0 0.0
        %5420 = vmatpush1.msra.mxu0 0.0
        %5421 = vmatprep.subr.mxu0 0.0
        %5422 = vmatpush1.msra.mxu0 0.0
        %5423 = vmatprep.subr.mxu0 0.0
        %5424 = vmatpush1.msra.mxu0 0.0
        %5425 = vmatprep.subr.mxu0 0.0
        %5426 = vmatpush1.msra.mxu0 0.0
        %5427 = vmatprep.subr.mxu0 0.0
        %5428 = vmatpush1.msra.mxu0 0.0
        %5429 = vmatprep.mubr.f32.mxu0 0.0
        %5430 = vmatmul.mubr.f32.gmra.mrb[0].mxu0 %v4653
        %v5431 = vpop.f32.mrb[0].mxu0
        %v5432 = vadd.f32 %v4650, %v5431
        %v5433 = vpop.f32.mrb[0].mxu0
        %v5434 = vadd.f32 %v4650, %v5433
        %5435 = vdwg.mxu0
        %5436 = vmatprep.subr.mxu0 %v4365
        %5437 = vmatpush1.msra.mxu0 %v4364
        %5438 = vmatprep.subr.mxu0 %v4481
        %5439 = vmatpush1.msra.mxu0 %v4480
        %5440 = vmatprep.subr.mxu0 %v4593
        %5441 = vmatpush1.msra.mxu0 %v4592
        %5442 = vmatprep.subr.mxu0 %v4366
        %5443 = vmatpush1.msra.mxu0 %v4365
        %5444 = vmatprep.subr.mxu0 %v4482
        %5445 = vmatpush1.msra.mxu0 %v4481
        %5446 = vmatprep.subr.mxu0 %v4594
        %5447 = vmatpush1.msra.mxu0 %v4593
        %5448 = vmatprep.subr.mxu0 %v4367
        %5449 = vmatpush1.msra.mxu0 %v4366
        %5450 = vmatprep.subr.mxu0 %v4483
        %5451 = vmatpush1.msra.mxu0 %v4482
        %5452 = vmatprep.subr.mxu0 %v4595
        %5453 = vmatpush1.msra.mxu0 %v4594
        %5454 = vmatprep.subr.mxu0 0.0
        %5455 = vmatpush1.msra.mxu0 0.0
        %5456 = vmatprep.subr.mxu0 0.0
        %5457 = vmatpush1.msra.mxu0 0.0
        %5458 = vmatprep.subr.mxu0 0.0
        %5459 = vmatpush1.msra.mxu0 0.0
        %5460 = vmatprep.subr.mxu0 0.0
        %5461 = vmatpush1.msra.mxu0 0.0
        %5462 = vmatprep.subr.mxu0 0.0
        %5463 = vmatpush1.msra.mxu0 0.0
        %5464 = vmatprep.subr.mxu0 0.0
        %5465 = vmatpush1.msra.mxu0 0.0
        %5466 = vmatprep.subr.mxu0 0.0
        %5467 = vmatpush1.msra.mxu0 0.0
        %5468 = vmatprep.subr.mxu0 0.0
        %5469 = vmatpush1.msra.mxu0 0.0
        %5470 = vmatprep.subr.mxu0 0.0
        %5471 = vmatpush1.msra.mxu0 0.0
        %5472 = vmatprep.subr.mxu0 0.0
        %5473 = vmatpush1.msra.mxu0 0.0
        %5474 = vmatprep.subr.mxu0 0.0
        %5475 = vmatpush1.msra.mxu0 0.0
        %5476 = vmatprep.subr.mxu0 0.0
        %5477 = vmatpush1.msra.mxu0 0.0
        %5478 = vmatprep.subr.mxu0 0.0
        %5479 = vmatpush1.msra.mxu0 0.0
        %5480 = vmatprep.subr.mxu0 0.0
        %5481 = vmatpush1.msra.mxu0 0.0
        %5482 = vmatprep.subr.mxu0 0.0
        %5483 = vmatpush1.msra.mxu0 0.0
        %5484 = vmatprep.subr.mxu0 0.0
        %5485 = vmatpush1.msra.mxu0 0.0
        %5486 = vmatprep.subr.mxu0 0.0
        %5487 = vmatpush1.msra.mxu0 0.0
        %5488 = vmatprep.subr.mxu0 0.0
        %5489 = vmatpush1.msra.mxu0 0.0
        %5490 = vmatprep.subr.mxu0 0.0
        %5491 = vmatpush1.msra.mxu0 0.0
        %5492 = vmatprep.subr.mxu0 0.0
        %5493 = vmatpush1.msra.mxu0 0.0
        %5494 = vmatprep.subr.mxu0 0.0
        %5495 = vmatpush1.msra.mxu0 0.0
        %5496 = vmatprep.subr.mxu0 0.0
        %5497 = vmatpush1.msra.mxu0 0.0
        %5498 = vmatprep.subr.mxu0 0.0
        %5499 = vmatpush1.msra.mxu0 0.0
        %5500 = vmatprep.mubr.f32.mxu0 0.0
        %5501 = vmatmul.mubr.f32.gmra.mrb[0].mxu0 %v4653
        %v5502 = vpop.f32.mrb[0].mxu0
        %v5503 = vadd.f32 %v4650, %v5502
        %v5504 = vpop.f32.mrb[0].mxu0
        %v5505 = vadd.f32 %v4650, %v5504
        %5506 = vdwg.mxu0
        %5507 = vmatprep.subr.mxu0 %v4367
        %5508 = vmatpush1.msra.mxu0 %v4366
        %5509 = vmatprep.subr.mxu0 %v4483
        %5510 = vmatpush1.msra.mxu0 %v4482
        %5511 = vmatprep.subr.mxu0 %v4595
        %5512 = vmatpush1.msra.mxu0 %v4594
        %5513 = vmatprep.subr.mxu0 %v4368
        %5514 = vmatpush1.msra.mxu0 %v4367
        %5515 = vmatprep.subr.mxu0 %v4484
        %5516 = vmatpush1.msra.mxu0 %v4483
        %5517 = vmatprep.subr.mxu0 %v4596
        %5518 = vmatpush1.msra.mxu0 %v4595
        %5519 = vmatprep.subr.mxu0 %v4369
        %5520 = vmatpush1.msra.mxu0 %v4368
        %5521 = vmatprep.subr.mxu0 %v4628
        %5522 = vmatpush1.msra.mxu0 %v4484
        %5523 = vmatprep.subr.mxu0 %v4633
        %5524 = vmatpush1.msra.mxu0 %v4596
        %5525 = vmatprep.subr.mxu0 0.0
        %5526 = vmatpush1.msra.mxu0 0.0
        %5527 = vmatprep.subr.mxu0 0.0
        %5528 = vmatpush1.msra.mxu0 0.0
        %5529 = vmatprep.subr.mxu0 0.0
        %5530 = vmatpush1.msra.mxu0 0.0
        %5531 = vmatprep.subr.mxu0 0.0
        %5532 = vmatpush1.msra.mxu0 0.0
        %5533 = vmatprep.subr.mxu0 0.0
        %5534 = vmatpush1.msra.mxu0 0.0
        %5535 = vmatprep.subr.mxu0 0.0
        %5536 = vmatpush1.msra.mxu0 0.0
        %5537 = vmatprep.subr.mxu0 0.0
        %5538 = vmatpush1.msra.mxu0 0.0
        %5539 = vmatprep.subr.mxu0 0.0
        %5540 = vmatpush1.msra.mxu0 0.0
        %5541 = vmatprep.subr.mxu0 0.0
        %5542 = vmatpush1.msra.mxu0 0.0
        %5543 = vmatprep.subr.mxu0 0.0
        %5544 = vmatpush1.msra.mxu0 0.0
        %5545 = vmatprep.subr.mxu0 0.0
        %5546 = vmatpush1.msra.mxu0 0.0
        %5547 = vmatprep.subr.mxu0 0.0
        %5548 = vmatpush1.msra.mxu0 0.0
        %5549 = vmatprep.subr.mxu0 0.0
        %5550 = vmatpush1.msra.mxu0 0.0
        %5551 = vmatprep.subr.mxu0 0.0
        %5552 = vmatpush1.msra.mxu0 0.0
        %5553 = vmatprep.subr.mxu0 0.0
        %5554 = vmatpush1.msra.mxu0 0.0
        %5555 = vmatprep.subr.mxu0 0.0
        %5556 = vmatpush1.msra.mxu0 0.0
        %5557 = vmatprep.subr.mxu0 0.0
        %5558 = vmatpush1.msra.mxu0 0.0
        %5559 = vmatprep.subr.mxu0 0.0
        %5560 = vmatpush1.msra.mxu0 0.0
        %5561 = vmatprep.subr.mxu0 0.0
        %5562 = vmatpush1.msra.mxu0 0.0
        %5563 = vmatprep.subr.mxu0 0.0
        %5564 = vmatpush1.msra.mxu0 0.0
        %5565 = vmatprep.subr.mxu0 0.0
        %5566 = vmatpush1.msra.mxu0 0.0
        %5567 = vmatprep.subr.mxu0 0.0
        %5568 = vmatpush1.msra.mxu0 0.0
        %5569 = vmatprep.subr.mxu0 0.0
        %5570 = vmatpush1.msra.mxu0 0.0
        %5571 = vmatprep.mubr.f32.mxu0 0.0
        %5572 = vmatmul.mubr.f32.gmra.mrb[0].mxu0 %v4653
        %v5573 = vpop.f32.mrb[0].mxu0
        %v5574 = vadd.f32 %v4650, %v5573
        %v5575 = vpop.f32.mrb[0].mxu0
        %v5576 = vadd.f32 %v4650, %v5575
        %5577 = vdwg.mxu0
        %5578 = vmatprep.subr.mxu0 %v4369
        %5579 = vmatpush1.msra.mxu0 %v4368
        %5580 = vmatprep.subr.mxu0 %v4457
        %5581 = vmatpush1.msra.mxu0 %v4484
        %5582 = vmatprep.subr.mxu0 %v4568
        %5583 = vmatpush1.msra.mxu0 %v4596
        %5584 = vmatprep.subr.mxu0 %v4370
        %5585 = vmatpush1.msra.mxu0 %v4369
        %5586 = vmatprep.subr.mxu0 %v4627
        %5587 = vmatpush1.msra.mxu0 %v4628
        %5588 = vmatprep.subr.mxu0 %v4632
        %5589 = vmatpush1.msra.mxu0 %v4633
        %5590 = vmatprep.subr.mxu0 %v4371
        %5591 = vmatpush1.msra.mxu0 %v4370
        %5592 = vmatprep.subr.mxu0 %v4638
        %5593 = vmatpush1.msra.mxu0 %v4639
        %5594 = vmatprep.subr.mxu0 %v4643
        %5595 = vmatpush1.msra.mxu0 %v4644
        %5596 = vmatprep.subr.mxu0 0.0
        %5597 = vmatpush1.msra.mxu0 0.0
        %5598 = vmatprep.subr.mxu0 0.0
        %5599 = vmatpush1.msra.mxu0 0.0
        %5600 = vmatprep.subr.mxu0 0.0
        %5601 = vmatpush1.msra.mxu0 0.0
        %5602 = vmatprep.subr.mxu0 0.0
        %5603 = vmatpush1.msra.mxu0 0.0
        %5604 = vmatprep.subr.mxu0 0.0
        %5605 = vmatpush1.msra.mxu0 0.0
        %5606 = vmatprep.subr.mxu0 0.0
        %5607 = vmatpush1.msra.mxu0 0.0
        %5608 = vmatprep.subr.mxu0 0.0
        %5609 = vmatpush1.msra.mxu0 0.0
        %5610 = vmatprep.subr.mxu0 0.0
        %5611 = vmatpush1.msra.mxu0 0.0
        %5612 = vmatprep.subr.mxu0 0.0
        %5613 = vmatpush1.msra.mxu0 0.0
        %5614 = vmatprep.subr.mxu0 0.0
        %5615 = vmatpush1.msra.mxu0 0.0
        %5616 = vmatprep.subr.mxu0 0.0
        %5617 = vmatpush1.msra.mxu0 0.0
        %5618 = vmatprep.subr.mxu0 0.0
        %5619 = vmatpush1.msra.mxu0 0.0
        %5620 = vmatprep.subr.mxu0 0.0
        %5621 = vmatpush1.msra.mxu0 0.0
        %5622 = vmatprep.subr.mxu0 0.0
        %5623 = vmatpush1.msra.mxu0 0.0
        %5624 = vmatprep.subr.mxu0 0.0
        %5625 = vmatpush1.msra.mxu0 0.0
        %5626 = vmatprep.subr.mxu0 0.0
        %5627 = vmatpush1.msra.mxu0 0.0
        %5628 = vmatprep.subr.mxu0 0.0
        %5629 = vmatpush1.msra.mxu0 0.0
        %5630 = vmatprep.subr.mxu0 0.0
        %5631 = vmatpush1.msra.mxu0 0.0
        %5632 = vmatprep.subr.mxu0 0.0
        %5633 = vmatpush1.msra.mxu0 0.0
        %5634 = vmatprep.subr.mxu0 0.0
        %5635 = vmatpush1.msra.mxu0 0.0
        %5636 = vmatprep.subr.mxu0 0.0
        %5637 = vmatpush1.msra.mxu0 0.0
        %5638 = vmatprep.subr.mxu0 0.0
        %5639 = vmatpush1.msra.mxu0 0.0
        %5640 = vmatprep.subr.mxu0 0.0
        %5641 = vmatpush1.msra.mxu0 0.0
        %5642 = vmatprep.mubr.f32.mxu0 0.0
        %5643 = vmatmul.mubr.f32.gmra.mrb[0].mxu0 %v4653
        %v5644 = vpop.f32.mrb[0].mxu0
        %v5645 = vadd.f32 %v4650, %v5644
        %v5646 = vpop.f32.mrb[0].mxu0
        %v5647 = vadd.f32 %v4650, %v5646
        %5648 = vdwg.mxu0
        %v5649 = vmax.f32 %v4722, 0.0
        %v5650 = vmax.f32 %v4724, 0.0
        %v5651 = vmax.f32 %v4793, 0.0
        %v5652 = vmax.f32 %v4795, 0.0
        %v5653 = vmax.f32 %v4864, 0.0
        %v5654 = vmax.f32 %v4866, 0.0
        %v5655 = vmax.f32 %v4935, 0.0
        %v5656 = vmax.f32 %v4937, 0.0
        %v5657 = vmax.f32 %v5006, 0.0
        %v5658 = vmax.f32 %v5008, 0.0
        %v5659 = vmax.f32 %v5077, 0.0
        %v5660 = vmax.f32 %v5079, 0.0
        %v5661 = vmax.f32 %v5148, 0.0
        %v5662 = vmax.f32 %v5150, 0.0
        %v5663 = vmax.f32 %v5219, 0.0
        %v5664 = vmax.f32 %v5221, 0.0
        %v5665 = vmax.f32 %v5290, 0.0
        %v5666 = vmax.f32 %v5292, 0.0
        %v5667 = vmax.f32 %v5361, 0.0
        %v5668 = vmax.f32 %v5363, 0.0
        %v5669 = vmax.f32 %v5432, 0.0
        %v5670 = vmax.f32 %v5434, 0.0
        %v5671 = vmax.f32 %v5503, 0.0
        %v5672 = vmax.f32 %v5505, 0.0
        %v5673 = vmax.f32 %v5574, 0.0
        %v5674 = vmax.f32 %v5576, 0.0
        %v5675 = vmax.f32 %v5645, 0.0
        %v5676 = vmax.f32 %v5647, 0.0
        %v5677 = vld [vmem:[%s7] sm:$0xff]
        %v5678 = vld [vmem:[%s8] sm:$0xff]
        %5705 = vrot.lane.b32.xlu0 %v5649, 126
        %v5706 = vpop.permute.xlu0 %5705
        %5707 = vrot.lane.b32.xlu0 %v5650, 126
        %v5708 = vpop.permute.xlu0 %5707
        %5709 = vrot.lane.b32.xlu0 %v5651, 126
        %v5710 = vpop.permute.xlu0 %5709
        %5711 = vrot.lane.b32.xlu0 %v5652, 126
        %v5712 = vpop.permute.xlu0 %5711
        %5713 = vrot.lane.b32.xlu0 %v5653, 126
        %v5714 = vpop.permute.xlu0 %5713
        %5715 = vrot.lane.b32.xlu0 %v5654, 126
        %v5716 = vpop.permute.xlu0 %5715
        %5717 = vrot.lane.b32.xlu0 %v5655, 126
        %v5718 = vpop.permute.xlu0 %5717
        %5719 = vrot.lane.b32.xlu0 %v5656, 126
        %v5720 = vpop.permute.xlu0 %5719
        %5721 = vrot.lane.b32.xlu0 %v5657, 126
        %v5722 = vpop.permute.xlu0 %5721
        %5723 = vrot.lane.b32.xlu0 %v5658, 126
        %v5724 = vpop.permute.xlu0 %5723
        %5725 = vrot.lane.b32.xlu0 %v5659, 126
        %v5726 = vpop.permute.xlu0 %5725
        %5727 = vrot.lane.b32.xlu0 %v5660, 126
        %v5728 = vpop.permute.xlu0 %5727
        %5729 = vrot.lane.b32.xlu0 %v5661, 126
        %v5730 = vpop.permute.xlu0 %5729
        %5731 = vrot.lane.b32.xlu0 %v5662, 126
        %v5732 = vpop.permute.xlu0 %5731
        %5733 = vrot.lane.b32.xlu0 %v5663, 126
        %v5734 = vpop.permute.xlu0 %5733
        %5735 = vrot.lane.b32.xlu0 %v5664, 126
        %v5736 = vpop.permute.xlu0 %5735
        %5737 = vrot.lane.b32.xlu0 %v5665, 126
        %v5738 = vpop.permute.xlu0 %5737
        %5739 = vrot.lane.b32.xlu0 %v5666, 126
        %v5740 = vpop.permute.xlu0 %5739
        %5741 = vrot.lane.b32.xlu0 %v5667, 126
        %v5742 = vpop.permute.xlu0 %5741
        %5743 = vrot.lane.b32.xlu0 %v5668, 126
        %v5744 = vpop.permute.xlu0 %5743
        %5745 = vrot.lane.b32.xlu0 %v5669, 126
        %v5746 = vpop.permute.xlu0 %5745
        %5747 = vrot.lane.b32.xlu0 %v5670, 126
        %v5748 = vpop.permute.xlu0 %5747
        %5749 = vrot.lane.b32.xlu0 %v5671, 126
        %v5750 = vpop.permute.xlu0 %5749
        %5751 = vrot.lane.b32.xlu0 %v5672, 126
        %v5752 = vpop.permute.xlu0 %5751
        %5753 = vrot.lane.b32.xlu0 %v5673, 126
        %v5754 = vpop.permute.xlu0 %5753
        %5755 = vrot.lane.b32.xlu0 %v5674, 126
        %v5756 = vpop.permute.xlu0 %5755
        %v5757 = vsel %vm635, %v5706, %v5708
        %v5758 = vsel %vm635, %v5708, %v5710
        %v5759 = vsel %vm635, %v5710, %v5712
        %v5760 = vsel %vm635, %v5712, %v5714
        %v5761 = vsel %vm635, %v5714, %v5716
        %v5762 = vsel %vm635, %v5716, %v5718
        %v5763 = vsel %vm635, %v5718, %v5720
        %v5764 = vsel %vm635, %v5720, %v5722
        %v5765 = vsel %vm635, %v5722, %v5724
        %v5766 = vsel %vm635, %v5724, %v5726
        %v5767 = vsel %vm635, %v5726, %v5728
        %v5768 = vsel %vm635, %v5728, %v5730
        %v5769 = vsel %vm635, %v5730, %v5732
        %v5770 = vsel %vm635, %v5732, %v5734
        %v5771 = vsel %vm635, %v5734, %v5736
        %v5772 = vsel %vm635, %v5736, %v5738
        %v5773 = vsel %vm635, %v5738, %v5740
        %v5774 = vsel %vm635, %v5740, %v5742
        %v5775 = vsel %vm635, %v5742, %v5744
        %v5776 = vsel %vm635, %v5744, %v5746
        %v5777 = vsel %vm635, %v5746, %v5748
        %v5778 = vsel %vm635, %v5748, %v5750
        %v5779 = vsel %vm635, %v5750, %v5752
        %v5780 = vsel %vm635, %v5752, %v5754
        %v5781 = vsel %vm635, %v5754, %v5756
        %5808 = vrot.lane.b32.xlu0 %v5649, 124
        %v5809 = vpop.permute.xlu0 %5808
        %5810 = vrot.lane.b32.xlu0 %v5650, 124
        %v5811 = vpop.permute.xlu0 %5810
        %5812 = vrot.lane.b32.xlu0 %v5651, 124
        %v5813 = vpop.permute.xlu0 %5812
        %5814 = vrot.lane.b32.xlu0 %v5652, 124
        %v5815 = vpop.permute.xlu0 %5814
        %5816 = vrot.lane.b32.xlu0 %v5653, 124
        %v5817 = vpop.permute.xlu0 %5816
        %5818 = vrot.lane.b32.xlu0 %v5654, 124
        %v5819 = vpop.permute.xlu0 %5818
        %5820 = vrot.lane.b32.xlu0 %v5655, 124
        %v5821 = vpop.permute.xlu0 %5820
        %5822 = vrot.lane.b32.xlu0 %v5656, 124
        %v5823 = vpop.permute.xlu0 %5822
        %5824 = vrot.lane.b32.xlu0 %v5657, 124
        %v5825 = vpop.permute.xlu0 %5824
        %5826 = vrot.lane.b32.xlu0 %v5658, 124
        %v5827 = vpop.permute.xlu0 %5826
        %5828 = vrot.lane.b32.xlu0 %v5659, 124
        %v5829 = vpop.permute.xlu0 %5828
        %5830 = vrot.lane.b32.xlu0 %v5660, 124
        %v5831 = vpop.permute.xlu0 %5830
        %5832 = vrot.lane.b32.xlu0 %v5661, 124
        %v5833 = vpop.permute.xlu0 %5832
        %5834 = vrot.lane.b32.xlu0 %v5662, 124
        %v5835 = vpop.permute.xlu0 %5834
        %5836 = vrot.lane.b32.xlu0 %v5663, 124
        %v5837 = vpop.permute.xlu0 %5836
        %5838 = vrot.lane.b32.xlu0 %v5664, 124
        %v5839 = vpop.permute.xlu0 %5838
        %5840 = vrot.lane.b32.xlu0 %v5665, 124
        %v5841 = vpop.permute.xlu0 %5840
        %5842 = vrot.lane.b32.xlu0 %v5666, 124
        %v5843 = vpop.permute.xlu0 %5842
        %5844 = vrot.lane.b32.xlu0 %v5667, 124
        %v5845 = vpop.permute.xlu0 %5844
        %5846 = vrot.lane.b32.xlu0 %v5668, 124
        %v5847 = vpop.permute.xlu0 %5846
        %5848 = vrot.lane.b32.xlu0 %v5669, 124
        %v5849 = vpop.permute.xlu0 %5848
        %5850 = vrot.lane.b32.xlu0 %v5670, 124
        %v5851 = vpop.permute.xlu0 %5850
        %5852 = vrot.lane.b32.xlu0 %v5671, 124
        %v5853 = vpop.permute.xlu0 %5852
        %5854 = vrot.lane.b32.xlu0 %v5672, 124
        %v5855 = vpop.permute.xlu0 %5854
        %5856 = vrot.lane.b32.xlu0 %v5673, 124
        %v5857 = vpop.permute.xlu0 %5856
        %5858 = vrot.lane.b32.xlu0 %v5674, 124
        %v5859 = vpop.permute.xlu0 %5858
        %v5860 = vsel %vm4569, %v5809, %v5811
        %v5861 = vsel %vm4569, %v5811, %v5813
        %v5862 = vsel %vm4569, %v5813, %v5815
        %v5863 = vsel %vm4569, %v5815, %v5817
        %v5864 = vsel %vm4569, %v5817, %v5819
        %v5865 = vsel %vm4569, %v5819, %v5821
        %v5866 = vsel %vm4569, %v5821, %v5823
        %v5867 = vsel %vm4569, %v5823, %v5825
        %v5868 = vsel %vm4569, %v5825, %v5827
        %v5869 = vsel %vm4569, %v5827, %v5829
        %v5870 = vsel %vm4569, %v5829, %v5831
        %v5871 = vsel %vm4569, %v5831, %v5833
        %v5872 = vsel %vm4569, %v5833, %v5835
        %v5873 = vsel %vm4569, %v5835, %v5837
        %v5874 = vsel %vm4569, %v5837, %v5839
        %v5875 = vsel %vm4569, %v5839, %v5841
        %v5876 = vsel %vm4569, %v5841, %v5843
        %v5877 = vsel %vm4569, %v5843, %v5845
        %v5878 = vsel %vm4569, %v5845, %v5847
        %v5879 = vsel %vm4569, %v5847, %v5849
        %v5880 = vsel %vm4569, %v5849, %v5851
        %v5881 = vsel %vm4569, %v5851, %v5853
        %v5882 = vsel %vm4569, %v5853, %v5855
        %v5883 = vsel %vm4569, %v5855, %v5857
        %v5884 = vsel %vm4569, %v5857, %v5859
        %5912 = vrot.lane.b32.xlu0 %v5675, 126
        %v5913 = vpop.permute.xlu0 %5912
        %v5914 = vsel %vm635, %v5756, %v5913
        %5917 = vrot.lane.b32.xlu0 %v5675, 124
        %v5918 = vpop.permute.xlu0 %5917
        %v5919 = vsel %vm4569, %v5859, %v5918
        %5923 = vrot.lane.b32.xlu0 %v5676, 126
        %v5924 = vpop.permute.xlu0 %5923
        %v5925 = vsel %vm635, %v5913, %v5924
        %5928 = vrot.lane.b32.xlu0 %v5676, 124
        %v5929 = vpop.permute.xlu0 %5928
        %v5930 = vsel %vm4569, %v5918, %v5929
        %5934 = vset.pattern.permute.xlu0 0
        %5935 = vperm.xlu0 %5934, %v5678
        %v5936 = vpop.permute.xlu0 %5935
        %v5939 = vsel %vm1094, %v5677, 0
        %5941 = vmatprep.subr.mxu0 %v5650
        %5942 = vmatpush1.msra.mxu0 %v5649
        %5943 = vmatprep.subr.mxu0 %v5758
        %5944 = vmatpush1.msra.mxu0 %v5757
        %5945 = vmatprep.subr.mxu0 %v5861
        %5946 = vmatpush1.msra.mxu0 %v5860
        %5947 = vmatprep.subr.mxu0 %v5651
        %5948 = vmatpush1.msra.mxu0 %v5650
        %5949 = vmatprep.subr.mxu0 %v5759
        %5950 = vmatpush1.msra.mxu0 %v5758
        %5951 = vmatprep.subr.mxu0 %v5862
        %5952 = vmatpush1.msra.mxu0 %v5861
        %5953 = vmatprep.subr.mxu0 %v5652
        %5954 = vmatpush1.msra.mxu0 %v5651
        %5955 = vmatprep.subr.mxu0 %v5760
        %5956 = vmatpush1.msra.mxu0 %v5759
        %5957 = vmatprep.subr.mxu0 %v5863
        %5958 = vmatpush1.msra.mxu0 %v5862
        %5959 = vmatprep.subr.mxu0 0.0
        %5960 = vmatpush1.msra.mxu0 0.0
        %5961 = vmatprep.subr.mxu0 0.0
        %5962 = vmatpush1.msra.mxu0 0.0
        %5963 = vmatprep.subr.mxu0 0.0
        %5964 = vmatpush1.msra.mxu0 0.0
        %5965 = vmatprep.subr.mxu0 0.0
        %5966 = vmatpush1.msra.mxu0 0.0
        %5967 = vmatprep.subr.mxu0 0.0
        %5968 = vmatpush1.msra.mxu0 0.0
        %5969 = vmatprep.subr.mxu0 0.0
        %5970 = vmatpush1.msra.mxu0 0.0
        %5971 = vmatprep.subr.mxu0 0.0
        %5972 = vmatpush1.msra.mxu0 0.0
        %5973 = vmatprep.subr.mxu0 0.0
        %5974 = vmatpush1.msra.mxu0 0.0
        %5975 = vmatprep.subr.mxu0 0.0
        %5976 = vmatpush1.msra.mxu0 0.0
        %5977 = vmatprep.subr.mxu0 0.0
        %5978 = vmatpush1.msra.mxu0 0.0
        %5979 = vmatprep.subr.mxu0 0.0
        %5980 = vmatpush1.msra.mxu0 0.0
        %5981 = vmatprep.subr.mxu0 0.0
        %5982 = vmatpush1.msra.mxu0 0.0
        %5983 = vmatprep.subr.mxu0 0.0
        %5984 = vmatpush1.msra.mxu0 0.0
        %5985 = vmatprep.subr.mxu0 0.0
        %5986 = vmatpush1.msra.mxu0 0.0
        %5987 = vmatprep.subr.mxu0 0.0
        %5988 = vmatpush1.msra.mxu0 0.0
        %5989 = vmatprep.subr.mxu0 0.0
        %5990 = vmatpush1.msra.mxu0 0.0
        %5991 = vmatprep.subr.mxu0 0.0
        %5992 = vmatpush1.msra.mxu0 0.0
        %5993 = vmatprep.subr.mxu0 0.0
        %5994 = vmatpush1.msra.mxu0 0.0
        %5995 = vmatprep.subr.mxu0 0.0
        %5996 = vmatpush1.msra.mxu0 0.0
        %5997 = vmatprep.subr.mxu0 0.0
        %5998 = vmatpush1.msra.mxu0 0.0
        %5999 = vmatprep.subr.mxu0 0.0
        %6000 = vmatpush1.msra.mxu0 0.0
        %6001 = vmatprep.subr.mxu0 0.0
        %6002 = vmatpush1.msra.mxu0 0.0
        %6003 = vmatprep.subr.mxu0 0.0
        %6004 = vmatpush1.msra.mxu0 0.0
        %6005 = vmatprep.mubr.f32.mxu0 0.0
        %6006 = vmatmul.mubr.f32.gmra.mrb[0].mxu0 %v5939
        %v6007 = vpop.f32.mrb[0].mxu0
        %v6008 = vadd.f32 %v5936, %v6007
        %v6009 = vpop.f32.mrb[0].mxu0
        %v6010 = vadd.f32 %v5936, %v6009
        %6011 = vdwg.mxu0
        %6012 = vmatprep.subr.mxu0 %v5652
        %6013 = vmatpush1.msra.mxu0 %v5651
        %6014 = vmatprep.subr.mxu0 %v5760
        %6015 = vmatpush1.msra.mxu0 %v5759
        %6016 = vmatprep.subr.mxu0 %v5863
        %6017 = vmatpush1.msra.mxu0 %v5862
        %6018 = vmatprep.subr.mxu0 %v5653
        %6019 = vmatpush1.msra.mxu0 %v5652
        %6020 = vmatprep.subr.mxu0 %v5761
        %6021 = vmatpush1.msra.mxu0 %v5760
        %6022 = vmatprep.subr.mxu0 %v5864
        %6023 = vmatpush1.msra.mxu0 %v5863
        %6024 = vmatprep.subr.mxu0 %v5654
        %6025 = vmatpush1.msra.mxu0 %v5653
        %6026 = vmatprep.subr.mxu0 %v5762
        %6027 = vmatpush1.msra.mxu0 %v5761
        %6028 = vmatprep.subr.mxu0 %v5865
        %6029 = vmatpush1.msra.mxu0 %v5864
        %6030 = vmatprep.subr.mxu0 0.0
        %6031 = vmatpush1.msra.mxu0 0.0
        %6032 = vmatprep.subr.mxu0 0.0
        %6033 = vmatpush1.msra.mxu0 0.0
        %6034 = vmatprep.subr.mxu0 0.0
        %6035 = vmatpush1.msra.mxu0 0.0
        %6036 = vmatprep.subr.mxu0 0.0
        %6037 = vmatpush1.msra.mxu0 0.0
        %6038 = vmatprep.subr.mxu0 0.0
        %6039 = vmatpush1.msra.mxu0 0.0
        %6040 = vmatprep.subr.mxu0 0.0
        %6041 = vmatpush1.msra.mxu0 0.0
        %6042 = vmatprep.subr.mxu0 0.0
        %6043 = vmatpush1.msra.mxu0 0.0
        %6044 = vmatprep.subr.mxu0 0.0
        %6045 = vmatpush1.msra.mxu0 0.0
        %6046 = vmatprep.subr.mxu0 0.0
        %6047 = vmatpush1.msra.mxu0 0.0
        %6048 = vmatprep.subr.mxu0 0.0
        %6049 = vmatpush1.msra.mxu0 0.0
        %6050 = vmatprep.subr.mxu0 0.0
        %6051 = vmatpush1.msra.mxu0 0.0
        %6052 = vmatprep.subr.mxu0 0.0
        %6053 = vmatpush1.msra.mxu0 0.0
        %6054 = vmatprep.subr.mxu0 0.0
        %6055 = vmatpush1.msra.mxu0 0.0
        %6056 = vmatprep.subr.mxu0 0.0
        %6057 = vmatpush1.msra.mxu0 0.0
        %6058 = vmatprep.subr.mxu0 0.0
        %6059 = vmatpush1.msra.mxu0 0.0
        %6060 = vmatprep.subr.mxu0 0.0
        %6061 = vmatpush1.msra.mxu0 0.0
        %6062 = vmatprep.subr.mxu0 0.0
        %6063 = vmatpush1.msra.mxu0 0.0
        %6064 = vmatprep.subr.mxu0 0.0
        %6065 = vmatpush1.msra.mxu0 0.0
        %6066 = vmatprep.subr.mxu0 0.0
        %6067 = vmatpush1.msra.mxu0 0.0
        %6068 = vmatprep.subr.mxu0 0.0
        %6069 = vmatpush1.msra.mxu0 0.0
        %6070 = vmatprep.subr.mxu0 0.0
        %6071 = vmatpush1.msra.mxu0 0.0
        %6072 = vmatprep.subr.mxu0 0.0
        %6073 = vmatpush1.msra.mxu0 0.0
        %6074 = vmatprep.subr.mxu0 0.0
        %6075 = vmatpush1.msra.mxu0 0.0
        %6076 = vmatprep.mubr.f32.mxu0 0.0
        %6077 = vmatmul.mubr.f32.gmra.mrb[0].mxu0 %v5939
        %v6078 = vpop.f32.mrb[0].mxu0
        %v6079 = vadd.f32 %v5936, %v6078
        %v6080 = vpop.f32.mrb[0].mxu0
        %v6081 = vadd.f32 %v5936, %v6080
        %6082 = vdwg.mxu0
        %6083 = vmatprep.subr.mxu0 %v5654
        %6084 = vmatpush1.msra.mxu0 %v5653
        %6085 = vmatprep.subr.mxu0 %v5762
        %6086 = vmatpush1.msra.mxu0 %v5761
        %6087 = vmatprep.subr.mxu0 %v5865
        %6088 = vmatpush1.msra.mxu0 %v5864
        %6089 = vmatprep.subr.mxu0 %v5655
        %6090 = vmatpush1.msra.mxu0 %v5654
        %6091 = vmatprep.subr.mxu0 %v5763
        %6092 = vmatpush1.msra.mxu0 %v5762
        %6093 = vmatprep.subr.mxu0 %v5866
        %6094 = vmatpush1.msra.mxu0 %v5865
        %6095 = vmatprep.subr.mxu0 %v5656
        %6096 = vmatpush1.msra.mxu0 %v5655
        %6097 = vmatprep.subr.mxu0 %v5764
        %6098 = vmatpush1.msra.mxu0 %v5763
        %6099 = vmatprep.subr.mxu0 %v5867
        %6100 = vmatpush1.msra.mxu0 %v5866
        %6101 = vmatprep.subr.mxu0 0.0
        %6102 = vmatpush1.msra.mxu0 0.0
        %6103 = vmatprep.subr.mxu0 0.0
        %6104 = vmatpush1.msra.mxu0 0.0
        %6105 = vmatprep.subr.mxu0 0.0
        %6106 = vmatpush1.msra.mxu0 0.0
        %6107 = vmatprep.subr.mxu0 0.0
        %6108 = vmatpush1.msra.mxu0 0.0
        %6109 = vmatprep.subr.mxu0 0.0
        %6110 = vmatpush1.msra.mxu0 0.0
        %6111 = vmatprep.subr.mxu0 0.0
        %6112 = vmatpush1.msra.mxu0 0.0
        %6113 = vmatprep.subr.mxu0 0.0
        %6114 = vmatpush1.msra.mxu0 0.0
        %6115 = vmatprep.subr.mxu0 0.0
        %6116 = vmatpush1.msra.mxu0 0.0
        %6117 = vmatprep.subr.mxu0 0.0
        %6118 = vmatpush1.msra.mxu0 0.0
        %6119 = vmatprep.subr.mxu0 0.0
        %6120 = vmatpush1.msra.mxu0 0.0
        %6121 = vmatprep.subr.mxu0 0.0
        %6122 = vmatpush1.msra.mxu0 0.0
        %6123 = vmatprep.subr.mxu0 0.0
        %6124 = vmatpush1.msra.mxu0 0.0
        %6125 = vmatprep.subr.mxu0 0.0
        %6126 = vmatpush1.msra.mxu0 0.0
        %6127 = vmatprep.subr.mxu0 0.0
        %6128 = vmatpush1.msra.mxu0 0.0
        %6129 = vmatprep.subr.mxu0 0.0
        %6130 = vmatpush1.msra.mxu0 0.0
        %6131 = vmatprep.subr.mxu0 0.0
        %6132 = vmatpush1.msra.mxu0 0.0
        %6133 = vmatprep.subr.mxu0 0.0
        %6134 = vmatpush1.msra.mxu0 0.0
        %6135 = vmatprep.subr.mxu0 0.0
        %6136 = vmatpush1.msra.mxu0 0.0
        %6137 = vmatprep.subr.mxu0 0.0
        %6138 = vmatpush1.msra.mxu0 0.0
        %6139 = vmatprep.subr.mxu0 0.0
        %6140 = vmatpush1.msra.mxu0 0.0
        %6141 = vmatprep.subr.mxu0 0.0
        %6142 = vmatpush1.msra.mxu0 0.0
        %6143 = vmatprep.subr.mxu0 0.0
        %6144 = vmatpush1.msra.mxu0 0.0
        %6145 = vmatprep.subr.mxu0 0.0
        %6146 = vmatpush1.msra.mxu0 0.0
        %6147 = vmatprep.mubr.f32.mxu0 0.0
        %6148 = vmatmul.mubr.f32.gmra.mrb[0].mxu0 %v5939
        %v6149 = vpop.f32.mrb[0].mxu0
        %v6150 = vadd.f32 %v5936, %v6149
        %v6151 = vpop.f32.mrb[0].mxu0
        %v6152 = vadd.f32 %v5936, %v6151
        %6153 = vdwg.mxu0
        %6154 = vmatprep.subr.mxu0 %v5656
        %6155 = vmatpush1.msra.mxu0 %v5655
        %6156 = vmatprep.subr.mxu0 %v5764
        %6157 = vmatpush1.msra.mxu0 %v5763
        %6158 = vmatprep.subr.mxu0 %v5867
        %6159 = vmatpush1.msra.mxu0 %v5866
        %6160 = vmatprep.subr.mxu0 %v5657
        %6161 = vmatpush1.msra.mxu0 %v5656
        %6162 = vmatprep.subr.mxu0 %v5765
        %6163 = vmatpush1.msra.mxu0 %v5764
        %6164 = vmatprep.subr.mxu0 %v5868
        %6165 = vmatpush1.msra.mxu0 %v5867
        %6166 = vmatprep.subr.mxu0 %v5658
        %6167 = vmatpush1.msra.mxu0 %v5657
        %6168 = vmatprep.subr.mxu0 %v5766
        %6169 = vmatpush1.msra.mxu0 %v5765
        %6170 = vmatprep.subr.mxu0 %v5869
        %6171 = vmatpush1.msra.mxu0 %v5868
        %6172 = vmatprep.subr.mxu0 0.0
        %6173 = vmatpush1.msra.mxu0 0.0
        %6174 = vmatprep.subr.mxu0 0.0
        %6175 = vmatpush1.msra.mxu0 0.0
        %6176 = vmatprep.subr.mxu0 0.0
        %6177 = vmatpush1.msra.mxu0 0.0
        %6178 = vmatprep.subr.mxu0 0.0
        %6179 = vmatpush1.msra.mxu0 0.0
        %6180 = vmatprep.subr.mxu0 0.0
        %6181 = vmatpush1.msra.mxu0 0.0
        %6182 = vmatprep.subr.mxu0 0.0
        %6183 = vmatpush1.msra.mxu0 0.0
        %6184 = vmatprep.subr.mxu0 0.0
        %6185 = vmatpush1.msra.mxu0 0.0
        %6186 = vmatprep.subr.mxu0 0.0
        %6187 = vmatpush1.msra.mxu0 0.0
        %6188 = vmatprep.subr.mxu0 0.0
        %6189 = vmatpush1.msra.mxu0 0.0
        %6190 = vmatprep.subr.mxu0 0.0
        %6191 = vmatpush1.msra.mxu0 0.0
        %6192 = vmatprep.subr.mxu0 0.0
        %6193 = vmatpush1.msra.mxu0 0.0
        %6194 = vmatprep.subr.mxu0 0.0
        %6195 = vmatpush1.msra.mxu0 0.0
        %6196 = vmatprep.subr.mxu0 0.0
        %6197 = vmatpush1.msra.mxu0 0.0
        %6198 = vmatprep.subr.mxu0 0.0
        %6199 = vmatpush1.msra.mxu0 0.0
        %6200 = vmatprep.subr.mxu0 0.0
        %6201 = vmatpush1.msra.mxu0 0.0
        %6202 = vmatprep.subr.mxu0 0.0
        %6203 = vmatpush1.msra.mxu0 0.0
        %6204 = vmatprep.subr.mxu0 0.0
        %6205 = vmatpush1.msra.mxu0 0.0
        %6206 = vmatprep.subr.mxu0 0.0
        %6207 = vmatpush1.msra.mxu0 0.0
        %6208 = vmatprep.subr.mxu0 0.0
        %6209 = vmatpush1.msra.mxu0 0.0
        %6210 = vmatprep.subr.mxu0 0.0
        %6211 = vmatpush1.msra.mxu0 0.0
        %6212 = vmatprep.subr.mxu0 0.0
        %6213 = vmatpush1.msra.mxu0 0.0
        %6214 = vmatprep.subr.mxu0 0.0
        %6215 = vmatpush1.msra.mxu0 0.0
        %6216 = vmatprep.subr.mxu0 0.0
        %6217 = vmatpush1.msra.mxu0 0.0
        %6218 = vmatprep.mubr.f32.mxu0 0.0
        %6219 = vmatmul.mubr.f32.gmra.mrb[0].mxu0 %v5939
        %v6220 = vpop.f32.mrb[0].mxu0
        %v6221 = vadd.f32 %v5936, %v6220
        %v6222 = vpop.f32.mrb[0].mxu0
        %v6223 = vadd.f32 %v5936, %v6222
        %6224 = vdwg.mxu0
        %6225 = vmatprep.subr.mxu0 %v5658
        %6226 = vmatpush1.msra.mxu0 %v5657
        %6227 = vmatprep.subr.mxu0 %v5766
        %6228 = vmatpush1.msra.mxu0 %v5765
        %6229 = vmatprep.subr.mxu0 %v5869
        %6230 = vmatpush1.msra.mxu0 %v5868
        %6231 = vmatprep.subr.mxu0 %v5659
        %6232 = vmatpush1.msra.mxu0 %v5658
        %6233 = vmatprep.subr.mxu0 %v5767
        %6234 = vmatpush1.msra.mxu0 %v5766
        %6235 = vmatprep.subr.mxu0 %v5870
        %6236 = vmatpush1.msra.mxu0 %v5869
        %6237 = vmatprep.subr.mxu0 %v5660
        %6238 = vmatpush1.msra.mxu0 %v5659
        %6239 = vmatprep.subr.mxu0 %v5768
        %6240 = vmatpush1.msra.mxu0 %v5767
        %6241 = vmatprep.subr.mxu0 %v5871
        %6242 = vmatpush1.msra.mxu0 %v5870
        %6243 = vmatprep.subr.mxu0 0.0
        %6244 = vmatpush1.msra.mxu0 0.0
        %6245 = vmatprep.subr.mxu0 0.0
        %6246 = vmatpush1.msra.mxu0 0.0
        %6247 = vmatprep.subr.mxu0 0.0
        %6248 = vmatpush1.msra.mxu0 0.0
        %6249 = vmatprep.subr.mxu0 0.0
        %6250 = vmatpush1.msra.mxu0 0.0
        %6251 = vmatprep.subr.mxu0 0.0
        %6252 = vmatpush1.msra.mxu0 0.0
        %6253 = vmatprep.subr.mxu0 0.0
        %6254 = vmatpush1.msra.mxu0 0.0
        %6255 = vmatprep.subr.mxu0 0.0
        %6256 = vmatpush1.msra.mxu0 0.0
        %6257 = vmatprep.subr.mxu0 0.0
        %6258 = vmatpush1.msra.mxu0 0.0
        %6259 = vmatprep.subr.mxu0 0.0
        %6260 = vmatpush1.msra.mxu0 0.0
        %6261 = vmatprep.subr.mxu0 0.0
        %6262 = vmatpush1.msra.mxu0 0.0
        %6263 = vmatprep.subr.mxu0 0.0
        %6264 = vmatpush1.msra.mxu0 0.0
        %6265 = vmatprep.subr.mxu0 0.0
        %6266 = vmatpush1.msra.mxu0 0.0
        %6267 = vmatprep.subr.mxu0 0.0
        %6268 = vmatpush1.msra.mxu0 0.0
        %6269 = vmatprep.subr.mxu0 0.0
        %6270 = vmatpush1.msra.mxu0 0.0
        %6271 = vmatprep.subr.mxu0 0.0
        %6272 = vmatpush1.msra.mxu0 0.0
        %6273 = vmatprep.subr.mxu0 0.0
        %6274 = vmatpush1.msra.mxu0 0.0
        %6275 = vmatprep.subr.mxu0 0.0
        %6276 = vmatpush1.msra.mxu0 0.0
        %6277 = vmatprep.subr.mxu0 0.0
        %6278 = vmatpush1.msra.mxu0 0.0
        %6279 = vmatprep.subr.mxu0 0.0
        %6280 = vmatpush1.msra.mxu0 0.0
        %6281 = vmatprep.subr.mxu0 0.0
        %6282 = vmatpush1.msra.mxu0 0.0
        %6283 = vmatprep.subr.mxu0 0.0
        %6284 = vmatpush1.msra.mxu0 0.0
        %6285 = vmatprep.subr.mxu0 0.0
        %6286 = vmatpush1.msra.mxu0 0.0
        %6287 = vmatprep.subr.mxu0 0.0
        %6288 = vmatpush1.msra.mxu0 0.0
        %6289 = vmatprep.mubr.f32.mxu0 0.0
        %6290 = vmatmul.mubr.f32.gmra.mrb[0].mxu0 %v5939
        %v6291 = vpop.f32.mrb[0].mxu0
        %v6292 = vadd.f32 %v5936, %v6291
        %v6293 = vpop.f32.mrb[0].mxu0
        %v6294 = vadd.f32 %v5936, %v6293
        %6295 = vdwg.mxu0
        %6296 = vmatprep.subr.mxu0 %v5660
        %6297 = vmatpush1.msra.mxu0 %v5659
        %6298 = vmatprep.subr.mxu0 %v5768
        %6299 = vmatpush1.msra.mxu0 %v5767
        %6300 = vmatprep.subr.mxu0 %v5871
        %6301 = vmatpush1.msra.mxu0 %v5870
        %6302 = vmatprep.subr.mxu0 %v5661
        %6303 = vmatpush1.msra.mxu0 %v5660
        %6304 = vmatprep.subr.mxu0 %v5769
        %6305 = vmatpush1.msra.mxu0 %v5768
        %6306 = vmatprep.subr.mxu0 %v5872
        %6307 = vmatpush1.msra.mxu0 %v5871
        %6308 = vmatprep.subr.mxu0 %v5662
        %6309 = vmatpush1.msra.mxu0 %v5661
        %6310 = vmatprep.subr.mxu0 %v5770
        %6311 = vmatpush1.msra.mxu0 %v5769
        %6312 = vmatprep.subr.mxu0 %v5873
        %6313 = vmatpush1.msra.mxu0 %v5872
        %6314 = vmatprep.subr.mxu0 0.0
        %6315 = vmatpush1.msra.mxu0 0.0
        %6316 = vmatprep.subr.mxu0 0.0
        %6317 = vmatpush1.msra.mxu0 0.0
        %6318 = vmatprep.subr.mxu0 0.0
        %6319 = vmatpush1.msra.mxu0 0.0
        %6320 = vmatprep.subr.mxu0 0.0
        %6321 = vmatpush1.msra.mxu0 0.0
        %6322 = vmatprep.subr.mxu0 0.0
        %6323 = vmatpush1.msra.mxu0 0.0
        %6324 = vmatprep.subr.mxu0 0.0
        %6325 = vmatpush1.msra.mxu0 0.0
        %6326 = vmatprep.subr.mxu0 0.0
        %6327 = vmatpush1.msra.mxu0 0.0
        %6328 = vmatprep.subr.mxu0 0.0
        %6329 = vmatpush1.msra.mxu0 0.0
        %6330 = vmatprep.subr.mxu0 0.0
        %6331 = vmatpush1.msra.mxu0 0.0
        %6332 = vmatprep.subr.mxu0 0.0
        %6333 = vmatpush1.msra.mxu0 0.0
        %6334 = vmatprep.subr.mxu0 0.0
        %6335 = vmatpush1.msra.mxu0 0.0
        %6336 = vmatprep.subr.mxu0 0.0
        %6337 = vmatpush1.msra.mxu0 0.0
        %6338 = vmatprep.subr.mxu0 0.0
        %6339 = vmatpush1.msra.mxu0 0.0
        %6340 = vmatprep.subr.mxu0 0.0
        %6341 = vmatpush1.msra.mxu0 0.0
        %6342 = vmatprep.subr.mxu0 0.0
        %6343 = vmatpush1.msra.mxu0 0.0
        %6344 = vmatprep.subr.mxu0 0.0
        %6345 = vmatpush1.msra.mxu0 0.0
        %6346 = vmatprep.subr.mxu0 0.0
        %6347 = vmatpush1.msra.mxu0 0.0
        %6348 = vmatprep.subr.mxu0 0.0
        %6349 = vmatpush1.msra.mxu0 0.0
        %6350 = vmatprep.subr.mxu0 0.0
        %6351 = vmatpush1.msra.mxu0 0.0
        %6352 = vmatprep.subr.mxu0 0.0
        %6353 = vmatpush1.msra.mxu0 0.0
        %6354 = vmatprep.subr.mxu0 0.0
        %6355 = vmatpush1.msra.mxu0 0.0
        %6356 = vmatprep.subr.mxu0 0.0
        %6357 = vmatpush1.msra.mxu0 0.0
        %6358 = vmatprep.subr.mxu0 0.0
        %6359 = vmatpush1.msra.mxu0 0.0
        %6360 = vmatprep.mubr.f32.mxu0 0.0
        %6361 = vmatmul.mubr.f32.gmra.mrb[0].mxu0 %v5939
        %v6362 = vpop.f32.mrb[0].mxu0
        %v6363 = vadd.f32 %v5936, %v6362
        %v6364 = vpop.f32.mrb[0].mxu0
        %v6365 = vadd.f32 %v5936, %v6364
        %6366 = vdwg.mxu0
        %6367 = vmatprep.subr.mxu0 %v5662
        %6368 = vmatpush1.msra.mxu0 %v5661
        %6369 = vmatprep.subr.mxu0 %v5770
        %6370 = vmatpush1.msra.mxu0 %v5769
        %6371 = vmatprep.subr.mxu0 %v5873
        %6372 = vmatpush1.msra.mxu0 %v5872
        %6373 = vmatprep.subr.mxu0 %v5663
        %6374 = vmatpush1.msra.mxu0 %v5662
        %6375 = vmatprep.subr.mxu0 %v5771
        %6376 = vmatpush1.msra.mxu0 %v5770
        %6377 = vmatprep.subr.mxu0 %v5874
        %6378 = vmatpush1.msra.mxu0 %v5873
        %6379 = vmatprep.subr.mxu0 %v5664
        %6380 = vmatpush1.msra.mxu0 %v5663
        %6381 = vmatprep.subr.mxu0 %v5772
        %6382 = vmatpush1.msra.mxu0 %v5771
        %6383 = vmatprep.subr.mxu0 %v5875
        %6384 = vmatpush1.msra.mxu0 %v5874
        %6385 = vmatprep.subr.mxu0 0.0
        %6386 = vmatpush1.msra.mxu0 0.0
        %6387 = vmatprep.subr.mxu0 0.0
        %6388 = vmatpush1.msra.mxu0 0.0
        %6389 = vmatprep.subr.mxu0 0.0
        %6390 = vmatpush1.msra.mxu0 0.0
        %6391 = vmatprep.subr.mxu0 0.0
        %6392 = vmatpush1.msra.mxu0 0.0
        %6393 = vmatprep.subr.mxu0 0.0
        %6394 = vmatpush1.msra.mxu0 0.0
        %6395 = vmatprep.subr.mxu0 0.0
        %6396 = vmatpush1.msra.mxu0 0.0
        %6397 = vmatprep.subr.mxu0 0.0
        %6398 = vmatpush1.msra.mxu0 0.0
        %6399 = vmatprep.subr.mxu0 0.0
        %6400 = vmatpush1.msra.mxu0 0.0
        %6401 = vmatprep.subr.mxu0 0.0
        %6402 = vmatpush1.msra.mxu0 0.0
        %6403 = vmatprep.subr.mxu0 0.0
        %6404 = vmatpush1.msra.mxu0 0.0
        %6405 = vmatprep.subr.mxu0 0.0
        %6406 = vmatpush1.msra.mxu0 0.0
        %6407 = vmatprep.subr.mxu0 0.0
        %6408 = vmatpush1.msra.mxu0 0.0
        %6409 = vmatprep.subr.mxu0 0.0
        %6410 = vmatpush1.msra.mxu0 0.0
        %6411 = vmatprep.subr.mxu0 0.0
        %6412 = vmatpush1.msra.mxu0 0.0
        %6413 = vmatprep.subr.mxu0 0.0
        %6414 = vmatpush1.msra.mxu0 0.0
        %6415 = vmatprep.subr.mxu0 0.0
        %6416 = vmatpush1.msra.mxu0 0.0
        %6417 = vmatprep.subr.mxu0 0.0
        %6418 = vmatpush1.msra.mxu0 0.0
        %6419 = vmatprep.subr.mxu0 0.0
        %6420 = vmatpush1.msra.mxu0 0.0
        %6421 = vmatprep.subr.mxu0 0.0
        %6422 = vmatpush1.msra.mxu0 0.0
        %6423 = vmatprep.subr.mxu0 0.0
        %6424 = vmatpush1.msra.mxu0 0.0
        %6425 = vmatprep.subr.mxu0 0.0
        %6426 = vmatpush1.msra.mxu0 0.0
        %6427 = vmatprep.subr.mxu0 0.0
        %6428 = vmatpush1.msra.mxu0 0.0
        %6429 = vmatprep.subr.mxu0 0.0
        %6430 = vmatpush1.msra.mxu0 0.0
        %6431 = vmatprep.mubr.f32.mxu0 0.0
        %6432 = vmatmul.mubr.f32.gmra.mrb[0].mxu0 %v5939
        %v6433 = vpop.f32.mrb[0].mxu0
        %v6434 = vadd.f32 %v5936, %v6433
        %v6435 = vpop.f32.mrb[0].mxu0
        %v6436 = vadd.f32 %v5936, %v6435
        %6437 = vdwg.mxu0
        %6438 = vmatprep.subr.mxu0 %v5664
        %6439 = vmatpush1.msra.mxu0 %v5663
        %6440 = vmatprep.subr.mxu0 %v5772
        %6441 = vmatpush1.msra.mxu0 %v5771
        %6442 = vmatprep.subr.mxu0 %v5875
        %6443 = vmatpush1.msra.mxu0 %v5874
        %6444 = vmatprep.subr.mxu0 %v5665
        %6445 = vmatpush1.msra.mxu0 %v5664
        %6446 = vmatprep.subr.mxu0 %v5773
        %6447 = vmatpush1.msra.mxu0 %v5772
        %6448 = vmatprep.subr.mxu0 %v5876
        %6449 = vmatpush1.msra.mxu0 %v5875
        %6450 = vmatprep.subr.mxu0 %v5666
        %6451 = vmatpush1.msra.mxu0 %v5665
        %6452 = vmatprep.subr.mxu0 %v5774
        %6453 = vmatpush1.msra.mxu0 %v5773
        %6454 = vmatprep.subr.mxu0 %v5877
        %6455 = vmatpush1.msra.mxu0 %v5876
        %6456 = vmatprep.subr.mxu0 0.0
        %6457 = vmatpush1.msra.mxu0 0.0
        %6458 = vmatprep.subr.mxu0 0.0
        %6459 = vmatpush1.msra.mxu0 0.0
        %6460 = vmatprep.subr.mxu0 0.0
        %6461 = vmatpush1.msra.mxu0 0.0
        %6462 = vmatprep.subr.mxu0 0.0
        %6463 = vmatpush1.msra.mxu0 0.0
        %6464 = vmatprep.subr.mxu0 0.0
        %6465 = vmatpush1.msra.mxu0 0.0
        %6466 = vmatprep.subr.mxu0 0.0
        %6467 = vmatpush1.msra.mxu0 0.0
        %6468 = vmatprep.subr.mxu0 0.0
        %6469 = vmatpush1.msra.mxu0 0.0
        %6470 = vmatprep.subr.mxu0 0.0
        %6471 = vmatpush1.msra.mxu0 0.0
        %6472 = vmatprep.subr.mxu0 0.0
        %6473 = vmatpush1.msra.mxu0 0.0
        %6474 = vmatprep.subr.mxu0 0.0
        %6475 = vmatpush1.msra.mxu0 0.0
        %6476 = vmatprep.subr.mxu0 0.0
        %6477 = vmatpush1.msra.mxu0 0.0
        %6478 = vmatprep.subr.mxu0 0.0
        %6479 = vmatpush1.msra.mxu0 0.0
        %6480 = vmatprep.subr.mxu0 0.0
        %6481 = vmatpush1.msra.mxu0 0.0
        %6482 = vmatprep.subr.mxu0 0.0
        %6483 = vmatpush1.msra.mxu0 0.0
        %6484 = vmatprep.subr.mxu0 0.0
        %6485 = vmatpush1.msra.mxu0 0.0
        %6486 = vmatprep.subr.mxu0 0.0
        %6487 = vmatpush1.msra.mxu0 0.0
        %6488 = vmatprep.subr.mxu0 0.0
        %6489 = vmatpush1.msra.mxu0 0.0
        %6490 = vmatprep.subr.mxu0 0.0
        %6491 = vmatpush1.msra.mxu0 0.0
        %6492 = vmatprep.subr.mxu0 0.0
        %6493 = vmatpush1.msra.mxu0 0.0
        %6494 = vmatprep.subr.mxu0 0.0
        %6495 = vmatpush1.msra.mxu0 0.0
        %6496 = vmatprep.subr.mxu0 0.0
        %6497 = vmatpush1.msra.mxu0 0.0
        %6498 = vmatprep.subr.mxu0 0.0
        %6499 = vmatpush1.msra.mxu0 0.0
        %6500 = vmatprep.subr.mxu0 0.0
        %6501 = vmatpush1.msra.mxu0 0.0
        %6502 = vmatprep.mubr.f32.mxu0 0.0
        %6503 = vmatmul.mubr.f32.gmra.mrb[0].mxu0 %v5939
        %v6504 = vpop.f32.mrb[0].mxu0
        %v6505 = vadd.f32 %v5936, %v6504
        %v6506 = vpop.f32.mrb[0].mxu0
        %v6507 = vadd.f32 %v5936, %v6506
        %6508 = vdwg.mxu0
        %6509 = vmatprep.subr.mxu0 %v5666
        %6510 = vmatpush1.msra.mxu0 %v5665
        %6511 = vmatprep.subr.mxu0 %v5774
        %6512 = vmatpush1.msra.mxu0 %v5773
        %6513 = vmatprep.subr.mxu0 %v5877
        %6514 = vmatpush1.msra.mxu0 %v5876
        %6515 = vmatprep.subr.mxu0 %v5667
        %6516 = vmatpush1.msra.mxu0 %v5666
        %6517 = vmatprep.subr.mxu0 %v5775
        %6518 = vmatpush1.msra.mxu0 %v5774
        %6519 = vmatprep.subr.mxu0 %v5878
        %6520 = vmatpush1.msra.mxu0 %v5877
        %6521 = vmatprep.subr.mxu0 %v5668
        %6522 = vmatpush1.msra.mxu0 %v5667
        %6523 = vmatprep.subr.mxu0 %v5776
        %6524 = vmatpush1.msra.mxu0 %v5775
        %6525 = vmatprep.subr.mxu0 %v5879
        %6526 = vmatpush1.msra.mxu0 %v5878
        %6527 = vmatprep.subr.mxu0 0.0
        %6528 = vmatpush1.msra.mxu0 0.0
        %6529 = vmatprep.subr.mxu0 0.0
        %6530 = vmatpush1.msra.mxu0 0.0
        %6531 = vmatprep.subr.mxu0 0.0
        %6532 = vmatpush1.msra.mxu0 0.0
        %6533 = vmatprep.subr.mxu0 0.0
        %6534 = vmatpush1.msra.mxu0 0.0
        %6535 = vmatprep.subr.mxu0 0.0
        %6536 = vmatpush1.msra.mxu0 0.0
        %6537 = vmatprep.subr.mxu0 0.0
        %6538 = vmatpush1.msra.mxu0 0.0
        %6539 = vmatprep.subr.mxu0 0.0
        %6540 = vmatpush1.msra.mxu0 0.0
        %6541 = vmatprep.subr.mxu0 0.0
        %6542 = vmatpush1.msra.mxu0 0.0
        %6543 = vmatprep.subr.mxu0 0.0
        %6544 = vmatpush1.msra.mxu0 0.0
        %6545 = vmatprep.subr.mxu0 0.0
        %6546 = vmatpush1.msra.mxu0 0.0
        %6547 = vmatprep.subr.mxu0 0.0
        %6548 = vmatpush1.msra.mxu0 0.0
        %6549 = vmatprep.subr.mxu0 0.0
        %6550 = vmatpush1.msra.mxu0 0.0
        %6551 = vmatprep.subr.mxu0 0.0
        %6552 = vmatpush1.msra.mxu0 0.0
        %6553 = vmatprep.subr.mxu0 0.0
        %6554 = vmatpush1.msra.mxu0 0.0
        %6555 = vmatprep.subr.mxu0 0.0
        %6556 = vmatpush1.msra.mxu0 0.0
        %6557 = vmatprep.subr.mxu0 0.0
        %6558 = vmatpush1.msra.mxu0 0.0
        %6559 = vmatprep.subr.mxu0 0.0
        %6560 = vmatpush1.msra.mxu0 0.0
        %6561 = vmatprep.subr.mxu0 0.0
        %6562 = vmatpush1.msra.mxu0 0.0
        %6563 = vmatprep.subr.mxu0 0.0
        %6564 = vmatpush1.msra.mxu0 0.0
        %6565 = vmatprep.subr.mxu0 0.0
        %6566 = vmatpush1.msra.mxu0 0.0
        %6567 = vmatprep.subr.mxu0 0.0
        %6568 = vmatpush1.msra.mxu0 0.0
        %6569 = vmatprep.subr.mxu0 0.0
        %6570 = vmatpush1.msra.mxu0 0.0
        %6571 = vmatprep.subr.mxu0 0.0
        %6572 = vmatpush1.msra.mxu0 0.0
        %6573 = vmatprep.mubr.f32.mxu0 0.0
        %6574 = vmatmul.mubr.f32.gmra.mrb[0].mxu0 %v5939
        %v6575 = vpop.f32.mrb[0].mxu0
        %v6576 = vadd.f32 %v5936, %v6575
        %v6577 = vpop.f32.mrb[0].mxu0
        %v6578 = vadd.f32 %v5936, %v6577
        %6579 = vdwg.mxu0
        %6580 = vmatprep.subr.mxu0 %v5668
        %6581 = vmatpush1.msra.mxu0 %v5667
        %6582 = vmatprep.subr.mxu0 %v5776
        %6583 = vmatpush1.msra.mxu0 %v5775
        %6584 = vmatprep.subr.mxu0 %v5879
        %6585 = vmatpush1.msra.mxu0 %v5878
        %6586 = vmatprep.subr.mxu0 %v5669
        %6587 = vmatpush1.msra.mxu0 %v5668
        %6588 = vmatprep.subr.mxu0 %v5777
        %6589 = vmatpush1.msra.mxu0 %v5776
        %6590 = vmatprep.subr.mxu0 %v5880
        %6591 = vmatpush1.msra.mxu0 %v5879
        %6592 = vmatprep.subr.mxu0 %v5670
        %6593 = vmatpush1.msra.mxu0 %v5669
        %6594 = vmatprep.subr.mxu0 %v5778
        %6595 = vmatpush1.msra.mxu0 %v5777
        %6596 = vmatprep.subr.mxu0 %v5881
        %6597 = vmatpush1.msra.mxu0 %v5880
        %6598 = vmatprep.subr.mxu0 0.0
        %6599 = vmatpush1.msra.mxu0 0.0
        %6600 = vmatprep.subr.mxu0 0.0
        %6601 = vmatpush1.msra.mxu0 0.0
        %6602 = vmatprep.subr.mxu0 0.0
        %6603 = vmatpush1.msra.mxu0 0.0
        %6604 = vmatprep.subr.mxu0 0.0
        %6605 = vmatpush1.msra.mxu0 0.0
        %6606 = vmatprep.subr.mxu0 0.0
        %6607 = vmatpush1.msra.mxu0 0.0
        %6608 = vmatprep.subr.mxu0 0.0
        %6609 = vmatpush1.msra.mxu0 0.0
        %6610 = vmatprep.subr.mxu0 0.0
        %6611 = vmatpush1.msra.mxu0 0.0
        %6612 = vmatprep.subr.mxu0 0.0
        %6613 = vmatpush1.msra.mxu0 0.0
        %6614 = vmatprep.subr.mxu0 0.0
        %6615 = vmatpush1.msra.mxu0 0.0
        %6616 = vmatprep.subr.mxu0 0.0
        %6617 = vmatpush1.msra.mxu0 0.0
        %6618 = vmatprep.subr.mxu0 0.0
        %6619 = vmatpush1.msra.mxu0 0.0
        %6620 = vmatprep.subr.mxu0 0.0
        %6621 = vmatpush1.msra.mxu0 0.0
        %6622 = vmatprep.subr.mxu0 0.0
        %6623 = vmatpush1.msra.mxu0 0.0
        %6624 = vmatprep.subr.mxu0 0.0
        %6625 = vmatpush1.msra.mxu0 0.0
        %6626 = vmatprep.subr.mxu0 0.0
        %6627 = vmatpush1.msra.mxu0 0.0
        %6628 = vmatprep.subr.mxu0 0.0
        %6629 = vmatpush1.msra.mxu0 0.0
        %6630 = vmatprep.subr.mxu0 0.0
        %6631 = vmatpush1.msra.mxu0 0.0
        %6632 = vmatprep.subr.mxu0 0.0
        %6633 = vmatpush1.msra.mxu0 0.0
        %6634 = vmatprep.subr.mxu0 0.0
        %6635 = vmatpush1.msra.mxu0 0.0
        %6636 = vmatprep.subr.mxu0 0.0
        %6637 = vmatpush1.msra.mxu0 0.0
        %6638 = vmatprep.subr.mxu0 0.0
        %6639 = vmatpush1.msra.mxu0 0.0
        %6640 = vmatprep.subr.mxu0 0.0
        %6641 = vmatpush1.msra.mxu0 0.0
        %6642 = vmatprep.subr.mxu0 0.0
        %6643 = vmatpush1.msra.mxu0 0.0
        %6644 = vmatprep.mubr.f32.mxu0 0.0
        %6645 = vmatmul.mubr.f32.gmra.mrb[0].mxu0 %v5939
        %v6646 = vpop.f32.mrb[0].mxu0
        %v6647 = vadd.f32 %v5936, %v6646
        %v6648 = vpop.f32.mrb[0].mxu0
        %v6649 = vadd.f32 %v5936, %v6648
        %6650 = vdwg.mxu0
        %6651 = vmatprep.subr.mxu0 %v5670
        %6652 = vmatpush1.msra.mxu0 %v5669
        %6653 = vmatprep.subr.mxu0 %v5778
        %6654 = vmatpush1.msra.mxu0 %v5777
        %6655 = vmatprep.subr.mxu0 %v5881
        %6656 = vmatpush1.msra.mxu0 %v5880
        %6657 = vmatprep.subr.mxu0 %v5671
        %6658 = vmatpush1.msra.mxu0 %v5670
        %6659 = vmatprep.subr.mxu0 %v5779
        %6660 = vmatpush1.msra.mxu0 %v5778
        %6661 = vmatprep.subr.mxu0 %v5882
        %6662 = vmatpush1.msra.mxu0 %v5881
        %6663 = vmatprep.subr.mxu0 %v5672
        %6664 = vmatpush1.msra.mxu0 %v5671
        %6665 = vmatprep.subr.mxu0 %v5780
        %6666 = vmatpush1.msra.mxu0 %v5779
        %6667 = vmatprep.subr.mxu0 %v5883
        %6668 = vmatpush1.msra.mxu0 %v5882
        %6669 = vmatprep.subr.mxu0 0.0
        %6670 = vmatpush1.msra.mxu0 0.0
        %6671 = vmatprep.subr.mxu0 0.0
        %6672 = vmatpush1.msra.mxu0 0.0
        %6673 = vmatprep.subr.mxu0 0.0
        %6674 = vmatpush1.msra.mxu0 0.0
        %6675 = vmatprep.subr.mxu0 0.0
        %6676 = vmatpush1.msra.mxu0 0.0
        %6677 = vmatprep.subr.mxu0 0.0
        %6678 = vmatpush1.msra.mxu0 0.0
        %6679 = vmatprep.subr.mxu0 0.0
        %6680 = vmatpush1.msra.mxu0 0.0
        %6681 = vmatprep.subr.mxu0 0.0
        %6682 = vmatpush1.msra.mxu0 0.0
        %6683 = vmatprep.subr.mxu0 0.0
        %6684 = vmatpush1.msra.mxu0 0.0
        %6685 = vmatprep.subr.mxu0 0.0
        %6686 = vmatpush1.msra.mxu0 0.0
        %6687 = vmatprep.subr.mxu0 0.0
        %6688 = vmatpush1.msra.mxu0 0.0
        %6689 = vmatprep.subr.mxu0 0.0
        %6690 = vmatpush1.msra.mxu0 0.0
        %6691 = vmatprep.subr.mxu0 0.0
        %6692 = vmatpush1.msra.mxu0 0.0
        %6693 = vmatprep.subr.mxu0 0.0
        %6694 = vmatpush1.msra.mxu0 0.0
        %6695 = vmatprep.subr.mxu0 0.0
        %6696 = vmatpush1.msra.mxu0 0.0
        %6697 = vmatprep.subr.mxu0 0.0
        %6698 = vmatpush1.msra.mxu0 0.0
        %6699 = vmatprep.subr.mxu0 0.0
        %6700 = vmatpush1.msra.mxu0 0.0
        %6701 = vmatprep.subr.mxu0 0.0
        %6702 = vmatpush1.msra.mxu0 0.0
        %6703 = vmatprep.subr.mxu0 0.0
        %6704 = vmatpush1.msra.mxu0 0.0
        %6705 = vmatprep.subr.mxu0 0.0
        %6706 = vmatpush1.msra.mxu0 0.0
        %6707 = vmatprep.subr.mxu0 0.0
        %6708 = vmatpush1.msra.mxu0 0.0
        %6709 = vmatprep.subr.mxu0 0.0
        %6710 = vmatpush1.msra.mxu0 0.0
        %6711 = vmatprep.subr.mxu0 0.0
        %6712 = vmatpush1.msra.mxu0 0.0
        %6713 = vmatprep.subr.mxu0 0.0
        %6714 = vmatpush1.msra.mxu0 0.0
        %6715 = vmatprep.mubr.f32.mxu0 0.0
        %6716 = vmatmul.mubr.f32.gmra.mrb[0].mxu0 %v5939
        %v6717 = vpop.f32.mrb[0].mxu0
        %v6718 = vadd.f32 %v5936, %v6717
        %v6719 = vpop.f32.mrb[0].mxu0
        %v6720 = vadd.f32 %v5936, %v6719
        %6721 = vdwg.mxu0
        %6722 = vmatprep.subr.mxu0 %v5672
        %6723 = vmatpush1.msra.mxu0 %v5671
        %6724 = vmatprep.subr.mxu0 %v5780
        %6725 = vmatpush1.msra.mxu0 %v5779
        %6726 = vmatprep.subr.mxu0 %v5883
        %6727 = vmatpush1.msra.mxu0 %v5882
        %6728 = vmatprep.subr.mxu0 %v5673
        %6729 = vmatpush1.msra.mxu0 %v5672
        %6730 = vmatprep.subr.mxu0 %v5781
        %6731 = vmatpush1.msra.mxu0 %v5780
        %6732 = vmatprep.subr.mxu0 %v5884
        %6733 = vmatpush1.msra.mxu0 %v5883
        %6734 = vmatprep.subr.mxu0 %v5674
        %6735 = vmatpush1.msra.mxu0 %v5673
        %6736 = vmatprep.subr.mxu0 %v5914
        %6737 = vmatpush1.msra.mxu0 %v5781
        %6738 = vmatprep.subr.mxu0 %v5919
        %6739 = vmatpush1.msra.mxu0 %v5884
        %6740 = vmatprep.subr.mxu0 0.0
        %6741 = vmatpush1.msra.mxu0 0.0
        %6742 = vmatprep.subr.mxu0 0.0
        %6743 = vmatpush1.msra.mxu0 0.0
        %6744 = vmatprep.subr.mxu0 0.0
        %6745 = vmatpush1.msra.mxu0 0.0
        %6746 = vmatprep.subr.mxu0 0.0
        %6747 = vmatpush1.msra.mxu0 0.0
        %6748 = vmatprep.subr.mxu0 0.0
        %6749 = vmatpush1.msra.mxu0 0.0
        %6750 = vmatprep.subr.mxu0 0.0
        %6751 = vmatpush1.msra.mxu0 0.0
        %6752 = vmatprep.subr.mxu0 0.0
        %6753 = vmatpush1.msra.mxu0 0.0
        %6754 = vmatprep.subr.mxu0 0.0
        %6755 = vmatpush1.msra.mxu0 0.0
        %6756 = vmatprep.subr.mxu0 0.0
        %6757 = vmatpush1.msra.mxu0 0.0
        %6758 = vmatprep.subr.mxu0 0.0
        %6759 = vmatpush1.msra.mxu0 0.0
        %6760 = vmatprep.subr.mxu0 0.0
        %6761 = vmatpush1.msra.mxu0 0.0
        %6762 = vmatprep.subr.mxu0 0.0
        %6763 = vmatpush1.msra.mxu0 0.0
        %6764 = vmatprep.subr.mxu0 0.0
        %6765 = vmatpush1.msra.mxu0 0.0
        %6766 = vmatprep.subr.mxu0 0.0
        %6767 = vmatpush1.msra.mxu0 0.0
        %6768 = vmatprep.subr.mxu0 0.0
        %6769 = vmatpush1.msra.mxu0 0.0
        %6770 = vmatprep.subr.mxu0 0.0
        %6771 = vmatpush1.msra.mxu0 0.0
        %6772 = vmatprep.subr.mxu0 0.0
        %6773 = vmatpush1.msra.mxu0 0.0
        %6774 = vmatprep.subr.mxu0 0.0
        %6775 = vmatpush1.msra.mxu0 0.0
        %6776 = vmatprep.subr.mxu0 0.0
        %6777 = vmatpush1.msra.mxu0 0.0
        %6778 = vmatprep.subr.mxu0 0.0
        %6779 = vmatpush1.msra.mxu0 0.0
        %6780 = vmatprep.subr.mxu0 0.0
        %6781 = vmatpush1.msra.mxu0 0.0
        %6782 = vmatprep.subr.mxu0 0.0
        %6783 = vmatpush1.msra.mxu0 0.0
        %6784 = vmatprep.subr.mxu0 0.0
        %6785 = vmatpush1.msra.mxu0 0.0
        %6786 = vmatprep.mubr.f32.mxu0 0.0
        %6787 = vmatmul.mubr.f32.gmra.mrb[0].mxu0 %v5939
        %v6788 = vpop.f32.mrb[0].mxu0
        %v6789 = vadd.f32 %v5936, %v6788
        %v6790 = vpop.f32.mrb[0].mxu0
        %v6791 = vadd.f32 %v5936, %v6790
        %6792 = vdwg.mxu0
        %6793 = vmatprep.subr.mxu0 %v5674
        %6794 = vmatpush1.msra.mxu0 %v5673
        %6795 = vmatprep.subr.mxu0 %v5756
        %6796 = vmatpush1.msra.mxu0 %v5781
        %6797 = vmatprep.subr.mxu0 %v5859
        %6798 = vmatpush1.msra.mxu0 %v5884
        %6799 = vmatprep.subr.mxu0 %v5675
        %6800 = vmatpush1.msra.mxu0 %v5674
        %6801 = vmatprep.subr.mxu0 %v5913
        %6802 = vmatpush1.msra.mxu0 %v5914
        %6803 = vmatprep.subr.mxu0 %v5918
        %6804 = vmatpush1.msra.mxu0 %v5919
        %6805 = vmatprep.subr.mxu0 %v5676
        %6806 = vmatpush1.msra.mxu0 %v5675
        %6807 = vmatprep.subr.mxu0 %v5924
        %6808 = vmatpush1.msra.mxu0 %v5925
        %6809 = vmatprep.subr.mxu0 %v5929
        %6810 = vmatpush1.msra.mxu0 %v5930
        %6811 = vmatprep.subr.mxu0 0.0
        %6812 = vmatpush1.msra.mxu0 0.0
        %6813 = vmatprep.subr.mxu0 0.0
        %6814 = vmatpush1.msra.mxu0 0.0
        %6815 = vmatprep.subr.mxu0 0.0
        %6816 = vmatpush1.msra.mxu0 0.0
        %6817 = vmatprep.subr.mxu0 0.0
        %6818 = vmatpush1.msra.mxu0 0.0
        %6819 = vmatprep.subr.mxu0 0.0
        %6820 = vmatpush1.msra.mxu0 0.0
        %6821 = vmatprep.subr.mxu0 0.0
        %6822 = vmatpush1.msra.mxu0 0.0
        %6823 = vmatprep.subr.mxu0 0.0
        %6824 = vmatpush1.msra.mxu0 0.0
        %6825 = vmatprep.subr.mxu0 0.0
        %6826 = vmatpush1.msra.mxu0 0.0
        %6827 = vmatprep.subr.mxu0 0.0
        %6828 = vmatpush1.msra.mxu0 0.0
        %6829 = vmatprep.subr.mxu0 0.0
        %6830 = vmatpush1.msra.mxu0 0.0
        %6831 = vmatprep.subr.mxu0 0.0
        %6832 = vmatpush1.msra.mxu0 0.0
        %6833 = vmatprep.subr.mxu0 0.0
        %6834 = vmatpush1.msra.mxu0 0.0
        %6835 = vmatprep.subr.mxu0 0.0
        %6836 = vmatpush1.msra.mxu0 0.0
        %6837 = vmatprep.subr.mxu0 0.0
        %6838 = vmatpush1.msra.mxu0 0.0
        %6839 = vmatprep.subr.mxu0 0.0
        %6840 = vmatpush1.msra.mxu0 0.0
        %6841 = vmatprep.subr.mxu0 0.0
        %6842 = vmatpush1.msra.mxu0 0.0
        %6843 = vmatprep.subr.mxu0 0.0
        %6844 = vmatpush1.msra.mxu0 0.0
        %6845 = vmatprep.subr.mxu0 0.0
        %6846 = vmatpush1.msra.mxu0 0.0
        %6847 = vmatprep.subr.mxu0 0.0
        %6848 = vmatpush1.msra.mxu0 0.0
        %6849 = vmatprep.subr.mxu0 0.0
        %6850 = vmatpush1.msra.mxu0 0.0
        %6851 = vmatprep.subr.mxu0 0.0
        %6852 = vmatpush1.msra.mxu0 0.0
        %6853 = vmatprep.subr.mxu0 0.0
        %6854 = vmatpush1.msra.mxu0 0.0
        %6855 = vmatprep.subr.mxu0 0.0
        %6856 = vmatpush1.msra.mxu0 0.0
        %6857 = vmatprep.mubr.f32.mxu0 0.0
        %6858 = vmatmul.mubr.f32.gmra.mrb[0].mxu0 %v5939
        %v6859 = vpop.f32.mrb[0].mxu0
        %v6860 = vadd.f32 %v5936, %v6859
        %v6861 = vpop.f32.mrb[0].mxu0
        %v6862 = vadd.f32 %v5936, %v6861
        %6863 = vdwg.mxu0
        %v6864 = vmax.f32 %v6008, 0.0
        %v6865 = vmax.f32 %v6010, 0.0
        %v6866 = vmax.f32 %v6079, 0.0
        %v6867 = vmax.f32 %v6081, 0.0
        %v6868 = vmax.f32 %v6150, 0.0
        %v6869 = vmax.f32 %v6152, 0.0
        %v6870 = vmax.f32 %v6221, 0.0
        %v6871 = vmax.f32 %v6223, 0.0
        %v6872 = vmax.f32 %v6292, 0.0
        %v6873 = vmax.f32 %v6294, 0.0
        %v6874 = vmax.f32 %v6363, 0.0
        %v6875 = vmax.f32 %v6365, 0.0
        %v6876 = vmax.f32 %v6434, 0.0
        %v6877 = vmax.f32 %v6436, 0.0
        %v6878 = vmax.f32 %v6505, 0.0
        %v6879 = vmax.f32 %v6507, 0.0
        %v6880 = vmax.f32 %v6576, 0.0
        %v6881 = vmax.f32 %v6578, 0.0
        %v6882 = vmax.f32 %v6647, 0.0
        %v6883 = vmax.f32 %v6649, 0.0
        %v6884 = vmax.f32 %v6718, 0.0
        %v6885 = vmax.f32 %v6720, 0.0
        %v6886 = vmax.f32 %v6789, 0.0
        %v6887 = vmax.f32 %v6791, 0.0
        %v6888 = vmax.f32 %v6860, 0.0
        %v6889 = vmax.f32 %v6862, 0.0
        %6915 = vrot.lane.b32.xlu0 %v6864, 126
        %v6916 = vpop.permute.xlu0 %6915
        %6917 = vrot.lane.b32.xlu0 %v6865, 126
        %v6918 = vpop.permute.xlu0 %6917
        %6919 = vrot.lane.b32.xlu0 %v6866, 126
        %v6920 = vpop.permute.xlu0 %6919
        %6921 = vrot.lane.b32.xlu0 %v6867, 126
        %v6922 = vpop.permute.xlu0 %6921
        %6923 = vrot.lane.b32.xlu0 %v6868, 126
        %v6924 = vpop.permute.xlu0 %6923
        %6925 = vrot.lane.b32.xlu0 %v6869, 126
        %v6926 = vpop.permute.xlu0 %6925
        %6927 = vrot.lane.b32.xlu0 %v6870, 126
        %v6928 = vpop.permute.xlu0 %6927
        %6929 = vrot.lane.b32.xlu0 %v6871, 126
        %v6930 = vpop.permute.xlu0 %6929
        %6931 = vrot.lane.b32.xlu0 %v6872, 126
        %v6932 = vpop.permute.xlu0 %6931
        %6933 = vrot.lane.b32.xlu0 %v6873, 126
        %v6934 = vpop.permute.xlu0 %6933
        %6935 = vrot.lane.b32.xlu0 %v6874, 126
        %v6936 = vpop.permute.xlu0 %6935
        %6937 = vrot.lane.b32.xlu0 %v6875, 126
        %v6938 = vpop.permute.xlu0 %6937
        %6939 = vrot.lane.b32.xlu0 %v6876, 126
        %v6940 = vpop.permute.xlu0 %6939
        %6941 = vrot.lane.b32.xlu0 %v6877, 126
        %v6942 = vpop.permute.xlu0 %6941
        %6943 = vrot.lane.b32.xlu0 %v6878, 126
        %v6944 = vpop.permute.xlu0 %6943
        %6945 = vrot.lane.b32.xlu0 %v6879, 126
        %v6946 = vpop.permute.xlu0 %6945
        %6947 = vrot.lane.b32.xlu0 %v6880, 126
        %v6948 = vpop.permute.xlu0 %6947
        %6949 = vrot.lane.b32.xlu0 %v6881, 126
        %v6950 = vpop.permute.xlu0 %6949
        %6951 = vrot.lane.b32.xlu0 %v6882, 126
        %v6952 = vpop.permute.xlu0 %6951
        %6953 = vrot.lane.b32.xlu0 %v6883, 126
        %v6954 = vpop.permute.xlu0 %6953
        %6955 = vrot.lane.b32.xlu0 %v6884, 126
        %v6956 = vpop.permute.xlu0 %6955
        %6957 = vrot.lane.b32.xlu0 %v6885, 126
        %v6958 = vpop.permute.xlu0 %6957
        %6959 = vrot.lane.b32.xlu0 %v6886, 126
        %v6960 = vpop.permute.xlu0 %6959
        %6961 = vrot.lane.b32.xlu0 %v6887, 126
        %v6962 = vpop.permute.xlu0 %6961
        %6963 = vrot.lane.b32.xlu0 %v6888, 126
        %v6964 = vpop.permute.xlu0 %6963
        %v6965 = vsel %vm635, %v6916, %v6918
        %v6966 = vsel %vm635, %v6918, %v6920
        %v6967 = vsel %vm635, %v6920, %v6922
        %v6968 = vsel %vm635, %v6922, %v6924
        %v6969 = vsel %vm635, %v6924, %v6926
        %v6970 = vsel %vm635, %v6926, %v6928
        %v6971 = vsel %vm635, %v6928, %v6930
        %v6972 = vsel %vm635, %v6930, %v6932
        %v6973 = vsel %vm635, %v6932, %v6934
        %v6974 = vsel %vm635, %v6934, %v6936
        %v6975 = vsel %vm635, %v6936, %v6938
        %v6976 = vsel %vm635, %v6938, %v6940
        %v6977 = vsel %vm635, %v6940, %v6942
        %v6978 = vsel %vm635, %v6942, %v6944
        %v6979 = vsel %vm635, %v6944, %v6946
        %v6980 = vsel %vm635, %v6946, %v6948
        %v6981 = vsel %vm635, %v6948, %v6950
        %v6982 = vsel %vm635, %v6950, %v6952
        %v6983 = vsel %vm635, %v6952, %v6954
        %v6984 = vsel %vm635, %v6954, %v6956
        %v6985 = vsel %vm635, %v6956, %v6958
        %v6986 = vsel %vm635, %v6958, %v6960
        %v6987 = vsel %vm635, %v6960, %v6962
        %v6988 = vsel %vm635, %v6962, %v6964
        %v7014 = vmax.f32 %v6864, %v6965
        %v7015 = vmax.f32 %v6865, %v6966
        %v7016 = vmax.f32 %v6866, %v6967
        %v7017 = vmax.f32 %v6867, %v6968
        %v7018 = vmax.f32 %v6868, %v6969
        %v7019 = vmax.f32 %v6869, %v6970
        %v7020 = vmax.f32 %v6870, %v6971
        %v7021 = vmax.f32 %v6871, %v6972
        %v7022 = vmax.f32 %v6872, %v6973
        %v7023 = vmax.f32 %v6873, %v6974
        %v7024 = vmax.f32 %v6874, %v6975
        %v7025 = vmax.f32 %v6875, %v6976
        %v7026 = vmax.f32 %v6876, %v6977
        %v7027 = vmax.f32 %v6877, %v6978
        %v7028 = vmax.f32 %v6878, %v6979
        %v7029 = vmax.f32 %v6879, %v6980
        %v7030 = vmax.f32 %v6880, %v6981
        %v7031 = vmax.f32 %v6881, %v6982
        %v7032 = vmax.f32 %v6882, %v6983
        %v7033 = vmax.f32 %v6883, %v6984
        %v7034 = vmax.f32 %v6884, %v6985
        %v7035 = vmax.f32 %v6885, %v6986
        %v7036 = vmax.f32 %v6886, %v6987
        %v7037 = vmax.f32 %v6887, %v6988
        %v7038 = vmax.f32 %v6888, %v6964
        %7040 = vrot.lane.b32.xlu0 %v6889, 126
        %v7041 = vpop.permute.xlu0 %7040
        %v7042 = vsel %vm635, %v6964, %v7041
        %v7045 = vmax.f32 %v6888, %v7042
        %v7046 = vmax.f32 %v6889, %v7041
        %v7047 = vmax.f32 %v7014, %v7015
        %v7048 = vmax.f32 %v7015, %v7016
        %v7049 = vmax.f32 %v7016, %v7017
        %v7050 = vmax.f32 %v7017, %v7018
        %v7051 = vmax.f32 %v7018, %v7019
        %v7052 = vmax.f32 %v7019, %v7020
        %v7053 = vmax.f32 %v7020, %v7021
        %v7054 = vmax.f32 %v7021, %v7022
        %v7055 = vmax.f32 %v7022, %v7023
        %v7056 = vmax.f32 %v7023, %v7024
        %v7057 = vmax.f32 %v7024, %v7025
        %v7058 = vmax.f32 %v7025, %v7026
        %v7059 = vmax.f32 %v7026, %v7027
        %v7060 = vmax.f32 %v7027, %v7028
        %v7061 = vmax.f32 %v7028, %v7029
        %v7062 = vmax.f32 %v7029, %v7030
        %v7063 = vmax.f32 %v7030, %v7031
        %v7064 = vmax.f32 %v7031, %v7032
        %v7065 = vmax.f32 %v7032, %v7033
        %v7066 = vmax.f32 %v7033, %v7034
        %v7067 = vmax.f32 %v7034, %v7035
        %v7068 = vmax.f32 %v7035, %v7036
        %v7069 = vmax.f32 %v7036, %v7037
        %v7070 = vmax.f32 %v7037, %v7045
        %v7071 = vmax.f32 %v7038, %v7046
        %v7072 = vld [vmem:[%s9] sm:$0xff]
        %v7073 = vld [vmem:[%s9 + $0x8] sm:$0xff]
        %v7074 = vld [vmem:[%s9 + $0x10] sm:$0xff]
        %v7075 = vld [vmem:[%s9 + $0x18] sm:$0xff]
        %v7076 = vld [vmem:[%s9 + $0x20] sm:$0xff]
        %v7077 = vld [vmem:[%s9 + $0x28] sm:$0xff]
        %v7078 = vld [vmem:[%s9 + $0x30] sm:$0xff]
        %v7079 = vld [vmem:[%s9 + $0x38] sm:$0xff]
        %v7080 = vld [vmem:[%s9 + $0x40] sm:$0xff]
        %v7081 = vld [vmem:[%s9 + $0x48] sm:$0xff]
        %v7082 = vld [vmem:[%s9 + $0x50] sm:$0xff]
        %v7083 = vld [vmem:[%s9 + $0x58] sm:$0xff]
        %v7084 = vld [vmem:[%s9 + $0x60] sm:$0xff]
        %v7085 = vld [vmem:[%s9 + $0x68] sm:$0xff]
        %v7086 = vld [vmem:[%s9 + $0x70] sm:$0xff]
        %v7087 = vld [vmem:[%s9 + $0x78] sm:$0xff]
        %v7088 = vld [vmem:[%s9 + $0x80] sm:$0xff]
        %v7089 = vld [vmem:[%s9 + $0x88] sm:$0xff]
        %v7090 = vld [vmem:[%s9 + $0x90] sm:$0xff]
        %v7091 = vld [vmem:[%s9 + $0x98] sm:$0xff]
        %v7092 = vld [vmem:[%s9 + $0xa0] sm:$0xff]
        %v7093 = vld [vmem:[%s9 + $0xa8] sm:$0xff]
        %v7094 = vld [vmem:[%s9 + $0xb0] sm:$0xff]
        %v7095 = vld [vmem:[%s9 + $0xb8] sm:$0xff]
        %v7096 = vld [vmem:[%s9 + $0xc0] sm:$0xff]
        %v7097 = vmul.f32 %v7047, %v7072
        %v7098 = vmul.f32 %v7048, %v7073
        %v7099 = vmul.f32 %v7049, %v7074
        %v7100 = vmul.f32 %v7050, %v7075
        %v7101 = vmul.f32 %v7051, %v7076
        %v7102 = vmul.f32 %v7052, %v7077
        %v7103 = vmul.f32 %v7053, %v7078
        %v7104 = vmul.f32 %v7054, %v7079
        %v7105 = vmul.f32 %v7055, %v7080
        %v7106 = vmul.f32 %v7056, %v7081
        %v7107 = vmul.f32 %v7057, %v7082
        %v7108 = vmul.f32 %v7058, %v7083
        %v7109 = vmul.f32 %v7059, %v7084
        %v7110 = vmul.f32 %v7060, %v7085
        %v7111 = vmul.f32 %v7061, %v7086
        %v7112 = vmul.f32 %v7062, %v7087
        %v7113 = vmul.f32 %v7063, %v7088
        %v7114 = vmul.f32 %v7064, %v7089
        %v7115 = vmul.f32 %v7065, %v7090
        %v7116 = vmul.f32 %v7066, %v7091
        %v7117 = vmul.f32 %v7067, %v7092
        %v7118 = vmul.f32 %v7068, %v7093
        %v7119 = vmul.f32 %v7069, %v7094
        %v7120 = vmul.f32 %v7070, %v7095
        %v7121 = vmul.f32 %v7071, %v7096
        %v7122 = vadd.f32 %v7097, %v7098
        %v7123 = vadd.f32 %v7122, %v7099
        %v7124 = vadd.f32 %v7123, %v7100
        %v7125 = vadd.f32 %v7124, %v7101
        %v7126 = vadd.f32 %v7125, %v7102
        %v7127 = vadd.f32 %v7126, %v7103
        %v7128 = vadd.f32 %v7127, %v7104
        %v7129 = vadd.f32 %v7128, %v7105
        %v7130 = vadd.f32 %v7129, %v7106
        %v7131 = vadd.f32 %v7130, %v7107
        %v7132 = vadd.f32 %v7131, %v7108
        %v7133 = vadd.f32 %v7132, %v7109
        %v7134 = vadd.f32 %v7133, %v7110
        %v7135 = vadd.f32 %v7134, %v7111
        %v7136 = vadd.f32 %v7135, %v7112
        %v7137 = vadd.f32 %v7136, %v7113
        %v7138 = vadd.f32 %v7137, %v7114
        %v7139 = vadd.f32 %v7138, %v7115
        %v7140 = vadd.f32 %v7139, %v7116
        %v7141 = vadd.f32 %v7140, %v7117
        %v7142 = vadd.f32 %v7141, %v7118
        %v7143 = vadd.f32 %v7142, %v7119
        %v7144 = vadd.f32 %v7143, %v7120
        %vm7145 = vcmask 400384
        %v7146 = vsel %vm7145, %v7121, 0.0
        %v7147 = vadd.f32 %v7144, %v7146
        %7148 = vadd.xlane.f32.xlu0 %v7147
        %v7149 = vpop.xlane.xlu0 %7148
        %v7150 = vrot.slane %v7149, 4
        %v7151 = vadd.f32 %v7149, %v7150
        %v7152 = vrot.slane %v7151, 2
        %v7153 = vadd.f32 %v7151, %v7152
        %v7154 = vrot.slane %v7153, 1
        %v7155 = vadd.f32 %v7153, %v7154
        %s7156 = scalar_lea.vmem %s9, 200
        %v7157 = vld [vmem:[%s7156] sm:$0xff]
        %v7158 = vld [vmem:[%s7156 + $0x8] sm:$0xff]
        %v7159 = vld [vmem:[%s7156 + $0x10] sm:$0xff]
        %v7160 = vld [vmem:[%s7156 + $0x18] sm:$0xff]
        %v7161 = vld [vmem:[%s7156 + $0x20] sm:$0xff]
        %v7162 = vld [vmem:[%s7156 + $0x28] sm:$0xff]
        %v7163 = vld [vmem:[%s7156 + $0x30] sm:$0xff]
        %v7164 = vld [vmem:[%s7156 + $0x38] sm:$0xff]
        %v7165 = vld [vmem:[%s7156 + $0x40] sm:$0xff]
        %v7166 = vld [vmem:[%s7156 + $0x48] sm:$0xff]
        %v7167 = vld [vmem:[%s7156 + $0x50] sm:$0xff]
        %v7168 = vld [vmem:[%s7156 + $0x58] sm:$0xff]
        %v7169 = vld [vmem:[%s7156 + $0x60] sm:$0xff]
        %v7170 = vld [vmem:[%s7156 + $0x68] sm:$0xff]
        %v7171 = vld [vmem:[%s7156 + $0x70] sm:$0xff]
        %v7172 = vld [vmem:[%s7156 + $0x78] sm:$0xff]
        %v7173 = vld [vmem:[%s7156 + $0x80] sm:$0xff]
        %v7174 = vld [vmem:[%s7156 + $0x88] sm:$0xff]
        %v7175 = vld [vmem:[%s7156 + $0x90] sm:$0xff]
        %v7176 = vld [vmem:[%s7156 + $0x98] sm:$0xff]
        %v7177 = vld [vmem:[%s7156 + $0xa0] sm:$0xff]
        %v7178 = vld [vmem:[%s7156 + $0xa8] sm:$0xff]
        %v7179 = vld [vmem:[%s7156 + $0xb0] sm:$0xff]
        %v7180 = vld [vmem:[%s7156 + $0xb8] sm:$0xff]
        %v7181 = vld [vmem:[%s7156 + $0xc0] sm:$0xff]
        %v7182 = vmul.f32 %v7047, %v7157
        %v7183 = vmul.f32 %v7048, %v7158
        %v7184 = vmul.f32 %v7049, %v7159
        %v7185 = vmul.f32 %v7050, %v7160
        %v7186 = vmul.f32 %v7051, %v7161
        %v7187 = vmul.f32 %v7052, %v7162
        %v7188 = vmul.f32 %v7053, %v7163
        %v7189 = vmul.f32 %v7054, %v7164
        %v7190 = vmul.f32 %v7055, %v7165
        %v7191 = vmul.f32 %v7056, %v7166
        %v7192 = vmul.f32 %v7057, %v7167
        %v7193 = vmul.f32 %v7058, %v7168
        %v7194 = vmul.f32 %v7059, %v7169
        %v7195 = vmul.f32 %v7060, %v7170
        %v7196 = vmul.f32 %v7061, %v7171
        %v7197 = vmul.f32 %v7062, %v7172
        %v7198 = vmul.f32 %v7063, %v7173
        %v7199 = vmul.f32 %v7064, %v7174
        %v7200 = vmul.f32 %v7065, %v7175
        %v7201 = vmul.f32 %v7066, %v7176
        %v7202 = vmul.f32 %v7067, %v7177
        %v7203 = vmul.f32 %v7068, %v7178
        %v7204 = vmul.f32 %v7069, %v7179
        %v7205 = vmul.f32 %v7070, %v7180
        %v7206 = vmul.f32 %v7071, %v7181
        %v7207 = vadd.f32 %v7182, %v7183
        %v7208 = vadd.f32 %v7207, %v7184
        %v7209 = vadd.f32 %v7208, %v7185
        %v7210 = vadd.f32 %v7209, %v7186
        %v7211 = vadd.f32 %v7210, %v7187
        %v7212 = vadd.f32 %v7211, %v7188
        %v7213 = vadd.f32 %v7212, %v7189
        %v7214 = vadd.f32 %v7213, %v7190
        %v7215 = vadd.f32 %v7214, %v7191
        %v7216 = vadd.f32 %v7215, %v7192
        %v7217 = vadd.f32 %v7216, %v7193
        %v7218 = vadd.f32 %v7217, %v7194
        %v7219 = vadd.f32 %v7218, %v7195
        %v7220 = vadd.f32 %v7219, %v7196
        %v7221 = vadd.f32 %v7220, %v7197
        %v7222 = vadd.f32 %v7221, %v7198
        %v7223 = vadd.f32 %v7222, %v7199
        %v7224 = vadd.f32 %v7223, %v7200
        %v7225 = vadd.f32 %v7224, %v7201
        %v7226 = vadd.f32 %v7225, %v7202
        %v7227 = vadd.f32 %v7226, %v7203
        %v7228 = vadd.f32 %v7227, %v7204
        %v7229 = vadd.f32 %v7228, %v7205
        %v7230 = vsel %vm7145, %v7206, 0.0
        %v7231 = vadd.f32 %v7229, %v7230
        %7232 = vadd.xlane.f32.xlu0 %v7231
        %v7233 = vpop.xlane.xlu0 %7232
        %v7234 = vrot.slane %v7233, 4
        %v7235 = vadd.f32 %v7233, %v7234
        %v7236 = vrot.slane %v7235, 2
        %v7237 = vadd.f32 %v7235, %v7236
        %v7238 = vrot.slane %v7237, 1
        %v7239 = vadd.f32 %v7237, %v7238
        %s7240 = scalar_lea.vmem %s9, 400
        %v7241 = vld [vmem:[%s7240] sm:$0xff]
        %v7242 = vld [vmem:[%s7240 + $0x8] sm:$0xff]
        %v7243 = vld [vmem:[%s7240 + $0x10] sm:$0xff]
        %v7244 = vld [vmem:[%s7240 + $0x18] sm:$0xff]
        %v7245 = vld [vmem:[%s7240 + $0x20] sm:$0xff]
        %v7246 = vld [vmem:[%s7240 + $0x28] sm:$0xff]
        %v7247 = vld [vmem:[%s7240 + $0x30] sm:$0xff]
        %v7248 = vld [vmem:[%s7240 + $0x38] sm:$0xff]
        %v7249 = vld [vmem:[%s7240 + $0x40] sm:$0xff]
        %v7250 = vld [vmem:[%s7240 + $0x48] sm:$0xff]
        %v7251 = vld [vmem:[%s7240 + $0x50] sm:$0xff]
        %v7252 = vld [vmem:[%s7240 + $0x58] sm:$0xff]
        %v7253 = vld [vmem:[%s7240 + $0x60] sm:$0xff]
        %v7254 = vld [vmem:[%s7240 + $0x68] sm:$0xff]
        %v7255 = vld [vmem:[%s7240 + $0x70] sm:$0xff]
        %v7256 = vld [vmem:[%s7240 + $0x78] sm:$0xff]
        %v7257 = vld [vmem:[%s7240 + $0x80] sm:$0xff]
        %v7258 = vld [vmem:[%s7240 + $0x88] sm:$0xff]
        %v7259 = vld [vmem:[%s7240 + $0x90] sm:$0xff]
        %v7260 = vld [vmem:[%s7240 + $0x98] sm:$0xff]
        %v7261 = vld [vmem:[%s7240 + $0xa0] sm:$0xff]
        %v7262 = vld [vmem:[%s7240 + $0xa8] sm:$0xff]
        %v7263 = vld [vmem:[%s7240 + $0xb0] sm:$0xff]
        %v7264 = vld [vmem:[%s7240 + $0xb8] sm:$0xff]
        %v7265 = vld [vmem:[%s7240 + $0xc0] sm:$0xff]
        %v7266 = vmul.f32 %v7047, %v7241
        %v7267 = vmul.f32 %v7048, %v7242
        %v7268 = vmul.f32 %v7049, %v7243
        %v7269 = vmul.f32 %v7050, %v7244
        %v7270 = vmul.f32 %v7051, %v7245
        %v7271 = vmul.f32 %v7052, %v7246
        %v7272 = vmul.f32 %v7053, %v7247
        %v7273 = vmul.f32 %v7054, %v7248
        %v7274 = vmul.f32 %v7055, %v7249
        %v7275 = vmul.f32 %v7056, %v7250
        %v7276 = vmul.f32 %v7057, %v7251
        %v7277 = vmul.f32 %v7058, %v7252
        %v7278 = vmul.f32 %v7059, %v7253
        %v7279 = vmul.f32 %v7060, %v7254
        %v7280 = vmul.f32 %v7061, %v7255
        %v7281 = vmul.f32 %v7062, %v7256
        %v7282 = vmul.f32 %v7063, %v7257
        %v7283 = vmul.f32 %v7064, %v7258
        %v7284 = vmul.f32 %v7065, %v7259
        %v7285 = vmul.f32 %v7066, %v7260
        %v7286 = vmul.f32 %v7067, %v7261
        %v7287 = vmul.f32 %v7068, %v7262
        %v7288 = vmul.f32 %v7069, %v7263
        %v7289 = vmul.f32 %v7070, %v7264
        %v7290 = vmul.f32 %v7071, %v7265
        %v7291 = vadd.f32 %v7266, %v7267
        %v7292 = vadd.f32 %v7291, %v7268
        %v7293 = vadd.f32 %v7292, %v7269
        %v7294 = vadd.f32 %v7293, %v7270
        %v7295 = vadd.f32 %v7294, %v7271
        %v7296 = vadd.f32 %v7295, %v7272
        %v7297 = vadd.f32 %v7296, %v7273
        %v7298 = vadd.f32 %v7297, %v7274
        %v7299 = vadd.f32 %v7298, %v7275
        %v7300 = vadd.f32 %v7299, %v7276
        %v7301 = vadd.f32 %v7300, %v7277
        %v7302 = vadd.f32 %v7301, %v7278
        %v7303 = vadd.f32 %v7302, %v7279
        %v7304 = vadd.f32 %v7303, %v7280
        %v7305 = vadd.f32 %v7304, %v7281
        %v7306 = vadd.f32 %v7305, %v7282
        %v7307 = vadd.f32 %v7306, %v7283
        %v7308 = vadd.f32 %v7307, %v7284
        %v7309 = vadd.f32 %v7308, %v7285
        %v7310 = vadd.f32 %v7309, %v7286
        %v7311 = vadd.f32 %v7310, %v7287
        %v7312 = vadd.f32 %v7311, %v7288
        %v7313 = vadd.f32 %v7312, %v7289
        %v7314 = vsel %vm7145, %v7290, 0.0
        %v7315 = vadd.f32 %v7313, %v7314
        %7316 = vadd.xlane.f32.xlu0 %v7315
        %v7317 = vpop.xlane.xlu0 %7316
        %v7318 = vrot.slane %v7317, 4
        %v7319 = vadd.f32 %v7317, %v7318
        %v7320 = vrot.slane %v7319, 2
        %v7321 = vadd.f32 %v7319, %v7320
        %v7322 = vrot.slane %v7321, 1
        %v7323 = vadd.f32 %v7321, %v7322
        %vm7324 = vcmask 7168
        %v7325 = vsel %vm7324, %v7155, %v7239
        %vm7326 = vcmask 15360
        %v7327 = vsel %vm7326, %v7325, %v7323
        %v7328 = vld [vmem:[%s10] sm:$0x1]
        %v7329 = vadd.f32 %v7327, %v7328
        %vm7330 = vcmask 16384
        %7331 = vst.msk [vmem:[%s378] sm:$0x1] %vm7330, %v7329
        %s7332 = sand.u32 %s269, 1
        %s7333 = scalar_lea.sflag [#allocation3], %s7332
        %s7334 = sand.u32 %s269, 1
        %s7335 = scalar_lea.vmem [#allocation2], %s7334
        // Predicated region
        $region65: #{tinyvgg_forward.1} parent=63 // pred_check
          %p7336 = pneg %p279
        $region66: #{tinyvgg_forward.1} parent=63 // pred_check_branch
          %7338 = sbr.rel (%p7336) target = $region68
        $region67: #{tinyvgg_forward.1} parent=63 // pred_region
          %s7340 = ssub.s32 16, 16
          %7341 = vsyncadd %s7333, %s7340
          %s7342 = smul.addr %s25, 16
          %s7343 = scalar_lea.hbm %s11, %s7342
          %s7345 = sshll.u32 %s7335, 4
          %s7346 = int_to_ptr.vmem [resolvable:$true] %s7345
          %7348 = dma.vmem_to_hbm [thread:$0]  %s7346, 16, %s7343, %s7333
        $region68: #{tinyvgg_forward.1} parent=63 // pred_fallthru
          _
      $region64: #{tinyvgg_forward.1} parent=5 // pred_fallthru
        _
      %p7349 = scmp.le.s32.totalorder 2, %s20
      // Predicated region
      $region69: #{tinyvgg_forward.1} parent=5 // pred_check
        %p7350 = pneg %p7349
      $region70: #{tinyvgg_forward.1} parent=5 // pred_check_branch
        %7352 = sbr.rel (%p7350) target = $region72
      $region71: #{tinyvgg_forward.1} parent=5 // pred_region
        %s7353 = ssub.s32 %s20, 2
        // Predicated region
        $region73: #{tinyvgg_forward.1} parent=71 // pred_check
          %p7354 = pneg %p285
        $region74: #{tinyvgg_forward.1} parent=71 // pred_check_branch
          %7356 = sbr.rel (%p7354) target = $region76
        $region75: #{tinyvgg_forward.1} parent=71 // pred_region
          %s7357 = sand.u32 %s270, 1
          %s7358 = scalar_lea.sflag [#allocation3], %s7357
          %s7359 = sand.u32 %s270, 1
          %s7360 = scalar_lea.vmem [#allocation2], %s7359
          %7361 = dma.done %s7358, 16
        $region76: #{tinyvgg_forward.1} parent=71 // pred_fallthru
          _
      $region72: #{tinyvgg_forward.1} parent=5 // pred_fallthru
        _
    $region6: #{tinyvgg_forward.1} parent=1 // loop_footer
      %s24 = sadd.s32 1, %s20
    $region7: #{tinyvgg_forward.1} parent=1 // loop_footer_branch
      %19 = sbr.rel target = $region3
    $region8: #{tinyvgg_forward.1} parent=1 // loop_exit
      _
    %7362 = vsyncpa [#allocation3], 1
    %s7363 = scalar_lea.sflag [#allocation3], 1
    %7364 = vsyncpa %s7363, 1

</llo_original>
